<compile_context>
chip_gen: v7x
topology: tpu7x:2x2x1
jax: 0.10.0
libtpu: 0.0.40
codegen_flags: <defaults>
</compile_context>

<pallas_src>
import jax
import jax.numpy as jnp
from jax.experimental import pallas as pl
from jax.experimental.pallas import tpu as pltpu

_OFF = 8  # sublane-aligned column offset of the image interior in the halo buffer


# ----------------------------------------------------------------------------
# Fused ResBlock kernel
# ----------------------------------------------------------------------------
def _make_resblock_kernel(H, W, Cin, Cout, has_downsample, matmul_dtype):
    """Builds the fused ResBlock kernel body for static shapes."""
    Cmax = max(Cin, Cout)
    HW = H * W
    WP = _OFF + W + 1            # [unused | halo col 7 | interior W cols | halo col 8+W]

    def conv3x3(pad_ref, C, w_ref, b_ref):
        # 9 accumulating MXU matmuls (K = C each), read straight from the
        # zero-halo buffer; f32 accumulation; bias added once at the end.
        acc = None
        for dy in range(3):
            for dx in range(3):
                tap = pad_ref[pl.ds(dy, H), pl.ds(_OFF - 1 + dx, W), pl.ds(0, C)]
                tap = tap.reshape(HW, C)          # layout-free when W % 8 == 0
                w_t = w_ref[pl.ds((dy * 3 + dx) * C, C), pl.ds(0, Cout)]   # (C, Cout)
                part = jnp.dot(tap, w_t, preferred_element_type=jnp.float32)
                acc = part if acc is None else acc + part
        return acc + b_ref[...]                   # (HW, Cout) f32

    def kernel(x_ref, w1_ref, b1_ref, w2_ref, b2_ref, *rest):
        if has_downsample:
            wd_ref, bd_ref, o_ref, pad_ref = rest
        else:
            o_ref, pad_ref = rest

        x = x_ref[0]                              # (H, W, Cin), f32

        # Zero ONLY the 1-pixel halo border; the interior is fully overwritten
        # below.  Re-zeroed every grid step (NOT program_id-gated) so the
        # "parallel" batch axis is safe on multi-TensorCore parts.
        zrow = jnp.zeros((1, WP, Cmax), matmul_dtype)
        pad_ref[pl.ds(0, 1), pl.ds(0, WP), pl.ds(0, Cmax)] = zrow
        pad_ref[pl.ds(H + 1, 1), pl.ds(0, WP), pl.ds(0, Cmax)] = zrow
        zcol = jnp.zeros((H, 1, Cmax), matmul_dtype)
        pad_ref[pl.ds(1, H), pl.ds(_OFF - 1, 1), pl.ds(0, Cmax)] = zcol
        pad_ref[pl.ds(1, H), pl.ds(_OFF + W, 1), pl.ds(0, Cmax)] = zcol

        if has_downsample:
            # skip = downsample(x)  (3x3 conv on the *non*-relu'd input)
            pad_ref[pl.ds(1, H), pl.ds(_OFF, W), pl.ds(0, Cin)] = x.astype(matmul_dtype)
            skip = conv3x3(pad_ref, Cin, wd_ref, bd_ref)          # (HW, Cout) f32
        else:
            skip = x.reshape(HW, Cout).astype(jnp.float32)        # Cin == Cout here

        # r = conv1(relu(x))
        pad_ref[pl.ds(1, H), pl.ds(_OFF, W), pl.ds(0, Cin)] = (
            jnp.maximum(x, 0.0).astype(matmul_dtype))
        r = conv3x3(pad_ref, Cin, w1_ref, b1_ref)

        # r = conv2(relu(r))  (reuse the halo buffer for the intermediate)
        pad_ref[pl.ds(1, H), pl.ds(_OFF, W), pl.ds(0, Cout)] = (
            jnp.maximum(r, 0.0).reshape(H, W, Cout).astype(matmul_dtype))
        r = conv3x3(pad_ref, Cout, w2_ref, b2_ref)

        o_ref[0] = (skip + r).reshape(H, W, Cout).astype(o_ref.dtype)

    return kernel


def resblock_pallas(x_nhwc, *, w1, b1, w2, b2, wd=None, bd=None,
                    matmul_dtype=jnp.bfloat16):
    """Fused ResBlock forward on an NHWC activation; returns NHWC."""
    B, H, W, Cin = x_nhwc.shape
    Cout = b1.shape[-1]
    Cmax = max(Cin, Cout)
    has_downsample = wd is not None
    mdt = jnp.dtype(matmul_dtype)
    WP = _OFF + W + 1

    # Pre-flatten + pre-cast weights ONCE to (9*C, Cout) in the matmul dtype;
    # biases stay f32 (added after the f32 accumulation).
    args = [x_nhwc,
            w1.reshape(9 * Cin, Cout).astype(mdt),
            b1.reshape(1, Cout).astype(jnp.float32),
            w2.reshape(9 * Cout, Cout).astype(mdt),
            b2.reshape(1, Cout).astype(jnp.float32)]

    def const_spec(shape):
        # Constant index_map -> DMA'd into VMEM once, resident across the grid.
        return pl.BlockSpec(shape, lambda b: (0,) * len(shape))

    in_specs = [pl.BlockSpec((1, H, W, Cin), lambda b: (b, 0, 0, 0)),
                const_spec((9 * Cin, Cout)), const_spec((1, Cout)),
                const_spec((9 * Cout, Cout)), const_spec((1, Cout))]
    if has_downsample:
        args += [wd.reshape(9 * Cin, Cout).astype(mdt),
                 bd.reshape(1, Cout).astype(jnp.float32)]
        in_specs += [const_spec((9 * Cin, Cout)), const_spec((1, Cout))]

    # ---- Explicit VMEM budget (v5e's default scoped limit is only 16 MiB) ----
    wbytes = (9 * Cin * Cout + 9 * Cout * Cout
              + (9 * Cin * Cout if has_downsample else 0)) * mdt.itemsize
    bbytes = (3 if has_downsample else 2) * Cout * 4
    vmem_need = (
        2 * H * W * Cin * 4                      # double-buffered input block (f32)
        + 2 * H * W * Cout * 4                   # double-buffered output block (f32)
        + 2 * (wbytes + bbytes)                  # resident weights/biases (dbl-buffered)
        + (H + 2) * WP * Cmax * mdt.itemsize     # halo scratch
        + 4 * H * W * Cout * 4)                  # f32 accumulator / temporaries headroom
    vmem_limit = int(min(max(vmem_need * 3 // 2 + (2 << 20), 8 << 20), 96 << 20))

    # Advisory cost so XLA schedules surrounding ops (layout transposes) well.
    flops = 2 * B * H * W * 9 * (Cin * Cout + Cout * Cout
                                 + (Cin * Cout if has_downsample else 0))
    bytes_accessed = B * H * W * (Cin + Cout) * 4 + wbytes + bbytes
    cost = pl.CostEstimate(flops=flops, transcendentals=0,
                           bytes_accessed=bytes_accessed)

    kernel = _make_resblock_kernel(H, W, Cin, Cout, has_downsample, matmul_dtype)

    return pl.pallas_call(
        kernel,
        out_shape=jax.ShapeDtypeStruct((B, H, W, Cout), x_nhwc.dtype),
        grid=(B,),
        in_specs=in_specs,
        out_specs=pl.BlockSpec((1, H, W, Cout), lambda b: (b, 0, 0, 0)),
        scratch_shapes=[
            pltpu.VMEM((H + 2, WP, Cmax), matmul_dtype),   # zero-halo buffer only
        ],
        compiler_params=pltpu.CompilerParams(
            dimension_semantics=("parallel",),             # 2 TCs on v7x
            vmem_limit_bytes=vmem_limit),
        cost_estimate=cost,
    )(*args)


# ----------------------------------------------------------------------------
# ResBlock module (JAX / Pallas)
# ----------------------------------------------------------------------------
class ResBlockPallas:
    """JAX/Pallas port of the PyTorch ResBlock (3x3 convs, 'same' padding)."""

    def __init__(self, indim, outdim=None, stride=1, key=None,
                 matmul_dtype=jnp.bfloat16):
        if outdim is None:
            outdim = indim
        if stride != 1:
            # TODO(synk): strided 3x3 conv (stride > 1) not supported.
            raise NotImplementedError("stride != 1 not supported")
        self.indim, self.outdim = indim, outdim
        self.has_downsample = not (indim == outdim and stride == 1)
        # bf16 operands (f32 accumulation) by default: ~2x fewer MXU passes on
        # v6e/v7x and half the weight/scratch VMEM.  Pass jnp.float32 for
        # bit-tight parity with an f32 reference.
        self.matmul_dtype = matmul_dtype

        key = jax.random.PRNGKey(42) if key is None else key
        k1, k2, k3, k4, k5, k6 = jax.random.split(key, 6)
        s1 = 1.0 / (indim * 9) ** 0.5
        s2 = 1.0 / (outdim * 9) ** 0.5
        # Master weights stored HWIO (3, 3, Cin, Cout) in f32.
        self.w1 = jax.random.normal(k1, (3, 3, indim, outdim), jnp.float32) * s1
        self.b1 = jax.random.normal(k2, (outdim,), jnp.float32) * s1
        self.w2 = jax.random.normal(k3, (3, 3, outdim, outdim), jnp.float32) * s2
        self.b2 = jax.random.normal(k4, (outdim,), jnp.float32) * s2
        self.wd = None
        self.bd = None
        if self.has_downsample:
            self.wd = jax.random.normal(k5, (3, 3, indim, outdim), jnp.float32) * s1
            self.bd = jax.random.normal(k6, (outdim,), jnp.float32) * s1

    def forward_nhwc(self, x_nhwc):
        """NHWC fast path: no HBM-level layout transposes."""
        return resblock_pallas(x_nhwc, w1=self.w1, b1=self.b1,
                               w2=self.w2, b2=self.b2,
                               wd=self.wd, bd=self.bd,
                               matmul_dtype=self.matmul_dtype)

    def __call__(self, x_nchw):
        # NCHW at the public interface (PyTorch convention).  Call sites that
        # can keep activations channels-last should use forward_nhwc() and
        # skip these two full HBM read+write transposes.
        x = jnp.transpose(x_nchw, (0, 2, 3, 1))                  # -> NHWC
        y = self.forward_nhwc(x)
        return jnp.transpose(y, (0, 3, 1, 2))                    # -> NCHW


# ----------------------------------------------------------------------------
# Pure-JAX reference (mirrors the PyTorch forward) for a correctness check
# ----------------------------------------------------------------------------
def _ref_conv(x_nchw, w_hwio, b):
    y = jax.lax.conv_general_dilated(
        x_nchw, w_hwio, window_strides=(1, 1), padding="SAME",
        dimension_numbers=("NCHW", "HWIO", "NCHW"))
    return y + b[None, :, None, None]


def ref_resblock(block, x_nchw):
    r = _ref_conv(jnp.maximum(x_nchw, 0.0), block.w1, block.b1)
    r = _ref_conv(jnp.maximum(r, 0.0), block.w2, block.b2)
    skip = x_nchw
    if block.has_downsample:
        skip = _ref_conv(x_nchw, block.wd, block.bd)
    return skip + r


if __name__ == "__main__":
    key = jax.random.PRNGKey(0)
    x = jax.random.normal(key, (2, 4, 16, 16), jnp.float32)      # NCHW, indim=4

    # 1) f32 matmul path (exactness check of the fused algorithm).
    block_f32 = ResBlockPallas(indim=4, key=jax.random.PRNGKey(3),
                               matmul_dtype=jnp.float32)
    y0 = jax.block_until_ready(block_f32(x))
    y0_ref = ref_resblock(block_f32, x)
    assert y0.shape == y0_ref.shape, (y0.shape, y0_ref.shape)
    assert jnp.allclose(y0, y0_ref, rtol=1e-4, atol=1e-4), (
        float(jnp.max(jnp.abs(y0 - y0_ref))))

    # 2) Default bf16-operand path, identity skip (indim == outdim, stride 1).
    #    Loose tolerance vs the f32 reference (bf16 operands, f32 accumulation).
    block = ResBlockPallas(indim=4)
    y = jax.block_until_ready(block(x))
    y_ref = ref_resblock(block, x)
    assert y.shape == y_ref.shape, (y.shape, y_ref.shape)
    assert jnp.allclose(y, y_ref, rtol=1e-1, atol=1e-1), (
        float(jnp.max(jnp.abs(y - y_ref))))

    # 3) Default bf16-operand path, downsample conv (indim != outdim, stride 1).
    block_ds = ResBlockPallas(indim=4, outdim=8, key=jax.random.PRNGKey(7))
    y2 = jax.block_until_ready(block_ds(x))
    y2_ref = ref_resblock(block_ds, x)
    assert y2.shape == y2_ref.shape, (y2.shape, y2_ref.shape)
    assert jnp.allclose(y2, y2_ref, rtol=1e-1, atol=1e-1), (
        float(jnp.max(jnp.abs(y2 - y2_ref))))

    print("KERNEL_OK")
</pallas_src>

<mosaic_0001>
module attributes {stable_mosaic.version = 11 : i64} {
  func.func @kernel(%arg0: i32, %arg1: memref<1x16x16x4xf32, #tpu.memory_space<vmem>>, %arg2: memref<36x4xf32, #tpu.memory_space<vmem>>, %arg3: memref<1x4xf32, #tpu.memory_space<vmem>>, %arg4: memref<36x4xf32, #tpu.memory_space<vmem>>, %arg5: memref<1x4xf32, #tpu.memory_space<vmem>>, %arg6: memref<1x16x16x4xf32, #tpu.memory_space<vmem>>, %arg7: memref<18x25x4xf32, #tpu.memory_space<vmem>>) attributes {dimension_semantics = [#tpu.dimension_semantics<parallel>], iteration_bounds = array<i64: 2>, scalar_prefetch = 0 : i64, scratch_operands = 1 : i64, tpu.core_type = #tpu.core_type<tc>, window_params = [{transform_indices = @transform_0, window_bounds = array<i64: 1, 16, 16, 4>}, {pipeline_mode = #tpu.pipeline_mode<synchronous>, transform_indices = @transform_1, window_bounds = array<i64: 36, 4>}, {pipeline_mode = #tpu.pipeline_mode<synchronous>, transform_indices = @transform_2, window_bounds = array<i64: 1, 4>}, {pipeline_mode = #tpu.pipeline_mode<synchronous>, transform_indices = @transform_3, window_bounds = array<i64: 36, 4>}, {pipeline_mode = #tpu.pipeline_mode<synchronous>, transform_indices = @transform_4, window_bounds = array<i64: 1, 4>}, {transform_indices = @transform_5, window_bounds = array<i64: 1, 16, 16, 4>}]} {
    %c0 = arith.constant 0 : index
    %c0_0 = arith.constant 0 : index
    %c0_1 = arith.constant 0 : index
    %c0_2 = arith.constant 0 : index
    %0 = vector.load %arg1[%c0, %c0_0, %c0_1, %c0_2] : memref<1x16x16x4xf32, #tpu.memory_space<vmem>>, vector<1x16x16x4xf32>
    %1 = vector.shape_cast %0 : vector<1x16x16x4xf32> to vector<16x16x4xf32>
    %cst = arith.constant 0.000000e+00 : f32
    %2 = vector.broadcast %cst : f32 to vector<1x25x4xf32>
    %c0_3 = arith.constant 0 : index
    %c0_4 = arith.constant 0 : index
    %c0_5 = arith.constant 0 : index
    %3 = vector.load %arg7[%c0_3, %c0_4, %c0_5] : memref<18x25x4xf32, #tpu.memory_space<vmem>>, vector<1x25x4xf32>
    tpu.vector_store %arg7[%c0_3, %c0_4, %c0_5], %2 {strides = array<i32>} : memref<18x25x4xf32, #tpu.memory_space<vmem>>, vector<1x25x4xf32>,
    %c17 = arith.constant 17 : index
    %c0_6 = arith.constant 0 : index
    %c0_7 = arith.constant 0 : index
    %4 = vector.load %arg7[%c17, %c0_6, %c0_7] : memref<18x25x4xf32, #tpu.memory_space<vmem>>, vector<1x25x4xf32>
    tpu.vector_store %arg7[%c17, %c0_6, %c0_7], %2 {strides = array<i32>} : memref<18x25x4xf32, #tpu.memory_space<vmem>>, vector<1x25x4xf32>,
    %cst_8 = arith.constant 0.000000e+00 : f32
    %5 = vector.broadcast %cst_8 : f32 to vector<16x1x4xf32>
    %c1 = arith.constant 1 : index
    %c7 = arith.constant 7 : index
    %c0_9 = arith.constant 0 : index
    %6 = vector.load %arg7[%c1, %c7, %c0_9] : memref<18x25x4xf32, #tpu.memory_space<vmem>>, vector<16x1x4xf32>
    tpu.vector_store %arg7[%c1, %c7, %c0_9], %5 {strides = array<i32>} : memref<18x25x4xf32, #tpu.memory_space<vmem>>, vector<16x1x4xf32>,
    %c1_10 = arith.constant 1 : index
    %c24 = arith.constant 24 : index
    %c0_11 = arith.constant 0 : index
    %7 = vector.load %arg7[%c1_10, %c24, %c0_11] : memref<18x25x4xf32, #tpu.memory_space<vmem>>, vector<16x1x4xf32>
    tpu.vector_store %arg7[%c1_10, %c24, %c0_11], %5 {strides = array<i32>} : memref<18x25x4xf32, #tpu.memory_space<vmem>>, vector<16x1x4xf32>,
    %8 = vector.shape_cast %1 : vector<16x16x4xf32> to vector<256x4xf32>
    %cst_12 = arith.constant 0.000000e+00 : f32
    %9 = vector.broadcast %cst_12 : f32 to vector<16x16x4xf32>
    %10 = arith.maximumf %1, %9 : vector<16x16x4xf32>
    %c1_13 = arith.constant 1 : index
    %c8 = arith.constant 8 : index
    %c0_14 = arith.constant 0 : index
    %11 = vector.load %arg7[%c1_13, %c8, %c0_14] : memref<18x25x4xf32, #tpu.memory_space<vmem>>, vector<16x16x4xf32>
    tpu.vector_store %arg7[%c1_13, %c8, %c0_14], %10 {strides = array<i32>} : memref<18x25x4xf32, #tpu.memory_space<vmem>>, vector<16x16x4xf32>,
    %c0_15 = arith.constant 0 : index
    %c7_16 = arith.constant 7 : index
    %c0_17 = arith.constant 0 : index
    %12 = vector.load %arg7[%c0_15, %c7_16, %c0_17] : memref<18x25x4xf32, #tpu.memory_space<vmem>>, vector<16x16x4xf32>
    %13 = vector.shape_cast %12 : vector<16x16x4xf32> to vector<256x4xf32>
    %c0_18 = arith.constant 0 : index
    %c0_19 = arith.constant 0 : index
    %14 = vector.load %arg2[%c0_18, %c0_19] : memref<36x4xf32, #tpu.memory_space<vmem>>, vector<4x4xf32>
    %cst_20 = arith.constant dense<0.000000e+00> : vector<256x4xf32>
    %15 = tpu.matmul %13, %14, %cst_20 {dimension_numbers = #tpu.dot_dimension_numbers<[1], [0], [0], [1], [0, 0, 1, 1], [], []>} : vector<256x4xf32>, vector<4x4xf32>, vector<256x4xf32> -> vector<256x4xf32>
    %c0_21 = arith.constant 0 : index
    %c8_22 = arith.constant 8 : index
    %c0_23 = arith.constant 0 : index
    %16 = vector.load %arg7[%c0_21, %c8_22, %c0_23] : memref<18x25x4xf32, #tpu.memory_space<vmem>>, vector<16x16x4xf32>
    %17 = vector.shape_cast %16 : vector<16x16x4xf32> to vector<256x4xf32>
    %c4 = arith.constant 4 : index
    %c0_24 = arith.constant 0 : index
    %18 = vector.load %arg2[%c4, %c0_24] : memref<36x4xf32, #tpu.memory_space<vmem>>, vector<4x4xf32>
    %cst_25 = arith.constant dense<0.000000e+00> : vector<256x4xf32>
    %19 = tpu.matmul %17, %18, %cst_25 {dimension_numbers = #tpu.dot_dimension_numbers<[1], [0], [0], [1], [0, 0, 1, 1], [], []>} : vector<256x4xf32>, vector<4x4xf32>, vector<256x4xf32> -> vector<256x4xf32>
    %20 = arith.addf %15, %19 : vector<256x4xf32>
    %c0_26 = arith.constant 0 : index
    %c9 = arith.constant 9 : index
    %c0_27 = arith.constant 0 : index
    %21 = vector.load %arg7[%c0_26, %c9, %c0_27] : memref<18x25x4xf32, #tpu.memory_space<vmem>>, vector<16x16x4xf32>
    %22 = vector.shape_cast %21 : vector<16x16x4xf32> to vector<256x4xf32>
    %c8_28 = arith.constant 8 : index
    %c0_29 = arith.constant 0 : index
    %23 = vector.load %arg2[%c8_28, %c0_29] : memref<36x4xf32, #tpu.memory_space<vmem>>, vector<4x4xf32>
    %cst_30 = arith.constant dense<0.000000e+00> : vector<256x4xf32>
    %24 = tpu.matmul %22, %23, %cst_30 {dimension_numbers = #tpu.dot_dimension_numbers<[1], [0], [0], [1], [0, 0, 1, 1], [], []>} : vector<256x4xf32>, vector<4x4xf32>, vector<256x4xf32> -> vector<256x4xf32>
    %25 = arith.addf %20, %24 : vector<256x4xf32>
    %c1_31 = arith.constant 1 : index
    %c7_32 = arith.constant 7 : index
    %c0_33 = arith.constant 0 : index
    %26 = vector.load %arg7[%c1_31, %c7_32, %c0_33] : memref<18x25x4xf32, #tpu.memory_space<vmem>>, vector<16x16x4xf32>
    %27 = vector.shape_cast %26 : vector<16x16x4xf32> to vector<256x4xf32>
    %c12 = arith.constant 12 : index
    %c0_34 = arith.constant 0 : index
    %28 = vector.load %arg2[%c12, %c0_34] : memref<36x4xf32, #tpu.memory_space<vmem>>, vector<4x4xf32>
    %cst_35 = arith.constant dense<0.000000e+00> : vector<256x4xf32>
    %29 = tpu.matmul %27, %28, %cst_35 {dimension_numbers = #tpu.dot_dimension_numbers<[1], [0], [0], [1], [0, 0, 1, 1], [], []>} : vector<256x4xf32>, vector<4x4xf32>, vector<256x4xf32> -> vector<256x4xf32>
    %30 = arith.addf %25, %29 : vector<256x4xf32>
    %c1_36 = arith.constant 1 : index
    %c8_37 = arith.constant 8 : index
    %c0_38 = arith.constant 0 : index
    %31 = vector.load %arg7[%c1_36, %c8_37, %c0_38] : memref<18x25x4xf32, #tpu.memory_space<vmem>>, vector<16x16x4xf32>
    %32 = vector.shape_cast %31 : vector<16x16x4xf32> to vector<256x4xf32>
    %c16 = arith.constant 16 : index
    %c0_39 = arith.constant 0 : index
    %33 = vector.load %arg2[%c16, %c0_39] : memref<36x4xf32, #tpu.memory_space<vmem>>, vector<4x4xf32>
    %cst_40 = arith.constant dense<0.000000e+00> : vector<256x4xf32>
    %34 = tpu.matmul %32, %33, %cst_40 {dimension_numbers = #tpu.dot_dimension_numbers<[1], [0], [0], [1], [0, 0, 1, 1], [], []>} : vector<256x4xf32>, vector<4x4xf32>, vector<256x4xf32> -> vector<256x4xf32>
    %35 = arith.addf %30, %34 : vector<256x4xf32>
    %c1_41 = arith.constant 1 : index
    %c9_42 = arith.constant 9 : index
    %c0_43 = arith.constant 0 : index
    %36 = vector.load %arg7[%c1_41, %c9_42, %c0_43] : memref<18x25x4xf32, #tpu.memory_space<vmem>>, vector<16x16x4xf32>
    %37 = vector.shape_cast %36 : vector<16x16x4xf32> to vector<256x4xf32>
    %c20 = arith.constant 20 : index
    %c0_44 = arith.constant 0 : index
    %38 = vector.load %arg2[%c20, %c0_44] : memref<36x4xf32, #tpu.memory_space<vmem>>, vector<4x4xf32>
    %cst_45 = arith.constant dense<0.000000e+00> : vector<256x4xf32>
    %39 = tpu.matmul %37, %38, %cst_45 {dimension_numbers = #tpu.dot_dimension_numbers<[1], [0], [0], [1], [0, 0, 1, 1], [], []>} : vector<256x4xf32>, vector<4x4xf32>, vector<256x4xf32> -> vector<256x4xf32>
    %40 = arith.addf %35, %39 : vector<256x4xf32>
    %c2 = arith.constant 2 : index
    %c7_46 = arith.constant 7 : index
    %c0_47 = arith.constant 0 : index
    %41 = vector.load %arg7[%c2, %c7_46, %c0_47] : memref<18x25x4xf32, #tpu.memory_space<vmem>>, vector<16x16x4xf32>
    %42 = vector.shape_cast %41 : vector<16x16x4xf32> to vector<256x4xf32>
    %c24_48 = arith.constant 24 : index
    %c0_49 = arith.constant 0 : index
    %43 = vector.load %arg2[%c24_48, %c0_49] : memref<36x4xf32, #tpu.memory_space<vmem>>, vector<4x4xf32>
    %cst_50 = arith.constant dense<0.000000e+00> : vector<256x4xf32>
    %44 = tpu.matmul %42, %43, %cst_50 {dimension_numbers = #tpu.dot_dimension_numbers<[1], [0], [0], [1], [0, 0, 1, 1], [], []>} : vector<256x4xf32>, vector<4x4xf32>, vector<256x4xf32> -> vector<256x4xf32>
    %45 = arith.addf %40, %44 : vector<256x4xf32>
    %c2_51 = arith.constant 2 : index
    %c8_52 = arith.constant 8 : index
    %c0_53 = arith.constant 0 : index
    %46 = vector.load %arg7[%c2_51, %c8_52, %c0_53] : memref<18x25x4xf32, #tpu.memory_space<vmem>>, vector<16x16x4xf32>
    %47 = vector.shape_cast %46 : vector<16x16x4xf32> to vector<256x4xf32>
    %c28 = arith.constant 28 : index
    %c0_54 = arith.constant 0 : index
    %48 = vector.load %arg2[%c28, %c0_54] : memref<36x4xf32, #tpu.memory_space<vmem>>, vector<4x4xf32>
    %cst_55 = arith.constant dense<0.000000e+00> : vector<256x4xf32>
    %49 = tpu.matmul %47, %48, %cst_55 {dimension_numbers = #tpu.dot_dimension_numbers<[1], [0], [0], [1], [0, 0, 1, 1], [], []>} : vector<256x4xf32>, vector<4x4xf32>, vector<256x4xf32> -> vector<256x4xf32>
    %50 = arith.addf %45, %49 : vector<256x4xf32>
    %c2_56 = arith.constant 2 : index
    %c9_57 = arith.constant 9 : index
    %c0_58 = arith.constant 0 : index
    %51 = vector.load %arg7[%c2_56, %c9_57, %c0_58] : memref<18x25x4xf32, #tpu.memory_space<vmem>>, vector<16x16x4xf32>
    %52 = vector.shape_cast %51 : vector<16x16x4xf32> to vector<256x4xf32>
    %c32 = arith.constant 32 : index
    %c0_59 = arith.constant 0 : index
    %53 = vector.load %arg2[%c32, %c0_59] : memref<36x4xf32, #tpu.memory_space<vmem>>, vector<4x4xf32>
    %cst_60 = arith.constant dense<0.000000e+00> : vector<256x4xf32>
    %54 = tpu.matmul %52, %53, %cst_60 {dimension_numbers = #tpu.dot_dimension_numbers<[1], [0], [0], [1], [0, 0, 1, 1], [], []>} : vector<256x4xf32>, vector<4x4xf32>, vector<256x4xf32> -> vector<256x4xf32>
    %55 = arith.addf %50, %54 : vector<256x4xf32>
    %c0_61 = arith.constant 0 : index
    %c0_62 = arith.constant 0 : index
    %56 = vector.load %arg3[%c0_61, %c0_62] : memref<1x4xf32, #tpu.memory_space<vmem>>, vector<1x4xf32>
    %57 = vector.broadcast %56 : vector<1x4xf32> to vector<256x4xf32>
    %58 = arith.addf %55, %57 : vector<256x4xf32>
    %cst_63 = arith.constant 0.000000e+00 : f32
    %59 = vector.broadcast %cst_63 : f32 to vector<256x4xf32>
    %60 = arith.maximumf %58, %59 : vector<256x4xf32>
    %61 = vector.shape_cast %60 : vector<256x4xf32> to vector<16x16x4xf32>
    %c1_64 = arith.constant 1 : index
    %c8_65 = arith.constant 8 : index
    %c0_66 = arith.constant 0 : index
    %62 = vector.load %arg7[%c1_64, %c8_65, %c0_66] : memref<18x25x4xf32, #tpu.memory_space<vmem>>, vector<16x16x4xf32>
    tpu.vector_store %arg7[%c1_64, %c8_65, %c0_66], %61 {strides = array<i32>} : memref<18x25x4xf32, #tpu.memory_space<vmem>>, vector<16x16x4xf32>,
    %c0_67 = arith.constant 0 : index
    %c7_68 = arith.constant 7 : index
    %c0_69 = arith.constant 0 : index
    %63 = vector.load %arg7[%c0_67, %c7_68, %c0_69] : memref<18x25x4xf32, #tpu.memory_space<vmem>>, vector<16x16x4xf32>
    %64 = vector.shape_cast %63 : vector<16x16x4xf32> to vector<256x4xf32>
    %c0_70 = arith.constant 0 : index
    %c0_71 = arith.constant 0 : index
    %65 = vector.load %arg4[%c0_70, %c0_71] : memref<36x4xf32, #tpu.memory_space<vmem>>, vector<4x4xf32>
    %cst_72 = arith.constant dense<0.000000e+00> : vector<256x4xf32>
    %66 = tpu.matmul %64, %65, %cst_72 {dimension_numbers = #tpu.dot_dimension_numbers<[1], [0], [0], [1], [0, 0, 1, 1], [], []>} : vector<256x4xf32>, vector<4x4xf32>, vector<256x4xf32> -> vector<256x4xf32>
    %c0_73 = arith.constant 0 : index
    %c8_74 = arith.constant 8 : index
    %c0_75 = arith.constant 0 : index
    %67 = vector.load %arg7[%c0_73, %c8_74, %c0_75] : memref<18x25x4xf32, #tpu.memory_space<vmem>>, vector<16x16x4xf32>
    %68 = vector.shape_cast %67 : vector<16x16x4xf32> to vector<256x4xf32>
    %c4_76 = arith.constant 4 : index
    %c0_77 = arith.constant 0 : index
    %69 = vector.load %arg4[%c4_76, %c0_77] : memref<36x4xf32, #tpu.memory_space<vmem>>, vector<4x4xf32>
    %cst_78 = arith.constant dense<0.000000e+00> : vector<256x4xf32>
    %70 = tpu.matmul %68, %69, %cst_78 {dimension_numbers = #tpu.dot_dimension_numbers<[1], [0], [0], [1], [0, 0, 1, 1], [], []>} : vector<256x4xf32>, vector<4x4xf32>, vector<256x4xf32> -> vector<256x4xf32>
    %71 = arith.addf %66, %70 : vector<256x4xf32>
    %c0_79 = arith.constant 0 : index
    %c9_80 = arith.constant 9 : index
    %c0_81 = arith.constant 0 : index
    %72 = vector.load %arg7[%c0_79, %c9_80, %c0_81] : memref<18x25x4xf32, #tpu.memory_space<vmem>>, vector<16x16x4xf32>
    %73 = vector.shape_cast %72 : vector<16x16x4xf32> to vector<256x4xf32>
    %c8_82 = arith.constant 8 : index
    %c0_83 = arith.constant 0 : index
    %74 = vector.load %arg4[%c8_82, %c0_83] : memref<36x4xf32, #tpu.memory_space<vmem>>, vector<4x4xf32>
    %cst_84 = arith.constant dense<0.000000e+00> : vector<256x4xf32>
    %75 = tpu.matmul %73, %74, %cst_84 {dimension_numbers = #tpu.dot_dimension_numbers<[1], [0], [0], [1], [0, 0, 1, 1], [], []>} : vector<256x4xf32>, vector<4x4xf32>, vector<256x4xf32> -> vector<256x4xf32>
    %76 = arith.addf %71, %75 : vector<256x4xf32>
    %c1_85 = arith.constant 1 : index
    %c7_86 = arith.constant 7 : index
    %c0_87 = arith.constant 0 : index
    %77 = vector.load %arg7[%c1_85, %c7_86, %c0_87] : memref<18x25x4xf32, #tpu.memory_space<vmem>>, vector<16x16x4xf32>
    %78 = vector.shape_cast %77 : vector<16x16x4xf32> to vector<256x4xf32>
    %c12_88 = arith.constant 12 : index
    %c0_89 = arith.constant 0 : index
    %79 = vector.load %arg4[%c12_88, %c0_89] : memref<36x4xf32, #tpu.memory_space<vmem>>, vector<4x4xf32>
    %cst_90 = arith.constant dense<0.000000e+00> : vector<256x4xf32>
    %80 = tpu.matmul %78, %79, %cst_90 {dimension_numbers = #tpu.dot_dimension_numbers<[1], [0], [0], [1], [0, 0, 1, 1], [], []>} : vector<256x4xf32>, vector<4x4xf32>, vector<256x4xf32> -> vector<256x4xf32>
    %81 = arith.addf %76, %80 : vector<256x4xf32>
    %c1_91 = arith.constant 1 : index
    %c8_92 = arith.constant 8 : index
    %c0_93 = arith.constant 0 : index
    %82 = vector.load %arg7[%c1_91, %c8_92, %c0_93] : memref<18x25x4xf32, #tpu.memory_space<vmem>>, vector<16x16x4xf32>
    %83 = vector.shape_cast %82 : vector<16x16x4xf32> to vector<256x4xf32>
    %c16_94 = arith.constant 16 : index
    %c0_95 = arith.constant 0 : index
    %84 = vector.load %arg4[%c16_94, %c0_95] : memref<36x4xf32, #tpu.memory_space<vmem>>, vector<4x4xf32>
    %cst_96 = arith.constant dense<0.000000e+00> : vector<256x4xf32>
    %85 = tpu.matmul %83, %84, %cst_96 {dimension_numbers = #tpu.dot_dimension_numbers<[1], [0], [0], [1], [0, 0, 1, 1], [], []>} : vector<256x4xf32>, vector<4x4xf32>, vector<256x4xf32> -> vector<256x4xf32>
    %86 = arith.addf %81, %85 : vector<256x4xf32>
    %c1_97 = arith.constant 1 : index
    %c9_98 = arith.constant 9 : index
    %c0_99 = arith.constant 0 : index
    %87 = vector.load %arg7[%c1_97, %c9_98, %c0_99] : memref<18x25x4xf32, #tpu.memory_space<vmem>>, vector<16x16x4xf32>
    %88 = vector.shape_cast %87 : vector<16x16x4xf32> to vector<256x4xf32>
    %c20_100 = arith.constant 20 : index
    %c0_101 = arith.constant 0 : index
    %89 = vector.load %arg4[%c20_100, %c0_101] : memref<36x4xf32, #tpu.memory_space<vmem>>, vector<4x4xf32>
    %cst_102 = arith.constant dense<0.000000e+00> : vector<256x4xf32>
    %90 = tpu.matmul %88, %89, %cst_102 {dimension_numbers = #tpu.dot_dimension_numbers<[1], [0], [0], [1], [0, 0, 1, 1], [], []>} : vector<256x4xf32>, vector<4x4xf32>, vector<256x4xf32> -> vector<256x4xf32>
    %91 = arith.addf %86, %90 : vector<256x4xf32>
    %c2_103 = arith.constant 2 : index
    %c7_104 = arith.constant 7 : index
    %c0_105 = arith.constant 0 : index
    %92 = vector.load %arg7[%c2_103, %c7_104, %c0_105] : memref<18x25x4xf32, #tpu.memory_space<vmem>>, vector<16x16x4xf32>
    %93 = vector.shape_cast %92 : vector<16x16x4xf32> to vector<256x4xf32>
    %c24_106 = arith.constant 24 : index
    %c0_107 = arith.constant 0 : index
    %94 = vector.load %arg4[%c24_106, %c0_107] : memref<36x4xf32, #tpu.memory_space<vmem>>, vector<4x4xf32>
    %cst_108 = arith.constant dense<0.000000e+00> : vector<256x4xf32>
    %95 = tpu.matmul %93, %94, %cst_108 {dimension_numbers = #tpu.dot_dimension_numbers<[1], [0], [0], [1], [0, 0, 1, 1], [], []>} : vector<256x4xf32>, vector<4x4xf32>, vector<256x4xf32> -> vector<256x4xf32>
    %96 = arith.addf %91, %95 : vector<256x4xf32>
    %c2_109 = arith.constant 2 : index
    %c8_110 = arith.constant 8 : index
    %c0_111 = arith.constant 0 : index
    %97 = vector.load %arg7[%c2_109, %c8_110, %c0_111] : memref<18x25x4xf32, #tpu.memory_space<vmem>>, vector<16x16x4xf32>
    %98 = vector.shape_cast %97 : vector<16x16x4xf32> to vector<256x4xf32>
    %c28_112 = arith.constant 28 : index
    %c0_113 = arith.constant 0 : index
    %99 = vector.load %arg4[%c28_112, %c0_113] : memref<36x4xf32, #tpu.memory_space<vmem>>, vector<4x4xf32>
    %cst_114 = arith.constant dense<0.000000e+00> : vector<256x4xf32>
    %100 = tpu.matmul %98, %99, %cst_114 {dimension_numbers = #tpu.dot_dimension_numbers<[1], [0], [0], [1], [0, 0, 1, 1], [], []>} : vector<256x4xf32>, vector<4x4xf32>, vector<256x4xf32> -> vector<256x4xf32>
    %101 = arith.addf %96, %100 : vector<256x4xf32>
    %c2_115 = arith.constant 2 : index
    %c9_116 = arith.constant 9 : index
    %c0_117 = arith.constant 0 : index
    %102 = vector.load %arg7[%c2_115, %c9_116, %c0_117] : memref<18x25x4xf32, #tpu.memory_space<vmem>>, vector<16x16x4xf32>
    %103 = vector.shape_cast %102 : vector<16x16x4xf32> to vector<256x4xf32>
    %c32_118 = arith.constant 32 : index
    %c0_119 = arith.constant 0 : index
    %104 = vector.load %arg4[%c32_118, %c0_119] : memref<36x4xf32, #tpu.memory_space<vmem>>, vector<4x4xf32>
    %cst_120 = arith.constant dense<0.000000e+00> : vector<256x4xf32>
    %105 = tpu.matmul %103, %104, %cst_120 {dimension_numbers = #tpu.dot_dimension_numbers<[1], [0], [0], [1], [0, 0, 1, 1], [], []>} : vector<256x4xf32>, vector<4x4xf32>, vector<256x4xf32> -> vector<256x4xf32>
    %106 = arith.addf %101, %105 : vector<256x4xf32>
    %c0_121 = arith.constant 0 : index
    %c0_122 = arith.constant 0 : index
    %107 = vector.load %arg5[%c0_121, %c0_122] : memref<1x4xf32, #tpu.memory_space<vmem>>, vector<1x4xf32>
    %108 = vector.broadcast %107 : vector<1x4xf32> to vector<256x4xf32>
    %109 = arith.addf %106, %108 : vector<256x4xf32>
    %110 = arith.addf %8, %109 : vector<256x4xf32>
    %111 = vector.shape_cast %110 : vector<256x4xf32> to vector<16x16x4xf32>
    %c0_123 = arith.constant 0 : index
    %c0_124 = arith.constant 0 : index
    %c0_125 = arith.constant 0 : index
    %c0_126 = arith.constant 0 : index
    %112 = vector.load %arg6[%c0_123, %c0_124, %c0_125, %c0_126] : memref<1x16x16x4xf32, #tpu.memory_space<vmem>>, vector<1x16x16x4xf32>
    %113 = vector.shape_cast %112 : vector<1x16x16x4xf32> to vector<16x16x4xf32>
    %114 = vector.shape_cast %111 : vector<16x16x4xf32> to vector<1x16x16x4xf32>
    tpu.vector_store %arg6[%c0_123, %c0_124, %c0_125, %c0_126], %114 {strides = array<i32>} : memref<1x16x16x4xf32, #tpu.memory_space<vmem>>, vector<1x16x16x4xf32>,
    return
  }
  func.func @transform_0(%arg0: i32) -> (i32, i32, i32, i32) {
    %c0_i32 = arith.constant 0 : i32
    %c0_i32_0 = arith.constant 0 : i32
    %c0_i32_1 = arith.constant 0 : i32
    %c0_i32_2 = arith.constant 0 : i32
    return %arg0, %c0_i32, %c0_i32_0, %c0_i32_1 : i32, i32, i32, i32
  }
  func.func @transform_1(%arg0: i32) -> (i32, i32) {
    %c0_i32 = arith.constant 0 : i32
    %c0_i32_0 = arith.constant 0 : i32
    %c0_i32_1 = arith.constant 0 : i32
    return %c0_i32, %c0_i32_0 : i32, i32
  }
  func.func @transform_2(%arg0: i32) -> (i32, i32) {
    %c0_i32 = arith.constant 0 : i32
    %c0_i32_0 = arith.constant 0 : i32
    %c0_i32_1 = arith.constant 0 : i32
    return %c0_i32, %c0_i32_0 : i32, i32
  }
  func.func @transform_3(%arg0: i32) -> (i32, i32) {
    %c0_i32 = arith.constant 0 : i32
    %c0_i32_0 = arith.constant 0 : i32
    %c0_i32_1 = arith.constant 0 : i32
    return %c0_i32, %c0_i32_0 : i32, i32
  }
  func.func @transform_4(%arg0: i32) -> (i32, i32) {
    %c0_i32 = arith.constant 0 : i32
    %c0_i32_0 = arith.constant 0 : i32
    %c0_i32_1 = arith.constant 0 : i32
    return %c0_i32, %c0_i32_0 : i32, i32
  }
  func.func @transform_5(%arg0: i32) -> (i32, i32, i32, i32) {
    %c0_i32 = arith.constant 0 : i32
    %c0_i32_0 = arith.constant 0 : i32
    %c0_i32_1 = arith.constant 0 : i32
    %c0_i32_2 = arith.constant 0 : i32
    return %arg0, %c0_i32, %c0_i32_0, %c0_i32_1 : i32, i32, i32, i32
  }
}

</mosaic_0001>

<llo_original>
// kernel: tpu_custom_call.1
$region0: #{tpu_custom_call.1}
  #allocation0 [shape = 'u32[]', space=smem, size = 0x4, offset = 0x4, fixed_abs, tag = 'smem constant byte address 0x4 - core index']
  #allocation1 [shape = 'u32[144,128]{1,0:T(1,128)}', space=vmem, size = 0x12000, scoped, tag = 'internal scratch']
  #allocation2 [shape = 'f32[18,25,4]{2,1,0:T(8,128)}', space=vmem, size = 0x48000, scoped, tag = 'scratch operand']
  %s0 = inlined_call_operand.vmem [shape: f32[2,16,16,4], index: 0, kind: input, shape index: {}]
  %s1 = inlined_call_operand.vmem [shape: f32[36,4], index: 1, kind: input, shape index: {}]
  %s2 = inlined_call_operand.vmem [shape: f32[1,4], index: 2, kind: input, shape index: {}]
  %s3 = inlined_call_operand.vmem [shape: f32[36,4], index: 3, kind: input, shape index: {}]
  %s4 = inlined_call_operand.vmem [shape: f32[1,4], index: 4, kind: input, shape index: {}]
  %s5 = inlined_call_operand.vmem [shape: f32[2,16,16,4], index: 5, kind: output, shape index: {}]
  %s6 = sld [smem:[#allocation0]]
  $region53: #{tpu_custom_call.1} parent=0
    _
  %s8 = ssub.s32 1, %s6
  %s9 = scalar_select 0, %s8, %s6
  loop: start=0, step=1, limit=4
  $region2: #{tpu_custom_call.1} parent=0 // loop_pre_header
    _
  $region3: #{tpu_custom_call.1} parent=0 // loop_header
    %s11 = sphi 0, %s15
    %p12 = scmp.ge.s32.totalorder %s11, 4
    %s21 = sphi 0, %s23
    %s24 = sphi 0, %s21
    %s25 = sphi 0, %s24
    %s41 = sphi 0, %s25
    %s45 = sphi 0, %s45
    %s47 = sphi 0, %s45
    %s48 = sphi 0, %s47
    %s62 = sphi 0, %s48
    %s66 = sphi 0, %s66
    %s68 = sphi 0, %s66
    %s69 = sphi 0, %s68
    %s83 = sphi 0, %s69
    %s87 = sphi 0, %s87
    %s89 = sphi 0, %s87
    %s90 = sphi 0, %s89
    %s104 = sphi 0, %s90
    %s108 = sphi 0, %s108
    %s110 = sphi 0, %s108
    %s111 = sphi 0, %s110
    %s125 = sphi 0, %s111
    %s131 = sphi 0, %s133
    %s134 = sphi 0, %s131
    %s135 = sphi 0, %s134
    %s151 = sphi 0, %s135
  $region4: #{tpu_custom_call.1} parent=0 // loop_header_branch
    %14 = sbr.rel (%p12) target = $region8
  $region5: #{tpu_custom_call.1} parent=0 // loop_body
    %s16 = ssub.s32 %s11, 1
    %s17 = ssub.s32 %s11, 2
    %s18 = sadd.s32 %s11, 1
    %s19 = ssub.s32 %s11, %s18
    %p20 = scmp.eq.s32.totalorder %s19, 0
    %s22 = sadd.s32 %s21, 1
    %s23 = scalar_select %p20, %s21, %s22
    %p26 = pneg %p20
    %p27 = scmp.eq.s32.totalorder %s11, 1
    %p28 = por %p26, %p27
    %p29 = scmp.ne.s32.totalorder %s21, %s24
    %p30 = scmp.eq.s32.totalorder %s11, 0
    %p31 = por %p29, %p30
    %p32 = scmp.ne.s32.totalorder %s21, %s24
    %p33 = scmp.eq.s32.totalorder %s16, 1
    %p34 = por %p32, %p33
    %p35 = scmp.ne.s32.totalorder %s24, %s25
    %p36 = scmp.eq.s32.totalorder %s16, 0
    %p37 = por %p35, %p36
    %p38 = scmp.ne.s32.totalorder %s24, %s25
    %p39 = scmp.eq.s32.totalorder %s17, 1
    %p40 = por %p38, %p39
    %p42 = scmp.ne.s32.totalorder %s25, %s41
    %p43 = scmp.eq.s32.totalorder %s17, 0
    %p44 = por %p42, %p43
    %s46 = sadd.s32 %s45, 1
    %p49 = scmp.eq.s32.totalorder %s11, 1
    %p50 = scmp.ne.s32.totalorder %s45, %s47
    %p51 = scmp.eq.s32.totalorder %s11, 0
    %p52 = por %p50, %p51
    %p53 = scmp.ne.s32.totalorder %s45, %s47
    %p54 = scmp.eq.s32.totalorder %s16, 1
    %p55 = por %p53, %p54
    %p56 = scmp.ne.s32.totalorder %s47, %s48
    %p57 = scmp.eq.s32.totalorder %s16, 0
    %p58 = por %p56, %p57
    %p59 = scmp.ne.s32.totalorder %s47, %s48
    %p60 = scmp.eq.s32.totalorder %s17, 1
    %p61 = por %p59, %p60
    %p63 = scmp.ne.s32.totalorder %s48, %s62
    %p64 = scmp.eq.s32.totalorder %s17, 0
    %p65 = por %p63, %p64
    %s67 = sadd.s32 %s66, 1
    %p70 = scmp.eq.s32.totalorder %s11, 1
    %p71 = scmp.ne.s32.totalorder %s66, %s68
    %p72 = scmp.eq.s32.totalorder %s11, 0
    %p73 = por %p71, %p72
    %p74 = scmp.ne.s32.totalorder %s66, %s68
    %p75 = scmp.eq.s32.totalorder %s16, 1
    %p76 = por %p74, %p75
    %p77 = scmp.ne.s32.totalorder %s68, %s69
    %p78 = scmp.eq.s32.totalorder %s16, 0
    %p79 = por %p77, %p78
    %p80 = scmp.ne.s32.totalorder %s68, %s69
    %p81 = scmp.eq.s32.totalorder %s17, 1
    %p82 = por %p80, %p81
    %p84 = scmp.ne.s32.totalorder %s69, %s83
    %p85 = scmp.eq.s32.totalorder %s17, 0
    %p86 = por %p84, %p85
    %s88 = sadd.s32 %s87, 1
    %p91 = scmp.eq.s32.totalorder %s11, 1
    %p92 = scmp.ne.s32.totalorder %s87, %s89
    %p93 = scmp.eq.s32.totalorder %s11, 0
    %p94 = por %p92, %p93
    %p95 = scmp.ne.s32.totalorder %s87, %s89
    %p96 = scmp.eq.s32.totalorder %s16, 1
    %p97 = por %p95, %p96
    %p98 = scmp.ne.s32.totalorder %s89, %s90
    %p99 = scmp.eq.s32.totalorder %s16, 0
    %p100 = por %p98, %p99
    %p101 = scmp.ne.s32.totalorder %s89, %s90
    %p102 = scmp.eq.s32.totalorder %s17, 1
    %p103 = por %p101, %p102
    %p105 = scmp.ne.s32.totalorder %s90, %s104
    %p106 = scmp.eq.s32.totalorder %s17, 0
    %p107 = por %p105, %p106
    %s109 = sadd.s32 %s108, 1
    %p112 = scmp.eq.s32.totalorder %s11, 1
    %p113 = scmp.ne.s32.totalorder %s108, %s110
    %p114 = scmp.eq.s32.totalorder %s11, 0
    %p115 = por %p113, %p114
    %p116 = scmp.ne.s32.totalorder %s108, %s110
    %p117 = scmp.eq.s32.totalorder %s16, 1
    %p118 = por %p116, %p117
    %p119 = scmp.ne.s32.totalorder %s110, %s111
    %p120 = scmp.eq.s32.totalorder %s16, 0
    %p121 = por %p119, %p120
    %p122 = scmp.ne.s32.totalorder %s110, %s111
    %p123 = scmp.eq.s32.totalorder %s17, 1
    %p124 = por %p122, %p123
    %p126 = scmp.ne.s32.totalorder %s111, %s125
    %p127 = scmp.eq.s32.totalorder %s17, 0
    %p128 = por %p126, %p127
    %s129 = ssub.s32 %s11, %s18
    %p130 = scmp.eq.s32.totalorder %s129, 0
    %s132 = sadd.s32 %s131, 1
    %s133 = scalar_select %p130, %s131, %s132
    %p136 = pneg %p130
    %p137 = scmp.eq.s32.totalorder %s11, 1
    %p138 = por %p136, %p137
    %p139 = scmp.ne.s32.totalorder %s131, %s134
    %p140 = scmp.eq.s32.totalorder %s11, 0
    %p141 = por %p139, %p140
    %p142 = scmp.ne.s32.totalorder %s131, %s134
    %p143 = scmp.eq.s32.totalorder %s16, 1
    %p144 = por %p142, %p143
    %p145 = scmp.ne.s32.totalorder %s134, %s135
    %p146 = scmp.eq.s32.totalorder %s16, 0
    %p147 = por %p145, %p146
    %p148 = scmp.ne.s32.totalorder %s134, %s135
    %p149 = scmp.eq.s32.totalorder %s17, 1
    %p150 = por %p148, %p149
    %p152 = scmp.ne.s32.totalorder %s135, %s151
    %p153 = scmp.eq.s32.totalorder %s17, 0
    %p154 = por %p152, %p153
    %p155 = scmp.le.s32.totalorder 1, %s11
    %p156 = scmp.lt.s32.totalorder %s11, 3
    %p157 = pnand %p155, %p156
    %p158 = pneg %p157
    // Predicated region
    $region9: #{tpu_custom_call.1} parent=5 // pred_check
      _
    $region10: #{tpu_custom_call.1} parent=5 // pred_check_branch
      %160 = sbr.rel (%p157) target = $region12
    $region11: #{tpu_custom_call.1} parent=5 // pred_region
      %s161 = ssub.s32 %s11, 1
      // Predicated region
      $region13: #{tpu_custom_call.1} parent=11 // pred_check
        %p162 = pneg %p58
      $region14: #{tpu_custom_call.1} parent=11 // pred_check_branch
        %164 = sbr.rel (%p162) target = $region16
      $region15: #{tpu_custom_call.1} parent=11 // pred_region
        _
      $region16: #{tpu_custom_call.1} parent=11 // pred_fallthru
        _
      // Predicated region
      $region17: #{tpu_custom_call.1} parent=11 // pred_check
        %p165 = pneg %p79
      $region18: #{tpu_custom_call.1} parent=11 // pred_check_branch
        %167 = sbr.rel (%p165) target = $region20
      $region19: #{tpu_custom_call.1} parent=11 // pred_region
        _
      $region20: #{tpu_custom_call.1} parent=11 // pred_fallthru
        _
      // Predicated region
      $region21: #{tpu_custom_call.1} parent=11 // pred_check
        %p168 = pneg %p100
      $region22: #{tpu_custom_call.1} parent=11 // pred_check_branch
        %170 = sbr.rel (%p168) target = $region24
      $region23: #{tpu_custom_call.1} parent=11 // pred_region
        _
      $region24: #{tpu_custom_call.1} parent=11 // pred_fallthru
        _
      // Predicated region
      $region25: #{tpu_custom_call.1} parent=11 // pred_check
        %p171 = pneg %p121
      $region26: #{tpu_custom_call.1} parent=11 // pred_check_branch
        %173 = sbr.rel (%p171) target = $region28
      $region27: #{tpu_custom_call.1} parent=11 // pred_region
        _
      $region28: #{tpu_custom_call.1} parent=11 // pred_fallthru
        _
    $region12: #{tpu_custom_call.1} parent=5 // pred_fallthru
      _
    %p174 = scmp.lt.s32.totalorder %s11, 2
    // Predicated region
    $region29: #{tpu_custom_call.1} parent=5 // pred_check
      %p175 = pneg %p174
    $region30: #{tpu_custom_call.1} parent=5 // pred_check_branch
      %177 = sbr.rel (%p175) target = $region32
    $region31: #{tpu_custom_call.1} parent=5 // pred_region
      // Predicated region
      $region33: #{tpu_custom_call.1} parent=31 // pred_check
        %p178 = pneg %p31
      $region34: #{tpu_custom_call.1} parent=31 // pred_check_branch
        %180 = sbr.rel (%p178) target = $region36
      $region35: #{tpu_custom_call.1} parent=31 // pred_region
        %p181 = scmp.lt.s32.totalorder %s11, 1
        %s182 = scalar_select %p181, %s11, 1
        %s183 = smul.addr %s182, 32
        %s184 = smul.addr %s183, 8
        %s185 = scalar_lea.vmem %s0, %s184
      $region36: #{tpu_custom_call.1} parent=31 // pred_fallthru
        _
    $region32: #{tpu_custom_call.1} parent=5 // pred_fallthru
      _
    %p186 = scmp.le.s32.totalorder 1, %s11
    %p187 = scmp.lt.s32.totalorder %s11, 3
    %p188 = pnand %p186, %p187
    %p189 = pneg %p188
    // Predicated region
    $region37: #{tpu_custom_call.1} parent=5 // pred_check
      _
    $region38: #{tpu_custom_call.1} parent=5 // pred_check_branch
      %191 = sbr.rel (%p188) target = $region40
    $region39: #{tpu_custom_call.1} parent=5 // pred_region
      %s192 = ssub.s32 %s11, 1
      %p193 = scmp.lt.s32.totalorder %s16, 1
      %s194 = scalar_select %p193, %s16, 1
      %s195 = smul.addr %s194, 32
      %s196 = smul.addr %s195, 8
      %s197 = scalar_lea.vmem %s0, %s196
      %p198 = pneg %p37
      %p199 = pneg %p34
      %p200 = pneg %p58
      %p201 = pneg %p55
      %p202 = pneg %p79
      %p203 = pneg %p76
      %p204 = pneg %p100
      %p205 = pneg %p97
      %p206 = pneg %p121
      %p207 = pneg %p118
      %p208 = pneg %p147
      %p209 = pneg %p144
      %p210 = scmp.lt.s32.totalorder %s16, 1
      %s211 = scalar_select %p210, %s16, 1
      %s212 = smul.addr %s211, 32
      %s213 = smul.addr %s212, 8
      %s214 = scalar_lea.vmem %s5, %s213
      %p215 = scmp.lt.s32.totalorder %s16, 1
      %s216 = scalar_select %p215, %s16, 1
      %s217 = smul.addr %s216, 32
      %s218 = smul.addr %s217, 8
      %s219 = scalar_lea.vmem %s0, %s218
      %p220 = scmp.lt.s32.totalorder %s16, 1
      %s221 = scalar_select %p220, %s16, 1
      %s222 = smul.addr %s221, 32
      %s223 = smul.addr %s222, 8
      %s224 = scalar_lea.vmem %s5, %s223
      %v225 = vld [vmem:[%s219] sm:$0xff]
      %v226 = vld [vmem:[%s219 + $0x8] sm:$0xff]
      %v227 = vld [vmem:[%s219 + $0x10] sm:$0xff]
      %v228 = vld [vmem:[%s219 + $0x18] sm:$0xff]
      %v229 = vld [vmem:[%s219 + $0x20] sm:$0xff]
      %v230 = vld [vmem:[%s219 + $0x28] sm:$0xff]
      %v231 = vld [vmem:[%s219 + $0x30] sm:$0xff]
      %v232 = vld [vmem:[%s219 + $0x38] sm:$0xff]
      %v233 = vld [vmem:[%s219 + $0x40] sm:$0xff]
      %v234 = vld [vmem:[%s219 + $0x48] sm:$0xff]
      %v235 = vld [vmem:[%s219 + $0x50] sm:$0xff]
      %v236 = vld [vmem:[%s219 + $0x58] sm:$0xff]
      %v237 = vld [vmem:[%s219 + $0x60] sm:$0xff]
      %v238 = vld [vmem:[%s219 + $0x68] sm:$0xff]
      %v239 = vld [vmem:[%s219 + $0x70] sm:$0xff]
      %v240 = vld [vmem:[%s219 + $0x78] sm:$0xff]
      %v241 = vld [vmem:[%s219 + $0x80] sm:$0xff]
      %v242 = vld [vmem:[%s219 + $0x88] sm:$0xff]
      %v243 = vld [vmem:[%s219 + $0x90] sm:$0xff]
      %v244 = vld [vmem:[%s219 + $0x98] sm:$0xff]
      %v245 = vld [vmem:[%s219 + $0xa0] sm:$0xff]
      %v246 = vld [vmem:[%s219 + $0xa8] sm:$0xff]
      %v247 = vld [vmem:[%s219 + $0xb0] sm:$0xff]
      %v248 = vld [vmem:[%s219 + $0xb8] sm:$0xff]
      %v249 = vld [vmem:[%s219 + $0xc0] sm:$0xff]
      %v250 = vld [vmem:[%s219 + $0xc8] sm:$0xff]
      %v251 = vld [vmem:[%s219 + $0xd0] sm:$0xff]
      %v252 = vld [vmem:[%s219 + $0xd8] sm:$0xff]
      %v253 = vld [vmem:[%s219 + $0xe0] sm:$0xff]
      %v254 = vld [vmem:[%s219 + $0xe8] sm:$0xff]
      %v255 = vld [vmem:[%s219 + $0xf0] sm:$0xff]
      %v256 = vld [vmem:[%s219 + $0xf8] sm:$0xff]
      %vm257 = vcmask 31744
      %258 = vst.msk [vmem:[#allocation2] sm:$0xff] %vm257, 0.0
      %259 = vst.msk [vmem:[#allocation2 + $0x8] sm:$0xff] %vm257, 0.0
      %260 = vst.msk [vmem:[#allocation2 + $0x10] sm:$0xff] %vm257, 0.0
      %vm261 = vcmask 24576
      %262 = vst.msk [vmem:[#allocation2 + $0x18] sm:$0x1] %vm261, 0.0
      %s263 = scalar_lea.vmem [#allocation2], 544
      %264 = vst.msk [vmem:[%s263] sm:$0xff] %vm257, 0.0
      %265 = vst.msk [vmem:[%s263 + $0x8] sm:$0xff] %vm257, 0.0
      %266 = vst.msk [vmem:[%s263 + $0x10] sm:$0xff] %vm257, 0.0
      %267 = vst.msk [vmem:[%s263 + $0x18] sm:$0x1] %vm261, 0.0
      %s268 = scalar_lea.vmem [#allocation2], 32
      %269 = vst.msk [vmem:[%s268 + $0x7] sm:$0x1] %vm261, 0.0
      %270 = vst.msk [vmem:[%s268 + $0x27] sm:$0x1] %vm261, 0.0
      %271 = vst.msk [vmem:[%s268 + $0x47] sm:$0x1] %vm261, 0.0
      %272 = vst.msk [vmem:[%s268 + $0x67] sm:$0x1] %vm261, 0.0
      %273 = vst.msk [vmem:[%s268 + $0x87] sm:$0x1] %vm261, 0.0
      %274 = vst.msk [vmem:[%s268 + $0xa7] sm:$0x1] %vm261, 0.0
      %275 = vst.msk [vmem:[%s268 + $0xc7] sm:$0x1] %vm261, 0.0
      %276 = vst.msk [vmem:[%s268 + $0xe7] sm:$0x1] %vm261, 0.0
      %277 = vst.msk [vmem:[%s268 + $0x107] sm:$0x1] %vm261, 0.0
      %278 = vst.msk [vmem:[%s268 + $0x127] sm:$0x1] %vm261, 0.0
      %279 = vst.msk [vmem:[%s268 + $0x147] sm:$0x1] %vm261, 0.0
      %280 = vst.msk [vmem:[%s268 + $0x167] sm:$0x1] %vm261, 0.0
      %281 = vst.msk [vmem:[%s268 + $0x187] sm:$0x1] %vm261, 0.0
      %282 = vst.msk [vmem:[%s268 + $0x1a7] sm:$0x1] %vm261, 0.0
      %283 = vst.msk [vmem:[%s268 + $0x1c7] sm:$0x1] %vm261, 0.0
      %284 = vst.msk [vmem:[%s268 + $0x1e7] sm:$0x1] %vm261, 0.0
      %285 = vst.msk [vmem:[%s268 + $0x18] sm:$0x1] %vm261, 0.0
      %286 = vst.msk [vmem:[%s268 + $0x38] sm:$0x1] %vm261, 0.0
      %287 = vst.msk [vmem:[%s268 + $0x58] sm:$0x1] %vm261, 0.0
      %288 = vst.msk [vmem:[%s268 + $0x78] sm:$0x1] %vm261, 0.0
      %289 = vst.msk [vmem:[%s268 + $0x98] sm:$0x1] %vm261, 0.0
      %290 = vst.msk [vmem:[%s268 + $0xb8] sm:$0x1] %vm261, 0.0
      %291 = vst.msk [vmem:[%s268 + $0xd8] sm:$0x1] %vm261, 0.0
      %292 = vst.msk [vmem:[%s268 + $0xf8] sm:$0x1] %vm261, 0.0
      %293 = vst.msk [vmem:[%s268 + $0x118] sm:$0x1] %vm261, 0.0
      %294 = vst.msk [vmem:[%s268 + $0x138] sm:$0x1] %vm261, 0.0
      %295 = vst.msk [vmem:[%s268 + $0x158] sm:$0x1] %vm261, 0.0
      %296 = vst.msk [vmem:[%s268 + $0x178] sm:$0x1] %vm261, 0.0
      %297 = vst.msk [vmem:[%s268 + $0x198] sm:$0x1] %vm261, 0.0
      %298 = vst.msk [vmem:[%s268 + $0x1b8] sm:$0x1] %vm261, 0.0
      %299 = vst.msk [vmem:[%s268 + $0x1d8] sm:$0x1] %vm261, 0.0
      %300 = vst.msk [vmem:[%s268 + $0x1f8] sm:$0x1] %vm261, 0.0
      %v301 = vmax.f32 %v225, 0.0
      %v302 = vmax.f32 %v226, 0.0
      %v303 = vmax.f32 %v227, 0.0
      %v304 = vmax.f32 %v228, 0.0
      %v305 = vmax.f32 %v229, 0.0
      %v306 = vmax.f32 %v230, 0.0
      %v307 = vmax.f32 %v231, 0.0
      %v308 = vmax.f32 %v232, 0.0
      %v309 = vmax.f32 %v233, 0.0
      %v310 = vmax.f32 %v234, 0.0
      %v311 = vmax.f32 %v235, 0.0
      %v312 = vmax.f32 %v236, 0.0
      %v313 = vmax.f32 %v237, 0.0
      %v314 = vmax.f32 %v238, 0.0
      %v315 = vmax.f32 %v239, 0.0
      %v316 = vmax.f32 %v240, 0.0
      %v317 = vmax.f32 %v241, 0.0
      %v318 = vmax.f32 %v242, 0.0
      %v319 = vmax.f32 %v243, 0.0
      %v320 = vmax.f32 %v244, 0.0
      %v321 = vmax.f32 %v245, 0.0
      %v322 = vmax.f32 %v246, 0.0
      %v323 = vmax.f32 %v247, 0.0
      %v324 = vmax.f32 %v248, 0.0
      %v325 = vmax.f32 %v249, 0.0
      %v326 = vmax.f32 %v250, 0.0
      %v327 = vmax.f32 %v251, 0.0
      %v328 = vmax.f32 %v252, 0.0
      %v329 = vmax.f32 %v253, 0.0
      %v330 = vmax.f32 %v254, 0.0
      %v331 = vmax.f32 %v255, 0.0
      %v332 = vmax.f32 %v256, 0.0
      %333 = vst.msk [vmem:[%s268 + $0x8] sm:$0xff] %vm257, %v301
      %334 = vst.msk [vmem:[%s268 + $0x10] sm:$0xff] %vm257, %v302
      %335 = vst.msk [vmem:[%s268 + $0x28] sm:$0xff] %vm257, %v303
      %336 = vst.msk [vmem:[%s268 + $0x30] sm:$0xff] %vm257, %v304
      %337 = vst.msk [vmem:[%s268 + $0x48] sm:$0xff] %vm257, %v305
      %338 = vst.msk [vmem:[%s268 + $0x50] sm:$0xff] %vm257, %v306
      %339 = vst.msk [vmem:[%s268 + $0x68] sm:$0xff] %vm257, %v307
      %340 = vst.msk [vmem:[%s268 + $0x70] sm:$0xff] %vm257, %v308
      %341 = vst.msk [vmem:[%s268 + $0x88] sm:$0xff] %vm257, %v309
      %342 = vst.msk [vmem:[%s268 + $0x90] sm:$0xff] %vm257, %v310
      %343 = vst.msk [vmem:[%s268 + $0xa8] sm:$0xff] %vm257, %v311
      %344 = vst.msk [vmem:[%s268 + $0xb0] sm:$0xff] %vm257, %v312
      %345 = vst.msk [vmem:[%s268 + $0xc8] sm:$0xff] %vm257, %v313
      %346 = vst.msk [vmem:[%s268 + $0xd0] sm:$0xff] %vm257, %v314
      %347 = vst.msk [vmem:[%s268 + $0xe8] sm:$0xff] %vm257, %v315
      %348 = vst.msk [vmem:[%s268 + $0xf0] sm:$0xff] %vm257, %v316
      %349 = vst.msk [vmem:[%s268 + $0x108] sm:$0xff] %vm257, %v317
      %350 = vst.msk [vmem:[%s268 + $0x110] sm:$0xff] %vm257, %v318
      %351 = vst.msk [vmem:[%s268 + $0x128] sm:$0xff] %vm257, %v319
      %352 = vst.msk [vmem:[%s268 + $0x130] sm:$0xff] %vm257, %v320
      %353 = vst.msk [vmem:[%s268 + $0x148] sm:$0xff] %vm257, %v321
      %354 = vst.msk [vmem:[%s268 + $0x150] sm:$0xff] %vm257, %v322
      %355 = vst.msk [vmem:[%s268 + $0x168] sm:$0xff] %vm257, %v323
      %356 = vst.msk [vmem:[%s268 + $0x170] sm:$0xff] %vm257, %v324
      %357 = vst.msk [vmem:[%s268 + $0x188] sm:$0xff] %vm257, %v325
      %358 = vst.msk [vmem:[%s268 + $0x190] sm:$0xff] %vm257, %v326
      %359 = vst.msk [vmem:[%s268 + $0x1a8] sm:$0xff] %vm257, %v327
      %360 = vst.msk [vmem:[%s268 + $0x1b0] sm:$0xff] %vm257, %v328
      %361 = vst.msk [vmem:[%s268 + $0x1c8] sm:$0xff] %vm257, %v329
      %362 = vst.msk [vmem:[%s268 + $0x1d0] sm:$0xff] %vm257, %v330
      %363 = vst.msk [vmem:[%s268 + $0x1e8] sm:$0xff] %vm257, %v331
      %364 = vst.msk [vmem:[%s268 + $0x1f0] sm:$0xff] %vm257, %v332
      %v365 = vld [vmem:[#allocation2 + $0x7] sm:$0xff]
      %v366 = vld [vmem:[#allocation2 + $0xf] sm:$0xff]
      %v367 = vld [vmem:[#allocation2 + $0x27] sm:$0xff]
      %v368 = vld [vmem:[#allocation2 + $0x2f] sm:$0xff]
      %v369 = vld [vmem:[#allocation2 + $0x47] sm:$0xff]
      %v370 = vld [vmem:[#allocation2 + $0x4f] sm:$0xff]
      %v371 = vld [vmem:[#allocation2 + $0x67] sm:$0xff]
      %v372 = vld [vmem:[#allocation2 + $0x6f] sm:$0xff]
      %v373 = vld [vmem:[#allocation2 + $0x87] sm:$0xff]
      %v374 = vld [vmem:[#allocation2 + $0x8f] sm:$0xff]
      %v375 = vld [vmem:[#allocation2 + $0xa7] sm:$0xff]
      %v376 = vld [vmem:[#allocation2 + $0xaf] sm:$0xff]
      %v377 = vld [vmem:[#allocation2 + $0xc7] sm:$0xff]
      %v378 = vld [vmem:[#allocation2 + $0xcf] sm:$0xff]
      %v379 = vld [vmem:[#allocation2 + $0xe7] sm:$0xff]
      %v380 = vld [vmem:[#allocation2 + $0xef] sm:$0xff]
      %v381 = vld [vmem:[#allocation2 + $0x107] sm:$0xff]
      %v382 = vld [vmem:[#allocation2 + $0x10f] sm:$0xff]
      %v383 = vld [vmem:[#allocation2 + $0x127] sm:$0xff]
      %v384 = vld [vmem:[#allocation2 + $0x12f] sm:$0xff]
      %v385 = vld [vmem:[#allocation2 + $0x147] sm:$0xff]
      %v386 = vld [vmem:[#allocation2 + $0x14f] sm:$0xff]
      %v387 = vld [vmem:[#allocation2 + $0x167] sm:$0xff]
      %v388 = vld [vmem:[#allocation2 + $0x16f] sm:$0xff]
      %v389 = vld [vmem:[#allocation2 + $0x187] sm:$0xff]
      %v390 = vld [vmem:[#allocation2 + $0x18f] sm:$0xff]
      %v391 = vld [vmem:[#allocation2 + $0x1a7] sm:$0xff]
      %v392 = vld [vmem:[#allocation2 + $0x1af] sm:$0xff]
      %v393 = vld [vmem:[#allocation2 + $0x1c7] sm:$0xff]
      %v394 = vld [vmem:[#allocation2 + $0x1cf] sm:$0xff]
      %v395 = vld [vmem:[#allocation2 + $0x1e7] sm:$0xff]
      %v396 = vld [vmem:[#allocation2 + $0x1ef] sm:$0xff]
      %v397 = vld [vmem:[%s1] sm:$0xf]
      %v398 = vld [vmem:[#allocation2 + $0x8] sm:$0xff]
      %v399 = vld [vmem:[#allocation2 + $0x10] sm:$0xff]
      %v400 = vld [vmem:[#allocation2 + $0x28] sm:$0xff]
      %v401 = vld [vmem:[#allocation2 + $0x30] sm:$0xff]
      %v402 = vld [vmem:[#allocation2 + $0x48] sm:$0xff]
      %v403 = vld [vmem:[#allocation2 + $0x50] sm:$0xff]
      %v404 = vld [vmem:[#allocation2 + $0x68] sm:$0xff]
      %v405 = vld [vmem:[#allocation2 + $0x70] sm:$0xff]
      %v406 = vld [vmem:[#allocation2 + $0x88] sm:$0xff]
      %v407 = vld [vmem:[#allocation2 + $0x90] sm:$0xff]
      %v408 = vld [vmem:[#allocation2 + $0xa8] sm:$0xff]
      %v409 = vld [vmem:[#allocation2 + $0xb0] sm:$0xff]
      %v410 = vld [vmem:[#allocation2 + $0xc8] sm:$0xff]
      %v411 = vld [vmem:[#allocation2 + $0xd0] sm:$0xff]
      %v412 = vld [vmem:[#allocation2 + $0xe8] sm:$0xff]
      %v413 = vld [vmem:[#allocation2 + $0xf0] sm:$0xff]
      %v414 = vld [vmem:[#allocation2 + $0x108] sm:$0xff]
      %v415 = vld [vmem:[#allocation2 + $0x110] sm:$0xff]
      %v416 = vld [vmem:[#allocation2 + $0x128] sm:$0xff]
      %v417 = vld [vmem:[#allocation2 + $0x130] sm:$0xff]
      %v418 = vld [vmem:[#allocation2 + $0x148] sm:$0xff]
      %v419 = vld [vmem:[#allocation2 + $0x150] sm:$0xff]
      %v420 = vld [vmem:[#allocation2 + $0x168] sm:$0xff]
      %v421 = vld [vmem:[#allocation2 + $0x170] sm:$0xff]
      %v422 = vld [vmem:[#allocation2 + $0x188] sm:$0xff]
      %v423 = vld [vmem:[#allocation2 + $0x190] sm:$0xff]
      %v424 = vld [vmem:[#allocation2 + $0x1a8] sm:$0xff]
      %v425 = vld [vmem:[#allocation2 + $0x1b0] sm:$0xff]
      %v426 = vld [vmem:[#allocation2 + $0x1c8] sm:$0xff]
      %v427 = vld [vmem:[#allocation2 + $0x1d0] sm:$0xff]
      %v428 = vld [vmem:[#allocation2 + $0x1e8] sm:$0xff]
      %v429 = vld [vmem:[#allocation2 + $0x1f0] sm:$0xff]
      %v430 = vld [vmem:[%s1 + $0x4] sm:$0xf]
      %v432 = vsel %vm257, %v398, 0
      %v435 = vsel %vm257, %v399, 0
      %v438 = vsel %vm257, %v400, 0
      %v441 = vsel %vm257, %v401, 0
      %v444 = vsel %vm257, %v402, 0
      %v447 = vsel %vm257, %v403, 0
      %v450 = vsel %vm257, %v404, 0
      %v453 = vsel %vm257, %v405, 0
      %v456 = vsel %vm257, %v406, 0
      %v459 = vsel %vm257, %v407, 0
      %v462 = vsel %vm257, %v408, 0
      %v465 = vsel %vm257, %v409, 0
      %v468 = vsel %vm257, %v410, 0
      %v471 = vsel %vm257, %v411, 0
      %v474 = vsel %vm257, %v412, 0
      %v477 = vsel %vm257, %v413, 0
      %v480 = vsel %vm257, %v414, 0
      %v483 = vsel %vm257, %v415, 0
      %v486 = vsel %vm257, %v416, 0
      %v489 = vsel %vm257, %v417, 0
      %v492 = vsel %vm257, %v418, 0
      %v495 = vsel %vm257, %v419, 0
      %v498 = vsel %vm257, %v420, 0
      %v501 = vsel %vm257, %v421, 0
      %v504 = vsel %vm257, %v422, 0
      %v507 = vsel %vm257, %v423, 0
      %v510 = vsel %vm257, %v424, 0
      %v513 = vsel %vm257, %v425, 0
      %v516 = vsel %vm257, %v426, 0
      %v519 = vsel %vm257, %v427, 0
      %v522 = vsel %vm257, %v428, 0
      %v525 = vsel %vm257, %v429, 0
      %vm527 = vcmask 1043456
      %v529 = vsel %vm527, %v430, 0
      %531 = vmatprep.subr.mxu0 0.0
      %532 = vmatpush1.msra.mxu0 %v529
      %533 = vmatprep.subr.mxu0 0.0
      %534 = vmatpush1.msra.mxu0 0.0
      %535 = vmatprep.subr.mxu0 0.0
      %536 = vmatpush1.msra.mxu0 0.0
      %537 = vmatprep.subr.mxu0 0.0
      %538 = vmatpush1.msra.mxu0 0.0
      %539 = vmatprep.subr.mxu0 0.0
      %540 = vmatpush1.msra.mxu0 0.0
      %541 = vmatprep.subr.mxu0 0.0
      %542 = vmatpush1.msra.mxu0 0.0
      %543 = vmatprep.subr.mxu0 0.0
      %544 = vmatpush1.msra.mxu0 0.0
      %545 = vmatprep.subr.mxu0 0.0
      %546 = vmatpush1.msra.mxu0 0.0
      %547 = vmatprep.subr.mxu0 0.0
      %548 = vmatpush1.msra.mxu0 0.0
      %549 = vmatprep.subr.mxu0 0.0
      %550 = vmatpush1.msra.mxu0 0.0
      %551 = vmatprep.subr.mxu0 0.0
      %552 = vmatpush1.msra.mxu0 0.0
      %553 = vmatprep.subr.mxu0 0.0
      %554 = vmatpush1.msra.mxu0 0.0
      %555 = vmatprep.subr.mxu0 0.0
      %556 = vmatpush1.msra.mxu0 0.0
      %557 = vmatprep.subr.mxu0 0.0
      %558 = vmatpush1.msra.mxu0 0.0
      %559 = vmatprep.subr.mxu0 0.0
      %560 = vmatpush1.msra.mxu0 0.0
      %561 = vmatprep.subr.mxu0 0.0
      %562 = vmatpush1.msra.mxu0 0.0
      %563 = vmatprep.subr.mxu0 0.0
      %564 = vmatpush1.msra.mxu0 0.0
      %565 = vmatprep.subr.mxu0 0.0
      %566 = vmatpush1.msra.mxu0 0.0
      %567 = vmatprep.subr.mxu0 0.0
      %568 = vmatpush1.msra.mxu0 0.0
      %569 = vmatprep.subr.mxu0 0.0
      %570 = vmatpush1.msra.mxu0 0.0
      %571 = vmatprep.subr.mxu0 0.0
      %572 = vmatpush1.msra.mxu0 0.0
      %573 = vmatprep.subr.mxu0 0.0
      %574 = vmatpush1.msra.mxu0 0.0
      %575 = vmatprep.subr.mxu0 0.0
      %576 = vmatpush1.msra.mxu0 0.0
      %577 = vmatprep.subr.mxu0 0.0
      %578 = vmatpush1.msra.mxu0 0.0
      %579 = vmatprep.subr.mxu0 0.0
      %580 = vmatpush1.msra.mxu0 0.0
      %581 = vmatprep.subr.mxu0 0.0
      %582 = vmatpush1.msra.mxu0 0.0
      %583 = vmatprep.subr.mxu0 0.0
      %584 = vmatpush1.msra.mxu0 0.0
      %585 = vmatprep.subr.mxu0 0.0
      %586 = vmatpush1.msra.mxu0 0.0
      %587 = vmatprep.subr.mxu0 0.0
      %588 = vmatpush1.msra.mxu0 0.0
      %589 = vmatprep.subr.mxu0 0.0
      %590 = vmatpush1.msra.mxu0 0.0
      %591 = vmatprep.subr.mxu0 0.0
      %592 = vmatpush1.msra.mxu0 0.0
      %593 = vmatprep.subr.mxu0 0.0
      %594 = vmatpush1.msra.mxu0 0.0
      %595 = vmatprep.mubr.f32.mxu0 0.0
      %596 = vmatmul.mubr.f32.gmra.mrb[0].mxu0 %v432
      %v597 = vpop.f32.mrb[0].mxu0
      %v598 = vadd.f32 0.0, %v597
      %v599 = vpop.f32.mrb[0].mxu0
      %600 = vmatprep.mubr.f32.mxu0 0.0
      %601 = vmatmul.mubr.f32.gmra.mrb[0].mxu0 %v435
      %v602 = vpop.f32.mrb[0].mxu0
      %v603 = vadd.f32 0.0, %v602
      %v604 = vpop.f32.mrb[0].mxu0
      %605 = vmatprep.mubr.f32.mxu0 0.0
      %606 = vmatmul.mubr.f32.gmra.mrb[0].mxu0 %v438
      %v607 = vpop.f32.mrb[0].mxu0
      %v608 = vadd.f32 0.0, %v607
      %v609 = vpop.f32.mrb[0].mxu0
      %610 = vmatprep.mubr.f32.mxu0 0.0
      %611 = vmatmul.mubr.f32.gmra.mrb[0].mxu0 %v441
      %v612 = vpop.f32.mrb[0].mxu0
      %v613 = vadd.f32 0.0, %v612
      %v614 = vpop.f32.mrb[0].mxu0
      %615 = vmatprep.mubr.f32.mxu0 0.0
      %616 = vmatmul.mubr.f32.gmra.mrb[0].mxu0 %v444
      %v617 = vpop.f32.mrb[0].mxu0
      %v618 = vadd.f32 0.0, %v617
      %v619 = vpop.f32.mrb[0].mxu0
      %620 = vmatprep.mubr.f32.mxu0 0.0
      %621 = vmatmul.mubr.f32.gmra.mrb[0].mxu0 %v447
      %v622 = vpop.f32.mrb[0].mxu0
      %v623 = vadd.f32 0.0, %v622
      %v624 = vpop.f32.mrb[0].mxu0
      %625 = vmatprep.mubr.f32.mxu0 0.0
      %626 = vmatmul.mubr.f32.gmra.mrb[0].mxu0 %v450
      %v627 = vpop.f32.mrb[0].mxu0
      %v628 = vadd.f32 0.0, %v627
      %v629 = vpop.f32.mrb[0].mxu0
      %630 = vmatprep.mubr.f32.mxu0 0.0
      %631 = vmatmul.mubr.f32.gmra.mrb[0].mxu0 %v453
      %v632 = vpop.f32.mrb[0].mxu0
      %v633 = vadd.f32 0.0, %v632
      %v634 = vpop.f32.mrb[0].mxu0
      %635 = vmatprep.mubr.f32.mxu0 0.0
      %636 = vmatmul.mubr.f32.gmra.mrb[0].mxu0 %v456
      %v637 = vpop.f32.mrb[0].mxu0
      %v638 = vadd.f32 0.0, %v637
      %v639 = vpop.f32.mrb[0].mxu0
      %640 = vmatprep.mubr.f32.mxu0 0.0
      %641 = vmatmul.mubr.f32.gmra.mrb[0].mxu0 %v459
      %v642 = vpop.f32.mrb[0].mxu0
      %v643 = vadd.f32 0.0, %v642
      %v644 = vpop.f32.mrb[0].mxu0
      %645 = vmatprep.mubr.f32.mxu0 0.0
      %646 = vmatmul.mubr.f32.gmra.mrb[0].mxu0 %v462
      %v647 = vpop.f32.mrb[0].mxu0
      %v648 = vadd.f32 0.0, %v647
      %v649 = vpop.f32.mrb[0].mxu0
      %650 = vmatprep.mubr.f32.mxu0 0.0
      %651 = vmatmul.mubr.f32.gmra.mrb[0].mxu0 %v465
      %v652 = vpop.f32.mrb[0].mxu0
      %v653 = vadd.f32 0.0, %v652
      %v654 = vpop.f32.mrb[0].mxu0
      %655 = vmatprep.mubr.f32.mxu0 0.0
      %656 = vmatmul.mubr.f32.gmra.mrb[0].mxu0 %v468
      %v657 = vpop.f32.mrb[0].mxu0
      %v658 = vadd.f32 0.0, %v657
      %v659 = vpop.f32.mrb[0].mxu0
      %660 = vmatprep.mubr.f32.mxu0 0.0
      %661 = vmatmul.mubr.f32.gmra.mrb[0].mxu0 %v471
      %v662 = vpop.f32.mrb[0].mxu0
      %v663 = vadd.f32 0.0, %v662
      %v664 = vpop.f32.mrb[0].mxu0
      %665 = vmatprep.mubr.f32.mxu0 0.0
      %666 = vmatmul.mubr.f32.gmra.mrb[0].mxu0 %v474
      %v667 = vpop.f32.mrb[0].mxu0
      %v668 = vadd.f32 0.0, %v667
      %v669 = vpop.f32.mrb[0].mxu0
      %670 = vmatprep.mubr.f32.mxu0 0.0
      %671 = vmatmul.mubr.f32.gmra.mrb[0].mxu0 %v477
      %v672 = vpop.f32.mrb[0].mxu0
      %v673 = vadd.f32 0.0, %v672
      %v674 = vpop.f32.mrb[0].mxu0
      %675 = vmatprep.mubr.f32.mxu0 0.0
      %676 = vmatmul.mubr.f32.gmra.mrb[0].mxu0 %v480
      %v677 = vpop.f32.mrb[0].mxu0
      %v678 = vadd.f32 0.0, %v677
      %v679 = vpop.f32.mrb[0].mxu0
      %680 = vmatprep.mubr.f32.mxu0 0.0
      %681 = vmatmul.mubr.f32.gmra.mrb[0].mxu0 %v483
      %v682 = vpop.f32.mrb[0].mxu0
      %v683 = vadd.f32 0.0, %v682
      %v684 = vpop.f32.mrb[0].mxu0
      %685 = vmatprep.mubr.f32.mxu0 0.0
      %686 = vmatmul.mubr.f32.gmra.mrb[0].mxu0 %v486
      %v687 = vpop.f32.mrb[0].mxu0
      %v688 = vadd.f32 0.0, %v687
      %v689 = vpop.f32.mrb[0].mxu0
      %690 = vmatprep.mubr.f32.mxu0 0.0
      %691 = vmatmul.mubr.f32.gmra.mrb[0].mxu0 %v489
      %v692 = vpop.f32.mrb[0].mxu0
      %v693 = vadd.f32 0.0, %v692
      %v694 = vpop.f32.mrb[0].mxu0
      %695 = vmatprep.mubr.f32.mxu0 0.0
      %696 = vmatmul.mubr.f32.gmra.mrb[0].mxu0 %v492
      %v697 = vpop.f32.mrb[0].mxu0
      %v698 = vadd.f32 0.0, %v697
      %v699 = vpop.f32.mrb[0].mxu0
      %700 = vmatprep.mubr.f32.mxu0 0.0
      %701 = vmatmul.mubr.f32.gmra.mrb[0].mxu0 %v495
      %v702 = vpop.f32.mrb[0].mxu0
      %v703 = vadd.f32 0.0, %v702
      %v704 = vpop.f32.mrb[0].mxu0
      %705 = vmatprep.mubr.f32.mxu0 0.0
      %706 = vmatmul.mubr.f32.gmra.mrb[0].mxu0 %v498
      %v707 = vpop.f32.mrb[0].mxu0
      %v708 = vadd.f32 0.0, %v707
      %v709 = vpop.f32.mrb[0].mxu0
      %710 = vmatprep.mubr.f32.mxu0 0.0
      %711 = vmatmul.mubr.f32.gmra.mrb[0].mxu0 %v501
      %v712 = vpop.f32.mrb[0].mxu0
      %v713 = vadd.f32 0.0, %v712
      %v714 = vpop.f32.mrb[0].mxu0
      %715 = vmatprep.mubr.f32.mxu0 0.0
      %716 = vmatmul.mubr.f32.gmra.mrb[0].mxu0 %v504
      %v717 = vpop.f32.mrb[0].mxu0
      %v718 = vadd.f32 0.0, %v717
      %v719 = vpop.f32.mrb[0].mxu0
      %720 = vmatprep.mubr.f32.mxu0 0.0
      %721 = vmatmul.mubr.f32.gmra.mrb[0].mxu0 %v507
      %v722 = vpop.f32.mrb[0].mxu0
      %v723 = vadd.f32 0.0, %v722
      %v724 = vpop.f32.mrb[0].mxu0
      %725 = vmatprep.mubr.f32.mxu0 0.0
      %726 = vmatmul.mubr.f32.gmra.mrb[0].mxu0 %v510
      %v727 = vpop.f32.mrb[0].mxu0
      %v728 = vadd.f32 0.0, %v727
      %v729 = vpop.f32.mrb[0].mxu0
      %730 = vmatprep.mubr.f32.mxu0 0.0
      %731 = vmatmul.mubr.f32.gmra.mrb[0].mxu0 %v513
      %v732 = vpop.f32.mrb[0].mxu0
      %v733 = vadd.f32 0.0, %v732
      %v734 = vpop.f32.mrb[0].mxu0
      %735 = vmatprep.mubr.f32.mxu0 0.0
      %736 = vmatmul.mubr.f32.gmra.mrb[0].mxu0 %v516
      %v737 = vpop.f32.mrb[0].mxu0
      %v738 = vadd.f32 0.0, %v737
      %v739 = vpop.f32.mrb[0].mxu0
      %740 = vmatprep.mubr.f32.mxu0 0.0
      %741 = vmatmul.mubr.f32.gmra.mrb[0].mxu0 %v519
      %v742 = vpop.f32.mrb[0].mxu0
      %v743 = vadd.f32 0.0, %v742
      %v744 = vpop.f32.mrb[0].mxu0
      %745 = vmatprep.mubr.f32.mxu0 0.0
      %746 = vmatmul.mubr.f32.gmra.mrb[0].mxu0 %v522
      %v747 = vpop.f32.mrb[0].mxu0
      %v748 = vadd.f32 0.0, %v747
      %v749 = vpop.f32.mrb[0].mxu0
      %750 = vmatprep.mubr.f32.mxu0 0.0
      %751 = vmatmul.mubr.f32.gmra.mrb[0].mxu0 %v525
      %v752 = vpop.f32.mrb[0].mxu0
      %v753 = vadd.f32 0.0, %v752
      %v754 = vpop.f32.mrb[0].mxu0
      %755 = vdwg.mxu0
      %v757 = vsel %vm257, %v365, 0
      %v760 = vsel %vm257, %v366, 0
      %v763 = vsel %vm257, %v367, 0
      %v766 = vsel %vm257, %v368, 0
      %v769 = vsel %vm257, %v369, 0
      %v772 = vsel %vm257, %v370, 0
      %v775 = vsel %vm257, %v371, 0
      %v778 = vsel %vm257, %v372, 0
      %v781 = vsel %vm257, %v373, 0
      %v784 = vsel %vm257, %v374, 0
      %v787 = vsel %vm257, %v375, 0
      %v790 = vsel %vm257, %v376, 0
      %v793 = vsel %vm257, %v377, 0
      %v796 = vsel %vm257, %v378, 0
      %v799 = vsel %vm257, %v379, 0
      %v802 = vsel %vm257, %v380, 0
      %v805 = vsel %vm257, %v381, 0
      %v808 = vsel %vm257, %v382, 0
      %v811 = vsel %vm257, %v383, 0
      %v814 = vsel %vm257, %v384, 0
      %v817 = vsel %vm257, %v385, 0
      %v820 = vsel %vm257, %v386, 0
      %v823 = vsel %vm257, %v387, 0
      %v826 = vsel %vm257, %v388, 0
      %v829 = vsel %vm257, %v389, 0
      %v832 = vsel %vm257, %v390, 0
      %v835 = vsel %vm257, %v391, 0
      %v838 = vsel %vm257, %v392, 0
      %v841 = vsel %vm257, %v393, 0
      %v844 = vsel %vm257, %v394, 0
      %v847 = vsel %vm257, %v395, 0
      %v850 = vsel %vm257, %v396, 0
      %v853 = vsel %vm527, %v397, 0
      %855 = vmatprep.subr.mxu0 0.0
      %856 = vmatpush1.msra.mxu0 %v853
      %857 = vmatprep.subr.mxu0 0.0
      %858 = vmatpush1.msra.mxu0 0.0
      %859 = vmatprep.subr.mxu0 0.0
      %860 = vmatpush1.msra.mxu0 0.0
      %861 = vmatprep.subr.mxu0 0.0
      %862 = vmatpush1.msra.mxu0 0.0
      %863 = vmatprep.subr.mxu0 0.0
      %864 = vmatpush1.msra.mxu0 0.0
      %865 = vmatprep.subr.mxu0 0.0
      %866 = vmatpush1.msra.mxu0 0.0
      %867 = vmatprep.subr.mxu0 0.0
      %868 = vmatpush1.msra.mxu0 0.0
      %869 = vmatprep.subr.mxu0 0.0
      %870 = vmatpush1.msra.mxu0 0.0
      %871 = vmatprep.subr.mxu0 0.0
      %872 = vmatpush1.msra.mxu0 0.0
      %873 = vmatprep.subr.mxu0 0.0
      %874 = vmatpush1.msra.mxu0 0.0
      %875 = vmatprep.subr.mxu0 0.0
      %876 = vmatpush1.msra.mxu0 0.0
      %877 = vmatprep.subr.mxu0 0.0
      %878 = vmatpush1.msra.mxu0 0.0
      %879 = vmatprep.subr.mxu0 0.0
      %880 = vmatpush1.msra.mxu0 0.0
      %881 = vmatprep.subr.mxu0 0.0
      %882 = vmatpush1.msra.mxu0 0.0
      %883 = vmatprep.subr.mxu0 0.0
      %884 = vmatpush1.msra.mxu0 0.0
      %885 = vmatprep.subr.mxu0 0.0
      %886 = vmatpush1.msra.mxu0 0.0
      %887 = vmatprep.subr.mxu0 0.0
      %888 = vmatpush1.msra.mxu0 0.0
      %889 = vmatprep.subr.mxu0 0.0
      %890 = vmatpush1.msra.mxu0 0.0
      %891 = vmatprep.subr.mxu0 0.0
      %892 = vmatpush1.msra.mxu0 0.0
      %893 = vmatprep.subr.mxu0 0.0
      %894 = vmatpush1.msra.mxu0 0.0
      %895 = vmatprep.subr.mxu0 0.0
      %896 = vmatpush1.msra.mxu0 0.0
      %897 = vmatprep.subr.mxu0 0.0
      %898 = vmatpush1.msra.mxu0 0.0
      %899 = vmatprep.subr.mxu0 0.0
      %900 = vmatpush1.msra.mxu0 0.0
      %901 = vmatprep.subr.mxu0 0.0
      %902 = vmatpush1.msra.mxu0 0.0
      %903 = vmatprep.subr.mxu0 0.0
      %904 = vmatpush1.msra.mxu0 0.0
      %905 = vmatprep.subr.mxu0 0.0
      %906 = vmatpush1.msra.mxu0 0.0
      %907 = vmatprep.subr.mxu0 0.0
      %908 = vmatpush1.msra.mxu0 0.0
      %909 = vmatprep.subr.mxu0 0.0
      %910 = vmatpush1.msra.mxu0 0.0
      %911 = vmatprep.subr.mxu0 0.0
      %912 = vmatpush1.msra.mxu0 0.0
      %913 = vmatprep.subr.mxu0 0.0
      %914 = vmatpush1.msra.mxu0 0.0
      %915 = vmatprep.subr.mxu0 0.0
      %916 = vmatpush1.msra.mxu0 0.0
      %917 = vmatprep.subr.mxu0 0.0
      %918 = vmatpush1.msra.mxu0 0.0
      %919 = vmatprep.mubr.f32.mxu0 0.0
      %920 = vmatmul.mubr.f32.gmra.mrb[0].mxu0 %v757
      %v921 = vpop.f32.mrb[0].mxu0
      %v922 = vadd.f32 %v598, %v921
      %v923 = vpop.f32.mrb[0].mxu0
      %924 = vmatprep.mubr.f32.mxu0 0.0
      %925 = vmatmul.mubr.f32.gmra.mrb[0].mxu0 %v760
      %v926 = vpop.f32.mrb[0].mxu0
      %v927 = vadd.f32 %v603, %v926
      %v928 = vpop.f32.mrb[0].mxu0
      %929 = vmatprep.mubr.f32.mxu0 0.0
      %930 = vmatmul.mubr.f32.gmra.mrb[0].mxu0 %v763
      %v931 = vpop.f32.mrb[0].mxu0
      %v932 = vadd.f32 %v608, %v931
      %v933 = vpop.f32.mrb[0].mxu0
      %934 = vmatprep.mubr.f32.mxu0 0.0
      %935 = vmatmul.mubr.f32.gmra.mrb[0].mxu0 %v766
      %v936 = vpop.f32.mrb[0].mxu0
      %v937 = vadd.f32 %v613, %v936
      %v938 = vpop.f32.mrb[0].mxu0
      %939 = vmatprep.mubr.f32.mxu0 0.0
      %940 = vmatmul.mubr.f32.gmra.mrb[0].mxu0 %v769
      %v941 = vpop.f32.mrb[0].mxu0
      %v942 = vadd.f32 %v618, %v941
      %v943 = vpop.f32.mrb[0].mxu0
      %944 = vmatprep.mubr.f32.mxu0 0.0
      %945 = vmatmul.mubr.f32.gmra.mrb[0].mxu0 %v772
      %v946 = vpop.f32.mrb[0].mxu0
      %v947 = vadd.f32 %v623, %v946
      %v948 = vpop.f32.mrb[0].mxu0
      %949 = vmatprep.mubr.f32.mxu0 0.0
      %950 = vmatmul.mubr.f32.gmra.mrb[0].mxu0 %v775
      %v951 = vpop.f32.mrb[0].mxu0
      %v952 = vadd.f32 %v628, %v951
      %v953 = vpop.f32.mrb[0].mxu0
      %954 = vmatprep.mubr.f32.mxu0 0.0
      %955 = vmatmul.mubr.f32.gmra.mrb[0].mxu0 %v778
      %v956 = vpop.f32.mrb[0].mxu0
      %v957 = vadd.f32 %v633, %v956
      %v958 = vpop.f32.mrb[0].mxu0
      %959 = vmatprep.mubr.f32.mxu0 0.0
      %960 = vmatmul.mubr.f32.gmra.mrb[0].mxu0 %v781
      %v961 = vpop.f32.mrb[0].mxu0
      %v962 = vadd.f32 %v638, %v961
      %v963 = vpop.f32.mrb[0].mxu0
      %964 = vmatprep.mubr.f32.mxu0 0.0
      %965 = vmatmul.mubr.f32.gmra.mrb[0].mxu0 %v784
      %v966 = vpop.f32.mrb[0].mxu0
      %v967 = vadd.f32 %v643, %v966
      %v968 = vpop.f32.mrb[0].mxu0
      %969 = vmatprep.mubr.f32.mxu0 0.0
      %970 = vmatmul.mubr.f32.gmra.mrb[0].mxu0 %v787
      %v971 = vpop.f32.mrb[0].mxu0
      %v972 = vadd.f32 %v648, %v971
      %v973 = vpop.f32.mrb[0].mxu0
      %974 = vmatprep.mubr.f32.mxu0 0.0
      %975 = vmatmul.mubr.f32.gmra.mrb[0].mxu0 %v790
      %v976 = vpop.f32.mrb[0].mxu0
      %v977 = vadd.f32 %v653, %v976
      %v978 = vpop.f32.mrb[0].mxu0
      %979 = vmatprep.mubr.f32.mxu0 0.0
      %980 = vmatmul.mubr.f32.gmra.mrb[0].mxu0 %v793
      %v981 = vpop.f32.mrb[0].mxu0
      %v982 = vadd.f32 %v658, %v981
      %v983 = vpop.f32.mrb[0].mxu0
      %984 = vmatprep.mubr.f32.mxu0 0.0
      %985 = vmatmul.mubr.f32.gmra.mrb[0].mxu0 %v796
      %v986 = vpop.f32.mrb[0].mxu0
      %v987 = vadd.f32 %v663, %v986
      %v988 = vpop.f32.mrb[0].mxu0
      %989 = vmatprep.mubr.f32.mxu0 0.0
      %990 = vmatmul.mubr.f32.gmra.mrb[0].mxu0 %v799
      %v991 = vpop.f32.mrb[0].mxu0
      %v992 = vadd.f32 %v668, %v991
      %v993 = vpop.f32.mrb[0].mxu0
      %994 = vmatprep.mubr.f32.mxu0 0.0
      %995 = vmatmul.mubr.f32.gmra.mrb[0].mxu0 %v802
      %v996 = vpop.f32.mrb[0].mxu0
      %v997 = vadd.f32 %v673, %v996
      %v998 = vpop.f32.mrb[0].mxu0
      %999 = vmatprep.mubr.f32.mxu0 0.0
      %1000 = vmatmul.mubr.f32.gmra.mrb[0].mxu0 %v805
      %v1001 = vpop.f32.mrb[0].mxu0
      %v1002 = vadd.f32 %v678, %v1001
      %v1003 = vpop.f32.mrb[0].mxu0
      %1004 = vmatprep.mubr.f32.mxu0 0.0
      %1005 = vmatmul.mubr.f32.gmra.mrb[0].mxu0 %v808
      %v1006 = vpop.f32.mrb[0].mxu0
      %v1007 = vadd.f32 %v683, %v1006
      %v1008 = vpop.f32.mrb[0].mxu0
      %1009 = vmatprep.mubr.f32.mxu0 0.0
      %1010 = vmatmul.mubr.f32.gmra.mrb[0].mxu0 %v811
      %v1011 = vpop.f32.mrb[0].mxu0
      %v1012 = vadd.f32 %v688, %v1011
      %v1013 = vpop.f32.mrb[0].mxu0
      %1014 = vmatprep.mubr.f32.mxu0 0.0
      %1015 = vmatmul.mubr.f32.gmra.mrb[0].mxu0 %v814
      %v1016 = vpop.f32.mrb[0].mxu0
      %v1017 = vadd.f32 %v693, %v1016
      %v1018 = vpop.f32.mrb[0].mxu0
      %1019 = vmatprep.mubr.f32.mxu0 0.0
      %1020 = vmatmul.mubr.f32.gmra.mrb[0].mxu0 %v817
      %v1021 = vpop.f32.mrb[0].mxu0
      %v1022 = vadd.f32 %v698, %v1021
      %v1023 = vpop.f32.mrb[0].mxu0
      %1024 = vmatprep.mubr.f32.mxu0 0.0
      %1025 = vmatmul.mubr.f32.gmra.mrb[0].mxu0 %v820
      %v1026 = vpop.f32.mrb[0].mxu0
      %v1027 = vadd.f32 %v703, %v1026
      %v1028 = vpop.f32.mrb[0].mxu0
      %1029 = vmatprep.mubr.f32.mxu0 0.0
      %1030 = vmatmul.mubr.f32.gmra.mrb[0].mxu0 %v823
      %v1031 = vpop.f32.mrb[0].mxu0
      %v1032 = vadd.f32 %v708, %v1031
      %v1033 = vpop.f32.mrb[0].mxu0
      %1034 = vmatprep.mubr.f32.mxu0 0.0
      %1035 = vmatmul.mubr.f32.gmra.mrb[0].mxu0 %v826
      %v1036 = vpop.f32.mrb[0].mxu0
      %v1037 = vadd.f32 %v713, %v1036
      %v1038 = vpop.f32.mrb[0].mxu0
      %1039 = vmatprep.mubr.f32.mxu0 0.0
      %1040 = vmatmul.mubr.f32.gmra.mrb[0].mxu0 %v829
      %v1041 = vpop.f32.mrb[0].mxu0
      %v1042 = vadd.f32 %v718, %v1041
      %v1043 = vpop.f32.mrb[0].mxu0
      %1044 = vmatprep.mubr.f32.mxu0 0.0
      %1045 = vmatmul.mubr.f32.gmra.mrb[0].mxu0 %v832
      %v1046 = vpop.f32.mrb[0].mxu0
      %v1047 = vadd.f32 %v723, %v1046
      %v1048 = vpop.f32.mrb[0].mxu0
      %1049 = vmatprep.mubr.f32.mxu0 0.0
      %1050 = vmatmul.mubr.f32.gmra.mrb[0].mxu0 %v835
      %v1051 = vpop.f32.mrb[0].mxu0
      %v1052 = vadd.f32 %v728, %v1051
      %v1053 = vpop.f32.mrb[0].mxu0
      %1054 = vmatprep.mubr.f32.mxu0 0.0
      %1055 = vmatmul.mubr.f32.gmra.mrb[0].mxu0 %v838
      %v1056 = vpop.f32.mrb[0].mxu0
      %v1057 = vadd.f32 %v733, %v1056
      %v1058 = vpop.f32.mrb[0].mxu0
      %1059 = vmatprep.mubr.f32.mxu0 0.0
      %1060 = vmatmul.mubr.f32.gmra.mrb[0].mxu0 %v841
      %v1061 = vpop.f32.mrb[0].mxu0
      %v1062 = vadd.f32 %v738, %v1061
      %v1063 = vpop.f32.mrb[0].mxu0
      %1064 = vmatprep.mubr.f32.mxu0 0.0
      %1065 = vmatmul.mubr.f32.gmra.mrb[0].mxu0 %v844
      %v1066 = vpop.f32.mrb[0].mxu0
      %v1067 = vadd.f32 %v743, %v1066
      %v1068 = vpop.f32.mrb[0].mxu0
      %1069 = vmatprep.mubr.f32.mxu0 0.0
      %1070 = vmatmul.mubr.f32.gmra.mrb[0].mxu0 %v847
      %v1071 = vpop.f32.mrb[0].mxu0
      %v1072 = vadd.f32 %v748, %v1071
      %v1073 = vpop.f32.mrb[0].mxu0
      %1074 = vmatprep.mubr.f32.mxu0 0.0
      %1075 = vmatmul.mubr.f32.gmra.mrb[0].mxu0 %v850
      %v1076 = vpop.f32.mrb[0].mxu0
      %v1077 = vadd.f32 %v753, %v1076
      %v1078 = vpop.f32.mrb[0].mxu0
      %1079 = vdwg.mxu0
      %v1080 = vld [vmem:[#allocation2 + $0x9] sm:$0xff]
      %v1081 = vld [vmem:[#allocation2 + $0x11] sm:$0xff]
      %v1082 = vld [vmem:[#allocation2 + $0x29] sm:$0xff]
      %v1083 = vld [vmem:[#allocation2 + $0x31] sm:$0xff]
      %v1084 = vld [vmem:[#allocation2 + $0x49] sm:$0xff]
      %v1085 = vld [vmem:[#allocation2 + $0x51] sm:$0xff]
      %v1086 = vld [vmem:[#allocation2 + $0x69] sm:$0xff]
      %v1087 = vld [vmem:[#allocation2 + $0x71] sm:$0xff]
      %v1088 = vld [vmem:[#allocation2 + $0x89] sm:$0xff]
      %v1089 = vld [vmem:[#allocation2 + $0x91] sm:$0xff]
      %v1090 = vld [vmem:[#allocation2 + $0xa9] sm:$0xff]
      %v1091 = vld [vmem:[#allocation2 + $0xb1] sm:$0xff]
      %v1092 = vld [vmem:[#allocation2 + $0xc9] sm:$0xff]
      %v1093 = vld [vmem:[#allocation2 + $0xd1] sm:$0xff]
      %v1094 = vld [vmem:[#allocation2 + $0xe9] sm:$0xff]
      %v1095 = vld [vmem:[#allocation2 + $0xf1] sm:$0xff]
      %v1096 = vld [vmem:[#allocation2 + $0x109] sm:$0xff]
      %v1097 = vld [vmem:[#allocation2 + $0x111] sm:$0xff]
      %v1098 = vld [vmem:[#allocation2 + $0x129] sm:$0xff]
      %v1099 = vld [vmem:[#allocation2 + $0x131] sm:$0xff]
      %v1100 = vld [vmem:[#allocation2 + $0x149] sm:$0xff]
      %v1101 = vld [vmem:[#allocation2 + $0x151] sm:$0xff]
      %v1102 = vld [vmem:[#allocation2 + $0x169] sm:$0xff]
      %v1103 = vld [vmem:[#allocation2 + $0x171] sm:$0xff]
      %v1104 = vld [vmem:[#allocation2 + $0x189] sm:$0xff]
      %v1105 = vld [vmem:[#allocation2 + $0x191] sm:$0xff]
      %v1106 = vld [vmem:[#allocation2 + $0x1a9] sm:$0xff]
      %v1107 = vld [vmem:[#allocation2 + $0x1b1] sm:$0xff]
      %v1108 = vld [vmem:[#allocation2 + $0x1c9] sm:$0xff]
      %v1109 = vld [vmem:[#allocation2 + $0x1d1] sm:$0xff]
      %v1110 = vld [vmem:[#allocation2 + $0x1e9] sm:$0xff]
      %v1111 = vld [vmem:[#allocation2 + $0x1f1] sm:$0xff]
      %v1112 = vld [vmem:[%s1 + $0x8] sm:$0xf]
      %v1114 = vsel %vm257, %v1080, 0
      %v1117 = vsel %vm257, %v1081, 0
      %v1120 = vsel %vm257, %v1082, 0
      %v1123 = vsel %vm257, %v1083, 0
      %v1126 = vsel %vm257, %v1084, 0
      %v1129 = vsel %vm257, %v1085, 0
      %v1132 = vsel %vm257, %v1086, 0
      %v1135 = vsel %vm257, %v1087, 0
      %v1138 = vsel %vm257, %v1088, 0
      %v1141 = vsel %vm257, %v1089, 0
      %v1144 = vsel %vm257, %v1090, 0
      %v1147 = vsel %vm257, %v1091, 0
      %v1150 = vsel %vm257, %v1092, 0
      %v1153 = vsel %vm257, %v1093, 0
      %v1156 = vsel %vm257, %v1094, 0
      %v1159 = vsel %vm257, %v1095, 0
      %v1162 = vsel %vm257, %v1096, 0
      %v1165 = vsel %vm257, %v1097, 0
      %v1168 = vsel %vm257, %v1098, 0
      %v1171 = vsel %vm257, %v1099, 0
      %v1174 = vsel %vm257, %v1100, 0
      %v1177 = vsel %vm257, %v1101, 0
      %v1180 = vsel %vm257, %v1102, 0
      %v1183 = vsel %vm257, %v1103, 0
      %v1186 = vsel %vm257, %v1104, 0
      %v1189 = vsel %vm257, %v1105, 0
      %v1192 = vsel %vm257, %v1106, 0
      %v1195 = vsel %vm257, %v1107, 0
      %v1198 = vsel %vm257, %v1108, 0
      %v1201 = vsel %vm257, %v1109, 0
      %v1204 = vsel %vm257, %v1110, 0
      %v1207 = vsel %vm257, %v1111, 0
      %v1210 = vsel %vm527, %v1112, 0
      %1212 = vmatprep.subr.mxu0 0.0
      %1213 = vmatpush1.msra.mxu0 %v1210
      %1214 = vmatprep.subr.mxu0 0.0
      %1215 = vmatpush1.msra.mxu0 0.0
      %1216 = vmatprep.subr.mxu0 0.0
      %1217 = vmatpush1.msra.mxu0 0.0
      %1218 = vmatprep.subr.mxu0 0.0
      %1219 = vmatpush1.msra.mxu0 0.0
      %1220 = vmatprep.subr.mxu0 0.0
      %1221 = vmatpush1.msra.mxu0 0.0
      %1222 = vmatprep.subr.mxu0 0.0
      %1223 = vmatpush1.msra.mxu0 0.0
      %1224 = vmatprep.subr.mxu0 0.0
      %1225 = vmatpush1.msra.mxu0 0.0
      %1226 = vmatprep.subr.mxu0 0.0
      %1227 = vmatpush1.msra.mxu0 0.0
      %1228 = vmatprep.subr.mxu0 0.0
      %1229 = vmatpush1.msra.mxu0 0.0
      %1230 = vmatprep.subr.mxu0 0.0
      %1231 = vmatpush1.msra.mxu0 0.0
      %1232 = vmatprep.subr.mxu0 0.0
      %1233 = vmatpush1.msra.mxu0 0.0
      %1234 = vmatprep.subr.mxu0 0.0
      %1235 = vmatpush1.msra.mxu0 0.0
      %1236 = vmatprep.subr.mxu0 0.0
      %1237 = vmatpush1.msra.mxu0 0.0
      %1238 = vmatprep.subr.mxu0 0.0
      %1239 = vmatpush1.msra.mxu0 0.0
      %1240 = vmatprep.subr.mxu0 0.0
      %1241 = vmatpush1.msra.mxu0 0.0
      %1242 = vmatprep.subr.mxu0 0.0
      %1243 = vmatpush1.msra.mxu0 0.0
      %1244 = vmatprep.subr.mxu0 0.0
      %1245 = vmatpush1.msra.mxu0 0.0
      %1246 = vmatprep.subr.mxu0 0.0
      %1247 = vmatpush1.msra.mxu0 0.0
      %1248 = vmatprep.subr.mxu0 0.0
      %1249 = vmatpush1.msra.mxu0 0.0
      %1250 = vmatprep.subr.mxu0 0.0
      %1251 = vmatpush1.msra.mxu0 0.0
      %1252 = vmatprep.subr.mxu0 0.0
      %1253 = vmatpush1.msra.mxu0 0.0
      %1254 = vmatprep.subr.mxu0 0.0
      %1255 = vmatpush1.msra.mxu0 0.0
      %1256 = vmatprep.subr.mxu0 0.0
      %1257 = vmatpush1.msra.mxu0 0.0
      %1258 = vmatprep.subr.mxu0 0.0
      %1259 = vmatpush1.msra.mxu0 0.0
      %1260 = vmatprep.subr.mxu0 0.0
      %1261 = vmatpush1.msra.mxu0 0.0
      %1262 = vmatprep.subr.mxu0 0.0
      %1263 = vmatpush1.msra.mxu0 0.0
      %1264 = vmatprep.subr.mxu0 0.0
      %1265 = vmatpush1.msra.mxu0 0.0
      %1266 = vmatprep.subr.mxu0 0.0
      %1267 = vmatpush1.msra.mxu0 0.0
      %1268 = vmatprep.subr.mxu0 0.0
      %1269 = vmatpush1.msra.mxu0 0.0
      %1270 = vmatprep.subr.mxu0 0.0
      %1271 = vmatpush1.msra.mxu0 0.0
      %1272 = vmatprep.subr.mxu0 0.0
      %1273 = vmatpush1.msra.mxu0 0.0
      %1274 = vmatprep.subr.mxu0 0.0
      %1275 = vmatpush1.msra.mxu0 0.0
      %1276 = vmatprep.mubr.f32.mxu0 0.0
      %1277 = vmatmul.mubr.f32.gmra.mrb[0].mxu0 %v1114
      %v1278 = vpop.f32.mrb[0].mxu0
      %v1279 = vadd.f32 0.0, %v1278
      %v1280 = vpop.f32.mrb[0].mxu0
      %1281 = vmatprep.mubr.f32.mxu0 0.0
      %1282 = vmatmul.mubr.f32.gmra.mrb[0].mxu0 %v1117
      %v1283 = vpop.f32.mrb[0].mxu0
      %v1284 = vadd.f32 0.0, %v1283
      %v1285 = vpop.f32.mrb[0].mxu0
      %1286 = vmatprep.mubr.f32.mxu0 0.0
      %1287 = vmatmul.mubr.f32.gmra.mrb[0].mxu0 %v1120
      %v1288 = vpop.f32.mrb[0].mxu0
      %v1289 = vadd.f32 0.0, %v1288
      %v1290 = vpop.f32.mrb[0].mxu0
      %1291 = vmatprep.mubr.f32.mxu0 0.0
      %1292 = vmatmul.mubr.f32.gmra.mrb[0].mxu0 %v1123
      %v1293 = vpop.f32.mrb[0].mxu0
      %v1294 = vadd.f32 0.0, %v1293
      %v1295 = vpop.f32.mrb[0].mxu0
      %1296 = vmatprep.mubr.f32.mxu0 0.0
      %1297 = vmatmul.mubr.f32.gmra.mrb[0].mxu0 %v1126
      %v1298 = vpop.f32.mrb[0].mxu0
      %v1299 = vadd.f32 0.0, %v1298
      %v1300 = vpop.f32.mrb[0].mxu0
      %1301 = vmatprep.mubr.f32.mxu0 0.0
      %1302 = vmatmul.mubr.f32.gmra.mrb[0].mxu0 %v1129
      %v1303 = vpop.f32.mrb[0].mxu0
      %v1304 = vadd.f32 0.0, %v1303
      %v1305 = vpop.f32.mrb[0].mxu0
      %1306 = vmatprep.mubr.f32.mxu0 0.0
      %1307 = vmatmul.mubr.f32.gmra.mrb[0].mxu0 %v1132
      %v1308 = vpop.f32.mrb[0].mxu0
      %v1309 = vadd.f32 0.0, %v1308
      %v1310 = vpop.f32.mrb[0].mxu0
      %1311 = vmatprep.mubr.f32.mxu0 0.0
      %1312 = vmatmul.mubr.f32.gmra.mrb[0].mxu0 %v1135
      %v1313 = vpop.f32.mrb[0].mxu0
      %v1314 = vadd.f32 0.0, %v1313
      %v1315 = vpop.f32.mrb[0].mxu0
      %1316 = vmatprep.mubr.f32.mxu0 0.0
      %1317 = vmatmul.mubr.f32.gmra.mrb[0].mxu0 %v1138
      %v1318 = vpop.f32.mrb[0].mxu0
      %v1319 = vadd.f32 0.0, %v1318
      %v1320 = vpop.f32.mrb[0].mxu0
      %1321 = vmatprep.mubr.f32.mxu0 0.0
      %1322 = vmatmul.mubr.f32.gmra.mrb[0].mxu0 %v1141
      %v1323 = vpop.f32.mrb[0].mxu0
      %v1324 = vadd.f32 0.0, %v1323
      %v1325 = vpop.f32.mrb[0].mxu0
      %1326 = vmatprep.mubr.f32.mxu0 0.0
      %1327 = vmatmul.mubr.f32.gmra.mrb[0].mxu0 %v1144
      %v1328 = vpop.f32.mrb[0].mxu0
      %v1329 = vadd.f32 0.0, %v1328
      %v1330 = vpop.f32.mrb[0].mxu0
      %1331 = vmatprep.mubr.f32.mxu0 0.0
      %1332 = vmatmul.mubr.f32.gmra.mrb[0].mxu0 %v1147
      %v1333 = vpop.f32.mrb[0].mxu0
      %v1334 = vadd.f32 0.0, %v1333
      %v1335 = vpop.f32.mrb[0].mxu0
      %1336 = vmatprep.mubr.f32.mxu0 0.0
      %1337 = vmatmul.mubr.f32.gmra.mrb[0].mxu0 %v1150
      %v1338 = vpop.f32.mrb[0].mxu0
      %v1339 = vadd.f32 0.0, %v1338
      %v1340 = vpop.f32.mrb[0].mxu0
      %1341 = vmatprep.mubr.f32.mxu0 0.0
      %1342 = vmatmul.mubr.f32.gmra.mrb[0].mxu0 %v1153
      %v1343 = vpop.f32.mrb[0].mxu0
      %v1344 = vadd.f32 0.0, %v1343
      %v1345 = vpop.f32.mrb[0].mxu0
      %1346 = vmatprep.mubr.f32.mxu0 0.0
      %1347 = vmatmul.mubr.f32.gmra.mrb[0].mxu0 %v1156
      %v1348 = vpop.f32.mrb[0].mxu0
      %v1349 = vadd.f32 0.0, %v1348
      %v1350 = vpop.f32.mrb[0].mxu0
      %1351 = vmatprep.mubr.f32.mxu0 0.0
      %1352 = vmatmul.mubr.f32.gmra.mrb[0].mxu0 %v1159
      %v1353 = vpop.f32.mrb[0].mxu0
      %v1354 = vadd.f32 0.0, %v1353
      %v1355 = vpop.f32.mrb[0].mxu0
      %1356 = vmatprep.mubr.f32.mxu0 0.0
      %1357 = vmatmul.mubr.f32.gmra.mrb[0].mxu0 %v1162
      %v1358 = vpop.f32.mrb[0].mxu0
      %v1359 = vadd.f32 0.0, %v1358
      %v1360 = vpop.f32.mrb[0].mxu0
      %1361 = vmatprep.mubr.f32.mxu0 0.0
      %1362 = vmatmul.mubr.f32.gmra.mrb[0].mxu0 %v1165
      %v1363 = vpop.f32.mrb[0].mxu0
      %v1364 = vadd.f32 0.0, %v1363
      %v1365 = vpop.f32.mrb[0].mxu0
      %1366 = vmatprep.mubr.f32.mxu0 0.0
      %1367 = vmatmul.mubr.f32.gmra.mrb[0].mxu0 %v1168
      %v1368 = vpop.f32.mrb[0].mxu0
      %v1369 = vadd.f32 0.0, %v1368
      %v1370 = vpop.f32.mrb[0].mxu0
      %1371 = vmatprep.mubr.f32.mxu0 0.0
      %1372 = vmatmul.mubr.f32.gmra.mrb[0].mxu0 %v1171
      %v1373 = vpop.f32.mrb[0].mxu0
      %v1374 = vadd.f32 0.0, %v1373
      %v1375 = vpop.f32.mrb[0].mxu0
      %1376 = vmatprep.mubr.f32.mxu0 0.0
      %1377 = vmatmul.mubr.f32.gmra.mrb[0].mxu0 %v1174
      %v1378 = vpop.f32.mrb[0].mxu0
      %v1379 = vadd.f32 0.0, %v1378
      %v1380 = vpop.f32.mrb[0].mxu0
      %1381 = vmatprep.mubr.f32.mxu0 0.0
      %1382 = vmatmul.mubr.f32.gmra.mrb[0].mxu0 %v1177
      %v1383 = vpop.f32.mrb[0].mxu0
      %v1384 = vadd.f32 0.0, %v1383
      %v1385 = vpop.f32.mrb[0].mxu0
      %1386 = vmatprep.mubr.f32.mxu0 0.0
      %1387 = vmatmul.mubr.f32.gmra.mrb[0].mxu0 %v1180
      %v1388 = vpop.f32.mrb[0].mxu0
      %v1389 = vadd.f32 0.0, %v1388
      %v1390 = vpop.f32.mrb[0].mxu0
      %1391 = vmatprep.mubr.f32.mxu0 0.0
      %1392 = vmatmul.mubr.f32.gmra.mrb[0].mxu0 %v1183
      %v1393 = vpop.f32.mrb[0].mxu0
      %v1394 = vadd.f32 0.0, %v1393
      %v1395 = vpop.f32.mrb[0].mxu0
      %1396 = vmatprep.mubr.f32.mxu0 0.0
      %1397 = vmatmul.mubr.f32.gmra.mrb[0].mxu0 %v1186
      %v1398 = vpop.f32.mrb[0].mxu0
      %v1399 = vadd.f32 0.0, %v1398
      %v1400 = vpop.f32.mrb[0].mxu0
      %1401 = vmatprep.mubr.f32.mxu0 0.0
      %1402 = vmatmul.mubr.f32.gmra.mrb[0].mxu0 %v1189
      %v1403 = vpop.f32.mrb[0].mxu0
      %v1404 = vadd.f32 0.0, %v1403
      %v1405 = vpop.f32.mrb[0].mxu0
      %1406 = vmatprep.mubr.f32.mxu0 0.0
      %1407 = vmatmul.mubr.f32.gmra.mrb[0].mxu0 %v1192
      %v1408 = vpop.f32.mrb[0].mxu0
      %v1409 = vadd.f32 0.0, %v1408
      %v1410 = vpop.f32.mrb[0].mxu0
      %1411 = vmatprep.mubr.f32.mxu0 0.0
      %1412 = vmatmul.mubr.f32.gmra.mrb[0].mxu0 %v1195
      %v1413 = vpop.f32.mrb[0].mxu0
      %v1414 = vadd.f32 0.0, %v1413
      %v1415 = vpop.f32.mrb[0].mxu0
      %1416 = vmatprep.mubr.f32.mxu0 0.0
      %1417 = vmatmul.mubr.f32.gmra.mrb[0].mxu0 %v1198
      %v1418 = vpop.f32.mrb[0].mxu0
      %v1419 = vadd.f32 0.0, %v1418
      %v1420 = vpop.f32.mrb[0].mxu0
      %1421 = vmatprep.mubr.f32.mxu0 0.0
      %1422 = vmatmul.mubr.f32.gmra.mrb[0].mxu0 %v1201
      %v1423 = vpop.f32.mrb[0].mxu0
      %v1424 = vadd.f32 0.0, %v1423
      %v1425 = vpop.f32.mrb[0].mxu0
      %1426 = vmatprep.mubr.f32.mxu0 0.0
      %1427 = vmatmul.mubr.f32.gmra.mrb[0].mxu0 %v1204
      %v1428 = vpop.f32.mrb[0].mxu0
      %v1429 = vadd.f32 0.0, %v1428
      %v1430 = vpop.f32.mrb[0].mxu0
      %1431 = vmatprep.mubr.f32.mxu0 0.0
      %1432 = vmatmul.mubr.f32.gmra.mrb[0].mxu0 %v1207
      %v1433 = vpop.f32.mrb[0].mxu0
      %v1434 = vadd.f32 0.0, %v1433
      %v1435 = vpop.f32.mrb[0].mxu0
      %1436 = vdwg.mxu0
      %v1437 = vadd.f32 %v922, %v1279
      %v1438 = vadd.f32 %v927, %v1284
      %v1439 = vadd.f32 %v932, %v1289
      %v1440 = vadd.f32 %v937, %v1294
      %v1441 = vadd.f32 %v942, %v1299
      %v1442 = vadd.f32 %v947, %v1304
      %v1443 = vadd.f32 %v952, %v1309
      %v1444 = vadd.f32 %v957, %v1314
      %v1445 = vadd.f32 %v962, %v1319
      %v1446 = vadd.f32 %v967, %v1324
      %v1447 = vadd.f32 %v972, %v1329
      %v1448 = vadd.f32 %v977, %v1334
      %v1449 = vadd.f32 %v982, %v1339
      %v1450 = vadd.f32 %v987, %v1344
      %v1451 = vadd.f32 %v992, %v1349
      %v1452 = vadd.f32 %v997, %v1354
      %v1453 = vadd.f32 %v1002, %v1359
      %v1454 = vadd.f32 %v1007, %v1364
      %v1455 = vadd.f32 %v1012, %v1369
      %v1456 = vadd.f32 %v1017, %v1374
      %v1457 = vadd.f32 %v1022, %v1379
      %v1458 = vadd.f32 %v1027, %v1384
      %v1459 = vadd.f32 %v1032, %v1389
      %v1460 = vadd.f32 %v1037, %v1394
      %v1461 = vadd.f32 %v1042, %v1399
      %v1462 = vadd.f32 %v1047, %v1404
      %v1463 = vadd.f32 %v1052, %v1409
      %v1464 = vadd.f32 %v1057, %v1414
      %v1465 = vadd.f32 %v1062, %v1419
      %v1466 = vadd.f32 %v1067, %v1424
      %v1467 = vadd.f32 %v1072, %v1429
      %v1468 = vadd.f32 %v1077, %v1434
      %v1469 = vld [vmem:[%s268 + $0x7] sm:$0xff]
      %v1470 = vld [vmem:[%s268 + $0xf] sm:$0xff]
      %v1471 = vld [vmem:[%s268 + $0x27] sm:$0xff]
      %v1472 = vld [vmem:[%s268 + $0x2f] sm:$0xff]
      %v1473 = vld [vmem:[%s268 + $0x47] sm:$0xff]
      %v1474 = vld [vmem:[%s268 + $0x4f] sm:$0xff]
      %v1475 = vld [vmem:[%s268 + $0x67] sm:$0xff]
      %v1476 = vld [vmem:[%s268 + $0x6f] sm:$0xff]
      %v1477 = vld [vmem:[%s268 + $0x87] sm:$0xff]
      %v1478 = vld [vmem:[%s268 + $0x8f] sm:$0xff]
      %v1479 = vld [vmem:[%s268 + $0xa7] sm:$0xff]
      %v1480 = vld [vmem:[%s268 + $0xaf] sm:$0xff]
      %v1481 = vld [vmem:[%s268 + $0xc7] sm:$0xff]
      %v1482 = vld [vmem:[%s268 + $0xcf] sm:$0xff]
      %v1483 = vld [vmem:[%s268 + $0xe7] sm:$0xff]
      %v1484 = vld [vmem:[%s268 + $0xef] sm:$0xff]
      %v1485 = vld [vmem:[%s268 + $0x107] sm:$0xff]
      %v1486 = vld [vmem:[%s268 + $0x10f] sm:$0xff]
      %v1487 = vld [vmem:[%s268 + $0x127] sm:$0xff]
      %v1488 = vld [vmem:[%s268 + $0x12f] sm:$0xff]
      %v1489 = vld [vmem:[%s268 + $0x147] sm:$0xff]
      %v1490 = vld [vmem:[%s268 + $0x14f] sm:$0xff]
      %v1491 = vld [vmem:[%s268 + $0x167] sm:$0xff]
      %v1492 = vld [vmem:[%s268 + $0x16f] sm:$0xff]
      %v1493 = vld [vmem:[%s268 + $0x187] sm:$0xff]
      %v1494 = vld [vmem:[%s268 + $0x18f] sm:$0xff]
      %v1495 = vld [vmem:[%s268 + $0x1a7] sm:$0xff]
      %v1496 = vld [vmem:[%s268 + $0x1af] sm:$0xff]
      %v1497 = vld [vmem:[%s268 + $0x1c7] sm:$0xff]
      %v1498 = vld [vmem:[%s268 + $0x1cf] sm:$0xff]
      %v1499 = vld [vmem:[%s268 + $0x1e7] sm:$0xff]
      %v1500 = vld [vmem:[%s268 + $0x1ef] sm:$0xff]
      %v1501 = vld [vmem:[%s1 + $0xc] sm:$0xf]
      %v1503 = vsel %vm257, %v1469, 0
      %v1506 = vsel %vm257, %v1470, 0
      %v1509 = vsel %vm257, %v1471, 0
      %v1512 = vsel %vm257, %v1472, 0
      %v1515 = vsel %vm257, %v1473, 0
      %v1518 = vsel %vm257, %v1474, 0
      %v1521 = vsel %vm257, %v1475, 0
      %v1524 = vsel %vm257, %v1476, 0
      %v1527 = vsel %vm257, %v1477, 0
      %v1530 = vsel %vm257, %v1478, 0
      %v1533 = vsel %vm257, %v1479, 0
      %v1536 = vsel %vm257, %v1480, 0
      %v1539 = vsel %vm257, %v1481, 0
      %v1542 = vsel %vm257, %v1482, 0
      %v1545 = vsel %vm257, %v1483, 0
      %v1548 = vsel %vm257, %v1484, 0
      %v1551 = vsel %vm257, %v1485, 0
      %v1554 = vsel %vm257, %v1486, 0
      %v1557 = vsel %vm257, %v1487, 0
      %v1560 = vsel %vm257, %v1488, 0
      %v1563 = vsel %vm257, %v1489, 0
      %v1566 = vsel %vm257, %v1490, 0
      %v1569 = vsel %vm257, %v1491, 0
      %v1572 = vsel %vm257, %v1492, 0
      %v1575 = vsel %vm257, %v1493, 0
      %v1578 = vsel %vm257, %v1494, 0
      %v1581 = vsel %vm257, %v1495, 0
      %v1584 = vsel %vm257, %v1496, 0
      %v1587 = vsel %vm257, %v1497, 0
      %v1590 = vsel %vm257, %v1498, 0
      %v1593 = vsel %vm257, %v1499, 0
      %v1596 = vsel %vm257, %v1500, 0
      %v1599 = vsel %vm527, %v1501, 0
      %1601 = vmatprep.subr.mxu0 0.0
      %1602 = vmatpush1.msra.mxu0 %v1599
      %1603 = vmatprep.subr.mxu0 0.0
      %1604 = vmatpush1.msra.mxu0 0.0
      %1605 = vmatprep.subr.mxu0 0.0
      %1606 = vmatpush1.msra.mxu0 0.0
      %1607 = vmatprep.subr.mxu0 0.0
      %1608 = vmatpush1.msra.mxu0 0.0
      %1609 = vmatprep.subr.mxu0 0.0
      %1610 = vmatpush1.msra.mxu0 0.0
      %1611 = vmatprep.subr.mxu0 0.0
      %1612 = vmatpush1.msra.mxu0 0.0
      %1613 = vmatprep.subr.mxu0 0.0
      %1614 = vmatpush1.msra.mxu0 0.0
      %1615 = vmatprep.subr.mxu0 0.0
      %1616 = vmatpush1.msra.mxu0 0.0
      %1617 = vmatprep.subr.mxu0 0.0
      %1618 = vmatpush1.msra.mxu0 0.0
      %1619 = vmatprep.subr.mxu0 0.0
      %1620 = vmatpush1.msra.mxu0 0.0
      %1621 = vmatprep.subr.mxu0 0.0
      %1622 = vmatpush1.msra.mxu0 0.0
      %1623 = vmatprep.subr.mxu0 0.0
      %1624 = vmatpush1.msra.mxu0 0.0
      %1625 = vmatprep.subr.mxu0 0.0
      %1626 = vmatpush1.msra.mxu0 0.0
      %1627 = vmatprep.subr.mxu0 0.0
      %1628 = vmatpush1.msra.mxu0 0.0
      %1629 = vmatprep.subr.mxu0 0.0
      %1630 = vmatpush1.msra.mxu0 0.0
      %1631 = vmatprep.subr.mxu0 0.0
      %1632 = vmatpush1.msra.mxu0 0.0
      %1633 = vmatprep.subr.mxu0 0.0
      %1634 = vmatpush1.msra.mxu0 0.0
      %1635 = vmatprep.subr.mxu0 0.0
      %1636 = vmatpush1.msra.mxu0 0.0
      %1637 = vmatprep.subr.mxu0 0.0
      %1638 = vmatpush1.msra.mxu0 0.0
      %1639 = vmatprep.subr.mxu0 0.0
      %1640 = vmatpush1.msra.mxu0 0.0
      %1641 = vmatprep.subr.mxu0 0.0
      %1642 = vmatpush1.msra.mxu0 0.0
      %1643 = vmatprep.subr.mxu0 0.0
      %1644 = vmatpush1.msra.mxu0 0.0
      %1645 = vmatprep.subr.mxu0 0.0
      %1646 = vmatpush1.msra.mxu0 0.0
      %1647 = vmatprep.subr.mxu0 0.0
      %1648 = vmatpush1.msra.mxu0 0.0
      %1649 = vmatprep.subr.mxu0 0.0
      %1650 = vmatpush1.msra.mxu0 0.0
      %1651 = vmatprep.subr.mxu0 0.0
      %1652 = vmatpush1.msra.mxu0 0.0
      %1653 = vmatprep.subr.mxu0 0.0
      %1654 = vmatpush1.msra.mxu0 0.0
      %1655 = vmatprep.subr.mxu0 0.0
      %1656 = vmatpush1.msra.mxu0 0.0
      %1657 = vmatprep.subr.mxu0 0.0
      %1658 = vmatpush1.msra.mxu0 0.0
      %1659 = vmatprep.subr.mxu0 0.0
      %1660 = vmatpush1.msra.mxu0 0.0
      %1661 = vmatprep.subr.mxu0 0.0
      %1662 = vmatpush1.msra.mxu0 0.0
      %1663 = vmatprep.subr.mxu0 0.0
      %1664 = vmatpush1.msra.mxu0 0.0
      %1665 = vmatprep.mubr.f32.mxu0 0.0
      %1666 = vmatmul.mubr.f32.gmra.mrb[0].mxu0 %v1503
      %v1667 = vpop.f32.mrb[0].mxu0
      %v1668 = vadd.f32 0.0, %v1667
      %v1669 = vpop.f32.mrb[0].mxu0
      %1670 = vmatprep.mubr.f32.mxu0 0.0
      %1671 = vmatmul.mubr.f32.gmra.mrb[0].mxu0 %v1506
      %v1672 = vpop.f32.mrb[0].mxu0
      %v1673 = vadd.f32 0.0, %v1672
      %v1674 = vpop.f32.mrb[0].mxu0
      %1675 = vmatprep.mubr.f32.mxu0 0.0
      %1676 = vmatmul.mubr.f32.gmra.mrb[0].mxu0 %v1509
      %v1677 = vpop.f32.mrb[0].mxu0
      %v1678 = vadd.f32 0.0, %v1677
      %v1679 = vpop.f32.mrb[0].mxu0
      %1680 = vmatprep.mubr.f32.mxu0 0.0
      %1681 = vmatmul.mubr.f32.gmra.mrb[0].mxu0 %v1512
      %v1682 = vpop.f32.mrb[0].mxu0
      %v1683 = vadd.f32 0.0, %v1682
      %v1684 = vpop.f32.mrb[0].mxu0
      %1685 = vmatprep.mubr.f32.mxu0 0.0
      %1686 = vmatmul.mubr.f32.gmra.mrb[0].mxu0 %v1515
      %v1687 = vpop.f32.mrb[0].mxu0
      %v1688 = vadd.f32 0.0, %v1687
      %v1689 = vpop.f32.mrb[0].mxu0
      %1690 = vmatprep.mubr.f32.mxu0 0.0
      %1691 = vmatmul.mubr.f32.gmra.mrb[0].mxu0 %v1518
      %v1692 = vpop.f32.mrb[0].mxu0
      %v1693 = vadd.f32 0.0, %v1692
      %v1694 = vpop.f32.mrb[0].mxu0
      %1695 = vmatprep.mubr.f32.mxu0 0.0
      %1696 = vmatmul.mubr.f32.gmra.mrb[0].mxu0 %v1521
      %v1697 = vpop.f32.mrb[0].mxu0
      %v1698 = vadd.f32 0.0, %v1697
      %v1699 = vpop.f32.mrb[0].mxu0
      %1700 = vmatprep.mubr.f32.mxu0 0.0
      %1701 = vmatmul.mubr.f32.gmra.mrb[0].mxu0 %v1524
      %v1702 = vpop.f32.mrb[0].mxu0
      %v1703 = vadd.f32 0.0, %v1702
      %v1704 = vpop.f32.mrb[0].mxu0
      %1705 = vmatprep.mubr.f32.mxu0 0.0
      %1706 = vmatmul.mubr.f32.gmra.mrb[0].mxu0 %v1527
      %v1707 = vpop.f32.mrb[0].mxu0
      %v1708 = vadd.f32 0.0, %v1707
      %v1709 = vpop.f32.mrb[0].mxu0
      %1710 = vmatprep.mubr.f32.mxu0 0.0
      %1711 = vmatmul.mubr.f32.gmra.mrb[0].mxu0 %v1530
      %v1712 = vpop.f32.mrb[0].mxu0
      %v1713 = vadd.f32 0.0, %v1712
      %v1714 = vpop.f32.mrb[0].mxu0
      %1715 = vmatprep.mubr.f32.mxu0 0.0
      %1716 = vmatmul.mubr.f32.gmra.mrb[0].mxu0 %v1533
      %v1717 = vpop.f32.mrb[0].mxu0
      %v1718 = vadd.f32 0.0, %v1717
      %v1719 = vpop.f32.mrb[0].mxu0
      %1720 = vmatprep.mubr.f32.mxu0 0.0
      %1721 = vmatmul.mubr.f32.gmra.mrb[0].mxu0 %v1536
      %v1722 = vpop.f32.mrb[0].mxu0
      %v1723 = vadd.f32 0.0, %v1722
      %v1724 = vpop.f32.mrb[0].mxu0
      %1725 = vmatprep.mubr.f32.mxu0 0.0
      %1726 = vmatmul.mubr.f32.gmra.mrb[0].mxu0 %v1539
      %v1727 = vpop.f32.mrb[0].mxu0
      %v1728 = vadd.f32 0.0, %v1727
      %v1729 = vpop.f32.mrb[0].mxu0
      %1730 = vmatprep.mubr.f32.mxu0 0.0
      %1731 = vmatmul.mubr.f32.gmra.mrb[0].mxu0 %v1542
      %v1732 = vpop.f32.mrb[0].mxu0
      %v1733 = vadd.f32 0.0, %v1732
      %v1734 = vpop.f32.mrb[0].mxu0
      %1735 = vmatprep.mubr.f32.mxu0 0.0
      %1736 = vmatmul.mubr.f32.gmra.mrb[0].mxu0 %v1545
      %v1737 = vpop.f32.mrb[0].mxu0
      %v1738 = vadd.f32 0.0, %v1737
      %v1739 = vpop.f32.mrb[0].mxu0
      %1740 = vmatprep.mubr.f32.mxu0 0.0
      %1741 = vmatmul.mubr.f32.gmra.mrb[0].mxu0 %v1548
      %v1742 = vpop.f32.mrb[0].mxu0
      %v1743 = vadd.f32 0.0, %v1742
      %v1744 = vpop.f32.mrb[0].mxu0
      %1745 = vmatprep.mubr.f32.mxu0 0.0
      %1746 = vmatmul.mubr.f32.gmra.mrb[0].mxu0 %v1551
      %v1747 = vpop.f32.mrb[0].mxu0
      %v1748 = vadd.f32 0.0, %v1747
      %v1749 = vpop.f32.mrb[0].mxu0
      %1750 = vmatprep.mubr.f32.mxu0 0.0
      %1751 = vmatmul.mubr.f32.gmra.mrb[0].mxu0 %v1554
      %v1752 = vpop.f32.mrb[0].mxu0
      %v1753 = vadd.f32 0.0, %v1752
      %v1754 = vpop.f32.mrb[0].mxu0
      %1755 = vmatprep.mubr.f32.mxu0 0.0
      %1756 = vmatmul.mubr.f32.gmra.mrb[0].mxu0 %v1557
      %v1757 = vpop.f32.mrb[0].mxu0
      %v1758 = vadd.f32 0.0, %v1757
      %v1759 = vpop.f32.mrb[0].mxu0
      %1760 = vmatprep.mubr.f32.mxu0 0.0
      %1761 = vmatmul.mubr.f32.gmra.mrb[0].mxu0 %v1560
      %v1762 = vpop.f32.mrb[0].mxu0
      %v1763 = vadd.f32 0.0, %v1762
      %v1764 = vpop.f32.mrb[0].mxu0
      %1765 = vmatprep.mubr.f32.mxu0 0.0
      %1766 = vmatmul.mubr.f32.gmra.mrb[0].mxu0 %v1563
      %v1767 = vpop.f32.mrb[0].mxu0
      %v1768 = vadd.f32 0.0, %v1767
      %v1769 = vpop.f32.mrb[0].mxu0
      %1770 = vmatprep.mubr.f32.mxu0 0.0
      %1771 = vmatmul.mubr.f32.gmra.mrb[0].mxu0 %v1566
      %v1772 = vpop.f32.mrb[0].mxu0
      %v1773 = vadd.f32 0.0, %v1772
      %v1774 = vpop.f32.mrb[0].mxu0
      %1775 = vmatprep.mubr.f32.mxu0 0.0
      %1776 = vmatmul.mubr.f32.gmra.mrb[0].mxu0 %v1569
      %v1777 = vpop.f32.mrb[0].mxu0
      %v1778 = vadd.f32 0.0, %v1777
      %v1779 = vpop.f32.mrb[0].mxu0
      %1780 = vmatprep.mubr.f32.mxu0 0.0
      %1781 = vmatmul.mubr.f32.gmra.mrb[0].mxu0 %v1572
      %v1782 = vpop.f32.mrb[0].mxu0
      %v1783 = vadd.f32 0.0, %v1782
      %v1784 = vpop.f32.mrb[0].mxu0
      %1785 = vmatprep.mubr.f32.mxu0 0.0
      %1786 = vmatmul.mubr.f32.gmra.mrb[0].mxu0 %v1575
      %v1787 = vpop.f32.mrb[0].mxu0
      %v1788 = vadd.f32 0.0, %v1787
      %v1789 = vpop.f32.mrb[0].mxu0
      %1790 = vmatprep.mubr.f32.mxu0 0.0
      %1791 = vmatmul.mubr.f32.gmra.mrb[0].mxu0 %v1578
      %v1792 = vpop.f32.mrb[0].mxu0
      %v1793 = vadd.f32 0.0, %v1792
      %v1794 = vpop.f32.mrb[0].mxu0
      %1795 = vmatprep.mubr.f32.mxu0 0.0
      %1796 = vmatmul.mubr.f32.gmra.mrb[0].mxu0 %v1581
      %v1797 = vpop.f32.mrb[0].mxu0
      %v1798 = vadd.f32 0.0, %v1797
      %v1799 = vpop.f32.mrb[0].mxu0
      %1800 = vmatprep.mubr.f32.mxu0 0.0
      %1801 = vmatmul.mubr.f32.gmra.mrb[0].mxu0 %v1584
      %v1802 = vpop.f32.mrb[0].mxu0
      %v1803 = vadd.f32 0.0, %v1802
      %v1804 = vpop.f32.mrb[0].mxu0
      %1805 = vmatprep.mubr.f32.mxu0 0.0
      %1806 = vmatmul.mubr.f32.gmra.mrb[0].mxu0 %v1587
      %v1807 = vpop.f32.mrb[0].mxu0
      %v1808 = vadd.f32 0.0, %v1807
      %v1809 = vpop.f32.mrb[0].mxu0
      %1810 = vmatprep.mubr.f32.mxu0 0.0
      %1811 = vmatmul.mubr.f32.gmra.mrb[0].mxu0 %v1590
      %v1812 = vpop.f32.mrb[0].mxu0
      %v1813 = vadd.f32 0.0, %v1812
      %v1814 = vpop.f32.mrb[0].mxu0
      %1815 = vmatprep.mubr.f32.mxu0 0.0
      %1816 = vmatmul.mubr.f32.gmra.mrb[0].mxu0 %v1593
      %v1817 = vpop.f32.mrb[0].mxu0
      %v1818 = vadd.f32 0.0, %v1817
      %v1819 = vpop.f32.mrb[0].mxu0
      %1820 = vmatprep.mubr.f32.mxu0 0.0
      %1821 = vmatmul.mubr.f32.gmra.mrb[0].mxu0 %v1596
      %v1822 = vpop.f32.mrb[0].mxu0
      %v1823 = vadd.f32 0.0, %v1822
      %v1824 = vpop.f32.mrb[0].mxu0
      %1825 = vdwg.mxu0
      %v1826 = vadd.f32 %v1437, %v1668
      %v1827 = vadd.f32 %v1438, %v1673
      %v1828 = vadd.f32 %v1439, %v1678
      %v1829 = vadd.f32 %v1440, %v1683
      %v1830 = vadd.f32 %v1441, %v1688
      %v1831 = vadd.f32 %v1442, %v1693
      %v1832 = vadd.f32 %v1443, %v1698
      %v1833 = vadd.f32 %v1444, %v1703
      %v1834 = vadd.f32 %v1445, %v1708
      %v1835 = vadd.f32 %v1446, %v1713
      %v1836 = vadd.f32 %v1447, %v1718
      %v1837 = vadd.f32 %v1448, %v1723
      %v1838 = vadd.f32 %v1449, %v1728
      %v1839 = vadd.f32 %v1450, %v1733
      %v1840 = vadd.f32 %v1451, %v1738
      %v1841 = vadd.f32 %v1452, %v1743
      %v1842 = vadd.f32 %v1453, %v1748
      %v1843 = vadd.f32 %v1454, %v1753
      %v1844 = vadd.f32 %v1455, %v1758
      %v1845 = vadd.f32 %v1456, %v1763
      %v1846 = vadd.f32 %v1457, %v1768
      %v1847 = vadd.f32 %v1458, %v1773
      %v1848 = vadd.f32 %v1459, %v1778
      %v1849 = vadd.f32 %v1460, %v1783
      %v1850 = vadd.f32 %v1461, %v1788
      %v1851 = vadd.f32 %v1462, %v1793
      %v1852 = vadd.f32 %v1463, %v1798
      %v1853 = vadd.f32 %v1464, %v1803
      %v1854 = vadd.f32 %v1465, %v1808
      %v1855 = vadd.f32 %v1466, %v1813
      %v1856 = vadd.f32 %v1467, %v1818
      %v1857 = vadd.f32 %v1468, %v1823
      %v1858 = vld [vmem:[%s268 + $0x8] sm:$0xff]
      %v1859 = vld [vmem:[%s268 + $0x10] sm:$0xff]
      %v1860 = vld [vmem:[%s268 + $0x28] sm:$0xff]
      %v1861 = vld [vmem:[%s268 + $0x30] sm:$0xff]
      %v1862 = vld [vmem:[%s268 + $0x48] sm:$0xff]
      %v1863 = vld [vmem:[%s268 + $0x50] sm:$0xff]
      %v1864 = vld [vmem:[%s268 + $0x68] sm:$0xff]
      %v1865 = vld [vmem:[%s268 + $0x70] sm:$0xff]
      %v1866 = vld [vmem:[%s268 + $0x88] sm:$0xff]
      %v1867 = vld [vmem:[%s268 + $0x90] sm:$0xff]
      %v1868 = vld [vmem:[%s268 + $0xa8] sm:$0xff]
      %v1869 = vld [vmem:[%s268 + $0xb0] sm:$0xff]
      %v1870 = vld [vmem:[%s268 + $0xc8] sm:$0xff]
      %v1871 = vld [vmem:[%s268 + $0xd0] sm:$0xff]
      %v1872 = vld [vmem:[%s268 + $0xe8] sm:$0xff]
      %v1873 = vld [vmem:[%s268 + $0xf0] sm:$0xff]
      %v1874 = vld [vmem:[%s268 + $0x108] sm:$0xff]
      %v1875 = vld [vmem:[%s268 + $0x110] sm:$0xff]
      %v1876 = vld [vmem:[%s268 + $0x128] sm:$0xff]
      %v1877 = vld [vmem:[%s268 + $0x130] sm:$0xff]
      %v1878 = vld [vmem:[%s268 + $0x148] sm:$0xff]
      %v1879 = vld [vmem:[%s268 + $0x150] sm:$0xff]
      %v1880 = vld [vmem:[%s268 + $0x168] sm:$0xff]
      %v1881 = vld [vmem:[%s268 + $0x170] sm:$0xff]
      %v1882 = vld [vmem:[%s268 + $0x188] sm:$0xff]
      %v1883 = vld [vmem:[%s268 + $0x190] sm:$0xff]
      %v1884 = vld [vmem:[%s268 + $0x1a8] sm:$0xff]
      %v1885 = vld [vmem:[%s268 + $0x1b0] sm:$0xff]
      %v1886 = vld [vmem:[%s268 + $0x1c8] sm:$0xff]
      %v1887 = vld [vmem:[%s268 + $0x1d0] sm:$0xff]
      %v1888 = vld [vmem:[%s268 + $0x1e8] sm:$0xff]
      %v1889 = vld [vmem:[%s268 + $0x1f0] sm:$0xff]
      %v1890 = vld [vmem:[%s1 + $0x10] sm:$0xf]
      %v1892 = vsel %vm257, %v1858, 0
      %v1895 = vsel %vm257, %v1859, 0
      %v1898 = vsel %vm257, %v1860, 0
      %v1901 = vsel %vm257, %v1861, 0
      %v1904 = vsel %vm257, %v1862, 0
      %v1907 = vsel %vm257, %v1863, 0
      %v1910 = vsel %vm257, %v1864, 0
      %v1913 = vsel %vm257, %v1865, 0
      %v1916 = vsel %vm257, %v1866, 0
      %v1919 = vsel %vm257, %v1867, 0
      %v1922 = vsel %vm257, %v1868, 0
      %v1925 = vsel %vm257, %v1869, 0
      %v1928 = vsel %vm257, %v1870, 0
      %v1931 = vsel %vm257, %v1871, 0
      %v1934 = vsel %vm257, %v1872, 0
      %v1937 = vsel %vm257, %v1873, 0
      %v1940 = vsel %vm257, %v1874, 0
      %v1943 = vsel %vm257, %v1875, 0
      %v1946 = vsel %vm257, %v1876, 0
      %v1949 = vsel %vm257, %v1877, 0
      %v1952 = vsel %vm257, %v1878, 0
      %v1955 = vsel %vm257, %v1879, 0
      %v1958 = vsel %vm257, %v1880, 0
      %v1961 = vsel %vm257, %v1881, 0
      %v1964 = vsel %vm257, %v1882, 0
      %v1967 = vsel %vm257, %v1883, 0
      %v1970 = vsel %vm257, %v1884, 0
      %v1973 = vsel %vm257, %v1885, 0
      %v1976 = vsel %vm257, %v1886, 0
      %v1979 = vsel %vm257, %v1887, 0
      %v1982 = vsel %vm257, %v1888, 0
      %v1985 = vsel %vm257, %v1889, 0
      %v1988 = vsel %vm527, %v1890, 0
      %1990 = vmatprep.subr.mxu0 0.0
      %1991 = vmatpush1.msra.mxu0 %v1988
      %1992 = vmatprep.subr.mxu0 0.0
      %1993 = vmatpush1.msra.mxu0 0.0
      %1994 = vmatprep.subr.mxu0 0.0
      %1995 = vmatpush1.msra.mxu0 0.0
      %1996 = vmatprep.subr.mxu0 0.0
      %1997 = vmatpush1.msra.mxu0 0.0
      %1998 = vmatprep.subr.mxu0 0.0
      %1999 = vmatpush1.msra.mxu0 0.0
      %2000 = vmatprep.subr.mxu0 0.0
      %2001 = vmatpush1.msra.mxu0 0.0
      %2002 = vmatprep.subr.mxu0 0.0
      %2003 = vmatpush1.msra.mxu0 0.0
      %2004 = vmatprep.subr.mxu0 0.0
      %2005 = vmatpush1.msra.mxu0 0.0
      %2006 = vmatprep.subr.mxu0 0.0
      %2007 = vmatpush1.msra.mxu0 0.0
      %2008 = vmatprep.subr.mxu0 0.0
      %2009 = vmatpush1.msra.mxu0 0.0
      %2010 = vmatprep.subr.mxu0 0.0
      %2011 = vmatpush1.msra.mxu0 0.0
      %2012 = vmatprep.subr.mxu0 0.0
      %2013 = vmatpush1.msra.mxu0 0.0
      %2014 = vmatprep.subr.mxu0 0.0
      %2015 = vmatpush1.msra.mxu0 0.0
      %2016 = vmatprep.subr.mxu0 0.0
      %2017 = vmatpush1.msra.mxu0 0.0
      %2018 = vmatprep.subr.mxu0 0.0
      %2019 = vmatpush1.msra.mxu0 0.0
      %2020 = vmatprep.subr.mxu0 0.0
      %2021 = vmatpush1.msra.mxu0 0.0
      %2022 = vmatprep.subr.mxu0 0.0
      %2023 = vmatpush1.msra.mxu0 0.0
      %2024 = vmatprep.subr.mxu0 0.0
      %2025 = vmatpush1.msra.mxu0 0.0
      %2026 = vmatprep.subr.mxu0 0.0
      %2027 = vmatpush1.msra.mxu0 0.0
      %2028 = vmatprep.subr.mxu0 0.0
      %2029 = vmatpush1.msra.mxu0 0.0
      %2030 = vmatprep.subr.mxu0 0.0
      %2031 = vmatpush1.msra.mxu0 0.0
      %2032 = vmatprep.subr.mxu0 0.0
      %2033 = vmatpush1.msra.mxu0 0.0
      %2034 = vmatprep.subr.mxu0 0.0
      %2035 = vmatpush1.msra.mxu0 0.0
      %2036 = vmatprep.subr.mxu0 0.0
      %2037 = vmatpush1.msra.mxu0 0.0
      %2038 = vmatprep.subr.mxu0 0.0
      %2039 = vmatpush1.msra.mxu0 0.0
      %2040 = vmatprep.subr.mxu0 0.0
      %2041 = vmatpush1.msra.mxu0 0.0
      %2042 = vmatprep.subr.mxu0 0.0
      %2043 = vmatpush1.msra.mxu0 0.0
      %2044 = vmatprep.subr.mxu0 0.0
      %2045 = vmatpush1.msra.mxu0 0.0
      %2046 = vmatprep.subr.mxu0 0.0
      %2047 = vmatpush1.msra.mxu0 0.0
      %2048 = vmatprep.subr.mxu0 0.0
      %2049 = vmatpush1.msra.mxu0 0.0
      %2050 = vmatprep.subr.mxu0 0.0
      %2051 = vmatpush1.msra.mxu0 0.0
      %2052 = vmatprep.subr.mxu0 0.0
      %2053 = vmatpush1.msra.mxu0 0.0
      %2054 = vmatprep.mubr.f32.mxu0 0.0
      %2055 = vmatmul.mubr.f32.gmra.mrb[0].mxu0 %v1892
      %v2056 = vpop.f32.mrb[0].mxu0
      %v2057 = vadd.f32 0.0, %v2056
      %v2058 = vpop.f32.mrb[0].mxu0
      %2059 = vmatprep.mubr.f32.mxu0 0.0
      %2060 = vmatmul.mubr.f32.gmra.mrb[0].mxu0 %v1895
      %v2061 = vpop.f32.mrb[0].mxu0
      %v2062 = vadd.f32 0.0, %v2061
      %v2063 = vpop.f32.mrb[0].mxu0
      %2064 = vmatprep.mubr.f32.mxu0 0.0
      %2065 = vmatmul.mubr.f32.gmra.mrb[0].mxu0 %v1898
      %v2066 = vpop.f32.mrb[0].mxu0
      %v2067 = vadd.f32 0.0, %v2066
      %v2068 = vpop.f32.mrb[0].mxu0
      %2069 = vmatprep.mubr.f32.mxu0 0.0
      %2070 = vmatmul.mubr.f32.gmra.mrb[0].mxu0 %v1901
      %v2071 = vpop.f32.mrb[0].mxu0
      %v2072 = vadd.f32 0.0, %v2071
      %v2073 = vpop.f32.mrb[0].mxu0
      %2074 = vmatprep.mubr.f32.mxu0 0.0
      %2075 = vmatmul.mubr.f32.gmra.mrb[0].mxu0 %v1904
      %v2076 = vpop.f32.mrb[0].mxu0
      %v2077 = vadd.f32 0.0, %v2076
      %v2078 = vpop.f32.mrb[0].mxu0
      %2079 = vmatprep.mubr.f32.mxu0 0.0
      %2080 = vmatmul.mubr.f32.gmra.mrb[0].mxu0 %v1907
      %v2081 = vpop.f32.mrb[0].mxu0
      %v2082 = vadd.f32 0.0, %v2081
      %v2083 = vpop.f32.mrb[0].mxu0
      %2084 = vmatprep.mubr.f32.mxu0 0.0
      %2085 = vmatmul.mubr.f32.gmra.mrb[0].mxu0 %v1910
      %v2086 = vpop.f32.mrb[0].mxu0
      %v2087 = vadd.f32 0.0, %v2086
      %v2088 = vpop.f32.mrb[0].mxu0
      %2089 = vmatprep.mubr.f32.mxu0 0.0
      %2090 = vmatmul.mubr.f32.gmra.mrb[0].mxu0 %v1913
      %v2091 = vpop.f32.mrb[0].mxu0
      %v2092 = vadd.f32 0.0, %v2091
      %v2093 = vpop.f32.mrb[0].mxu0
      %2094 = vmatprep.mubr.f32.mxu0 0.0
      %2095 = vmatmul.mubr.f32.gmra.mrb[0].mxu0 %v1916
      %v2096 = vpop.f32.mrb[0].mxu0
      %v2097 = vadd.f32 0.0, %v2096
      %v2098 = vpop.f32.mrb[0].mxu0
      %2099 = vmatprep.mubr.f32.mxu0 0.0
      %2100 = vmatmul.mubr.f32.gmra.mrb[0].mxu0 %v1919
      %v2101 = vpop.f32.mrb[0].mxu0
      %v2102 = vadd.f32 0.0, %v2101
      %v2103 = vpop.f32.mrb[0].mxu0
      %2104 = vmatprep.mubr.f32.mxu0 0.0
      %2105 = vmatmul.mubr.f32.gmra.mrb[0].mxu0 %v1922
      %v2106 = vpop.f32.mrb[0].mxu0
      %v2107 = vadd.f32 0.0, %v2106
      %v2108 = vpop.f32.mrb[0].mxu0
      %2109 = vmatprep.mubr.f32.mxu0 0.0
      %2110 = vmatmul.mubr.f32.gmra.mrb[0].mxu0 %v1925
      %v2111 = vpop.f32.mrb[0].mxu0
      %v2112 = vadd.f32 0.0, %v2111
      %v2113 = vpop.f32.mrb[0].mxu0
      %2114 = vmatprep.mubr.f32.mxu0 0.0
      %2115 = vmatmul.mubr.f32.gmra.mrb[0].mxu0 %v1928
      %v2116 = vpop.f32.mrb[0].mxu0
      %v2117 = vadd.f32 0.0, %v2116
      %v2118 = vpop.f32.mrb[0].mxu0
      %2119 = vmatprep.mubr.f32.mxu0 0.0
      %2120 = vmatmul.mubr.f32.gmra.mrb[0].mxu0 %v1931
      %v2121 = vpop.f32.mrb[0].mxu0
      %v2122 = vadd.f32 0.0, %v2121
      %v2123 = vpop.f32.mrb[0].mxu0
      %2124 = vmatprep.mubr.f32.mxu0 0.0
      %2125 = vmatmul.mubr.f32.gmra.mrb[0].mxu0 %v1934
      %v2126 = vpop.f32.mrb[0].mxu0
      %v2127 = vadd.f32 0.0, %v2126
      %v2128 = vpop.f32.mrb[0].mxu0
      %2129 = vmatprep.mubr.f32.mxu0 0.0
      %2130 = vmatmul.mubr.f32.gmra.mrb[0].mxu0 %v1937
      %v2131 = vpop.f32.mrb[0].mxu0
      %v2132 = vadd.f32 0.0, %v2131
      %v2133 = vpop.f32.mrb[0].mxu0
      %2134 = vmatprep.mubr.f32.mxu0 0.0
      %2135 = vmatmul.mubr.f32.gmra.mrb[0].mxu0 %v1940
      %v2136 = vpop.f32.mrb[0].mxu0
      %v2137 = vadd.f32 0.0, %v2136
      %v2138 = vpop.f32.mrb[0].mxu0
      %2139 = vmatprep.mubr.f32.mxu0 0.0
      %2140 = vmatmul.mubr.f32.gmra.mrb[0].mxu0 %v1943
      %v2141 = vpop.f32.mrb[0].mxu0
      %v2142 = vadd.f32 0.0, %v2141
      %v2143 = vpop.f32.mrb[0].mxu0
      %2144 = vmatprep.mubr.f32.mxu0 0.0
      %2145 = vmatmul.mubr.f32.gmra.mrb[0].mxu0 %v1946
      %v2146 = vpop.f32.mrb[0].mxu0
      %v2147 = vadd.f32 0.0, %v2146
      %v2148 = vpop.f32.mrb[0].mxu0
      %2149 = vmatprep.mubr.f32.mxu0 0.0
      %2150 = vmatmul.mubr.f32.gmra.mrb[0].mxu0 %v1949
      %v2151 = vpop.f32.mrb[0].mxu0
      %v2152 = vadd.f32 0.0, %v2151
      %v2153 = vpop.f32.mrb[0].mxu0
      %2154 = vmatprep.mubr.f32.mxu0 0.0
      %2155 = vmatmul.mubr.f32.gmra.mrb[0].mxu0 %v1952
      %v2156 = vpop.f32.mrb[0].mxu0
      %v2157 = vadd.f32 0.0, %v2156
      %v2158 = vpop.f32.mrb[0].mxu0
      %2159 = vmatprep.mubr.f32.mxu0 0.0
      %2160 = vmatmul.mubr.f32.gmra.mrb[0].mxu0 %v1955
      %v2161 = vpop.f32.mrb[0].mxu0
      %v2162 = vadd.f32 0.0, %v2161
      %v2163 = vpop.f32.mrb[0].mxu0
      %2164 = vmatprep.mubr.f32.mxu0 0.0
      %2165 = vmatmul.mubr.f32.gmra.mrb[0].mxu0 %v1958
      %v2166 = vpop.f32.mrb[0].mxu0
      %v2167 = vadd.f32 0.0, %v2166
      %v2168 = vpop.f32.mrb[0].mxu0
      %2169 = vmatprep.mubr.f32.mxu0 0.0
      %2170 = vmatmul.mubr.f32.gmra.mrb[0].mxu0 %v1961
      %v2171 = vpop.f32.mrb[0].mxu0
      %v2172 = vadd.f32 0.0, %v2171
      %v2173 = vpop.f32.mrb[0].mxu0
      %2174 = vmatprep.mubr.f32.mxu0 0.0
      %2175 = vmatmul.mubr.f32.gmra.mrb[0].mxu0 %v1964
      %v2176 = vpop.f32.mrb[0].mxu0
      %v2177 = vadd.f32 0.0, %v2176
      %v2178 = vpop.f32.mrb[0].mxu0
      %2179 = vmatprep.mubr.f32.mxu0 0.0
      %2180 = vmatmul.mubr.f32.gmra.mrb[0].mxu0 %v1967
      %v2181 = vpop.f32.mrb[0].mxu0
      %v2182 = vadd.f32 0.0, %v2181
      %v2183 = vpop.f32.mrb[0].mxu0
      %2184 = vmatprep.mubr.f32.mxu0 0.0
      %2185 = vmatmul.mubr.f32.gmra.mrb[0].mxu0 %v1970
      %v2186 = vpop.f32.mrb[0].mxu0
      %v2187 = vadd.f32 0.0, %v2186
      %v2188 = vpop.f32.mrb[0].mxu0
      %2189 = vmatprep.mubr.f32.mxu0 0.0
      %2190 = vmatmul.mubr.f32.gmra.mrb[0].mxu0 %v1973
      %v2191 = vpop.f32.mrb[0].mxu0
      %v2192 = vadd.f32 0.0, %v2191
      %v2193 = vpop.f32.mrb[0].mxu0
      %2194 = vmatprep.mubr.f32.mxu0 0.0
      %2195 = vmatmul.mubr.f32.gmra.mrb[0].mxu0 %v1976
      %v2196 = vpop.f32.mrb[0].mxu0
      %v2197 = vadd.f32 0.0, %v2196
      %v2198 = vpop.f32.mrb[0].mxu0
      %2199 = vmatprep.mubr.f32.mxu0 0.0
      %2200 = vmatmul.mubr.f32.gmra.mrb[0].mxu0 %v1979
      %v2201 = vpop.f32.mrb[0].mxu0
      %v2202 = vadd.f32 0.0, %v2201
      %v2203 = vpop.f32.mrb[0].mxu0
      %2204 = vmatprep.mubr.f32.mxu0 0.0
      %2205 = vmatmul.mubr.f32.gmra.mrb[0].mxu0 %v1982
      %v2206 = vpop.f32.mrb[0].mxu0
      %v2207 = vadd.f32 0.0, %v2206
      %v2208 = vpop.f32.mrb[0].mxu0
      %2209 = vmatprep.mubr.f32.mxu0 0.0
      %2210 = vmatmul.mubr.f32.gmra.mrb[0].mxu0 %v1985
      %v2211 = vpop.f32.mrb[0].mxu0
      %v2212 = vadd.f32 0.0, %v2211
      %v2213 = vpop.f32.mrb[0].mxu0
      %2214 = vdwg.mxu0
      %v2215 = vadd.f32 %v1826, %v2057
      %v2216 = vadd.f32 %v1827, %v2062
      %v2217 = vadd.f32 %v1828, %v2067
      %v2218 = vadd.f32 %v1829, %v2072
      %v2219 = vadd.f32 %v1830, %v2077
      %v2220 = vadd.f32 %v1831, %v2082
      %v2221 = vadd.f32 %v1832, %v2087
      %v2222 = vadd.f32 %v1833, %v2092
      %v2223 = vadd.f32 %v1834, %v2097
      %v2224 = vadd.f32 %v1835, %v2102
      %v2225 = vadd.f32 %v1836, %v2107
      %v2226 = vadd.f32 %v1837, %v2112
      %v2227 = vadd.f32 %v1838, %v2117
      %v2228 = vadd.f32 %v1839, %v2122
      %v2229 = vadd.f32 %v1840, %v2127
      %v2230 = vadd.f32 %v1841, %v2132
      %v2231 = vadd.f32 %v1842, %v2137
      %v2232 = vadd.f32 %v1843, %v2142
      %v2233 = vadd.f32 %v1844, %v2147
      %v2234 = vadd.f32 %v1845, %v2152
      %v2235 = vadd.f32 %v1846, %v2157
      %v2236 = vadd.f32 %v1847, %v2162
      %v2237 = vadd.f32 %v1848, %v2167
      %v2238 = vadd.f32 %v1849, %v2172
      %v2239 = vadd.f32 %v1850, %v2177
      %v2240 = vadd.f32 %v1851, %v2182
      %v2241 = vadd.f32 %v1852, %v2187
      %v2242 = vadd.f32 %v1853, %v2192
      %v2243 = vadd.f32 %v1854, %v2197
      %v2244 = vadd.f32 %v1855, %v2202
      %v2245 = vadd.f32 %v1856, %v2207
      %v2246 = vadd.f32 %v1857, %v2212
      %v2247 = vld [vmem:[%s268 + $0x9] sm:$0xff]
      %v2248 = vld [vmem:[%s268 + $0x11] sm:$0xff]
      %v2249 = vld [vmem:[%s268 + $0x29] sm:$0xff]
      %v2250 = vld [vmem:[%s268 + $0x31] sm:$0xff]
      %v2251 = vld [vmem:[%s268 + $0x49] sm:$0xff]
      %v2252 = vld [vmem:[%s268 + $0x51] sm:$0xff]
      %v2253 = vld [vmem:[%s268 + $0x69] sm:$0xff]
      %v2254 = vld [vmem:[%s268 + $0x71] sm:$0xff]
      %v2255 = vld [vmem:[%s268 + $0x89] sm:$0xff]
      %v2256 = vld [vmem:[%s268 + $0x91] sm:$0xff]
      %v2257 = vld [vmem:[%s268 + $0xa9] sm:$0xff]
      %v2258 = vld [vmem:[%s268 + $0xb1] sm:$0xff]
      %v2259 = vld [vmem:[%s268 + $0xc9] sm:$0xff]
      %v2260 = vld [vmem:[%s268 + $0xd1] sm:$0xff]
      %v2261 = vld [vmem:[%s268 + $0xe9] sm:$0xff]
      %v2262 = vld [vmem:[%s268 + $0xf1] sm:$0xff]
      %v2263 = vld [vmem:[%s268 + $0x109] sm:$0xff]
      %v2264 = vld [vmem:[%s268 + $0x111] sm:$0xff]
      %v2265 = vld [vmem:[%s268 + $0x129] sm:$0xff]
      %v2266 = vld [vmem:[%s268 + $0x131] sm:$0xff]
      %v2267 = vld [vmem:[%s268 + $0x149] sm:$0xff]
      %v2268 = vld [vmem:[%s268 + $0x151] sm:$0xff]
      %v2269 = vld [vmem:[%s268 + $0x169] sm:$0xff]
      %v2270 = vld [vmem:[%s268 + $0x171] sm:$0xff]
      %v2271 = vld [vmem:[%s268 + $0x189] sm:$0xff]
      %v2272 = vld [vmem:[%s268 + $0x191] sm:$0xff]
      %v2273 = vld [vmem:[%s268 + $0x1a9] sm:$0xff]
      %v2274 = vld [vmem:[%s268 + $0x1b1] sm:$0xff]
      %v2275 = vld [vmem:[%s268 + $0x1c9] sm:$0xff]
      %v2276 = vld [vmem:[%s268 + $0x1d1] sm:$0xff]
      %v2277 = vld [vmem:[%s268 + $0x1e9] sm:$0xff]
      %v2278 = vld [vmem:[%s268 + $0x1f1] sm:$0xff]
      %v2279 = vld [vmem:[%s1 + $0x14] sm:$0xf]
      %v2281 = vsel %vm257, %v2247, 0
      %v2284 = vsel %vm257, %v2248, 0
      %v2287 = vsel %vm257, %v2249, 0
      %v2290 = vsel %vm257, %v2250, 0
      %v2293 = vsel %vm257, %v2251, 0
      %v2296 = vsel %vm257, %v2252, 0
      %v2299 = vsel %vm257, %v2253, 0
      %v2302 = vsel %vm257, %v2254, 0
      %v2305 = vsel %vm257, %v2255, 0
      %v2308 = vsel %vm257, %v2256, 0
      %v2311 = vsel %vm257, %v2257, 0
      %v2314 = vsel %vm257, %v2258, 0
      %v2317 = vsel %vm257, %v2259, 0
      %v2320 = vsel %vm257, %v2260, 0
      %v2323 = vsel %vm257, %v2261, 0
      %v2326 = vsel %vm257, %v2262, 0
      %v2329 = vsel %vm257, %v2263, 0
      %v2332 = vsel %vm257, %v2264, 0
      %v2335 = vsel %vm257, %v2265, 0
      %v2338 = vsel %vm257, %v2266, 0
      %v2341 = vsel %vm257, %v2267, 0
      %v2344 = vsel %vm257, %v2268, 0
      %v2347 = vsel %vm257, %v2269, 0
      %v2350 = vsel %vm257, %v2270, 0
      %v2353 = vsel %vm257, %v2271, 0
      %v2356 = vsel %vm257, %v2272, 0
      %v2359 = vsel %vm257, %v2273, 0
      %v2362 = vsel %vm257, %v2274, 0
      %v2365 = vsel %vm257, %v2275, 0
      %v2368 = vsel %vm257, %v2276, 0
      %v2371 = vsel %vm257, %v2277, 0
      %v2374 = vsel %vm257, %v2278, 0
      %v2377 = vsel %vm527, %v2279, 0
      %2379 = vmatprep.subr.mxu0 0.0
      %2380 = vmatpush1.msra.mxu0 %v2377
      %2381 = vmatprep.subr.mxu0 0.0
      %2382 = vmatpush1.msra.mxu0 0.0
      %2383 = vmatprep.subr.mxu0 0.0
      %2384 = vmatpush1.msra.mxu0 0.0
      %2385 = vmatprep.subr.mxu0 0.0
      %2386 = vmatpush1.msra.mxu0 0.0
      %2387 = vmatprep.subr.mxu0 0.0
      %2388 = vmatpush1.msra.mxu0 0.0
      %2389 = vmatprep.subr.mxu0 0.0
      %2390 = vmatpush1.msra.mxu0 0.0
      %2391 = vmatprep.subr.mxu0 0.0
      %2392 = vmatpush1.msra.mxu0 0.0
      %2393 = vmatprep.subr.mxu0 0.0
      %2394 = vmatpush1.msra.mxu0 0.0
      %2395 = vmatprep.subr.mxu0 0.0
      %2396 = vmatpush1.msra.mxu0 0.0
      %2397 = vmatprep.subr.mxu0 0.0
      %2398 = vmatpush1.msra.mxu0 0.0
      %2399 = vmatprep.subr.mxu0 0.0
      %2400 = vmatpush1.msra.mxu0 0.0
      %2401 = vmatprep.subr.mxu0 0.0
      %2402 = vmatpush1.msra.mxu0 0.0
      %2403 = vmatprep.subr.mxu0 0.0
      %2404 = vmatpush1.msra.mxu0 0.0
      %2405 = vmatprep.subr.mxu0 0.0
      %2406 = vmatpush1.msra.mxu0 0.0
      %2407 = vmatprep.subr.mxu0 0.0
      %2408 = vmatpush1.msra.mxu0 0.0
      %2409 = vmatprep.subr.mxu0 0.0
      %2410 = vmatpush1.msra.mxu0 0.0
      %2411 = vmatprep.subr.mxu0 0.0
      %2412 = vmatpush1.msra.mxu0 0.0
      %2413 = vmatprep.subr.mxu0 0.0
      %2414 = vmatpush1.msra.mxu0 0.0
      %2415 = vmatprep.subr.mxu0 0.0
      %2416 = vmatpush1.msra.mxu0 0.0
      %2417 = vmatprep.subr.mxu0 0.0
      %2418 = vmatpush1.msra.mxu0 0.0
      %2419 = vmatprep.subr.mxu0 0.0
      %2420 = vmatpush1.msra.mxu0 0.0
      %2421 = vmatprep.subr.mxu0 0.0
      %2422 = vmatpush1.msra.mxu0 0.0
      %2423 = vmatprep.subr.mxu0 0.0
      %2424 = vmatpush1.msra.mxu0 0.0
      %2425 = vmatprep.subr.mxu0 0.0
      %2426 = vmatpush1.msra.mxu0 0.0
      %2427 = vmatprep.subr.mxu0 0.0
      %2428 = vmatpush1.msra.mxu0 0.0
      %2429 = vmatprep.subr.mxu0 0.0
      %2430 = vmatpush1.msra.mxu0 0.0
      %2431 = vmatprep.subr.mxu0 0.0
      %2432 = vmatpush1.msra.mxu0 0.0
      %2433 = vmatprep.subr.mxu0 0.0
      %2434 = vmatpush1.msra.mxu0 0.0
      %2435 = vmatprep.subr.mxu0 0.0
      %2436 = vmatpush1.msra.mxu0 0.0
      %2437 = vmatprep.subr.mxu0 0.0
      %2438 = vmatpush1.msra.mxu0 0.0
      %2439 = vmatprep.subr.mxu0 0.0
      %2440 = vmatpush1.msra.mxu0 0.0
      %2441 = vmatprep.subr.mxu0 0.0
      %2442 = vmatpush1.msra.mxu0 0.0
      %2443 = vmatprep.mubr.f32.mxu0 0.0
      %2444 = vmatmul.mubr.f32.gmra.mrb[0].mxu0 %v2281
      %v2445 = vpop.f32.mrb[0].mxu0
      %v2446 = vadd.f32 0.0, %v2445
      %v2447 = vpop.f32.mrb[0].mxu0
      %2448 = vmatprep.mubr.f32.mxu0 0.0
      %2449 = vmatmul.mubr.f32.gmra.mrb[0].mxu0 %v2284
      %v2450 = vpop.f32.mrb[0].mxu0
      %v2451 = vadd.f32 0.0, %v2450
      %v2452 = vpop.f32.mrb[0].mxu0
      %2453 = vmatprep.mubr.f32.mxu0 0.0
      %2454 = vmatmul.mubr.f32.gmra.mrb[0].mxu0 %v2287
      %v2455 = vpop.f32.mrb[0].mxu0
      %v2456 = vadd.f32 0.0, %v2455
      %v2457 = vpop.f32.mrb[0].mxu0
      %2458 = vmatprep.mubr.f32.mxu0 0.0
      %2459 = vmatmul.mubr.f32.gmra.mrb[0].mxu0 %v2290
      %v2460 = vpop.f32.mrb[0].mxu0
      %v2461 = vadd.f32 0.0, %v2460
      %v2462 = vpop.f32.mrb[0].mxu0
      %2463 = vmatprep.mubr.f32.mxu0 0.0
      %2464 = vmatmul.mubr.f32.gmra.mrb[0].mxu0 %v2293
      %v2465 = vpop.f32.mrb[0].mxu0
      %v2466 = vadd.f32 0.0, %v2465
      %v2467 = vpop.f32.mrb[0].mxu0
      %2468 = vmatprep.mubr.f32.mxu0 0.0
      %2469 = vmatmul.mubr.f32.gmra.mrb[0].mxu0 %v2296
      %v2470 = vpop.f32.mrb[0].mxu0
      %v2471 = vadd.f32 0.0, %v2470
      %v2472 = vpop.f32.mrb[0].mxu0
      %2473 = vmatprep.mubr.f32.mxu0 0.0
      %2474 = vmatmul.mubr.f32.gmra.mrb[0].mxu0 %v2299
      %v2475 = vpop.f32.mrb[0].mxu0
      %v2476 = vadd.f32 0.0, %v2475
      %v2477 = vpop.f32.mrb[0].mxu0
      %2478 = vmatprep.mubr.f32.mxu0 0.0
      %2479 = vmatmul.mubr.f32.gmra.mrb[0].mxu0 %v2302
      %v2480 = vpop.f32.mrb[0].mxu0
      %v2481 = vadd.f32 0.0, %v2480
      %v2482 = vpop.f32.mrb[0].mxu0
      %2483 = vmatprep.mubr.f32.mxu0 0.0
      %2484 = vmatmul.mubr.f32.gmra.mrb[0].mxu0 %v2305
      %v2485 = vpop.f32.mrb[0].mxu0
      %v2486 = vadd.f32 0.0, %v2485
      %v2487 = vpop.f32.mrb[0].mxu0
      %2488 = vmatprep.mubr.f32.mxu0 0.0
      %2489 = vmatmul.mubr.f32.gmra.mrb[0].mxu0 %v2308
      %v2490 = vpop.f32.mrb[0].mxu0
      %v2491 = vadd.f32 0.0, %v2490
      %v2492 = vpop.f32.mrb[0].mxu0
      %2493 = vmatprep.mubr.f32.mxu0 0.0
      %2494 = vmatmul.mubr.f32.gmra.mrb[0].mxu0 %v2311
      %v2495 = vpop.f32.mrb[0].mxu0
      %v2496 = vadd.f32 0.0, %v2495
      %v2497 = vpop.f32.mrb[0].mxu0
      %2498 = vmatprep.mubr.f32.mxu0 0.0
      %2499 = vmatmul.mubr.f32.gmra.mrb[0].mxu0 %v2314
      %v2500 = vpop.f32.mrb[0].mxu0
      %v2501 = vadd.f32 0.0, %v2500
      %v2502 = vpop.f32.mrb[0].mxu0
      %2503 = vmatprep.mubr.f32.mxu0 0.0
      %2504 = vmatmul.mubr.f32.gmra.mrb[0].mxu0 %v2317
      %v2505 = vpop.f32.mrb[0].mxu0
      %v2506 = vadd.f32 0.0, %v2505
      %v2507 = vpop.f32.mrb[0].mxu0
      %2508 = vmatprep.mubr.f32.mxu0 0.0
      %2509 = vmatmul.mubr.f32.gmra.mrb[0].mxu0 %v2320
      %v2510 = vpop.f32.mrb[0].mxu0
      %v2511 = vadd.f32 0.0, %v2510
      %v2512 = vpop.f32.mrb[0].mxu0
      %2513 = vmatprep.mubr.f32.mxu0 0.0
      %2514 = vmatmul.mubr.f32.gmra.mrb[0].mxu0 %v2323
      %v2515 = vpop.f32.mrb[0].mxu0
      %v2516 = vadd.f32 0.0, %v2515
      %v2517 = vpop.f32.mrb[0].mxu0
      %2518 = vmatprep.mubr.f32.mxu0 0.0
      %2519 = vmatmul.mubr.f32.gmra.mrb[0].mxu0 %v2326
      %v2520 = vpop.f32.mrb[0].mxu0
      %v2521 = vadd.f32 0.0, %v2520
      %v2522 = vpop.f32.mrb[0].mxu0
      %2523 = vmatprep.mubr.f32.mxu0 0.0
      %2524 = vmatmul.mubr.f32.gmra.mrb[0].mxu0 %v2329
      %v2525 = vpop.f32.mrb[0].mxu0
      %v2526 = vadd.f32 0.0, %v2525
      %v2527 = vpop.f32.mrb[0].mxu0
      %2528 = vmatprep.mubr.f32.mxu0 0.0
      %2529 = vmatmul.mubr.f32.gmra.mrb[0].mxu0 %v2332
      %v2530 = vpop.f32.mrb[0].mxu0
      %v2531 = vadd.f32 0.0, %v2530
      %v2532 = vpop.f32.mrb[0].mxu0
      %2533 = vmatprep.mubr.f32.mxu0 0.0
      %2534 = vmatmul.mubr.f32.gmra.mrb[0].mxu0 %v2335
      %v2535 = vpop.f32.mrb[0].mxu0
      %v2536 = vadd.f32 0.0, %v2535
      %v2537 = vpop.f32.mrb[0].mxu0
      %2538 = vmatprep.mubr.f32.mxu0 0.0
      %2539 = vmatmul.mubr.f32.gmra.mrb[0].mxu0 %v2338
      %v2540 = vpop.f32.mrb[0].mxu0
      %v2541 = vadd.f32 0.0, %v2540
      %v2542 = vpop.f32.mrb[0].mxu0
      %2543 = vmatprep.mubr.f32.mxu0 0.0
      %2544 = vmatmul.mubr.f32.gmra.mrb[0].mxu0 %v2341
      %v2545 = vpop.f32.mrb[0].mxu0
      %v2546 = vadd.f32 0.0, %v2545
      %v2547 = vpop.f32.mrb[0].mxu0
      %2548 = vmatprep.mubr.f32.mxu0 0.0
      %2549 = vmatmul.mubr.f32.gmra.mrb[0].mxu0 %v2344
      %v2550 = vpop.f32.mrb[0].mxu0
      %v2551 = vadd.f32 0.0, %v2550
      %v2552 = vpop.f32.mrb[0].mxu0
      %2553 = vmatprep.mubr.f32.mxu0 0.0
      %2554 = vmatmul.mubr.f32.gmra.mrb[0].mxu0 %v2347
      %v2555 = vpop.f32.mrb[0].mxu0
      %v2556 = vadd.f32 0.0, %v2555
      %v2557 = vpop.f32.mrb[0].mxu0
      %2558 = vmatprep.mubr.f32.mxu0 0.0
      %2559 = vmatmul.mubr.f32.gmra.mrb[0].mxu0 %v2350
      %v2560 = vpop.f32.mrb[0].mxu0
      %v2561 = vadd.f32 0.0, %v2560
      %v2562 = vpop.f32.mrb[0].mxu0
      %2563 = vmatprep.mubr.f32.mxu0 0.0
      %2564 = vmatmul.mubr.f32.gmra.mrb[0].mxu0 %v2353
      %v2565 = vpop.f32.mrb[0].mxu0
      %v2566 = vadd.f32 0.0, %v2565
      %v2567 = vpop.f32.mrb[0].mxu0
      %2568 = vmatprep.mubr.f32.mxu0 0.0
      %2569 = vmatmul.mubr.f32.gmra.mrb[0].mxu0 %v2356
      %v2570 = vpop.f32.mrb[0].mxu0
      %v2571 = vadd.f32 0.0, %v2570
      %v2572 = vpop.f32.mrb[0].mxu0
      %2573 = vmatprep.mubr.f32.mxu0 0.0
      %2574 = vmatmul.mubr.f32.gmra.mrb[0].mxu0 %v2359
      %v2575 = vpop.f32.mrb[0].mxu0
      %v2576 = vadd.f32 0.0, %v2575
      %v2577 = vpop.f32.mrb[0].mxu0
      %2578 = vmatprep.mubr.f32.mxu0 0.0
      %2579 = vmatmul.mubr.f32.gmra.mrb[0].mxu0 %v2362
      %v2580 = vpop.f32.mrb[0].mxu0
      %v2581 = vadd.f32 0.0, %v2580
      %v2582 = vpop.f32.mrb[0].mxu0
      %2583 = vmatprep.mubr.f32.mxu0 0.0
      %2584 = vmatmul.mubr.f32.gmra.mrb[0].mxu0 %v2365
      %v2585 = vpop.f32.mrb[0].mxu0
      %v2586 = vadd.f32 0.0, %v2585
      %v2587 = vpop.f32.mrb[0].mxu0
      %2588 = vmatprep.mubr.f32.mxu0 0.0
      %2589 = vmatmul.mubr.f32.gmra.mrb[0].mxu0 %v2368
      %v2590 = vpop.f32.mrb[0].mxu0
      %v2591 = vadd.f32 0.0, %v2590
      %v2592 = vpop.f32.mrb[0].mxu0
      %2593 = vmatprep.mubr.f32.mxu0 0.0
      %2594 = vmatmul.mubr.f32.gmra.mrb[0].mxu0 %v2371
      %v2595 = vpop.f32.mrb[0].mxu0
      %v2596 = vadd.f32 0.0, %v2595
      %v2597 = vpop.f32.mrb[0].mxu0
      %2598 = vmatprep.mubr.f32.mxu0 0.0
      %2599 = vmatmul.mubr.f32.gmra.mrb[0].mxu0 %v2374
      %v2600 = vpop.f32.mrb[0].mxu0
      %v2601 = vadd.f32 0.0, %v2600
      %v2602 = vpop.f32.mrb[0].mxu0
      %2603 = vdwg.mxu0
      %v2604 = vadd.f32 %v2215, %v2446
      %v2605 = vadd.f32 %v2216, %v2451
      %v2606 = vadd.f32 %v2217, %v2456
      %v2607 = vadd.f32 %v2218, %v2461
      %v2608 = vadd.f32 %v2219, %v2466
      %v2609 = vadd.f32 %v2220, %v2471
      %v2610 = vadd.f32 %v2221, %v2476
      %v2611 = vadd.f32 %v2222, %v2481
      %v2612 = vadd.f32 %v2223, %v2486
      %v2613 = vadd.f32 %v2224, %v2491
      %v2614 = vadd.f32 %v2225, %v2496
      %v2615 = vadd.f32 %v2226, %v2501
      %v2616 = vadd.f32 %v2227, %v2506
      %v2617 = vadd.f32 %v2228, %v2511
      %v2618 = vadd.f32 %v2229, %v2516
      %v2619 = vadd.f32 %v2230, %v2521
      %v2620 = vadd.f32 %v2231, %v2526
      %v2621 = vadd.f32 %v2232, %v2531
      %v2622 = vadd.f32 %v2233, %v2536
      %v2623 = vadd.f32 %v2234, %v2541
      %v2624 = vadd.f32 %v2235, %v2546
      %v2625 = vadd.f32 %v2236, %v2551
      %v2626 = vadd.f32 %v2237, %v2556
      %v2627 = vadd.f32 %v2238, %v2561
      %v2628 = vadd.f32 %v2239, %v2566
      %v2629 = vadd.f32 %v2240, %v2571
      %v2630 = vadd.f32 %v2241, %v2576
      %v2631 = vadd.f32 %v2242, %v2581
      %v2632 = vadd.f32 %v2243, %v2586
      %v2633 = vadd.f32 %v2244, %v2591
      %v2634 = vadd.f32 %v2245, %v2596
      %v2635 = vadd.f32 %v2246, %v2601
      %s2636 = scalar_lea.vmem [#allocation2], 64
      %v2637 = vld [vmem:[%s2636 + $0x7] sm:$0xff]
      %v2638 = vld [vmem:[%s2636 + $0xf] sm:$0xff]
      %v2639 = vld [vmem:[%s2636 + $0x27] sm:$0xff]
      %v2640 = vld [vmem:[%s2636 + $0x2f] sm:$0xff]
      %v2641 = vld [vmem:[%s2636 + $0x47] sm:$0xff]
      %v2642 = vld [vmem:[%s2636 + $0x4f] sm:$0xff]
      %v2643 = vld [vmem:[%s2636 + $0x67] sm:$0xff]
      %v2644 = vld [vmem:[%s2636 + $0x6f] sm:$0xff]
      %v2645 = vld [vmem:[%s2636 + $0x87] sm:$0xff]
      %v2646 = vld [vmem:[%s2636 + $0x8f] sm:$0xff]
      %v2647 = vld [vmem:[%s2636 + $0xa7] sm:$0xff]
      %v2648 = vld [vmem:[%s2636 + $0xaf] sm:$0xff]
      %v2649 = vld [vmem:[%s2636 + $0xc7] sm:$0xff]
      %v2650 = vld [vmem:[%s2636 + $0xcf] sm:$0xff]
      %v2651 = vld [vmem:[%s2636 + $0xe7] sm:$0xff]
      %v2652 = vld [vmem:[%s2636 + $0xef] sm:$0xff]
      %v2653 = vld [vmem:[%s2636 + $0x107] sm:$0xff]
      %v2654 = vld [vmem:[%s2636 + $0x10f] sm:$0xff]
      %v2655 = vld [vmem:[%s2636 + $0x127] sm:$0xff]
      %v2656 = vld [vmem:[%s2636 + $0x12f] sm:$0xff]
      %v2657 = vld [vmem:[%s2636 + $0x147] sm:$0xff]
      %v2658 = vld [vmem:[%s2636 + $0x14f] sm:$0xff]
      %v2659 = vld [vmem:[%s2636 + $0x167] sm:$0xff]
      %v2660 = vld [vmem:[%s2636 + $0x16f] sm:$0xff]
      %v2661 = vld [vmem:[%s2636 + $0x187] sm:$0xff]
      %v2662 = vld [vmem:[%s2636 + $0x18f] sm:$0xff]
      %v2663 = vld [vmem:[%s2636 + $0x1a7] sm:$0xff]
      %v2664 = vld [vmem:[%s2636 + $0x1af] sm:$0xff]
      %v2665 = vld [vmem:[%s2636 + $0x1c7] sm:$0xff]
      %v2666 = vld [vmem:[%s2636 + $0x1cf] sm:$0xff]
      %v2667 = vld [vmem:[%s2636 + $0x1e7] sm:$0xff]
      %v2668 = vld [vmem:[%s2636 + $0x1ef] sm:$0xff]
      %v2669 = vld [vmem:[%s1 + $0x18] sm:$0xf]
      %v2671 = vsel %vm257, %v2637, 0
      %v2674 = vsel %vm257, %v2638, 0
      %v2677 = vsel %vm257, %v2639, 0
      %v2680 = vsel %vm257, %v2640, 0
      %v2683 = vsel %vm257, %v2641, 0
      %v2686 = vsel %vm257, %v2642, 0
      %v2689 = vsel %vm257, %v2643, 0
      %v2692 = vsel %vm257, %v2644, 0
      %v2695 = vsel %vm257, %v2645, 0
      %v2698 = vsel %vm257, %v2646, 0
      %v2701 = vsel %vm257, %v2647, 0
      %v2704 = vsel %vm257, %v2648, 0
      %v2707 = vsel %vm257, %v2649, 0
      %v2710 = vsel %vm257, %v2650, 0
      %v2713 = vsel %vm257, %v2651, 0
      %v2716 = vsel %vm257, %v2652, 0
      %v2719 = vsel %vm257, %v2653, 0
      %v2722 = vsel %vm257, %v2654, 0
      %v2725 = vsel %vm257, %v2655, 0
      %v2728 = vsel %vm257, %v2656, 0
      %v2731 = vsel %vm257, %v2657, 0
      %v2734 = vsel %vm257, %v2658, 0
      %v2737 = vsel %vm257, %v2659, 0
      %v2740 = vsel %vm257, %v2660, 0
      %v2743 = vsel %vm257, %v2661, 0
      %v2746 = vsel %vm257, %v2662, 0
      %v2749 = vsel %vm257, %v2663, 0
      %v2752 = vsel %vm257, %v2664, 0
      %v2755 = vsel %vm257, %v2665, 0
      %v2758 = vsel %vm257, %v2666, 0
      %v2761 = vsel %vm257, %v2667, 0
      %v2764 = vsel %vm257, %v2668, 0
      %v2767 = vsel %vm527, %v2669, 0
      %2769 = vmatprep.subr.mxu0 0.0
      %2770 = vmatpush1.msra.mxu0 %v2767
      %2771 = vmatprep.subr.mxu0 0.0
      %2772 = vmatpush1.msra.mxu0 0.0
      %2773 = vmatprep.subr.mxu0 0.0
      %2774 = vmatpush1.msra.mxu0 0.0
      %2775 = vmatprep.subr.mxu0 0.0
      %2776 = vmatpush1.msra.mxu0 0.0
      %2777 = vmatprep.subr.mxu0 0.0
      %2778 = vmatpush1.msra.mxu0 0.0
      %2779 = vmatprep.subr.mxu0 0.0
      %2780 = vmatpush1.msra.mxu0 0.0
      %2781 = vmatprep.subr.mxu0 0.0
      %2782 = vmatpush1.msra.mxu0 0.0
      %2783 = vmatprep.subr.mxu0 0.0
      %2784 = vmatpush1.msra.mxu0 0.0
      %2785 = vmatprep.subr.mxu0 0.0
      %2786 = vmatpush1.msra.mxu0 0.0
      %2787 = vmatprep.subr.mxu0 0.0
      %2788 = vmatpush1.msra.mxu0 0.0
      %2789 = vmatprep.subr.mxu0 0.0
      %2790 = vmatpush1.msra.mxu0 0.0
      %2791 = vmatprep.subr.mxu0 0.0
      %2792 = vmatpush1.msra.mxu0 0.0
      %2793 = vmatprep.subr.mxu0 0.0
      %2794 = vmatpush1.msra.mxu0 0.0
      %2795 = vmatprep.subr.mxu0 0.0
      %2796 = vmatpush1.msra.mxu0 0.0
      %2797 = vmatprep.subr.mxu0 0.0
      %2798 = vmatpush1.msra.mxu0 0.0
      %2799 = vmatprep.subr.mxu0 0.0
      %2800 = vmatpush1.msra.mxu0 0.0
      %2801 = vmatprep.subr.mxu0 0.0
      %2802 = vmatpush1.msra.mxu0 0.0
      %2803 = vmatprep.subr.mxu0 0.0
      %2804 = vmatpush1.msra.mxu0 0.0
      %2805 = vmatprep.subr.mxu0 0.0
      %2806 = vmatpush1.msra.mxu0 0.0
      %2807 = vmatprep.subr.mxu0 0.0
      %2808 = vmatpush1.msra.mxu0 0.0
      %2809 = vmatprep.subr.mxu0 0.0
      %2810 = vmatpush1.msra.mxu0 0.0
      %2811 = vmatprep.subr.mxu0 0.0
      %2812 = vmatpush1.msra.mxu0 0.0
      %2813 = vmatprep.subr.mxu0 0.0
      %2814 = vmatpush1.msra.mxu0 0.0
      %2815 = vmatprep.subr.mxu0 0.0
      %2816 = vmatpush1.msra.mxu0 0.0
      %2817 = vmatprep.subr.mxu0 0.0
      %2818 = vmatpush1.msra.mxu0 0.0
      %2819 = vmatprep.subr.mxu0 0.0
      %2820 = vmatpush1.msra.mxu0 0.0
      %2821 = vmatprep.subr.mxu0 0.0
      %2822 = vmatpush1.msra.mxu0 0.0
      %2823 = vmatprep.subr.mxu0 0.0
      %2824 = vmatpush1.msra.mxu0 0.0
      %2825 = vmatprep.subr.mxu0 0.0
      %2826 = vmatpush1.msra.mxu0 0.0
      %2827 = vmatprep.subr.mxu0 0.0
      %2828 = vmatpush1.msra.mxu0 0.0
      %2829 = vmatprep.subr.mxu0 0.0
      %2830 = vmatpush1.msra.mxu0 0.0
      %2831 = vmatprep.subr.mxu0 0.0
      %2832 = vmatpush1.msra.mxu0 0.0
      %2833 = vmatprep.mubr.f32.mxu0 0.0
      %2834 = vmatmul.mubr.f32.gmra.mrb[0].mxu0 %v2671
      %v2835 = vpop.f32.mrb[0].mxu0
      %v2836 = vadd.f32 0.0, %v2835
      %v2837 = vpop.f32.mrb[0].mxu0
      %2838 = vmatprep.mubr.f32.mxu0 0.0
      %2839 = vmatmul.mubr.f32.gmra.mrb[0].mxu0 %v2674
      %v2840 = vpop.f32.mrb[0].mxu0
      %v2841 = vadd.f32 0.0, %v2840
      %v2842 = vpop.f32.mrb[0].mxu0
      %2843 = vmatprep.mubr.f32.mxu0 0.0
      %2844 = vmatmul.mubr.f32.gmra.mrb[0].mxu0 %v2677
      %v2845 = vpop.f32.mrb[0].mxu0
      %v2846 = vadd.f32 0.0, %v2845
      %v2847 = vpop.f32.mrb[0].mxu0
      %2848 = vmatprep.mubr.f32.mxu0 0.0
      %2849 = vmatmul.mubr.f32.gmra.mrb[0].mxu0 %v2680
      %v2850 = vpop.f32.mrb[0].mxu0
      %v2851 = vadd.f32 0.0, %v2850
      %v2852 = vpop.f32.mrb[0].mxu0
      %2853 = vmatprep.mubr.f32.mxu0 0.0
      %2854 = vmatmul.mubr.f32.gmra.mrb[0].mxu0 %v2683
      %v2855 = vpop.f32.mrb[0].mxu0
      %v2856 = vadd.f32 0.0, %v2855
      %v2857 = vpop.f32.mrb[0].mxu0
      %2858 = vmatprep.mubr.f32.mxu0 0.0
      %2859 = vmatmul.mubr.f32.gmra.mrb[0].mxu0 %v2686
      %v2860 = vpop.f32.mrb[0].mxu0
      %v2861 = vadd.f32 0.0, %v2860
      %v2862 = vpop.f32.mrb[0].mxu0
      %2863 = vmatprep.mubr.f32.mxu0 0.0
      %2864 = vmatmul.mubr.f32.gmra.mrb[0].mxu0 %v2689
      %v2865 = vpop.f32.mrb[0].mxu0
      %v2866 = vadd.f32 0.0, %v2865
      %v2867 = vpop.f32.mrb[0].mxu0
      %2868 = vmatprep.mubr.f32.mxu0 0.0
      %2869 = vmatmul.mubr.f32.gmra.mrb[0].mxu0 %v2692
      %v2870 = vpop.f32.mrb[0].mxu0
      %v2871 = vadd.f32 0.0, %v2870
      %v2872 = vpop.f32.mrb[0].mxu0
      %2873 = vmatprep.mubr.f32.mxu0 0.0
      %2874 = vmatmul.mubr.f32.gmra.mrb[0].mxu0 %v2695
      %v2875 = vpop.f32.mrb[0].mxu0
      %v2876 = vadd.f32 0.0, %v2875
      %v2877 = vpop.f32.mrb[0].mxu0
      %2878 = vmatprep.mubr.f32.mxu0 0.0
      %2879 = vmatmul.mubr.f32.gmra.mrb[0].mxu0 %v2698
      %v2880 = vpop.f32.mrb[0].mxu0
      %v2881 = vadd.f32 0.0, %v2880
      %v2882 = vpop.f32.mrb[0].mxu0
      %2883 = vmatprep.mubr.f32.mxu0 0.0
      %2884 = vmatmul.mubr.f32.gmra.mrb[0].mxu0 %v2701
      %v2885 = vpop.f32.mrb[0].mxu0
      %v2886 = vadd.f32 0.0, %v2885
      %v2887 = vpop.f32.mrb[0].mxu0
      %2888 = vmatprep.mubr.f32.mxu0 0.0
      %2889 = vmatmul.mubr.f32.gmra.mrb[0].mxu0 %v2704
      %v2890 = vpop.f32.mrb[0].mxu0
      %v2891 = vadd.f32 0.0, %v2890
      %v2892 = vpop.f32.mrb[0].mxu0
      %2893 = vmatprep.mubr.f32.mxu0 0.0
      %2894 = vmatmul.mubr.f32.gmra.mrb[0].mxu0 %v2707
      %v2895 = vpop.f32.mrb[0].mxu0
      %v2896 = vadd.f32 0.0, %v2895
      %v2897 = vpop.f32.mrb[0].mxu0
      %2898 = vmatprep.mubr.f32.mxu0 0.0
      %2899 = vmatmul.mubr.f32.gmra.mrb[0].mxu0 %v2710
      %v2900 = vpop.f32.mrb[0].mxu0
      %v2901 = vadd.f32 0.0, %v2900
      %v2902 = vpop.f32.mrb[0].mxu0
      %2903 = vmatprep.mubr.f32.mxu0 0.0
      %2904 = vmatmul.mubr.f32.gmra.mrb[0].mxu0 %v2713
      %v2905 = vpop.f32.mrb[0].mxu0
      %v2906 = vadd.f32 0.0, %v2905
      %v2907 = vpop.f32.mrb[0].mxu0
      %2908 = vmatprep.mubr.f32.mxu0 0.0
      %2909 = vmatmul.mubr.f32.gmra.mrb[0].mxu0 %v2716
      %v2910 = vpop.f32.mrb[0].mxu0
      %v2911 = vadd.f32 0.0, %v2910
      %v2912 = vpop.f32.mrb[0].mxu0
      %2913 = vmatprep.mubr.f32.mxu0 0.0
      %2914 = vmatmul.mubr.f32.gmra.mrb[0].mxu0 %v2719
      %v2915 = vpop.f32.mrb[0].mxu0
      %v2916 = vadd.f32 0.0, %v2915
      %v2917 = vpop.f32.mrb[0].mxu0
      %2918 = vmatprep.mubr.f32.mxu0 0.0
      %2919 = vmatmul.mubr.f32.gmra.mrb[0].mxu0 %v2722
      %v2920 = vpop.f32.mrb[0].mxu0
      %v2921 = vadd.f32 0.0, %v2920
      %v2922 = vpop.f32.mrb[0].mxu0
      %2923 = vmatprep.mubr.f32.mxu0 0.0
      %2924 = vmatmul.mubr.f32.gmra.mrb[0].mxu0 %v2725
      %v2925 = vpop.f32.mrb[0].mxu0
      %v2926 = vadd.f32 0.0, %v2925
      %v2927 = vpop.f32.mrb[0].mxu0
      %2928 = vmatprep.mubr.f32.mxu0 0.0
      %2929 = vmatmul.mubr.f32.gmra.mrb[0].mxu0 %v2728
      %v2930 = vpop.f32.mrb[0].mxu0
      %v2931 = vadd.f32 0.0, %v2930
      %v2932 = vpop.f32.mrb[0].mxu0
      %2933 = vmatprep.mubr.f32.mxu0 0.0
      %2934 = vmatmul.mubr.f32.gmra.mrb[0].mxu0 %v2731
      %v2935 = vpop.f32.mrb[0].mxu0
      %v2936 = vadd.f32 0.0, %v2935
      %v2937 = vpop.f32.mrb[0].mxu0
      %2938 = vmatprep.mubr.f32.mxu0 0.0
      %2939 = vmatmul.mubr.f32.gmra.mrb[0].mxu0 %v2734
      %v2940 = vpop.f32.mrb[0].mxu0
      %v2941 = vadd.f32 0.0, %v2940
      %v2942 = vpop.f32.mrb[0].mxu0
      %2943 = vmatprep.mubr.f32.mxu0 0.0
      %2944 = vmatmul.mubr.f32.gmra.mrb[0].mxu0 %v2737
      %v2945 = vpop.f32.mrb[0].mxu0
      %v2946 = vadd.f32 0.0, %v2945
      %v2947 = vpop.f32.mrb[0].mxu0
      %2948 = vmatprep.mubr.f32.mxu0 0.0
      %2949 = vmatmul.mubr.f32.gmra.mrb[0].mxu0 %v2740
      %v2950 = vpop.f32.mrb[0].mxu0
      %v2951 = vadd.f32 0.0, %v2950
      %v2952 = vpop.f32.mrb[0].mxu0
      %2953 = vmatprep.mubr.f32.mxu0 0.0
      %2954 = vmatmul.mubr.f32.gmra.mrb[0].mxu0 %v2743
      %v2955 = vpop.f32.mrb[0].mxu0
      %v2956 = vadd.f32 0.0, %v2955
      %v2957 = vpop.f32.mrb[0].mxu0
      %2958 = vmatprep.mubr.f32.mxu0 0.0
      %2959 = vmatmul.mubr.f32.gmra.mrb[0].mxu0 %v2746
      %v2960 = vpop.f32.mrb[0].mxu0
      %v2961 = vadd.f32 0.0, %v2960
      %v2962 = vpop.f32.mrb[0].mxu0
      %2963 = vmatprep.mubr.f32.mxu0 0.0
      %2964 = vmatmul.mubr.f32.gmra.mrb[0].mxu0 %v2749
      %v2965 = vpop.f32.mrb[0].mxu0
      %v2966 = vadd.f32 0.0, %v2965
      %v2967 = vpop.f32.mrb[0].mxu0
      %2968 = vmatprep.mubr.f32.mxu0 0.0
      %2969 = vmatmul.mubr.f32.gmra.mrb[0].mxu0 %v2752
      %v2970 = vpop.f32.mrb[0].mxu0
      %v2971 = vadd.f32 0.0, %v2970
      %v2972 = vpop.f32.mrb[0].mxu0
      %2973 = vmatprep.mubr.f32.mxu0 0.0
      %2974 = vmatmul.mubr.f32.gmra.mrb[0].mxu0 %v2755
      %v2975 = vpop.f32.mrb[0].mxu0
      %v2976 = vadd.f32 0.0, %v2975
      %v2977 = vpop.f32.mrb[0].mxu0
      %2978 = vmatprep.mubr.f32.mxu0 0.0
      %2979 = vmatmul.mubr.f32.gmra.mrb[0].mxu0 %v2758
      %v2980 = vpop.f32.mrb[0].mxu0
      %v2981 = vadd.f32 0.0, %v2980
      %v2982 = vpop.f32.mrb[0].mxu0
      %2983 = vmatprep.mubr.f32.mxu0 0.0
      %2984 = vmatmul.mubr.f32.gmra.mrb[0].mxu0 %v2761
      %v2985 = vpop.f32.mrb[0].mxu0
      %v2986 = vadd.f32 0.0, %v2985
      %v2987 = vpop.f32.mrb[0].mxu0
      %2988 = vmatprep.mubr.f32.mxu0 0.0
      %2989 = vmatmul.mubr.f32.gmra.mrb[0].mxu0 %v2764
      %v2990 = vpop.f32.mrb[0].mxu0
      %v2991 = vadd.f32 0.0, %v2990
      %v2992 = vpop.f32.mrb[0].mxu0
      %2993 = vdwg.mxu0
      %v2994 = vadd.f32 %v2604, %v2836
      %v2995 = vadd.f32 %v2605, %v2841
      %v2996 = vadd.f32 %v2606, %v2846
      %v2997 = vadd.f32 %v2607, %v2851
      %v2998 = vadd.f32 %v2608, %v2856
      %v2999 = vadd.f32 %v2609, %v2861
      %v3000 = vadd.f32 %v2610, %v2866
      %v3001 = vadd.f32 %v2611, %v2871
      %v3002 = vadd.f32 %v2612, %v2876
      %v3003 = vadd.f32 %v2613, %v2881
      %v3004 = vadd.f32 %v2614, %v2886
      %v3005 = vadd.f32 %v2615, %v2891
      %v3006 = vadd.f32 %v2616, %v2896
      %v3007 = vadd.f32 %v2617, %v2901
      %v3008 = vadd.f32 %v2618, %v2906
      %v3009 = vadd.f32 %v2619, %v2911
      %v3010 = vadd.f32 %v2620, %v2916
      %v3011 = vadd.f32 %v2621, %v2921
      %v3012 = vadd.f32 %v2622, %v2926
      %v3013 = vadd.f32 %v2623, %v2931
      %v3014 = vadd.f32 %v2624, %v2936
      %v3015 = vadd.f32 %v2625, %v2941
      %v3016 = vadd.f32 %v2626, %v2946
      %v3017 = vadd.f32 %v2627, %v2951
      %v3018 = vadd.f32 %v2628, %v2956
      %v3019 = vadd.f32 %v2629, %v2961
      %v3020 = vadd.f32 %v2630, %v2966
      %v3021 = vadd.f32 %v2631, %v2971
      %v3022 = vadd.f32 %v2632, %v2976
      %v3023 = vadd.f32 %v2633, %v2981
      %v3024 = vadd.f32 %v2634, %v2986
      %v3025 = vadd.f32 %v2635, %v2991
      %v3026 = vld [vmem:[%s2636 + $0x8] sm:$0xff]
      %v3027 = vld [vmem:[%s2636 + $0x10] sm:$0xff]
      %v3028 = vld [vmem:[%s2636 + $0x28] sm:$0xff]
      %v3029 = vld [vmem:[%s2636 + $0x30] sm:$0xff]
      %v3030 = vld [vmem:[%s2636 + $0x48] sm:$0xff]
      %v3031 = vld [vmem:[%s2636 + $0x50] sm:$0xff]
      %v3032 = vld [vmem:[%s2636 + $0x68] sm:$0xff]
      %v3033 = vld [vmem:[%s2636 + $0x70] sm:$0xff]
      %v3034 = vld [vmem:[%s2636 + $0x88] sm:$0xff]
      %v3035 = vld [vmem:[%s2636 + $0x90] sm:$0xff]
      %v3036 = vld [vmem:[%s2636 + $0xa8] sm:$0xff]
      %v3037 = vld [vmem:[%s2636 + $0xb0] sm:$0xff]
      %v3038 = vld [vmem:[%s2636 + $0xc8] sm:$0xff]
      %v3039 = vld [vmem:[%s2636 + $0xd0] sm:$0xff]
      %v3040 = vld [vmem:[%s2636 + $0xe8] sm:$0xff]
      %v3041 = vld [vmem:[%s2636 + $0xf0] sm:$0xff]
      %v3042 = vld [vmem:[%s2636 + $0x108] sm:$0xff]
      %v3043 = vld [vmem:[%s2636 + $0x110] sm:$0xff]
      %v3044 = vld [vmem:[%s2636 + $0x128] sm:$0xff]
      %v3045 = vld [vmem:[%s2636 + $0x130] sm:$0xff]
      %v3046 = vld [vmem:[%s2636 + $0x148] sm:$0xff]
      %v3047 = vld [vmem:[%s2636 + $0x150] sm:$0xff]
      %v3048 = vld [vmem:[%s2636 + $0x168] sm:$0xff]
      %v3049 = vld [vmem:[%s2636 + $0x170] sm:$0xff]
      %v3050 = vld [vmem:[%s2636 + $0x188] sm:$0xff]
      %v3051 = vld [vmem:[%s2636 + $0x190] sm:$0xff]
      %v3052 = vld [vmem:[%s2636 + $0x1a8] sm:$0xff]
      %v3053 = vld [vmem:[%s2636 + $0x1b0] sm:$0xff]
      %v3054 = vld [vmem:[%s2636 + $0x1c8] sm:$0xff]
      %v3055 = vld [vmem:[%s2636 + $0x1d0] sm:$0xff]
      %v3056 = vld [vmem:[%s2636 + $0x1e8] sm:$0xff]
      %v3057 = vld [vmem:[%s2636 + $0x1f0] sm:$0xff]
      %v3058 = vld [vmem:[%s1 + $0x1c] sm:$0xf]
      %v3060 = vsel %vm257, %v3026, 0
      %v3063 = vsel %vm257, %v3027, 0
      %v3066 = vsel %vm257, %v3028, 0
      %v3069 = vsel %vm257, %v3029, 0
      %v3072 = vsel %vm257, %v3030, 0
      %v3075 = vsel %vm257, %v3031, 0
      %v3078 = vsel %vm257, %v3032, 0
      %v3081 = vsel %vm257, %v3033, 0
      %v3084 = vsel %vm257, %v3034, 0
      %v3087 = vsel %vm257, %v3035, 0
      %v3090 = vsel %vm257, %v3036, 0
      %v3093 = vsel %vm257, %v3037, 0
      %v3096 = vsel %vm257, %v3038, 0
      %v3099 = vsel %vm257, %v3039, 0
      %v3102 = vsel %vm257, %v3040, 0
      %v3105 = vsel %vm257, %v3041, 0
      %v3108 = vsel %vm257, %v3042, 0
      %v3111 = vsel %vm257, %v3043, 0
      %v3114 = vsel %vm257, %v3044, 0
      %v3117 = vsel %vm257, %v3045, 0
      %v3120 = vsel %vm257, %v3046, 0
      %v3123 = vsel %vm257, %v3047, 0
      %v3126 = vsel %vm257, %v3048, 0
      %v3129 = vsel %vm257, %v3049, 0
      %v3132 = vsel %vm257, %v3050, 0
      %v3135 = vsel %vm257, %v3051, 0
      %v3138 = vsel %vm257, %v3052, 0
      %v3141 = vsel %vm257, %v3053, 0
      %v3144 = vsel %vm257, %v3054, 0
      %v3147 = vsel %vm257, %v3055, 0
      %v3150 = vsel %vm257, %v3056, 0
      %v3153 = vsel %vm257, %v3057, 0
      %v3156 = vsel %vm527, %v3058, 0
      %3158 = vmatprep.subr.mxu0 0.0
      %3159 = vmatpush1.msra.mxu0 %v3156
      %3160 = vmatprep.subr.mxu0 0.0
      %3161 = vmatpush1.msra.mxu0 0.0
      %3162 = vmatprep.subr.mxu0 0.0
      %3163 = vmatpush1.msra.mxu0 0.0
      %3164 = vmatprep.subr.mxu0 0.0
      %3165 = vmatpush1.msra.mxu0 0.0
      %3166 = vmatprep.subr.mxu0 0.0
      %3167 = vmatpush1.msra.mxu0 0.0
      %3168 = vmatprep.subr.mxu0 0.0
      %3169 = vmatpush1.msra.mxu0 0.0
      %3170 = vmatprep.subr.mxu0 0.0
      %3171 = vmatpush1.msra.mxu0 0.0
      %3172 = vmatprep.subr.mxu0 0.0
      %3173 = vmatpush1.msra.mxu0 0.0
      %3174 = vmatprep.subr.mxu0 0.0
      %3175 = vmatpush1.msra.mxu0 0.0
      %3176 = vmatprep.subr.mxu0 0.0
      %3177 = vmatpush1.msra.mxu0 0.0
      %3178 = vmatprep.subr.mxu0 0.0
      %3179 = vmatpush1.msra.mxu0 0.0
      %3180 = vmatprep.subr.mxu0 0.0
      %3181 = vmatpush1.msra.mxu0 0.0
      %3182 = vmatprep.subr.mxu0 0.0
      %3183 = vmatpush1.msra.mxu0 0.0
      %3184 = vmatprep.subr.mxu0 0.0
      %3185 = vmatpush1.msra.mxu0 0.0
      %3186 = vmatprep.subr.mxu0 0.0
      %3187 = vmatpush1.msra.mxu0 0.0
      %3188 = vmatprep.subr.mxu0 0.0
      %3189 = vmatpush1.msra.mxu0 0.0
      %3190 = vmatprep.subr.mxu0 0.0
      %3191 = vmatpush1.msra.mxu0 0.0
      %3192 = vmatprep.subr.mxu0 0.0
      %3193 = vmatpush1.msra.mxu0 0.0
      %3194 = vmatprep.subr.mxu0 0.0
      %3195 = vmatpush1.msra.mxu0 0.0
      %3196 = vmatprep.subr.mxu0 0.0
      %3197 = vmatpush1.msra.mxu0 0.0
      %3198 = vmatprep.subr.mxu0 0.0
      %3199 = vmatpush1.msra.mxu0 0.0
      %3200 = vmatprep.subr.mxu0 0.0
      %3201 = vmatpush1.msra.mxu0 0.0
      %3202 = vmatprep.subr.mxu0 0.0
      %3203 = vmatpush1.msra.mxu0 0.0
      %3204 = vmatprep.subr.mxu0 0.0
      %3205 = vmatpush1.msra.mxu0 0.0
      %3206 = vmatprep.subr.mxu0 0.0
      %3207 = vmatpush1.msra.mxu0 0.0
      %3208 = vmatprep.subr.mxu0 0.0
      %3209 = vmatpush1.msra.mxu0 0.0
      %3210 = vmatprep.subr.mxu0 0.0
      %3211 = vmatpush1.msra.mxu0 0.0
      %3212 = vmatprep.subr.mxu0 0.0
      %3213 = vmatpush1.msra.mxu0 0.0
      %3214 = vmatprep.subr.mxu0 0.0
      %3215 = vmatpush1.msra.mxu0 0.0
      %3216 = vmatprep.subr.mxu0 0.0
      %3217 = vmatpush1.msra.mxu0 0.0
      %3218 = vmatprep.subr.mxu0 0.0
      %3219 = vmatpush1.msra.mxu0 0.0
      %3220 = vmatprep.subr.mxu0 0.0
      %3221 = vmatpush1.msra.mxu0 0.0
      %3222 = vmatprep.mubr.f32.mxu0 0.0
      %3223 = vmatmul.mubr.f32.gmra.mrb[0].mxu0 %v3060
      %v3224 = vpop.f32.mrb[0].mxu0
      %v3225 = vadd.f32 0.0, %v3224
      %v3226 = vpop.f32.mrb[0].mxu0
      %3227 = vmatprep.mubr.f32.mxu0 0.0
      %3228 = vmatmul.mubr.f32.gmra.mrb[0].mxu0 %v3063
      %v3229 = vpop.f32.mrb[0].mxu0
      %v3230 = vadd.f32 0.0, %v3229
      %v3231 = vpop.f32.mrb[0].mxu0
      %3232 = vmatprep.mubr.f32.mxu0 0.0
      %3233 = vmatmul.mubr.f32.gmra.mrb[0].mxu0 %v3066
      %v3234 = vpop.f32.mrb[0].mxu0
      %v3235 = vadd.f32 0.0, %v3234
      %v3236 = vpop.f32.mrb[0].mxu0
      %3237 = vmatprep.mubr.f32.mxu0 0.0
      %3238 = vmatmul.mubr.f32.gmra.mrb[0].mxu0 %v3069
      %v3239 = vpop.f32.mrb[0].mxu0
      %v3240 = vadd.f32 0.0, %v3239
      %v3241 = vpop.f32.mrb[0].mxu0
      %3242 = vmatprep.mubr.f32.mxu0 0.0
      %3243 = vmatmul.mubr.f32.gmra.mrb[0].mxu0 %v3072
      %v3244 = vpop.f32.mrb[0].mxu0
      %v3245 = vadd.f32 0.0, %v3244
      %v3246 = vpop.f32.mrb[0].mxu0
      %3247 = vmatprep.mubr.f32.mxu0 0.0
      %3248 = vmatmul.mubr.f32.gmra.mrb[0].mxu0 %v3075
      %v3249 = vpop.f32.mrb[0].mxu0
      %v3250 = vadd.f32 0.0, %v3249
      %v3251 = vpop.f32.mrb[0].mxu0
      %3252 = vmatprep.mubr.f32.mxu0 0.0
      %3253 = vmatmul.mubr.f32.gmra.mrb[0].mxu0 %v3078
      %v3254 = vpop.f32.mrb[0].mxu0
      %v3255 = vadd.f32 0.0, %v3254
      %v3256 = vpop.f32.mrb[0].mxu0
      %3257 = vmatprep.mubr.f32.mxu0 0.0
      %3258 = vmatmul.mubr.f32.gmra.mrb[0].mxu0 %v3081
      %v3259 = vpop.f32.mrb[0].mxu0
      %v3260 = vadd.f32 0.0, %v3259
      %v3261 = vpop.f32.mrb[0].mxu0
      %3262 = vmatprep.mubr.f32.mxu0 0.0
      %3263 = vmatmul.mubr.f32.gmra.mrb[0].mxu0 %v3084
      %v3264 = vpop.f32.mrb[0].mxu0
      %v3265 = vadd.f32 0.0, %v3264
      %v3266 = vpop.f32.mrb[0].mxu0
      %3267 = vmatprep.mubr.f32.mxu0 0.0
      %3268 = vmatmul.mubr.f32.gmra.mrb[0].mxu0 %v3087
      %v3269 = vpop.f32.mrb[0].mxu0
      %v3270 = vadd.f32 0.0, %v3269
      %v3271 = vpop.f32.mrb[0].mxu0
      %3272 = vmatprep.mubr.f32.mxu0 0.0
      %3273 = vmatmul.mubr.f32.gmra.mrb[0].mxu0 %v3090
      %v3274 = vpop.f32.mrb[0].mxu0
      %v3275 = vadd.f32 0.0, %v3274
      %v3276 = vpop.f32.mrb[0].mxu0
      %3277 = vmatprep.mubr.f32.mxu0 0.0
      %3278 = vmatmul.mubr.f32.gmra.mrb[0].mxu0 %v3093
      %v3279 = vpop.f32.mrb[0].mxu0
      %v3280 = vadd.f32 0.0, %v3279
      %v3281 = vpop.f32.mrb[0].mxu0
      %3282 = vmatprep.mubr.f32.mxu0 0.0
      %3283 = vmatmul.mubr.f32.gmra.mrb[0].mxu0 %v3096
      %v3284 = vpop.f32.mrb[0].mxu0
      %v3285 = vadd.f32 0.0, %v3284
      %v3286 = vpop.f32.mrb[0].mxu0
      %3287 = vmatprep.mubr.f32.mxu0 0.0
      %3288 = vmatmul.mubr.f32.gmra.mrb[0].mxu0 %v3099
      %v3289 = vpop.f32.mrb[0].mxu0
      %v3290 = vadd.f32 0.0, %v3289
      %v3291 = vpop.f32.mrb[0].mxu0
      %3292 = vmatprep.mubr.f32.mxu0 0.0
      %3293 = vmatmul.mubr.f32.gmra.mrb[0].mxu0 %v3102
      %v3294 = vpop.f32.mrb[0].mxu0
      %v3295 = vadd.f32 0.0, %v3294
      %v3296 = vpop.f32.mrb[0].mxu0
      %3297 = vmatprep.mubr.f32.mxu0 0.0
      %3298 = vmatmul.mubr.f32.gmra.mrb[0].mxu0 %v3105
      %v3299 = vpop.f32.mrb[0].mxu0
      %v3300 = vadd.f32 0.0, %v3299
      %v3301 = vpop.f32.mrb[0].mxu0
      %3302 = vmatprep.mubr.f32.mxu0 0.0
      %3303 = vmatmul.mubr.f32.gmra.mrb[0].mxu0 %v3108
      %v3304 = vpop.f32.mrb[0].mxu0
      %v3305 = vadd.f32 0.0, %v3304
      %v3306 = vpop.f32.mrb[0].mxu0
      %3307 = vmatprep.mubr.f32.mxu0 0.0
      %3308 = vmatmul.mubr.f32.gmra.mrb[0].mxu0 %v3111
      %v3309 = vpop.f32.mrb[0].mxu0
      %v3310 = vadd.f32 0.0, %v3309
      %v3311 = vpop.f32.mrb[0].mxu0
      %3312 = vmatprep.mubr.f32.mxu0 0.0
      %3313 = vmatmul.mubr.f32.gmra.mrb[0].mxu0 %v3114
      %v3314 = vpop.f32.mrb[0].mxu0
      %v3315 = vadd.f32 0.0, %v3314
      %v3316 = vpop.f32.mrb[0].mxu0
      %3317 = vmatprep.mubr.f32.mxu0 0.0
      %3318 = vmatmul.mubr.f32.gmra.mrb[0].mxu0 %v3117
      %v3319 = vpop.f32.mrb[0].mxu0
      %v3320 = vadd.f32 0.0, %v3319
      %v3321 = vpop.f32.mrb[0].mxu0
      %3322 = vmatprep.mubr.f32.mxu0 0.0
      %3323 = vmatmul.mubr.f32.gmra.mrb[0].mxu0 %v3120
      %v3324 = vpop.f32.mrb[0].mxu0
      %v3325 = vadd.f32 0.0, %v3324
      %v3326 = vpop.f32.mrb[0].mxu0
      %3327 = vmatprep.mubr.f32.mxu0 0.0
      %3328 = vmatmul.mubr.f32.gmra.mrb[0].mxu0 %v3123
      %v3329 = vpop.f32.mrb[0].mxu0
      %v3330 = vadd.f32 0.0, %v3329
      %v3331 = vpop.f32.mrb[0].mxu0
      %3332 = vmatprep.mubr.f32.mxu0 0.0
      %3333 = vmatmul.mubr.f32.gmra.mrb[0].mxu0 %v3126
      %v3334 = vpop.f32.mrb[0].mxu0
      %v3335 = vadd.f32 0.0, %v3334
      %v3336 = vpop.f32.mrb[0].mxu0
      %3337 = vmatprep.mubr.f32.mxu0 0.0
      %3338 = vmatmul.mubr.f32.gmra.mrb[0].mxu0 %v3129
      %v3339 = vpop.f32.mrb[0].mxu0
      %v3340 = vadd.f32 0.0, %v3339
      %v3341 = vpop.f32.mrb[0].mxu0
      %3342 = vmatprep.mubr.f32.mxu0 0.0
      %3343 = vmatmul.mubr.f32.gmra.mrb[0].mxu0 %v3132
      %v3344 = vpop.f32.mrb[0].mxu0
      %v3345 = vadd.f32 0.0, %v3344
      %v3346 = vpop.f32.mrb[0].mxu0
      %3347 = vmatprep.mubr.f32.mxu0 0.0
      %3348 = vmatmul.mubr.f32.gmra.mrb[0].mxu0 %v3135
      %v3349 = vpop.f32.mrb[0].mxu0
      %v3350 = vadd.f32 0.0, %v3349
      %v3351 = vpop.f32.mrb[0].mxu0
      %3352 = vmatprep.mubr.f32.mxu0 0.0
      %3353 = vmatmul.mubr.f32.gmra.mrb[0].mxu0 %v3138
      %v3354 = vpop.f32.mrb[0].mxu0
      %v3355 = vadd.f32 0.0, %v3354
      %v3356 = vpop.f32.mrb[0].mxu0
      %3357 = vmatprep.mubr.f32.mxu0 0.0
      %3358 = vmatmul.mubr.f32.gmra.mrb[0].mxu0 %v3141
      %v3359 = vpop.f32.mrb[0].mxu0
      %v3360 = vadd.f32 0.0, %v3359
      %v3361 = vpop.f32.mrb[0].mxu0
      %3362 = vmatprep.mubr.f32.mxu0 0.0
      %3363 = vmatmul.mubr.f32.gmra.mrb[0].mxu0 %v3144
      %v3364 = vpop.f32.mrb[0].mxu0
      %v3365 = vadd.f32 0.0, %v3364
      %v3366 = vpop.f32.mrb[0].mxu0
      %3367 = vmatprep.mubr.f32.mxu0 0.0
      %3368 = vmatmul.mubr.f32.gmra.mrb[0].mxu0 %v3147
      %v3369 = vpop.f32.mrb[0].mxu0
      %v3370 = vadd.f32 0.0, %v3369
      %v3371 = vpop.f32.mrb[0].mxu0
      %3372 = vmatprep.mubr.f32.mxu0 0.0
      %3373 = vmatmul.mubr.f32.gmra.mrb[0].mxu0 %v3150
      %v3374 = vpop.f32.mrb[0].mxu0
      %v3375 = vadd.f32 0.0, %v3374
      %v3376 = vpop.f32.mrb[0].mxu0
      %3377 = vmatprep.mubr.f32.mxu0 0.0
      %3378 = vmatmul.mubr.f32.gmra.mrb[0].mxu0 %v3153
      %v3379 = vpop.f32.mrb[0].mxu0
      %v3380 = vadd.f32 0.0, %v3379
      %v3381 = vpop.f32.mrb[0].mxu0
      %3382 = vdwg.mxu0
      %v3383 = vadd.f32 %v2994, %v3225
      %v3384 = vadd.f32 %v2995, %v3230
      %v3385 = vadd.f32 %v2996, %v3235
      %v3386 = vadd.f32 %v2997, %v3240
      %v3387 = vadd.f32 %v2998, %v3245
      %v3388 = vadd.f32 %v2999, %v3250
      %v3389 = vadd.f32 %v3000, %v3255
      %v3390 = vadd.f32 %v3001, %v3260
      %v3391 = vadd.f32 %v3002, %v3265
      %v3392 = vadd.f32 %v3003, %v3270
      %v3393 = vadd.f32 %v3004, %v3275
      %v3394 = vadd.f32 %v3005, %v3280
      %v3395 = vadd.f32 %v3006, %v3285
      %v3396 = vadd.f32 %v3007, %v3290
      %v3397 = vadd.f32 %v3008, %v3295
      %v3398 = vadd.f32 %v3009, %v3300
      %v3399 = vadd.f32 %v3010, %v3305
      %v3400 = vadd.f32 %v3011, %v3310
      %v3401 = vadd.f32 %v3012, %v3315
      %v3402 = vadd.f32 %v3013, %v3320
      %v3403 = vadd.f32 %v3014, %v3325
      %v3404 = vadd.f32 %v3015, %v3330
      %v3405 = vadd.f32 %v3016, %v3335
      %v3406 = vadd.f32 %v3017, %v3340
      %v3407 = vadd.f32 %v3018, %v3345
      %v3408 = vadd.f32 %v3019, %v3350
      %v3409 = vadd.f32 %v3020, %v3355
      %v3410 = vadd.f32 %v3021, %v3360
      %v3411 = vadd.f32 %v3022, %v3365
      %v3412 = vadd.f32 %v3023, %v3370
      %v3413 = vadd.f32 %v3024, %v3375
      %v3414 = vadd.f32 %v3025, %v3380
      %v3415 = vld [vmem:[%s2636 + $0x9] sm:$0xff]
      %v3416 = vld [vmem:[%s2636 + $0x11] sm:$0xff]
      %v3417 = vld [vmem:[%s2636 + $0x29] sm:$0xff]
      %v3418 = vld [vmem:[%s2636 + $0x31] sm:$0xff]
      %v3419 = vld [vmem:[%s2636 + $0x49] sm:$0xff]
      %v3420 = vld [vmem:[%s2636 + $0x51] sm:$0xff]
      %v3421 = vld [vmem:[%s2636 + $0x69] sm:$0xff]
      %v3422 = vld [vmem:[%s2636 + $0x71] sm:$0xff]
      %v3423 = vld [vmem:[%s2636 + $0x89] sm:$0xff]
      %v3424 = vld [vmem:[%s2636 + $0x91] sm:$0xff]
      %v3425 = vld [vmem:[%s2636 + $0xa9] sm:$0xff]
      %v3426 = vld [vmem:[%s2636 + $0xb1] sm:$0xff]
      %v3427 = vld [vmem:[%s2636 + $0xc9] sm:$0xff]
      %v3428 = vld [vmem:[%s2636 + $0xd1] sm:$0xff]
      %v3429 = vld [vmem:[%s2636 + $0xe9] sm:$0xff]
      %v3430 = vld [vmem:[%s2636 + $0xf1] sm:$0xff]
      %v3431 = vld [vmem:[%s2636 + $0x109] sm:$0xff]
      %v3432 = vld [vmem:[%s2636 + $0x111] sm:$0xff]
      %v3433 = vld [vmem:[%s2636 + $0x129] sm:$0xff]
      %v3434 = vld [vmem:[%s2636 + $0x131] sm:$0xff]
      %v3435 = vld [vmem:[%s2636 + $0x149] sm:$0xff]
      %v3436 = vld [vmem:[%s2636 + $0x151] sm:$0xff]
      %v3437 = vld [vmem:[%s2636 + $0x169] sm:$0xff]
      %v3438 = vld [vmem:[%s2636 + $0x171] sm:$0xff]
      %v3439 = vld [vmem:[%s2636 + $0x189] sm:$0xff]
      %v3440 = vld [vmem:[%s2636 + $0x191] sm:$0xff]
      %v3441 = vld [vmem:[%s2636 + $0x1a9] sm:$0xff]
      %v3442 = vld [vmem:[%s2636 + $0x1b1] sm:$0xff]
      %v3443 = vld [vmem:[%s2636 + $0x1c9] sm:$0xff]
      %v3444 = vld [vmem:[%s2636 + $0x1d1] sm:$0xff]
      %v3445 = vld [vmem:[%s2636 + $0x1e9] sm:$0xff]
      %v3446 = vld [vmem:[%s2636 + $0x1f1] sm:$0xff]
      %v3447 = vld [vmem:[%s1 + $0x20] sm:$0xf]
      %v3449 = vsel %vm257, %v3415, 0
      %v3452 = vsel %vm257, %v3416, 0
      %v3455 = vsel %vm257, %v3417, 0
      %v3458 = vsel %vm257, %v3418, 0
      %v3461 = vsel %vm257, %v3419, 0
      %v3464 = vsel %vm257, %v3420, 0
      %v3467 = vsel %vm257, %v3421, 0
      %v3470 = vsel %vm257, %v3422, 0
      %v3473 = vsel %vm257, %v3423, 0
      %v3476 = vsel %vm257, %v3424, 0
      %v3479 = vsel %vm257, %v3425, 0
      %v3482 = vsel %vm257, %v3426, 0
      %v3485 = vsel %vm257, %v3427, 0
      %v3488 = vsel %vm257, %v3428, 0
      %v3491 = vsel %vm257, %v3429, 0
      %v3494 = vsel %vm257, %v3430, 0
      %v3497 = vsel %vm257, %v3431, 0
      %v3500 = vsel %vm257, %v3432, 0
      %v3503 = vsel %vm257, %v3433, 0
      %v3506 = vsel %vm257, %v3434, 0
      %v3509 = vsel %vm257, %v3435, 0
      %v3512 = vsel %vm257, %v3436, 0
      %v3515 = vsel %vm257, %v3437, 0
      %v3518 = vsel %vm257, %v3438, 0
      %v3521 = vsel %vm257, %v3439, 0
      %v3524 = vsel %vm257, %v3440, 0
      %v3527 = vsel %vm257, %v3441, 0
      %v3530 = vsel %vm257, %v3442, 0
      %v3533 = vsel %vm257, %v3443, 0
      %v3536 = vsel %vm257, %v3444, 0
      %v3539 = vsel %vm257, %v3445, 0
      %v3542 = vsel %vm257, %v3446, 0
      %v3545 = vsel %vm527, %v3447, 0
      %3547 = vmatprep.subr.mxu0 0.0
      %3548 = vmatpush1.msra.mxu0 %v3545
      %3549 = vmatprep.subr.mxu0 0.0
      %3550 = vmatpush1.msra.mxu0 0.0
      %3551 = vmatprep.subr.mxu0 0.0
      %3552 = vmatpush1.msra.mxu0 0.0
      %3553 = vmatprep.subr.mxu0 0.0
      %3554 = vmatpush1.msra.mxu0 0.0
      %3555 = vmatprep.subr.mxu0 0.0
      %3556 = vmatpush1.msra.mxu0 0.0
      %3557 = vmatprep.subr.mxu0 0.0
      %3558 = vmatpush1.msra.mxu0 0.0
      %3559 = vmatprep.subr.mxu0 0.0
      %3560 = vmatpush1.msra.mxu0 0.0
      %3561 = vmatprep.subr.mxu0 0.0
      %3562 = vmatpush1.msra.mxu0 0.0
      %3563 = vmatprep.subr.mxu0 0.0
      %3564 = vmatpush1.msra.mxu0 0.0
      %3565 = vmatprep.subr.mxu0 0.0
      %3566 = vmatpush1.msra.mxu0 0.0
      %3567 = vmatprep.subr.mxu0 0.0
      %3568 = vmatpush1.msra.mxu0 0.0
      %3569 = vmatprep.subr.mxu0 0.0
      %3570 = vmatpush1.msra.mxu0 0.0
      %3571 = vmatprep.subr.mxu0 0.0
      %3572 = vmatpush1.msra.mxu0 0.0
      %3573 = vmatprep.subr.mxu0 0.0
      %3574 = vmatpush1.msra.mxu0 0.0
      %3575 = vmatprep.subr.mxu0 0.0
      %3576 = vmatpush1.msra.mxu0 0.0
      %3577 = vmatprep.subr.mxu0 0.0
      %3578 = vmatpush1.msra.mxu0 0.0
      %3579 = vmatprep.subr.mxu0 0.0
      %3580 = vmatpush1.msra.mxu0 0.0
      %3581 = vmatprep.subr.mxu0 0.0
      %3582 = vmatpush1.msra.mxu0 0.0
      %3583 = vmatprep.subr.mxu0 0.0
      %3584 = vmatpush1.msra.mxu0 0.0
      %3585 = vmatprep.subr.mxu0 0.0
      %3586 = vmatpush1.msra.mxu0 0.0
      %3587 = vmatprep.subr.mxu0 0.0
      %3588 = vmatpush1.msra.mxu0 0.0
      %3589 = vmatprep.subr.mxu0 0.0
      %3590 = vmatpush1.msra.mxu0 0.0
      %3591 = vmatprep.subr.mxu0 0.0
      %3592 = vmatpush1.msra.mxu0 0.0
      %3593 = vmatprep.subr.mxu0 0.0
      %3594 = vmatpush1.msra.mxu0 0.0
      %3595 = vmatprep.subr.mxu0 0.0
      %3596 = vmatpush1.msra.mxu0 0.0
      %3597 = vmatprep.subr.mxu0 0.0
      %3598 = vmatpush1.msra.mxu0 0.0
      %3599 = vmatprep.subr.mxu0 0.0
      %3600 = vmatpush1.msra.mxu0 0.0
      %3601 = vmatprep.subr.mxu0 0.0
      %3602 = vmatpush1.msra.mxu0 0.0
      %3603 = vmatprep.subr.mxu0 0.0
      %3604 = vmatpush1.msra.mxu0 0.0
      %3605 = vmatprep.subr.mxu0 0.0
      %3606 = vmatpush1.msra.mxu0 0.0
      %3607 = vmatprep.subr.mxu0 0.0
      %3608 = vmatpush1.msra.mxu0 0.0
      %3609 = vmatprep.subr.mxu0 0.0
      %3610 = vmatpush1.msra.mxu0 0.0
      %3611 = vmatprep.mubr.f32.mxu0 0.0
      %3612 = vmatmul.mubr.f32.gmra.mrb[0].mxu0 %v3449
      %v3613 = vpop.f32.mrb[0].mxu0
      %v3614 = vadd.f32 0.0, %v3613
      %v3615 = vpop.f32.mrb[0].mxu0
      %3616 = vmatprep.mubr.f32.mxu0 0.0
      %3617 = vmatmul.mubr.f32.gmra.mrb[0].mxu0 %v3452
      %v3618 = vpop.f32.mrb[0].mxu0
      %v3619 = vadd.f32 0.0, %v3618
      %v3620 = vpop.f32.mrb[0].mxu0
      %3621 = vmatprep.mubr.f32.mxu0 0.0
      %3622 = vmatmul.mubr.f32.gmra.mrb[0].mxu0 %v3455
      %v3623 = vpop.f32.mrb[0].mxu0
      %v3624 = vadd.f32 0.0, %v3623
      %v3625 = vpop.f32.mrb[0].mxu0
      %3626 = vmatprep.mubr.f32.mxu0 0.0
      %3627 = vmatmul.mubr.f32.gmra.mrb[0].mxu0 %v3458
      %v3628 = vpop.f32.mrb[0].mxu0
      %v3629 = vadd.f32 0.0, %v3628
      %v3630 = vpop.f32.mrb[0].mxu0
      %3631 = vmatprep.mubr.f32.mxu0 0.0
      %3632 = vmatmul.mubr.f32.gmra.mrb[0].mxu0 %v3461
      %v3633 = vpop.f32.mrb[0].mxu0
      %v3634 = vadd.f32 0.0, %v3633
      %v3635 = vpop.f32.mrb[0].mxu0
      %3636 = vmatprep.mubr.f32.mxu0 0.0
      %3637 = vmatmul.mubr.f32.gmra.mrb[0].mxu0 %v3464
      %v3638 = vpop.f32.mrb[0].mxu0
      %v3639 = vadd.f32 0.0, %v3638
      %v3640 = vpop.f32.mrb[0].mxu0
      %3641 = vmatprep.mubr.f32.mxu0 0.0
      %3642 = vmatmul.mubr.f32.gmra.mrb[0].mxu0 %v3467
      %v3643 = vpop.f32.mrb[0].mxu0
      %v3644 = vadd.f32 0.0, %v3643
      %v3645 = vpop.f32.mrb[0].mxu0
      %3646 = vmatprep.mubr.f32.mxu0 0.0
      %3647 = vmatmul.mubr.f32.gmra.mrb[0].mxu0 %v3470
      %v3648 = vpop.f32.mrb[0].mxu0
      %v3649 = vadd.f32 0.0, %v3648
      %v3650 = vpop.f32.mrb[0].mxu0
      %3651 = vmatprep.mubr.f32.mxu0 0.0
      %3652 = vmatmul.mubr.f32.gmra.mrb[0].mxu0 %v3473
      %v3653 = vpop.f32.mrb[0].mxu0
      %v3654 = vadd.f32 0.0, %v3653
      %v3655 = vpop.f32.mrb[0].mxu0
      %3656 = vmatprep.mubr.f32.mxu0 0.0
      %3657 = vmatmul.mubr.f32.gmra.mrb[0].mxu0 %v3476
      %v3658 = vpop.f32.mrb[0].mxu0
      %v3659 = vadd.f32 0.0, %v3658
      %v3660 = vpop.f32.mrb[0].mxu0
      %3661 = vmatprep.mubr.f32.mxu0 0.0
      %3662 = vmatmul.mubr.f32.gmra.mrb[0].mxu0 %v3479
      %v3663 = vpop.f32.mrb[0].mxu0
      %v3664 = vadd.f32 0.0, %v3663
      %v3665 = vpop.f32.mrb[0].mxu0
      %3666 = vmatprep.mubr.f32.mxu0 0.0
      %3667 = vmatmul.mubr.f32.gmra.mrb[0].mxu0 %v3482
      %v3668 = vpop.f32.mrb[0].mxu0
      %v3669 = vadd.f32 0.0, %v3668
      %v3670 = vpop.f32.mrb[0].mxu0
      %3671 = vmatprep.mubr.f32.mxu0 0.0
      %3672 = vmatmul.mubr.f32.gmra.mrb[0].mxu0 %v3485
      %v3673 = vpop.f32.mrb[0].mxu0
      %v3674 = vadd.f32 0.0, %v3673
      %v3675 = vpop.f32.mrb[0].mxu0
      %3676 = vmatprep.mubr.f32.mxu0 0.0
      %3677 = vmatmul.mubr.f32.gmra.mrb[0].mxu0 %v3488
      %v3678 = vpop.f32.mrb[0].mxu0
      %v3679 = vadd.f32 0.0, %v3678
      %v3680 = vpop.f32.mrb[0].mxu0
      %3681 = vmatprep.mubr.f32.mxu0 0.0
      %3682 = vmatmul.mubr.f32.gmra.mrb[0].mxu0 %v3491
      %v3683 = vpop.f32.mrb[0].mxu0
      %v3684 = vadd.f32 0.0, %v3683
      %v3685 = vpop.f32.mrb[0].mxu0
      %3686 = vmatprep.mubr.f32.mxu0 0.0
      %3687 = vmatmul.mubr.f32.gmra.mrb[0].mxu0 %v3494
      %v3688 = vpop.f32.mrb[0].mxu0
      %v3689 = vadd.f32 0.0, %v3688
      %v3690 = vpop.f32.mrb[0].mxu0
      %3691 = vmatprep.mubr.f32.mxu0 0.0
      %3692 = vmatmul.mubr.f32.gmra.mrb[0].mxu0 %v3497
      %v3693 = vpop.f32.mrb[0].mxu0
      %v3694 = vadd.f32 0.0, %v3693
      %v3695 = vpop.f32.mrb[0].mxu0
      %3696 = vmatprep.mubr.f32.mxu0 0.0
      %3697 = vmatmul.mubr.f32.gmra.mrb[0].mxu0 %v3500
      %v3698 = vpop.f32.mrb[0].mxu0
      %v3699 = vadd.f32 0.0, %v3698
      %v3700 = vpop.f32.mrb[0].mxu0
      %3701 = vmatprep.mubr.f32.mxu0 0.0
      %3702 = vmatmul.mubr.f32.gmra.mrb[0].mxu0 %v3503
      %v3703 = vpop.f32.mrb[0].mxu0
      %v3704 = vadd.f32 0.0, %v3703
      %v3705 = vpop.f32.mrb[0].mxu0
      %3706 = vmatprep.mubr.f32.mxu0 0.0
      %3707 = vmatmul.mubr.f32.gmra.mrb[0].mxu0 %v3506
      %v3708 = vpop.f32.mrb[0].mxu0
      %v3709 = vadd.f32 0.0, %v3708
      %v3710 = vpop.f32.mrb[0].mxu0
      %3711 = vmatprep.mubr.f32.mxu0 0.0
      %3712 = vmatmul.mubr.f32.gmra.mrb[0].mxu0 %v3509
      %v3713 = vpop.f32.mrb[0].mxu0
      %v3714 = vadd.f32 0.0, %v3713
      %v3715 = vpop.f32.mrb[0].mxu0
      %3716 = vmatprep.mubr.f32.mxu0 0.0
      %3717 = vmatmul.mubr.f32.gmra.mrb[0].mxu0 %v3512
      %v3718 = vpop.f32.mrb[0].mxu0
      %v3719 = vadd.f32 0.0, %v3718
      %v3720 = vpop.f32.mrb[0].mxu0
      %3721 = vmatprep.mubr.f32.mxu0 0.0
      %3722 = vmatmul.mubr.f32.gmra.mrb[0].mxu0 %v3515
      %v3723 = vpop.f32.mrb[0].mxu0
      %v3724 = vadd.f32 0.0, %v3723
      %v3725 = vpop.f32.mrb[0].mxu0
      %3726 = vmatprep.mubr.f32.mxu0 0.0
      %3727 = vmatmul.mubr.f32.gmra.mrb[0].mxu0 %v3518
      %v3728 = vpop.f32.mrb[0].mxu0
      %v3729 = vadd.f32 0.0, %v3728
      %v3730 = vpop.f32.mrb[0].mxu0
      %3731 = vmatprep.mubr.f32.mxu0 0.0
      %3732 = vmatmul.mubr.f32.gmra.mrb[0].mxu0 %v3521
      %v3733 = vpop.f32.mrb[0].mxu0
      %v3734 = vadd.f32 0.0, %v3733
      %v3735 = vpop.f32.mrb[0].mxu0
      %3736 = vmatprep.mubr.f32.mxu0 0.0
      %3737 = vmatmul.mubr.f32.gmra.mrb[0].mxu0 %v3524
      %v3738 = vpop.f32.mrb[0].mxu0
      %v3739 = vadd.f32 0.0, %v3738
      %v3740 = vpop.f32.mrb[0].mxu0
      %3741 = vmatprep.mubr.f32.mxu0 0.0
      %3742 = vmatmul.mubr.f32.gmra.mrb[0].mxu0 %v3527
      %v3743 = vpop.f32.mrb[0].mxu0
      %v3744 = vadd.f32 0.0, %v3743
      %v3745 = vpop.f32.mrb[0].mxu0
      %3746 = vmatprep.mubr.f32.mxu0 0.0
      %3747 = vmatmul.mubr.f32.gmra.mrb[0].mxu0 %v3530
      %v3748 = vpop.f32.mrb[0].mxu0
      %v3749 = vadd.f32 0.0, %v3748
      %v3750 = vpop.f32.mrb[0].mxu0
      %3751 = vmatprep.mubr.f32.mxu0 0.0
      %3752 = vmatmul.mubr.f32.gmra.mrb[0].mxu0 %v3533
      %v3753 = vpop.f32.mrb[0].mxu0
      %v3754 = vadd.f32 0.0, %v3753
      %v3755 = vpop.f32.mrb[0].mxu0
      %3756 = vmatprep.mubr.f32.mxu0 0.0
      %3757 = vmatmul.mubr.f32.gmra.mrb[0].mxu0 %v3536
      %v3758 = vpop.f32.mrb[0].mxu0
      %v3759 = vadd.f32 0.0, %v3758
      %v3760 = vpop.f32.mrb[0].mxu0
      %3761 = vmatprep.mubr.f32.mxu0 0.0
      %3762 = vmatmul.mubr.f32.gmra.mrb[0].mxu0 %v3539
      %v3763 = vpop.f32.mrb[0].mxu0
      %v3764 = vadd.f32 0.0, %v3763
      %v3765 = vpop.f32.mrb[0].mxu0
      %3766 = vmatprep.mubr.f32.mxu0 0.0
      %3767 = vmatmul.mubr.f32.gmra.mrb[0].mxu0 %v3542
      %v3768 = vpop.f32.mrb[0].mxu0
      %v3769 = vadd.f32 0.0, %v3768
      %v3770 = vpop.f32.mrb[0].mxu0
      %3771 = vdwg.mxu0
      %v3772 = vadd.f32 %v3383, %v3614
      %v3773 = vadd.f32 %v3384, %v3619
      %v3774 = vadd.f32 %v3385, %v3624
      %v3775 = vadd.f32 %v3386, %v3629
      %v3776 = vadd.f32 %v3387, %v3634
      %v3777 = vadd.f32 %v3388, %v3639
      %v3778 = vadd.f32 %v3389, %v3644
      %v3779 = vadd.f32 %v3390, %v3649
      %v3780 = vadd.f32 %v3391, %v3654
      %v3781 = vadd.f32 %v3392, %v3659
      %v3782 = vadd.f32 %v3393, %v3664
      %v3783 = vadd.f32 %v3394, %v3669
      %v3784 = vadd.f32 %v3395, %v3674
      %v3785 = vadd.f32 %v3396, %v3679
      %v3786 = vadd.f32 %v3397, %v3684
      %v3787 = vadd.f32 %v3398, %v3689
      %v3788 = vadd.f32 %v3399, %v3694
      %v3789 = vadd.f32 %v3400, %v3699
      %v3790 = vadd.f32 %v3401, %v3704
      %v3791 = vadd.f32 %v3402, %v3709
      %v3792 = vadd.f32 %v3403, %v3714
      %v3793 = vadd.f32 %v3404, %v3719
      %v3794 = vadd.f32 %v3405, %v3724
      %v3795 = vadd.f32 %v3406, %v3729
      %v3796 = vadd.f32 %v3407, %v3734
      %v3797 = vadd.f32 %v3408, %v3739
      %v3798 = vadd.f32 %v3409, %v3744
      %v3799 = vadd.f32 %v3410, %v3749
      %v3800 = vadd.f32 %v3411, %v3754
      %v3801 = vadd.f32 %v3412, %v3759
      %v3802 = vadd.f32 %v3413, %v3764
      %v3803 = vadd.f32 %v3414, %v3769
      %v3804 = vld [vmem:[%s2] sm:$0x1]
      %v3806 = vlaneseq
      %v3807 = vshrl.u32 %v3806, 7
      %v3808 = vsub.s32 0, %v3807
      %v3809 = vrot.slane %v3804, %v3808
      %v3811 = vadd.f32 %v3772, %v3809
      %v3812 = vadd.f32 %v3773, %v3809
      %v3813 = vadd.f32 %v3774, %v3809
      %v3814 = vadd.f32 %v3775, %v3809
      %v3815 = vadd.f32 %v3776, %v3809
      %v3816 = vadd.f32 %v3777, %v3809
      %v3817 = vadd.f32 %v3778, %v3809
      %v3818 = vadd.f32 %v3779, %v3809
      %v3819 = vadd.f32 %v3780, %v3809
      %v3820 = vadd.f32 %v3781, %v3809
      %v3821 = vadd.f32 %v3782, %v3809
      %v3822 = vadd.f32 %v3783, %v3809
      %v3823 = vadd.f32 %v3784, %v3809
      %v3824 = vadd.f32 %v3785, %v3809
      %v3825 = vadd.f32 %v3786, %v3809
      %v3826 = vadd.f32 %v3787, %v3809
      %v3827 = vadd.f32 %v3788, %v3809
      %v3828 = vadd.f32 %v3789, %v3809
      %v3829 = vadd.f32 %v3790, %v3809
      %v3830 = vadd.f32 %v3791, %v3809
      %v3831 = vadd.f32 %v3792, %v3809
      %v3832 = vadd.f32 %v3793, %v3809
      %v3833 = vadd.f32 %v3794, %v3809
      %v3834 = vadd.f32 %v3795, %v3809
      %v3835 = vadd.f32 %v3796, %v3809
      %v3836 = vadd.f32 %v3797, %v3809
      %v3837 = vadd.f32 %v3798, %v3809
      %v3838 = vadd.f32 %v3799, %v3809
      %v3839 = vadd.f32 %v3800, %v3809
      %v3840 = vadd.f32 %v3801, %v3809
      %v3841 = vadd.f32 %v3802, %v3809
      %v3842 = vadd.f32 %v3803, %v3809
      %v3843 = vmax.f32 %v3811, 0.0
      %v3844 = vmax.f32 %v3812, 0.0
      %v3845 = vmax.f32 %v3813, 0.0
      %v3846 = vmax.f32 %v3814, 0.0
      %v3847 = vmax.f32 %v3815, 0.0
      %v3848 = vmax.f32 %v3816, 0.0
      %v3849 = vmax.f32 %v3817, 0.0
      %v3850 = vmax.f32 %v3818, 0.0
      %v3851 = vmax.f32 %v3819, 0.0
      %v3852 = vmax.f32 %v3820, 0.0
      %v3853 = vmax.f32 %v3821, 0.0
      %v3854 = vmax.f32 %v3822, 0.0
      %v3855 = vmax.f32 %v3823, 0.0
      %v3856 = vmax.f32 %v3824, 0.0
      %v3857 = vmax.f32 %v3825, 0.0
      %v3858 = vmax.f32 %v3826, 0.0
      %v3859 = vmax.f32 %v3827, 0.0
      %v3860 = vmax.f32 %v3828, 0.0
      %v3861 = vmax.f32 %v3829, 0.0
      %v3862 = vmax.f32 %v3830, 0.0
      %v3863 = vmax.f32 %v3831, 0.0
      %v3864 = vmax.f32 %v3832, 0.0
      %v3865 = vmax.f32 %v3833, 0.0
      %v3866 = vmax.f32 %v3834, 0.0
      %v3867 = vmax.f32 %v3835, 0.0
      %v3868 = vmax.f32 %v3836, 0.0
      %v3869 = vmax.f32 %v3837, 0.0
      %v3870 = vmax.f32 %v3838, 0.0
      %v3871 = vmax.f32 %v3839, 0.0
      %v3872 = vmax.f32 %v3840, 0.0
      %v3873 = vmax.f32 %v3841, 0.0
      %v3874 = vmax.f32 %v3842, 0.0
      %3875 = vst.msk [vmem:[%s268 + $0x8] sm:$0xff] %vm257, %v3843
      %3876 = vst.msk [vmem:[%s268 + $0x10] sm:$0xff] %vm257, %v3844
      %3877 = vst.msk [vmem:[%s268 + $0x28] sm:$0xff] %vm257, %v3845
      %3878 = vst.msk [vmem:[%s268 + $0x30] sm:$0xff] %vm257, %v3846
      %3879 = vst.msk [vmem:[%s268 + $0x48] sm:$0xff] %vm257, %v3847
      %3880 = vst.msk [vmem:[%s268 + $0x50] sm:$0xff] %vm257, %v3848
      %3881 = vst.msk [vmem:[%s268 + $0x68] sm:$0xff] %vm257, %v3849
      %3882 = vst.msk [vmem:[%s268 + $0x70] sm:$0xff] %vm257, %v3850
      %3883 = vst.msk [vmem:[%s268 + $0x88] sm:$0xff] %vm257, %v3851
      %3884 = vst.msk [vmem:[%s268 + $0x90] sm:$0xff] %vm257, %v3852
      %3885 = vst.msk [vmem:[%s268 + $0xa8] sm:$0xff] %vm257, %v3853
      %3886 = vst.msk [vmem:[%s268 + $0xb0] sm:$0xff] %vm257, %v3854
      %3887 = vst.msk [vmem:[%s268 + $0xc8] sm:$0xff] %vm257, %v3855
      %3888 = vst.msk [vmem:[%s268 + $0xd0] sm:$0xff] %vm257, %v3856
      %3889 = vst.msk [vmem:[%s268 + $0xe8] sm:$0xff] %vm257, %v3857
      %3890 = vst.msk [vmem:[%s268 + $0xf0] sm:$0xff] %vm257, %v3858
      %3891 = vst.msk [vmem:[%s268 + $0x108] sm:$0xff] %vm257, %v3859
      %3892 = vst.msk [vmem:[%s268 + $0x110] sm:$0xff] %vm257, %v3860
      %3893 = vst.msk [vmem:[%s268 + $0x128] sm:$0xff] %vm257, %v3861
      %3894 = vst.msk [vmem:[%s268 + $0x130] sm:$0xff] %vm257, %v3862
      %3895 = vst.msk [vmem:[%s268 + $0x148] sm:$0xff] %vm257, %v3863
      %3896 = vst.msk [vmem:[%s268 + $0x150] sm:$0xff] %vm257, %v3864
      %3897 = vst.msk [vmem:[%s268 + $0x168] sm:$0xff] %vm257, %v3865
      %3898 = vst.msk [vmem:[%s268 + $0x170] sm:$0xff] %vm257, %v3866
      %3899 = vst.msk [vmem:[%s268 + $0x188] sm:$0xff] %vm257, %v3867
      %3900 = vst.msk [vmem:[%s268 + $0x190] sm:$0xff] %vm257, %v3868
      %3901 = vst.msk [vmem:[%s268 + $0x1a8] sm:$0xff] %vm257, %v3869
      %3902 = vst.msk [vmem:[%s268 + $0x1b0] sm:$0xff] %vm257, %v3870
      %3903 = vst.msk [vmem:[%s268 + $0x1c8] sm:$0xff] %vm257, %v3871
      %3904 = vst.msk [vmem:[%s268 + $0x1d0] sm:$0xff] %vm257, %v3872
      %3905 = vst.msk [vmem:[%s268 + $0x1e8] sm:$0xff] %vm257, %v3873
      %3906 = vst.msk [vmem:[%s268 + $0x1f0] sm:$0xff] %vm257, %v3874
      %v3907 = vld [vmem:[#allocation2 + $0x7] sm:$0xff]
      %v3908 = vld [vmem:[#allocation2 + $0xf] sm:$0xff]
      %v3909 = vld [vmem:[#allocation2 + $0x27] sm:$0xff]
      %v3910 = vld [vmem:[#allocation2 + $0x2f] sm:$0xff]
      %v3911 = vld [vmem:[#allocation2 + $0x47] sm:$0xff]
      %v3912 = vld [vmem:[#allocation2 + $0x4f] sm:$0xff]
      %v3913 = vld [vmem:[#allocation2 + $0x67] sm:$0xff]
      %v3914 = vld [vmem:[#allocation2 + $0x6f] sm:$0xff]
      %v3915 = vld [vmem:[#allocation2 + $0x87] sm:$0xff]
      %v3916 = vld [vmem:[#allocation2 + $0x8f] sm:$0xff]
      %v3917 = vld [vmem:[#allocation2 + $0xa7] sm:$0xff]
      %v3918 = vld [vmem:[#allocation2 + $0xaf] sm:$0xff]
      %v3919 = vld [vmem:[#allocation2 + $0xc7] sm:$0xff]
      %v3920 = vld [vmem:[#allocation2 + $0xcf] sm:$0xff]
      %v3921 = vld [vmem:[#allocation2 + $0xe7] sm:$0xff]
      %v3922 = vld [vmem:[#allocation2 + $0xef] sm:$0xff]
      %v3923 = vld [vmem:[#allocation2 + $0x107] sm:$0xff]
      %v3924 = vld [vmem:[#allocation2 + $0x10f] sm:$0xff]
      %v3925 = vld [vmem:[#allocation2 + $0x127] sm:$0xff]
      %v3926 = vld [vmem:[#allocation2 + $0x12f] sm:$0xff]
      %v3927 = vld [vmem:[#allocation2 + $0x147] sm:$0xff]
      %v3928 = vld [vmem:[#allocation2 + $0x14f] sm:$0xff]
      %v3929 = vld [vmem:[#allocation2 + $0x167] sm:$0xff]
      %v3930 = vld [vmem:[#allocation2 + $0x16f] sm:$0xff]
      %v3931 = vld [vmem:[#allocation2 + $0x187] sm:$0xff]
      %v3932 = vld [vmem:[#allocation2 + $0x18f] sm:$0xff]
      %v3933 = vld [vmem:[#allocation2 + $0x1a7] sm:$0xff]
      %v3934 = vld [vmem:[#allocation2 + $0x1af] sm:$0xff]
      %v3935 = vld [vmem:[#allocation2 + $0x1c7] sm:$0xff]
      %v3936 = vld [vmem:[#allocation2 + $0x1cf] sm:$0xff]
      %v3937 = vld [vmem:[#allocation2 + $0x1e7] sm:$0xff]
      %v3938 = vld [vmem:[#allocation2 + $0x1ef] sm:$0xff]
      %v3939 = vld [vmem:[%s3] sm:$0xf]
      %v3940 = vld [vmem:[#allocation2 + $0x8] sm:$0xff]
      %v3941 = vld [vmem:[#allocation2 + $0x10] sm:$0xff]
      %v3942 = vld [vmem:[#allocation2 + $0x28] sm:$0xff]
      %v3943 = vld [vmem:[#allocation2 + $0x30] sm:$0xff]
      %v3944 = vld [vmem:[#allocation2 + $0x48] sm:$0xff]
      %v3945 = vld [vmem:[#allocation2 + $0x50] sm:$0xff]
      %v3946 = vld [vmem:[#allocation2 + $0x68] sm:$0xff]
      %v3947 = vld [vmem:[#allocation2 + $0x70] sm:$0xff]
      %v3948 = vld [vmem:[#allocation2 + $0x88] sm:$0xff]
      %v3949 = vld [vmem:[#allocation2 + $0x90] sm:$0xff]
      %v3950 = vld [vmem:[#allocation2 + $0xa8] sm:$0xff]
      %v3951 = vld [vmem:[#allocation2 + $0xb0] sm:$0xff]
      %v3952 = vld [vmem:[#allocation2 + $0xc8] sm:$0xff]
      %v3953 = vld [vmem:[#allocation2 + $0xd0] sm:$0xff]
      %v3954 = vld [vmem:[#allocation2 + $0xe8] sm:$0xff]
      %v3955 = vld [vmem:[#allocation2 + $0xf0] sm:$0xff]
      %v3956 = vld [vmem:[#allocation2 + $0x108] sm:$0xff]
      %v3957 = vld [vmem:[#allocation2 + $0x110] sm:$0xff]
      %v3958 = vld [vmem:[#allocation2 + $0x128] sm:$0xff]
      %v3959 = vld [vmem:[#allocation2 + $0x130] sm:$0xff]
      %v3960 = vld [vmem:[#allocation2 + $0x148] sm:$0xff]
      %v3961 = vld [vmem:[#allocation2 + $0x150] sm:$0xff]
      %v3962 = vld [vmem:[#allocation2 + $0x168] sm:$0xff]
      %v3963 = vld [vmem:[#allocation2 + $0x170] sm:$0xff]
      %v3964 = vld [vmem:[#allocation2 + $0x188] sm:$0xff]
      %v3965 = vld [vmem:[#allocation2 + $0x190] sm:$0xff]
      %v3966 = vld [vmem:[#allocation2 + $0x1a8] sm:$0xff]
      %v3967 = vld [vmem:[#allocation2 + $0x1b0] sm:$0xff]
      %v3968 = vld [vmem:[#allocation2 + $0x1c8] sm:$0xff]
      %v3969 = vld [vmem:[#allocation2 + $0x1d0] sm:$0xff]
      %v3970 = vld [vmem:[#allocation2 + $0x1e8] sm:$0xff]
      %v3971 = vld [vmem:[#allocation2 + $0x1f0] sm:$0xff]
      %v3972 = vld [vmem:[%s3 + $0x4] sm:$0xf]
      %v3974 = vsel %vm257, %v3940, 0
      %v3977 = vsel %vm257, %v3941, 0
      %v3980 = vsel %vm257, %v3942, 0
      %v3983 = vsel %vm257, %v3943, 0
      %v3986 = vsel %vm257, %v3944, 0
      %v3989 = vsel %vm257, %v3945, 0
      %v3992 = vsel %vm257, %v3946, 0
      %v3995 = vsel %vm257, %v3947, 0
      %v3998 = vsel %vm257, %v3948, 0
      %v4001 = vsel %vm257, %v3949, 0
      %v4004 = vsel %vm257, %v3950, 0
      %v4007 = vsel %vm257, %v3951, 0
      %v4010 = vsel %vm257, %v3952, 0
      %v4013 = vsel %vm257, %v3953, 0
      %v4016 = vsel %vm257, %v3954, 0
      %v4019 = vsel %vm257, %v3955, 0
      %v4022 = vsel %vm257, %v3956, 0
      %v4025 = vsel %vm257, %v3957, 0
      %v4028 = vsel %vm257, %v3958, 0
      %v4031 = vsel %vm257, %v3959, 0
      %v4034 = vsel %vm257, %v3960, 0
      %v4037 = vsel %vm257, %v3961, 0
      %v4040 = vsel %vm257, %v3962, 0
      %v4043 = vsel %vm257, %v3963, 0
      %v4046 = vsel %vm257, %v3964, 0
      %v4049 = vsel %vm257, %v3965, 0
      %v4052 = vsel %vm257, %v3966, 0
      %v4055 = vsel %vm257, %v3967, 0
      %v4058 = vsel %vm257, %v3968, 0
      %v4061 = vsel %vm257, %v3969, 0
      %v4064 = vsel %vm257, %v3970, 0
      %v4067 = vsel %vm257, %v3971, 0
      %v4070 = vsel %vm527, %v3972, 0
      %4072 = vmatprep.subr.mxu0 0.0
      %4073 = vmatpush1.msra.mxu0 %v4070
      %4074 = vmatprep.subr.mxu0 0.0
      %4075 = vmatpush1.msra.mxu0 0.0
      %4076 = vmatprep.subr.mxu0 0.0
      %4077 = vmatpush1.msra.mxu0 0.0
      %4078 = vmatprep.subr.mxu0 0.0
      %4079 = vmatpush1.msra.mxu0 0.0
      %4080 = vmatprep.subr.mxu0 0.0
      %4081 = vmatpush1.msra.mxu0 0.0
      %4082 = vmatprep.subr.mxu0 0.0
      %4083 = vmatpush1.msra.mxu0 0.0
      %4084 = vmatprep.subr.mxu0 0.0
      %4085 = vmatpush1.msra.mxu0 0.0
      %4086 = vmatprep.subr.mxu0 0.0
      %4087 = vmatpush1.msra.mxu0 0.0
      %4088 = vmatprep.subr.mxu0 0.0
      %4089 = vmatpush1.msra.mxu0 0.0
      %4090 = vmatprep.subr.mxu0 0.0
      %4091 = vmatpush1.msra.mxu0 0.0
      %4092 = vmatprep.subr.mxu0 0.0
      %4093 = vmatpush1.msra.mxu0 0.0
      %4094 = vmatprep.subr.mxu0 0.0
      %4095 = vmatpush1.msra.mxu0 0.0
      %4096 = vmatprep.subr.mxu0 0.0
      %4097 = vmatpush1.msra.mxu0 0.0
      %4098 = vmatprep.subr.mxu0 0.0
      %4099 = vmatpush1.msra.mxu0 0.0
      %4100 = vmatprep.subr.mxu0 0.0
      %4101 = vmatpush1.msra.mxu0 0.0
      %4102 = vmatprep.subr.mxu0 0.0
      %4103 = vmatpush1.msra.mxu0 0.0
      %4104 = vmatprep.subr.mxu0 0.0
      %4105 = vmatpush1.msra.mxu0 0.0
      %4106 = vmatprep.subr.mxu0 0.0
      %4107 = vmatpush1.msra.mxu0 0.0
      %4108 = vmatprep.subr.mxu0 0.0
      %4109 = vmatpush1.msra.mxu0 0.0
      %4110 = vmatprep.subr.mxu0 0.0
      %4111 = vmatpush1.msra.mxu0 0.0
      %4112 = vmatprep.subr.mxu0 0.0
      %4113 = vmatpush1.msra.mxu0 0.0
      %4114 = vmatprep.subr.mxu0 0.0
      %4115 = vmatpush1.msra.mxu0 0.0
      %4116 = vmatprep.subr.mxu0 0.0
      %4117 = vmatpush1.msra.mxu0 0.0
      %4118 = vmatprep.subr.mxu0 0.0
      %4119 = vmatpush1.msra.mxu0 0.0
      %4120 = vmatprep.subr.mxu0 0.0
      %4121 = vmatpush1.msra.mxu0 0.0
      %4122 = vmatprep.subr.mxu0 0.0
      %4123 = vmatpush1.msra.mxu0 0.0
      %4124 = vmatprep.subr.mxu0 0.0
      %4125 = vmatpush1.msra.mxu0 0.0
      %4126 = vmatprep.subr.mxu0 0.0
      %4127 = vmatpush1.msra.mxu0 0.0
      %4128 = vmatprep.subr.mxu0 0.0
      %4129 = vmatpush1.msra.mxu0 0.0
      %4130 = vmatprep.subr.mxu0 0.0
      %4131 = vmatpush1.msra.mxu0 0.0
      %4132 = vmatprep.subr.mxu0 0.0
      %4133 = vmatpush1.msra.mxu0 0.0
      %4134 = vmatprep.subr.mxu0 0.0
      %4135 = vmatpush1.msra.mxu0 0.0
      %4136 = vmatprep.mubr.f32.mxu0 0.0
      %4137 = vmatmul.mubr.f32.gmra.mrb[0].mxu0 %v3974
      %v4138 = vpop.f32.mrb[0].mxu0
      %v4139 = vadd.f32 0.0, %v4138
      %v4140 = vpop.f32.mrb[0].mxu0
      %4141 = vmatprep.mubr.f32.mxu0 0.0
      %4142 = vmatmul.mubr.f32.gmra.mrb[0].mxu0 %v3977
      %v4143 = vpop.f32.mrb[0].mxu0
      %v4144 = vadd.f32 0.0, %v4143
      %v4145 = vpop.f32.mrb[0].mxu0
      %4146 = vmatprep.mubr.f32.mxu0 0.0
      %4147 = vmatmul.mubr.f32.gmra.mrb[0].mxu0 %v3980
      %v4148 = vpop.f32.mrb[0].mxu0
      %v4149 = vadd.f32 0.0, %v4148
      %v4150 = vpop.f32.mrb[0].mxu0
      %4151 = vmatprep.mubr.f32.mxu0 0.0
      %4152 = vmatmul.mubr.f32.gmra.mrb[0].mxu0 %v3983
      %v4153 = vpop.f32.mrb[0].mxu0
      %v4154 = vadd.f32 0.0, %v4153
      %v4155 = vpop.f32.mrb[0].mxu0
      %4156 = vmatprep.mubr.f32.mxu0 0.0
      %4157 = vmatmul.mubr.f32.gmra.mrb[0].mxu0 %v3986
      %v4158 = vpop.f32.mrb[0].mxu0
      %v4159 = vadd.f32 0.0, %v4158
      %v4160 = vpop.f32.mrb[0].mxu0
      %4161 = vmatprep.mubr.f32.mxu0 0.0
      %4162 = vmatmul.mubr.f32.gmra.mrb[0].mxu0 %v3989
      %v4163 = vpop.f32.mrb[0].mxu0
      %v4164 = vadd.f32 0.0, %v4163
      %v4165 = vpop.f32.mrb[0].mxu0
      %4166 = vmatprep.mubr.f32.mxu0 0.0
      %4167 = vmatmul.mubr.f32.gmra.mrb[0].mxu0 %v3992
      %v4168 = vpop.f32.mrb[0].mxu0
      %v4169 = vadd.f32 0.0, %v4168
      %v4170 = vpop.f32.mrb[0].mxu0
      %4171 = vmatprep.mubr.f32.mxu0 0.0
      %4172 = vmatmul.mubr.f32.gmra.mrb[0].mxu0 %v3995
      %v4173 = vpop.f32.mrb[0].mxu0
      %v4174 = vadd.f32 0.0, %v4173
      %v4175 = vpop.f32.mrb[0].mxu0
      %4176 = vmatprep.mubr.f32.mxu0 0.0
      %4177 = vmatmul.mubr.f32.gmra.mrb[0].mxu0 %v3998
      %v4178 = vpop.f32.mrb[0].mxu0
      %v4179 = vadd.f32 0.0, %v4178
      %v4180 = vpop.f32.mrb[0].mxu0
      %4181 = vmatprep.mubr.f32.mxu0 0.0
      %4182 = vmatmul.mubr.f32.gmra.mrb[0].mxu0 %v4001
      %v4183 = vpop.f32.mrb[0].mxu0
      %v4184 = vadd.f32 0.0, %v4183
      %v4185 = vpop.f32.mrb[0].mxu0
      %4186 = vmatprep.mubr.f32.mxu0 0.0
      %4187 = vmatmul.mubr.f32.gmra.mrb[0].mxu0 %v4004
      %v4188 = vpop.f32.mrb[0].mxu0
      %v4189 = vadd.f32 0.0, %v4188
      %v4190 = vpop.f32.mrb[0].mxu0
      %4191 = vmatprep.mubr.f32.mxu0 0.0
      %4192 = vmatmul.mubr.f32.gmra.mrb[0].mxu0 %v4007
      %v4193 = vpop.f32.mrb[0].mxu0
      %v4194 = vadd.f32 0.0, %v4193
      %v4195 = vpop.f32.mrb[0].mxu0
      %4196 = vmatprep.mubr.f32.mxu0 0.0
      %4197 = vmatmul.mubr.f32.gmra.mrb[0].mxu0 %v4010
      %v4198 = vpop.f32.mrb[0].mxu0
      %v4199 = vadd.f32 0.0, %v4198
      %v4200 = vpop.f32.mrb[0].mxu0
      %4201 = vmatprep.mubr.f32.mxu0 0.0
      %4202 = vmatmul.mubr.f32.gmra.mrb[0].mxu0 %v4013
      %v4203 = vpop.f32.mrb[0].mxu0
      %v4204 = vadd.f32 0.0, %v4203
      %v4205 = vpop.f32.mrb[0].mxu0
      %4206 = vmatprep.mubr.f32.mxu0 0.0
      %4207 = vmatmul.mubr.f32.gmra.mrb[0].mxu0 %v4016
      %v4208 = vpop.f32.mrb[0].mxu0
      %v4209 = vadd.f32 0.0, %v4208
      %v4210 = vpop.f32.mrb[0].mxu0
      %4211 = vmatprep.mubr.f32.mxu0 0.0
      %4212 = vmatmul.mubr.f32.gmra.mrb[0].mxu0 %v4019
      %v4213 = vpop.f32.mrb[0].mxu0
      %v4214 = vadd.f32 0.0, %v4213
      %v4215 = vpop.f32.mrb[0].mxu0
      %4216 = vmatprep.mubr.f32.mxu0 0.0
      %4217 = vmatmul.mubr.f32.gmra.mrb[0].mxu0 %v4022
      %v4218 = vpop.f32.mrb[0].mxu0
      %v4219 = vadd.f32 0.0, %v4218
      %v4220 = vpop.f32.mrb[0].mxu0
      %4221 = vmatprep.mubr.f32.mxu0 0.0
      %4222 = vmatmul.mubr.f32.gmra.mrb[0].mxu0 %v4025
      %v4223 = vpop.f32.mrb[0].mxu0
      %v4224 = vadd.f32 0.0, %v4223
      %v4225 = vpop.f32.mrb[0].mxu0
      %4226 = vmatprep.mubr.f32.mxu0 0.0
      %4227 = vmatmul.mubr.f32.gmra.mrb[0].mxu0 %v4028
      %v4228 = vpop.f32.mrb[0].mxu0
      %v4229 = vadd.f32 0.0, %v4228
      %v4230 = vpop.f32.mrb[0].mxu0
      %4231 = vmatprep.mubr.f32.mxu0 0.0
      %4232 = vmatmul.mubr.f32.gmra.mrb[0].mxu0 %v4031
      %v4233 = vpop.f32.mrb[0].mxu0
      %v4234 = vadd.f32 0.0, %v4233
      %v4235 = vpop.f32.mrb[0].mxu0
      %4236 = vmatprep.mubr.f32.mxu0 0.0
      %4237 = vmatmul.mubr.f32.gmra.mrb[0].mxu0 %v4034
      %v4238 = vpop.f32.mrb[0].mxu0
      %v4239 = vadd.f32 0.0, %v4238
      %v4240 = vpop.f32.mrb[0].mxu0
      %4241 = vmatprep.mubr.f32.mxu0 0.0
      %4242 = vmatmul.mubr.f32.gmra.mrb[0].mxu0 %v4037
      %v4243 = vpop.f32.mrb[0].mxu0
      %v4244 = vadd.f32 0.0, %v4243
      %v4245 = vpop.f32.mrb[0].mxu0
      %4246 = vmatprep.mubr.f32.mxu0 0.0
      %4247 = vmatmul.mubr.f32.gmra.mrb[0].mxu0 %v4040
      %v4248 = vpop.f32.mrb[0].mxu0
      %v4249 = vadd.f32 0.0, %v4248
      %v4250 = vpop.f32.mrb[0].mxu0
      %4251 = vmatprep.mubr.f32.mxu0 0.0
      %4252 = vmatmul.mubr.f32.gmra.mrb[0].mxu0 %v4043
      %v4253 = vpop.f32.mrb[0].mxu0
      %v4254 = vadd.f32 0.0, %v4253
      %v4255 = vpop.f32.mrb[0].mxu0
      %4256 = vmatprep.mubr.f32.mxu0 0.0
      %4257 = vmatmul.mubr.f32.gmra.mrb[0].mxu0 %v4046
      %v4258 = vpop.f32.mrb[0].mxu0
      %v4259 = vadd.f32 0.0, %v4258
      %v4260 = vpop.f32.mrb[0].mxu0
      %4261 = vmatprep.mubr.f32.mxu0 0.0
      %4262 = vmatmul.mubr.f32.gmra.mrb[0].mxu0 %v4049
      %v4263 = vpop.f32.mrb[0].mxu0
      %v4264 = vadd.f32 0.0, %v4263
      %v4265 = vpop.f32.mrb[0].mxu0
      %4266 = vmatprep.mubr.f32.mxu0 0.0
      %4267 = vmatmul.mubr.f32.gmra.mrb[0].mxu0 %v4052
      %v4268 = vpop.f32.mrb[0].mxu0
      %v4269 = vadd.f32 0.0, %v4268
      %v4270 = vpop.f32.mrb[0].mxu0
      %4271 = vmatprep.mubr.f32.mxu0 0.0
      %4272 = vmatmul.mubr.f32.gmra.mrb[0].mxu0 %v4055
      %v4273 = vpop.f32.mrb[0].mxu0
      %v4274 = vadd.f32 0.0, %v4273
      %v4275 = vpop.f32.mrb[0].mxu0
      %4276 = vmatprep.mubr.f32.mxu0 0.0
      %4277 = vmatmul.mubr.f32.gmra.mrb[0].mxu0 %v4058
      %v4278 = vpop.f32.mrb[0].mxu0
      %v4279 = vadd.f32 0.0, %v4278
      %v4280 = vpop.f32.mrb[0].mxu0
      %4281 = vmatprep.mubr.f32.mxu0 0.0
      %4282 = vmatmul.mubr.f32.gmra.mrb[0].mxu0 %v4061
      %v4283 = vpop.f32.mrb[0].mxu0
      %v4284 = vadd.f32 0.0, %v4283
      %v4285 = vpop.f32.mrb[0].mxu0
      %4286 = vmatprep.mubr.f32.mxu0 0.0
      %4287 = vmatmul.mubr.f32.gmra.mrb[0].mxu0 %v4064
      %v4288 = vpop.f32.mrb[0].mxu0
      %v4289 = vadd.f32 0.0, %v4288
      %v4290 = vpop.f32.mrb[0].mxu0
      %4291 = vmatprep.mubr.f32.mxu0 0.0
      %4292 = vmatmul.mubr.f32.gmra.mrb[0].mxu0 %v4067
      %v4293 = vpop.f32.mrb[0].mxu0
      %v4294 = vadd.f32 0.0, %v4293
      %v4295 = vpop.f32.mrb[0].mxu0
      %4296 = vdwg.mxu0
      %v4298 = vsel %vm257, %v3907, 0
      %v4301 = vsel %vm257, %v3908, 0
      %v4304 = vsel %vm257, %v3909, 0
      %v4307 = vsel %vm257, %v3910, 0
      %v4310 = vsel %vm257, %v3911, 0
      %v4313 = vsel %vm257, %v3912, 0
      %v4316 = vsel %vm257, %v3913, 0
      %v4319 = vsel %vm257, %v3914, 0
      %v4322 = vsel %vm257, %v3915, 0
      %v4325 = vsel %vm257, %v3916, 0
      %v4328 = vsel %vm257, %v3917, 0
      %v4331 = vsel %vm257, %v3918, 0
      %v4334 = vsel %vm257, %v3919, 0
      %v4337 = vsel %vm257, %v3920, 0
      %v4340 = vsel %vm257, %v3921, 0
      %v4343 = vsel %vm257, %v3922, 0
      %v4346 = vsel %vm257, %v3923, 0
      %v4349 = vsel %vm257, %v3924, 0
      %v4352 = vsel %vm257, %v3925, 0
      %v4355 = vsel %vm257, %v3926, 0
      %v4358 = vsel %vm257, %v3927, 0
      %v4361 = vsel %vm257, %v3928, 0
      %v4364 = vsel %vm257, %v3929, 0
      %v4367 = vsel %vm257, %v3930, 0
      %v4370 = vsel %vm257, %v3931, 0
      %v4373 = vsel %vm257, %v3932, 0
      %v4376 = vsel %vm257, %v3933, 0
      %v4379 = vsel %vm257, %v3934, 0
      %v4382 = vsel %vm257, %v3935, 0
      %v4385 = vsel %vm257, %v3936, 0
      %v4388 = vsel %vm257, %v3937, 0
      %v4391 = vsel %vm257, %v3938, 0
      %v4394 = vsel %vm527, %v3939, 0
      %4396 = vmatprep.subr.mxu0 0.0
      %4397 = vmatpush1.msra.mxu0 %v4394
      %4398 = vmatprep.subr.mxu0 0.0
      %4399 = vmatpush1.msra.mxu0 0.0
      %4400 = vmatprep.subr.mxu0 0.0
      %4401 = vmatpush1.msra.mxu0 0.0
      %4402 = vmatprep.subr.mxu0 0.0
      %4403 = vmatpush1.msra.mxu0 0.0
      %4404 = vmatprep.subr.mxu0 0.0
      %4405 = vmatpush1.msra.mxu0 0.0
      %4406 = vmatprep.subr.mxu0 0.0
      %4407 = vmatpush1.msra.mxu0 0.0
      %4408 = vmatprep.subr.mxu0 0.0
      %4409 = vmatpush1.msra.mxu0 0.0
      %4410 = vmatprep.subr.mxu0 0.0
      %4411 = vmatpush1.msra.mxu0 0.0
      %4412 = vmatprep.subr.mxu0 0.0
      %4413 = vmatpush1.msra.mxu0 0.0
      %4414 = vmatprep.subr.mxu0 0.0
      %4415 = vmatpush1.msra.mxu0 0.0
      %4416 = vmatprep.subr.mxu0 0.0
      %4417 = vmatpush1.msra.mxu0 0.0
      %4418 = vmatprep.subr.mxu0 0.0
      %4419 = vmatpush1.msra.mxu0 0.0
      %4420 = vmatprep.subr.mxu0 0.0
      %4421 = vmatpush1.msra.mxu0 0.0
      %4422 = vmatprep.subr.mxu0 0.0
      %4423 = vmatpush1.msra.mxu0 0.0
      %4424 = vmatprep.subr.mxu0 0.0
      %4425 = vmatpush1.msra.mxu0 0.0
      %4426 = vmatprep.subr.mxu0 0.0
      %4427 = vmatpush1.msra.mxu0 0.0
      %4428 = vmatprep.subr.mxu0 0.0
      %4429 = vmatpush1.msra.mxu0 0.0
      %4430 = vmatprep.subr.mxu0 0.0
      %4431 = vmatpush1.msra.mxu0 0.0
      %4432 = vmatprep.subr.mxu0 0.0
      %4433 = vmatpush1.msra.mxu0 0.0
      %4434 = vmatprep.subr.mxu0 0.0
      %4435 = vmatpush1.msra.mxu0 0.0
      %4436 = vmatprep.subr.mxu0 0.0
      %4437 = vmatpush1.msra.mxu0 0.0
      %4438 = vmatprep.subr.mxu0 0.0
      %4439 = vmatpush1.msra.mxu0 0.0
      %4440 = vmatprep.subr.mxu0 0.0
      %4441 = vmatpush1.msra.mxu0 0.0
      %4442 = vmatprep.subr.mxu0 0.0
      %4443 = vmatpush1.msra.mxu0 0.0
      %4444 = vmatprep.subr.mxu0 0.0
      %4445 = vmatpush1.msra.mxu0 0.0
      %4446 = vmatprep.subr.mxu0 0.0
      %4447 = vmatpush1.msra.mxu0 0.0
      %4448 = vmatprep.subr.mxu0 0.0
      %4449 = vmatpush1.msra.mxu0 0.0
      %4450 = vmatprep.subr.mxu0 0.0
      %4451 = vmatpush1.msra.mxu0 0.0
      %4452 = vmatprep.subr.mxu0 0.0
      %4453 = vmatpush1.msra.mxu0 0.0
      %4454 = vmatprep.subr.mxu0 0.0
      %4455 = vmatpush1.msra.mxu0 0.0
      %4456 = vmatprep.subr.mxu0 0.0
      %4457 = vmatpush1.msra.mxu0 0.0
      %4458 = vmatprep.subr.mxu0 0.0
      %4459 = vmatpush1.msra.mxu0 0.0
      %4460 = vmatprep.mubr.f32.mxu0 0.0
      %4461 = vmatmul.mubr.f32.gmra.mrb[0].mxu0 %v4298
      %v4462 = vpop.f32.mrb[0].mxu0
      %v4463 = vadd.f32 %v4139, %v4462
      %v4464 = vpop.f32.mrb[0].mxu0
      %4465 = vmatprep.mubr.f32.mxu0 0.0
      %4466 = vmatmul.mubr.f32.gmra.mrb[0].mxu0 %v4301
      %v4467 = vpop.f32.mrb[0].mxu0
      %v4468 = vadd.f32 %v4144, %v4467
      %v4469 = vpop.f32.mrb[0].mxu0
      %4470 = vmatprep.mubr.f32.mxu0 0.0
      %4471 = vmatmul.mubr.f32.gmra.mrb[0].mxu0 %v4304
      %v4472 = vpop.f32.mrb[0].mxu0
      %v4473 = vadd.f32 %v4149, %v4472
      %v4474 = vpop.f32.mrb[0].mxu0
      %4475 = vmatprep.mubr.f32.mxu0 0.0
      %4476 = vmatmul.mubr.f32.gmra.mrb[0].mxu0 %v4307
      %v4477 = vpop.f32.mrb[0].mxu0
      %v4478 = vadd.f32 %v4154, %v4477
      %v4479 = vpop.f32.mrb[0].mxu0
      %4480 = vmatprep.mubr.f32.mxu0 0.0
      %4481 = vmatmul.mubr.f32.gmra.mrb[0].mxu0 %v4310
      %v4482 = vpop.f32.mrb[0].mxu0
      %v4483 = vadd.f32 %v4159, %v4482
      %v4484 = vpop.f32.mrb[0].mxu0
      %4485 = vmatprep.mubr.f32.mxu0 0.0
      %4486 = vmatmul.mubr.f32.gmra.mrb[0].mxu0 %v4313
      %v4487 = vpop.f32.mrb[0].mxu0
      %v4488 = vadd.f32 %v4164, %v4487
      %v4489 = vpop.f32.mrb[0].mxu0
      %4490 = vmatprep.mubr.f32.mxu0 0.0
      %4491 = vmatmul.mubr.f32.gmra.mrb[0].mxu0 %v4316
      %v4492 = vpop.f32.mrb[0].mxu0
      %v4493 = vadd.f32 %v4169, %v4492
      %v4494 = vpop.f32.mrb[0].mxu0
      %4495 = vmatprep.mubr.f32.mxu0 0.0
      %4496 = vmatmul.mubr.f32.gmra.mrb[0].mxu0 %v4319
      %v4497 = vpop.f32.mrb[0].mxu0
      %v4498 = vadd.f32 %v4174, %v4497
      %v4499 = vpop.f32.mrb[0].mxu0
      %4500 = vmatprep.mubr.f32.mxu0 0.0
      %4501 = vmatmul.mubr.f32.gmra.mrb[0].mxu0 %v4322
      %v4502 = vpop.f32.mrb[0].mxu0
      %v4503 = vadd.f32 %v4179, %v4502
      %v4504 = vpop.f32.mrb[0].mxu0
      %4505 = vmatprep.mubr.f32.mxu0 0.0
      %4506 = vmatmul.mubr.f32.gmra.mrb[0].mxu0 %v4325
      %v4507 = vpop.f32.mrb[0].mxu0
      %v4508 = vadd.f32 %v4184, %v4507
      %v4509 = vpop.f32.mrb[0].mxu0
      %4510 = vmatprep.mubr.f32.mxu0 0.0
      %4511 = vmatmul.mubr.f32.gmra.mrb[0].mxu0 %v4328
      %v4512 = vpop.f32.mrb[0].mxu0
      %v4513 = vadd.f32 %v4189, %v4512
      %v4514 = vpop.f32.mrb[0].mxu0
      %4515 = vmatprep.mubr.f32.mxu0 0.0
      %4516 = vmatmul.mubr.f32.gmra.mrb[0].mxu0 %v4331
      %v4517 = vpop.f32.mrb[0].mxu0
      %v4518 = vadd.f32 %v4194, %v4517
      %v4519 = vpop.f32.mrb[0].mxu0
      %4520 = vmatprep.mubr.f32.mxu0 0.0
      %4521 = vmatmul.mubr.f32.gmra.mrb[0].mxu0 %v4334
      %v4522 = vpop.f32.mrb[0].mxu0
      %v4523 = vadd.f32 %v4199, %v4522
      %v4524 = vpop.f32.mrb[0].mxu0
      %4525 = vmatprep.mubr.f32.mxu0 0.0
      %4526 = vmatmul.mubr.f32.gmra.mrb[0].mxu0 %v4337
      %v4527 = vpop.f32.mrb[0].mxu0
      %v4528 = vadd.f32 %v4204, %v4527
      %v4529 = vpop.f32.mrb[0].mxu0
      %4530 = vmatprep.mubr.f32.mxu0 0.0
      %4531 = vmatmul.mubr.f32.gmra.mrb[0].mxu0 %v4340
      %v4532 = vpop.f32.mrb[0].mxu0
      %v4533 = vadd.f32 %v4209, %v4532
      %v4534 = vpop.f32.mrb[0].mxu0
      %4535 = vmatprep.mubr.f32.mxu0 0.0
      %4536 = vmatmul.mubr.f32.gmra.mrb[0].mxu0 %v4343
      %v4537 = vpop.f32.mrb[0].mxu0
      %v4538 = vadd.f32 %v4214, %v4537
      %v4539 = vpop.f32.mrb[0].mxu0
      %4540 = vmatprep.mubr.f32.mxu0 0.0
      %4541 = vmatmul.mubr.f32.gmra.mrb[0].mxu0 %v4346
      %v4542 = vpop.f32.mrb[0].mxu0
      %v4543 = vadd.f32 %v4219, %v4542
      %v4544 = vpop.f32.mrb[0].mxu0
      %4545 = vmatprep.mubr.f32.mxu0 0.0
      %4546 = vmatmul.mubr.f32.gmra.mrb[0].mxu0 %v4349
      %v4547 = vpop.f32.mrb[0].mxu0
      %v4548 = vadd.f32 %v4224, %v4547
      %v4549 = vpop.f32.mrb[0].mxu0
      %4550 = vmatprep.mubr.f32.mxu0 0.0
      %4551 = vmatmul.mubr.f32.gmra.mrb[0].mxu0 %v4352
      %v4552 = vpop.f32.mrb[0].mxu0
      %v4553 = vadd.f32 %v4229, %v4552
      %v4554 = vpop.f32.mrb[0].mxu0
      %4555 = vmatprep.mubr.f32.mxu0 0.0
      %4556 = vmatmul.mubr.f32.gmra.mrb[0].mxu0 %v4355
      %v4557 = vpop.f32.mrb[0].mxu0
      %v4558 = vadd.f32 %v4234, %v4557
      %v4559 = vpop.f32.mrb[0].mxu0
      %4560 = vmatprep.mubr.f32.mxu0 0.0
      %4561 = vmatmul.mubr.f32.gmra.mrb[0].mxu0 %v4358
      %v4562 = vpop.f32.mrb[0].mxu0
      %v4563 = vadd.f32 %v4239, %v4562
      %v4564 = vpop.f32.mrb[0].mxu0
      %4565 = vmatprep.mubr.f32.mxu0 0.0
      %4566 = vmatmul.mubr.f32.gmra.mrb[0].mxu0 %v4361
      %v4567 = vpop.f32.mrb[0].mxu0
      %v4568 = vadd.f32 %v4244, %v4567
      %v4569 = vpop.f32.mrb[0].mxu0
      %4570 = vmatprep.mubr.f32.mxu0 0.0
      %4571 = vmatmul.mubr.f32.gmra.mrb[0].mxu0 %v4364
      %v4572 = vpop.f32.mrb[0].mxu0
      %v4573 = vadd.f32 %v4249, %v4572
      %v4574 = vpop.f32.mrb[0].mxu0
      %4575 = vmatprep.mubr.f32.mxu0 0.0
      %4576 = vmatmul.mubr.f32.gmra.mrb[0].mxu0 %v4367
      %v4577 = vpop.f32.mrb[0].mxu0
      %v4578 = vadd.f32 %v4254, %v4577
      %v4579 = vpop.f32.mrb[0].mxu0
      %4580 = vmatprep.mubr.f32.mxu0 0.0
      %4581 = vmatmul.mubr.f32.gmra.mrb[0].mxu0 %v4370
      %v4582 = vpop.f32.mrb[0].mxu0
      %v4583 = vadd.f32 %v4259, %v4582
      %v4584 = vpop.f32.mrb[0].mxu0
      %4585 = vmatprep.mubr.f32.mxu0 0.0
      %4586 = vmatmul.mubr.f32.gmra.mrb[0].mxu0 %v4373
      %v4587 = vpop.f32.mrb[0].mxu0
      %v4588 = vadd.f32 %v4264, %v4587
      %v4589 = vpop.f32.mrb[0].mxu0
      %4590 = vmatprep.mubr.f32.mxu0 0.0
      %4591 = vmatmul.mubr.f32.gmra.mrb[0].mxu0 %v4376
      %v4592 = vpop.f32.mrb[0].mxu0
      %v4593 = vadd.f32 %v4269, %v4592
      %v4594 = vpop.f32.mrb[0].mxu0
      %4595 = vmatprep.mubr.f32.mxu0 0.0
      %4596 = vmatmul.mubr.f32.gmra.mrb[0].mxu0 %v4379
      %v4597 = vpop.f32.mrb[0].mxu0
      %v4598 = vadd.f32 %v4274, %v4597
      %v4599 = vpop.f32.mrb[0].mxu0
      %4600 = vmatprep.mubr.f32.mxu0 0.0
      %4601 = vmatmul.mubr.f32.gmra.mrb[0].mxu0 %v4382
      %v4602 = vpop.f32.mrb[0].mxu0
      %v4603 = vadd.f32 %v4279, %v4602
      %v4604 = vpop.f32.mrb[0].mxu0
      %4605 = vmatprep.mubr.f32.mxu0 0.0
      %4606 = vmatmul.mubr.f32.gmra.mrb[0].mxu0 %v4385
      %v4607 = vpop.f32.mrb[0].mxu0
      %v4608 = vadd.f32 %v4284, %v4607
      %v4609 = vpop.f32.mrb[0].mxu0
      %4610 = vmatprep.mubr.f32.mxu0 0.0
      %4611 = vmatmul.mubr.f32.gmra.mrb[0].mxu0 %v4388
      %v4612 = vpop.f32.mrb[0].mxu0
      %v4613 = vadd.f32 %v4289, %v4612
      %v4614 = vpop.f32.mrb[0].mxu0
      %4615 = vmatprep.mubr.f32.mxu0 0.0
      %4616 = vmatmul.mubr.f32.gmra.mrb[0].mxu0 %v4391
      %v4617 = vpop.f32.mrb[0].mxu0
      %v4618 = vadd.f32 %v4294, %v4617
      %v4619 = vpop.f32.mrb[0].mxu0
      %4620 = vdwg.mxu0
      %v4621 = vld [vmem:[#allocation2 + $0x9] sm:$0xff]
      %v4622 = vld [vmem:[#allocation2 + $0x11] sm:$0xff]
      %v4623 = vld [vmem:[#allocation2 + $0x29] sm:$0xff]
      %v4624 = vld [vmem:[#allocation2 + $0x31] sm:$0xff]
      %v4625 = vld [vmem:[#allocation2 + $0x49] sm:$0xff]
      %v4626 = vld [vmem:[#allocation2 + $0x51] sm:$0xff]
      %v4627 = vld [vmem:[#allocation2 + $0x69] sm:$0xff]
      %v4628 = vld [vmem:[#allocation2 + $0x71] sm:$0xff]
      %v4629 = vld [vmem:[#allocation2 + $0x89] sm:$0xff]
      %v4630 = vld [vmem:[#allocation2 + $0x91] sm:$0xff]
      %v4631 = vld [vmem:[#allocation2 + $0xa9] sm:$0xff]
      %v4632 = vld [vmem:[#allocation2 + $0xb1] sm:$0xff]
      %v4633 = vld [vmem:[#allocation2 + $0xc9] sm:$0xff]
      %v4634 = vld [vmem:[#allocation2 + $0xd1] sm:$0xff]
      %v4635 = vld [vmem:[#allocation2 + $0xe9] sm:$0xff]
      %v4636 = vld [vmem:[#allocation2 + $0xf1] sm:$0xff]
      %v4637 = vld [vmem:[#allocation2 + $0x109] sm:$0xff]
      %v4638 = vld [vmem:[#allocation2 + $0x111] sm:$0xff]
      %v4639 = vld [vmem:[#allocation2 + $0x129] sm:$0xff]
      %v4640 = vld [vmem:[#allocation2 + $0x131] sm:$0xff]
      %v4641 = vld [vmem:[#allocation2 + $0x149] sm:$0xff]
      %v4642 = vld [vmem:[#allocation2 + $0x151] sm:$0xff]
      %v4643 = vld [vmem:[#allocation2 + $0x169] sm:$0xff]
      %v4644 = vld [vmem:[#allocation2 + $0x171] sm:$0xff]
      %v4645 = vld [vmem:[#allocation2 + $0x189] sm:$0xff]
      %v4646 = vld [vmem:[#allocation2 + $0x191] sm:$0xff]
      %v4647 = vld [vmem:[#allocation2 + $0x1a9] sm:$0xff]
      %v4648 = vld [vmem:[#allocation2 + $0x1b1] sm:$0xff]
      %v4649 = vld [vmem:[#allocation2 + $0x1c9] sm:$0xff]
      %v4650 = vld [vmem:[#allocation2 + $0x1d1] sm:$0xff]
      %v4651 = vld [vmem:[#allocation2 + $0x1e9] sm:$0xff]
      %v4652 = vld [vmem:[#allocation2 + $0x1f1] sm:$0xff]
      %v4653 = vld [vmem:[%s3 + $0x8] sm:$0xf]
      %v4655 = vsel %vm257, %v4621, 0
      %v4658 = vsel %vm257, %v4622, 0
      %v4661 = vsel %vm257, %v4623, 0
      %v4664 = vsel %vm257, %v4624, 0
      %v4667 = vsel %vm257, %v4625, 0
      %v4670 = vsel %vm257, %v4626, 0
      %v4673 = vsel %vm257, %v4627, 0
      %v4676 = vsel %vm257, %v4628, 0
      %v4679 = vsel %vm257, %v4629, 0
      %v4682 = vsel %vm257, %v4630, 0
      %v4685 = vsel %vm257, %v4631, 0
      %v4688 = vsel %vm257, %v4632, 0
      %v4691 = vsel %vm257, %v4633, 0
      %v4694 = vsel %vm257, %v4634, 0
      %v4697 = vsel %vm257, %v4635, 0
      %v4700 = vsel %vm257, %v4636, 0
      %v4703 = vsel %vm257, %v4637, 0
      %v4706 = vsel %vm257, %v4638, 0
      %v4709 = vsel %vm257, %v4639, 0
      %v4712 = vsel %vm257, %v4640, 0
      %v4715 = vsel %vm257, %v4641, 0
      %v4718 = vsel %vm257, %v4642, 0
      %v4721 = vsel %vm257, %v4643, 0
      %v4724 = vsel %vm257, %v4644, 0
      %v4727 = vsel %vm257, %v4645, 0
      %v4730 = vsel %vm257, %v4646, 0
      %v4733 = vsel %vm257, %v4647, 0
      %v4736 = vsel %vm257, %v4648, 0
      %v4739 = vsel %vm257, %v4649, 0
      %v4742 = vsel %vm257, %v4650, 0
      %v4745 = vsel %vm257, %v4651, 0
      %v4748 = vsel %vm257, %v4652, 0
      %v4751 = vsel %vm527, %v4653, 0
      %4753 = vmatprep.subr.mxu0 0.0
      %4754 = vmatpush1.msra.mxu0 %v4751
      %4755 = vmatprep.subr.mxu0 0.0
      %4756 = vmatpush1.msra.mxu0 0.0
      %4757 = vmatprep.subr.mxu0 0.0
      %4758 = vmatpush1.msra.mxu0 0.0
      %4759 = vmatprep.subr.mxu0 0.0
      %4760 = vmatpush1.msra.mxu0 0.0
      %4761 = vmatprep.subr.mxu0 0.0
      %4762 = vmatpush1.msra.mxu0 0.0
      %4763 = vmatprep.subr.mxu0 0.0
      %4764 = vmatpush1.msra.mxu0 0.0
      %4765 = vmatprep.subr.mxu0 0.0
      %4766 = vmatpush1.msra.mxu0 0.0
      %4767 = vmatprep.subr.mxu0 0.0
      %4768 = vmatpush1.msra.mxu0 0.0
      %4769 = vmatprep.subr.mxu0 0.0
      %4770 = vmatpush1.msra.mxu0 0.0
      %4771 = vmatprep.subr.mxu0 0.0
      %4772 = vmatpush1.msra.mxu0 0.0
      %4773 = vmatprep.subr.mxu0 0.0
      %4774 = vmatpush1.msra.mxu0 0.0
      %4775 = vmatprep.subr.mxu0 0.0
      %4776 = vmatpush1.msra.mxu0 0.0
      %4777 = vmatprep.subr.mxu0 0.0
      %4778 = vmatpush1.msra.mxu0 0.0
      %4779 = vmatprep.subr.mxu0 0.0
      %4780 = vmatpush1.msra.mxu0 0.0
      %4781 = vmatprep.subr.mxu0 0.0
      %4782 = vmatpush1.msra.mxu0 0.0
      %4783 = vmatprep.subr.mxu0 0.0
      %4784 = vmatpush1.msra.mxu0 0.0
      %4785 = vmatprep.subr.mxu0 0.0
      %4786 = vmatpush1.msra.mxu0 0.0
      %4787 = vmatprep.subr.mxu0 0.0
      %4788 = vmatpush1.msra.mxu0 0.0
      %4789 = vmatprep.subr.mxu0 0.0
      %4790 = vmatpush1.msra.mxu0 0.0
      %4791 = vmatprep.subr.mxu0 0.0
      %4792 = vmatpush1.msra.mxu0 0.0
      %4793 = vmatprep.subr.mxu0 0.0
      %4794 = vmatpush1.msra.mxu0 0.0
      %4795 = vmatprep.subr.mxu0 0.0
      %4796 = vmatpush1.msra.mxu0 0.0
      %4797 = vmatprep.subr.mxu0 0.0
      %4798 = vmatpush1.msra.mxu0 0.0
      %4799 = vmatprep.subr.mxu0 0.0
      %4800 = vmatpush1.msra.mxu0 0.0
      %4801 = vmatprep.subr.mxu0 0.0
      %4802 = vmatpush1.msra.mxu0 0.0
      %4803 = vmatprep.subr.mxu0 0.0
      %4804 = vmatpush1.msra.mxu0 0.0
      %4805 = vmatprep.subr.mxu0 0.0
      %4806 = vmatpush1.msra.mxu0 0.0
      %4807 = vmatprep.subr.mxu0 0.0
      %4808 = vmatpush1.msra.mxu0 0.0
      %4809 = vmatprep.subr.mxu0 0.0
      %4810 = vmatpush1.msra.mxu0 0.0
      %4811 = vmatprep.subr.mxu0 0.0
      %4812 = vmatpush1.msra.mxu0 0.0
      %4813 = vmatprep.subr.mxu0 0.0
      %4814 = vmatpush1.msra.mxu0 0.0
      %4815 = vmatprep.subr.mxu0 0.0
      %4816 = vmatpush1.msra.mxu0 0.0
      %4817 = vmatprep.mubr.f32.mxu0 0.0
      %4818 = vmatmul.mubr.f32.gmra.mrb[0].mxu0 %v4655
      %v4819 = vpop.f32.mrb[0].mxu0
      %v4820 = vadd.f32 0.0, %v4819
      %v4821 = vpop.f32.mrb[0].mxu0
      %4822 = vmatprep.mubr.f32.mxu0 0.0
      %4823 = vmatmul.mubr.f32.gmra.mrb[0].mxu0 %v4658
      %v4824 = vpop.f32.mrb[0].mxu0
      %v4825 = vadd.f32 0.0, %v4824
      %v4826 = vpop.f32.mrb[0].mxu0
      %4827 = vmatprep.mubr.f32.mxu0 0.0
      %4828 = vmatmul.mubr.f32.gmra.mrb[0].mxu0 %v4661
      %v4829 = vpop.f32.mrb[0].mxu0
      %v4830 = vadd.f32 0.0, %v4829
      %v4831 = vpop.f32.mrb[0].mxu0
      %4832 = vmatprep.mubr.f32.mxu0 0.0
      %4833 = vmatmul.mubr.f32.gmra.mrb[0].mxu0 %v4664
      %v4834 = vpop.f32.mrb[0].mxu0
      %v4835 = vadd.f32 0.0, %v4834
      %v4836 = vpop.f32.mrb[0].mxu0
      %4837 = vmatprep.mubr.f32.mxu0 0.0
      %4838 = vmatmul.mubr.f32.gmra.mrb[0].mxu0 %v4667
      %v4839 = vpop.f32.mrb[0].mxu0
      %v4840 = vadd.f32 0.0, %v4839
      %v4841 = vpop.f32.mrb[0].mxu0
      %4842 = vmatprep.mubr.f32.mxu0 0.0
      %4843 = vmatmul.mubr.f32.gmra.mrb[0].mxu0 %v4670
      %v4844 = vpop.f32.mrb[0].mxu0
      %v4845 = vadd.f32 0.0, %v4844
      %v4846 = vpop.f32.mrb[0].mxu0
      %4847 = vmatprep.mubr.f32.mxu0 0.0
      %4848 = vmatmul.mubr.f32.gmra.mrb[0].mxu0 %v4673
      %v4849 = vpop.f32.mrb[0].mxu0
      %v4850 = vadd.f32 0.0, %v4849
      %v4851 = vpop.f32.mrb[0].mxu0
      %4852 = vmatprep.mubr.f32.mxu0 0.0
      %4853 = vmatmul.mubr.f32.gmra.mrb[0].mxu0 %v4676
      %v4854 = vpop.f32.mrb[0].mxu0
      %v4855 = vadd.f32 0.0, %v4854
      %v4856 = vpop.f32.mrb[0].mxu0
      %4857 = vmatprep.mubr.f32.mxu0 0.0
      %4858 = vmatmul.mubr.f32.gmra.mrb[0].mxu0 %v4679
      %v4859 = vpop.f32.mrb[0].mxu0
      %v4860 = vadd.f32 0.0, %v4859
      %v4861 = vpop.f32.mrb[0].mxu0
      %4862 = vmatprep.mubr.f32.mxu0 0.0
      %4863 = vmatmul.mubr.f32.gmra.mrb[0].mxu0 %v4682
      %v4864 = vpop.f32.mrb[0].mxu0
      %v4865 = vadd.f32 0.0, %v4864
      %v4866 = vpop.f32.mrb[0].mxu0
      %4867 = vmatprep.mubr.f32.mxu0 0.0
      %4868 = vmatmul.mubr.f32.gmra.mrb[0].mxu0 %v4685
      %v4869 = vpop.f32.mrb[0].mxu0
      %v4870 = vadd.f32 0.0, %v4869
      %v4871 = vpop.f32.mrb[0].mxu0
      %4872 = vmatprep.mubr.f32.mxu0 0.0
      %4873 = vmatmul.mubr.f32.gmra.mrb[0].mxu0 %v4688
      %v4874 = vpop.f32.mrb[0].mxu0
      %v4875 = vadd.f32 0.0, %v4874
      %v4876 = vpop.f32.mrb[0].mxu0
      %4877 = vmatprep.mubr.f32.mxu0 0.0
      %4878 = vmatmul.mubr.f32.gmra.mrb[0].mxu0 %v4691
      %v4879 = vpop.f32.mrb[0].mxu0
      %v4880 = vadd.f32 0.0, %v4879
      %v4881 = vpop.f32.mrb[0].mxu0
      %4882 = vmatprep.mubr.f32.mxu0 0.0
      %4883 = vmatmul.mubr.f32.gmra.mrb[0].mxu0 %v4694
      %v4884 = vpop.f32.mrb[0].mxu0
      %v4885 = vadd.f32 0.0, %v4884
      %v4886 = vpop.f32.mrb[0].mxu0
      %4887 = vmatprep.mubr.f32.mxu0 0.0
      %4888 = vmatmul.mubr.f32.gmra.mrb[0].mxu0 %v4697
      %v4889 = vpop.f32.mrb[0].mxu0
      %v4890 = vadd.f32 0.0, %v4889
      %v4891 = vpop.f32.mrb[0].mxu0
      %4892 = vmatprep.mubr.f32.mxu0 0.0
      %4893 = vmatmul.mubr.f32.gmra.mrb[0].mxu0 %v4700
      %v4894 = vpop.f32.mrb[0].mxu0
      %v4895 = vadd.f32 0.0, %v4894
      %v4896 = vpop.f32.mrb[0].mxu0
      %4897 = vmatprep.mubr.f32.mxu0 0.0
      %4898 = vmatmul.mubr.f32.gmra.mrb[0].mxu0 %v4703
      %v4899 = vpop.f32.mrb[0].mxu0
      %v4900 = vadd.f32 0.0, %v4899
      %v4901 = vpop.f32.mrb[0].mxu0
      %4902 = vmatprep.mubr.f32.mxu0 0.0
      %4903 = vmatmul.mubr.f32.gmra.mrb[0].mxu0 %v4706
      %v4904 = vpop.f32.mrb[0].mxu0
      %v4905 = vadd.f32 0.0, %v4904
      %v4906 = vpop.f32.mrb[0].mxu0
      %4907 = vmatprep.mubr.f32.mxu0 0.0
      %4908 = vmatmul.mubr.f32.gmra.mrb[0].mxu0 %v4709
      %v4909 = vpop.f32.mrb[0].mxu0
      %v4910 = vadd.f32 0.0, %v4909
      %v4911 = vpop.f32.mrb[0].mxu0
      %4912 = vmatprep.mubr.f32.mxu0 0.0
      %4913 = vmatmul.mubr.f32.gmra.mrb[0].mxu0 %v4712
      %v4914 = vpop.f32.mrb[0].mxu0
      %v4915 = vadd.f32 0.0, %v4914
      %v4916 = vpop.f32.mrb[0].mxu0
      %4917 = vmatprep.mubr.f32.mxu0 0.0
      %4918 = vmatmul.mubr.f32.gmra.mrb[0].mxu0 %v4715
      %v4919 = vpop.f32.mrb[0].mxu0
      %v4920 = vadd.f32 0.0, %v4919
      %v4921 = vpop.f32.mrb[0].mxu0
      %4922 = vmatprep.mubr.f32.mxu0 0.0
      %4923 = vmatmul.mubr.f32.gmra.mrb[0].mxu0 %v4718
      %v4924 = vpop.f32.mrb[0].mxu0
      %v4925 = vadd.f32 0.0, %v4924
      %v4926 = vpop.f32.mrb[0].mxu0
      %4927 = vmatprep.mubr.f32.mxu0 0.0
      %4928 = vmatmul.mubr.f32.gmra.mrb[0].mxu0 %v4721
      %v4929 = vpop.f32.mrb[0].mxu0
      %v4930 = vadd.f32 0.0, %v4929
      %v4931 = vpop.f32.mrb[0].mxu0
      %4932 = vmatprep.mubr.f32.mxu0 0.0
      %4933 = vmatmul.mubr.f32.gmra.mrb[0].mxu0 %v4724
      %v4934 = vpop.f32.mrb[0].mxu0
      %v4935 = vadd.f32 0.0, %v4934
      %v4936 = vpop.f32.mrb[0].mxu0
      %4937 = vmatprep.mubr.f32.mxu0 0.0
      %4938 = vmatmul.mubr.f32.gmra.mrb[0].mxu0 %v4727
      %v4939 = vpop.f32.mrb[0].mxu0
      %v4940 = vadd.f32 0.0, %v4939
      %v4941 = vpop.f32.mrb[0].mxu0
      %4942 = vmatprep.mubr.f32.mxu0 0.0
      %4943 = vmatmul.mubr.f32.gmra.mrb[0].mxu0 %v4730
      %v4944 = vpop.f32.mrb[0].mxu0
      %v4945 = vadd.f32 0.0, %v4944
      %v4946 = vpop.f32.mrb[0].mxu0
      %4947 = vmatprep.mubr.f32.mxu0 0.0
      %4948 = vmatmul.mubr.f32.gmra.mrb[0].mxu0 %v4733
      %v4949 = vpop.f32.mrb[0].mxu0
      %v4950 = vadd.f32 0.0, %v4949
      %v4951 = vpop.f32.mrb[0].mxu0
      %4952 = vmatprep.mubr.f32.mxu0 0.0
      %4953 = vmatmul.mubr.f32.gmra.mrb[0].mxu0 %v4736
      %v4954 = vpop.f32.mrb[0].mxu0
      %v4955 = vadd.f32 0.0, %v4954
      %v4956 = vpop.f32.mrb[0].mxu0
      %4957 = vmatprep.mubr.f32.mxu0 0.0
      %4958 = vmatmul.mubr.f32.gmra.mrb[0].mxu0 %v4739
      %v4959 = vpop.f32.mrb[0].mxu0
      %v4960 = vadd.f32 0.0, %v4959
      %v4961 = vpop.f32.mrb[0].mxu0
      %4962 = vmatprep.mubr.f32.mxu0 0.0
      %4963 = vmatmul.mubr.f32.gmra.mrb[0].mxu0 %v4742
      %v4964 = vpop.f32.mrb[0].mxu0
      %v4965 = vadd.f32 0.0, %v4964
      %v4966 = vpop.f32.mrb[0].mxu0
      %4967 = vmatprep.mubr.f32.mxu0 0.0
      %4968 = vmatmul.mubr.f32.gmra.mrb[0].mxu0 %v4745
      %v4969 = vpop.f32.mrb[0].mxu0
      %v4970 = vadd.f32 0.0, %v4969
      %v4971 = vpop.f32.mrb[0].mxu0
      %4972 = vmatprep.mubr.f32.mxu0 0.0
      %4973 = vmatmul.mubr.f32.gmra.mrb[0].mxu0 %v4748
      %v4974 = vpop.f32.mrb[0].mxu0
      %v4975 = vadd.f32 0.0, %v4974
      %v4976 = vpop.f32.mrb[0].mxu0
      %4977 = vdwg.mxu0
      %v4978 = vadd.f32 %v4463, %v4820
      %v4979 = vadd.f32 %v4468, %v4825
      %v4980 = vadd.f32 %v4473, %v4830
      %v4981 = vadd.f32 %v4478, %v4835
      %v4982 = vadd.f32 %v4483, %v4840
      %v4983 = vadd.f32 %v4488, %v4845
      %v4984 = vadd.f32 %v4493, %v4850
      %v4985 = vadd.f32 %v4498, %v4855
      %v4986 = vadd.f32 %v4503, %v4860
      %v4987 = vadd.f32 %v4508, %v4865
      %v4988 = vadd.f32 %v4513, %v4870
      %v4989 = vadd.f32 %v4518, %v4875
      %v4990 = vadd.f32 %v4523, %v4880
      %v4991 = vadd.f32 %v4528, %v4885
      %v4992 = vadd.f32 %v4533, %v4890
      %v4993 = vadd.f32 %v4538, %v4895
      %v4994 = vadd.f32 %v4543, %v4900
      %v4995 = vadd.f32 %v4548, %v4905
      %v4996 = vadd.f32 %v4553, %v4910
      %v4997 = vadd.f32 %v4558, %v4915
      %v4998 = vadd.f32 %v4563, %v4920
      %v4999 = vadd.f32 %v4568, %v4925
      %v5000 = vadd.f32 %v4573, %v4930
      %v5001 = vadd.f32 %v4578, %v4935
      %v5002 = vadd.f32 %v4583, %v4940
      %v5003 = vadd.f32 %v4588, %v4945
      %v5004 = vadd.f32 %v4593, %v4950
      %v5005 = vadd.f32 %v4598, %v4955
      %v5006 = vadd.f32 %v4603, %v4960
      %v5007 = vadd.f32 %v4608, %v4965
      %v5008 = vadd.f32 %v4613, %v4970
      %v5009 = vadd.f32 %v4618, %v4975
      %v5010 = vld [vmem:[%s268 + $0x7] sm:$0xff]
      %v5011 = vld [vmem:[%s268 + $0xf] sm:$0xff]
      %v5012 = vld [vmem:[%s268 + $0x27] sm:$0xff]
      %v5013 = vld [vmem:[%s268 + $0x2f] sm:$0xff]
      %v5014 = vld [vmem:[%s268 + $0x47] sm:$0xff]
      %v5015 = vld [vmem:[%s268 + $0x4f] sm:$0xff]
      %v5016 = vld [vmem:[%s268 + $0x67] sm:$0xff]
      %v5017 = vld [vmem:[%s268 + $0x6f] sm:$0xff]
      %v5018 = vld [vmem:[%s268 + $0x87] sm:$0xff]
      %v5019 = vld [vmem:[%s268 + $0x8f] sm:$0xff]
      %v5020 = vld [vmem:[%s268 + $0xa7] sm:$0xff]
      %v5021 = vld [vmem:[%s268 + $0xaf] sm:$0xff]
      %v5022 = vld [vmem:[%s268 + $0xc7] sm:$0xff]
      %v5023 = vld [vmem:[%s268 + $0xcf] sm:$0xff]
      %v5024 = vld [vmem:[%s268 + $0xe7] sm:$0xff]
      %v5025 = vld [vmem:[%s268 + $0xef] sm:$0xff]
      %v5026 = vld [vmem:[%s268 + $0x107] sm:$0xff]
      %v5027 = vld [vmem:[%s268 + $0x10f] sm:$0xff]
      %v5028 = vld [vmem:[%s268 + $0x127] sm:$0xff]
      %v5029 = vld [vmem:[%s268 + $0x12f] sm:$0xff]
      %v5030 = vld [vmem:[%s268 + $0x147] sm:$0xff]
      %v5031 = vld [vmem:[%s268 + $0x14f] sm:$0xff]
      %v5032 = vld [vmem:[%s268 + $0x167] sm:$0xff]
      %v5033 = vld [vmem:[%s268 + $0x16f] sm:$0xff]
      %v5034 = vld [vmem:[%s268 + $0x187] sm:$0xff]
      %v5035 = vld [vmem:[%s268 + $0x18f] sm:$0xff]
      %v5036 = vld [vmem:[%s268 + $0x1a7] sm:$0xff]
      %v5037 = vld [vmem:[%s268 + $0x1af] sm:$0xff]
      %v5038 = vld [vmem:[%s268 + $0x1c7] sm:$0xff]
      %v5039 = vld [vmem:[%s268 + $0x1cf] sm:$0xff]
      %v5040 = vld [vmem:[%s268 + $0x1e7] sm:$0xff]
      %v5041 = vld [vmem:[%s268 + $0x1ef] sm:$0xff]
      %v5042 = vld [vmem:[%s3 + $0xc] sm:$0xf]
      %v5044 = vsel %vm257, %v5010, 0
      %v5047 = vsel %vm257, %v5011, 0
      %v5050 = vsel %vm257, %v5012, 0
      %v5053 = vsel %vm257, %v5013, 0
      %v5056 = vsel %vm257, %v5014, 0
      %v5059 = vsel %vm257, %v5015, 0
      %v5062 = vsel %vm257, %v5016, 0
      %v5065 = vsel %vm257, %v5017, 0
      %v5068 = vsel %vm257, %v5018, 0
      %v5071 = vsel %vm257, %v5019, 0
      %v5074 = vsel %vm257, %v5020, 0
      %v5077 = vsel %vm257, %v5021, 0
      %v5080 = vsel %vm257, %v5022, 0
      %v5083 = vsel %vm257, %v5023, 0
      %v5086 = vsel %vm257, %v5024, 0
      %v5089 = vsel %vm257, %v5025, 0
      %v5092 = vsel %vm257, %v5026, 0
      %v5095 = vsel %vm257, %v5027, 0
      %v5098 = vsel %vm257, %v5028, 0
      %v5101 = vsel %vm257, %v5029, 0
      %v5104 = vsel %vm257, %v5030, 0
      %v5107 = vsel %vm257, %v5031, 0
      %v5110 = vsel %vm257, %v5032, 0
      %v5113 = vsel %vm257, %v5033, 0
      %v5116 = vsel %vm257, %v5034, 0
      %v5119 = vsel %vm257, %v5035, 0
      %v5122 = vsel %vm257, %v5036, 0
      %v5125 = vsel %vm257, %v5037, 0
      %v5128 = vsel %vm257, %v5038, 0
      %v5131 = vsel %vm257, %v5039, 0
      %v5134 = vsel %vm257, %v5040, 0
      %v5137 = vsel %vm257, %v5041, 0
      %v5140 = vsel %vm527, %v5042, 0
      %5142 = vmatprep.subr.mxu0 0.0
      %5143 = vmatpush1.msra.mxu0 %v5140
      %5144 = vmatprep.subr.mxu0 0.0
      %5145 = vmatpush1.msra.mxu0 0.0
      %5146 = vmatprep.subr.mxu0 0.0
      %5147 = vmatpush1.msra.mxu0 0.0
      %5148 = vmatprep.subr.mxu0 0.0
      %5149 = vmatpush1.msra.mxu0 0.0
      %5150 = vmatprep.subr.mxu0 0.0
      %5151 = vmatpush1.msra.mxu0 0.0
      %5152 = vmatprep.subr.mxu0 0.0
      %5153 = vmatpush1.msra.mxu0 0.0
      %5154 = vmatprep.subr.mxu0 0.0
      %5155 = vmatpush1.msra.mxu0 0.0
      %5156 = vmatprep.subr.mxu0 0.0
      %5157 = vmatpush1.msra.mxu0 0.0
      %5158 = vmatprep.subr.mxu0 0.0
      %5159 = vmatpush1.msra.mxu0 0.0
      %5160 = vmatprep.subr.mxu0 0.0
      %5161 = vmatpush1.msra.mxu0 0.0
      %5162 = vmatprep.subr.mxu0 0.0
      %5163 = vmatpush1.msra.mxu0 0.0
      %5164 = vmatprep.subr.mxu0 0.0
      %5165 = vmatpush1.msra.mxu0 0.0
      %5166 = vmatprep.subr.mxu0 0.0
      %5167 = vmatpush1.msra.mxu0 0.0
      %5168 = vmatprep.subr.mxu0 0.0
      %5169 = vmatpush1.msra.mxu0 0.0
      %5170 = vmatprep.subr.mxu0 0.0
      %5171 = vmatpush1.msra.mxu0 0.0
      %5172 = vmatprep.subr.mxu0 0.0
      %5173 = vmatpush1.msra.mxu0 0.0
      %5174 = vmatprep.subr.mxu0 0.0
      %5175 = vmatpush1.msra.mxu0 0.0
      %5176 = vmatprep.subr.mxu0 0.0
      %5177 = vmatpush1.msra.mxu0 0.0
      %5178 = vmatprep.subr.mxu0 0.0
      %5179 = vmatpush1.msra.mxu0 0.0
      %5180 = vmatprep.subr.mxu0 0.0
      %5181 = vmatpush1.msra.mxu0 0.0
      %5182 = vmatprep.subr.mxu0 0.0
      %5183 = vmatpush1.msra.mxu0 0.0
      %5184 = vmatprep.subr.mxu0 0.0
      %5185 = vmatpush1.msra.mxu0 0.0
      %5186 = vmatprep.subr.mxu0 0.0
      %5187 = vmatpush1.msra.mxu0 0.0
      %5188 = vmatprep.subr.mxu0 0.0
      %5189 = vmatpush1.msra.mxu0 0.0
      %5190 = vmatprep.subr.mxu0 0.0
      %5191 = vmatpush1.msra.mxu0 0.0
      %5192 = vmatprep.subr.mxu0 0.0
      %5193 = vmatpush1.msra.mxu0 0.0
      %5194 = vmatprep.subr.mxu0 0.0
      %5195 = vmatpush1.msra.mxu0 0.0
      %5196 = vmatprep.subr.mxu0 0.0
      %5197 = vmatpush1.msra.mxu0 0.0
      %5198 = vmatprep.subr.mxu0 0.0
      %5199 = vmatpush1.msra.mxu0 0.0
      %5200 = vmatprep.subr.mxu0 0.0
      %5201 = vmatpush1.msra.mxu0 0.0
      %5202 = vmatprep.subr.mxu0 0.0
      %5203 = vmatpush1.msra.mxu0 0.0
      %5204 = vmatprep.subr.mxu0 0.0
      %5205 = vmatpush1.msra.mxu0 0.0
      %5206 = vmatprep.mubr.f32.mxu0 0.0
      %5207 = vmatmul.mubr.f32.gmra.mrb[0].mxu0 %v5044
      %v5208 = vpop.f32.mrb[0].mxu0
      %v5209 = vadd.f32 0.0, %v5208
      %v5210 = vpop.f32.mrb[0].mxu0
      %5211 = vmatprep.mubr.f32.mxu0 0.0
      %5212 = vmatmul.mubr.f32.gmra.mrb[0].mxu0 %v5047
      %v5213 = vpop.f32.mrb[0].mxu0
      %v5214 = vadd.f32 0.0, %v5213
      %v5215 = vpop.f32.mrb[0].mxu0
      %5216 = vmatprep.mubr.f32.mxu0 0.0
      %5217 = vmatmul.mubr.f32.gmra.mrb[0].mxu0 %v5050
      %v5218 = vpop.f32.mrb[0].mxu0
      %v5219 = vadd.f32 0.0, %v5218
      %v5220 = vpop.f32.mrb[0].mxu0
      %5221 = vmatprep.mubr.f32.mxu0 0.0
      %5222 = vmatmul.mubr.f32.gmra.mrb[0].mxu0 %v5053
      %v5223 = vpop.f32.mrb[0].mxu0
      %v5224 = vadd.f32 0.0, %v5223
      %v5225 = vpop.f32.mrb[0].mxu0
      %5226 = vmatprep.mubr.f32.mxu0 0.0
      %5227 = vmatmul.mubr.f32.gmra.mrb[0].mxu0 %v5056
      %v5228 = vpop.f32.mrb[0].mxu0
      %v5229 = vadd.f32 0.0, %v5228
      %v5230 = vpop.f32.mrb[0].mxu0
      %5231 = vmatprep.mubr.f32.mxu0 0.0
      %5232 = vmatmul.mubr.f32.gmra.mrb[0].mxu0 %v5059
      %v5233 = vpop.f32.mrb[0].mxu0
      %v5234 = vadd.f32 0.0, %v5233
      %v5235 = vpop.f32.mrb[0].mxu0
      %5236 = vmatprep.mubr.f32.mxu0 0.0
      %5237 = vmatmul.mubr.f32.gmra.mrb[0].mxu0 %v5062
      %v5238 = vpop.f32.mrb[0].mxu0
      %v5239 = vadd.f32 0.0, %v5238
      %v5240 = vpop.f32.mrb[0].mxu0
      %5241 = vmatprep.mubr.f32.mxu0 0.0
      %5242 = vmatmul.mubr.f32.gmra.mrb[0].mxu0 %v5065
      %v5243 = vpop.f32.mrb[0].mxu0
      %v5244 = vadd.f32 0.0, %v5243
      %v5245 = vpop.f32.mrb[0].mxu0
      %5246 = vmatprep.mubr.f32.mxu0 0.0
      %5247 = vmatmul.mubr.f32.gmra.mrb[0].mxu0 %v5068
      %v5248 = vpop.f32.mrb[0].mxu0
      %v5249 = vadd.f32 0.0, %v5248
      %v5250 = vpop.f32.mrb[0].mxu0
      %5251 = vmatprep.mubr.f32.mxu0 0.0
      %5252 = vmatmul.mubr.f32.gmra.mrb[0].mxu0 %v5071
      %v5253 = vpop.f32.mrb[0].mxu0
      %v5254 = vadd.f32 0.0, %v5253
      %v5255 = vpop.f32.mrb[0].mxu0
      %5256 = vmatprep.mubr.f32.mxu0 0.0
      %5257 = vmatmul.mubr.f32.gmra.mrb[0].mxu0 %v5074
      %v5258 = vpop.f32.mrb[0].mxu0
      %v5259 = vadd.f32 0.0, %v5258
      %v5260 = vpop.f32.mrb[0].mxu0
      %5261 = vmatprep.mubr.f32.mxu0 0.0
      %5262 = vmatmul.mubr.f32.gmra.mrb[0].mxu0 %v5077
      %v5263 = vpop.f32.mrb[0].mxu0
      %v5264 = vadd.f32 0.0, %v5263
      %v5265 = vpop.f32.mrb[0].mxu0
      %5266 = vmatprep.mubr.f32.mxu0 0.0
      %5267 = vmatmul.mubr.f32.gmra.mrb[0].mxu0 %v5080
      %v5268 = vpop.f32.mrb[0].mxu0
      %v5269 = vadd.f32 0.0, %v5268
      %v5270 = vpop.f32.mrb[0].mxu0
      %5271 = vmatprep.mubr.f32.mxu0 0.0
      %5272 = vmatmul.mubr.f32.gmra.mrb[0].mxu0 %v5083
      %v5273 = vpop.f32.mrb[0].mxu0
      %v5274 = vadd.f32 0.0, %v5273
      %v5275 = vpop.f32.mrb[0].mxu0
      %5276 = vmatprep.mubr.f32.mxu0 0.0
      %5277 = vmatmul.mubr.f32.gmra.mrb[0].mxu0 %v5086
      %v5278 = vpop.f32.mrb[0].mxu0
      %v5279 = vadd.f32 0.0, %v5278
      %v5280 = vpop.f32.mrb[0].mxu0
      %5281 = vmatprep.mubr.f32.mxu0 0.0
      %5282 = vmatmul.mubr.f32.gmra.mrb[0].mxu0 %v5089
      %v5283 = vpop.f32.mrb[0].mxu0
      %v5284 = vadd.f32 0.0, %v5283
      %v5285 = vpop.f32.mrb[0].mxu0
      %5286 = vmatprep.mubr.f32.mxu0 0.0
      %5287 = vmatmul.mubr.f32.gmra.mrb[0].mxu0 %v5092
      %v5288 = vpop.f32.mrb[0].mxu0
      %v5289 = vadd.f32 0.0, %v5288
      %v5290 = vpop.f32.mrb[0].mxu0
      %5291 = vmatprep.mubr.f32.mxu0 0.0
      %5292 = vmatmul.mubr.f32.gmra.mrb[0].mxu0 %v5095
      %v5293 = vpop.f32.mrb[0].mxu0
      %v5294 = vadd.f32 0.0, %v5293
      %v5295 = vpop.f32.mrb[0].mxu0
      %5296 = vmatprep.mubr.f32.mxu0 0.0
      %5297 = vmatmul.mubr.f32.gmra.mrb[0].mxu0 %v5098
      %v5298 = vpop.f32.mrb[0].mxu0
      %v5299 = vadd.f32 0.0, %v5298
      %v5300 = vpop.f32.mrb[0].mxu0
      %5301 = vmatprep.mubr.f32.mxu0 0.0
      %5302 = vmatmul.mubr.f32.gmra.mrb[0].mxu0 %v5101
      %v5303 = vpop.f32.mrb[0].mxu0
      %v5304 = vadd.f32 0.0, %v5303
      %v5305 = vpop.f32.mrb[0].mxu0
      %5306 = vmatprep.mubr.f32.mxu0 0.0
      %5307 = vmatmul.mubr.f32.gmra.mrb[0].mxu0 %v5104
      %v5308 = vpop.f32.mrb[0].mxu0
      %v5309 = vadd.f32 0.0, %v5308
      %v5310 = vpop.f32.mrb[0].mxu0
      %5311 = vmatprep.mubr.f32.mxu0 0.0
      %5312 = vmatmul.mubr.f32.gmra.mrb[0].mxu0 %v5107
      %v5313 = vpop.f32.mrb[0].mxu0
      %v5314 = vadd.f32 0.0, %v5313
      %v5315 = vpop.f32.mrb[0].mxu0
      %5316 = vmatprep.mubr.f32.mxu0 0.0
      %5317 = vmatmul.mubr.f32.gmra.mrb[0].mxu0 %v5110
      %v5318 = vpop.f32.mrb[0].mxu0
      %v5319 = vadd.f32 0.0, %v5318
      %v5320 = vpop.f32.mrb[0].mxu0
      %5321 = vmatprep.mubr.f32.mxu0 0.0
      %5322 = vmatmul.mubr.f32.gmra.mrb[0].mxu0 %v5113
      %v5323 = vpop.f32.mrb[0].mxu0
      %v5324 = vadd.f32 0.0, %v5323
      %v5325 = vpop.f32.mrb[0].mxu0
      %5326 = vmatprep.mubr.f32.mxu0 0.0
      %5327 = vmatmul.mubr.f32.gmra.mrb[0].mxu0 %v5116
      %v5328 = vpop.f32.mrb[0].mxu0
      %v5329 = vadd.f32 0.0, %v5328
      %v5330 = vpop.f32.mrb[0].mxu0
      %5331 = vmatprep.mubr.f32.mxu0 0.0
      %5332 = vmatmul.mubr.f32.gmra.mrb[0].mxu0 %v5119
      %v5333 = vpop.f32.mrb[0].mxu0
      %v5334 = vadd.f32 0.0, %v5333
      %v5335 = vpop.f32.mrb[0].mxu0
      %5336 = vmatprep.mubr.f32.mxu0 0.0
      %5337 = vmatmul.mubr.f32.gmra.mrb[0].mxu0 %v5122
      %v5338 = vpop.f32.mrb[0].mxu0
      %v5339 = vadd.f32 0.0, %v5338
      %v5340 = vpop.f32.mrb[0].mxu0
      %5341 = vmatprep.mubr.f32.mxu0 0.0
      %5342 = vmatmul.mubr.f32.gmra.mrb[0].mxu0 %v5125
      %v5343 = vpop.f32.mrb[0].mxu0
      %v5344 = vadd.f32 0.0, %v5343
      %v5345 = vpop.f32.mrb[0].mxu0
      %5346 = vmatprep.mubr.f32.mxu0 0.0
      %5347 = vmatmul.mubr.f32.gmra.mrb[0].mxu0 %v5128
      %v5348 = vpop.f32.mrb[0].mxu0
      %v5349 = vadd.f32 0.0, %v5348
      %v5350 = vpop.f32.mrb[0].mxu0
      %5351 = vmatprep.mubr.f32.mxu0 0.0
      %5352 = vmatmul.mubr.f32.gmra.mrb[0].mxu0 %v5131
      %v5353 = vpop.f32.mrb[0].mxu0
      %v5354 = vadd.f32 0.0, %v5353
      %v5355 = vpop.f32.mrb[0].mxu0
      %5356 = vmatprep.mubr.f32.mxu0 0.0
      %5357 = vmatmul.mubr.f32.gmra.mrb[0].mxu0 %v5134
      %v5358 = vpop.f32.mrb[0].mxu0
      %v5359 = vadd.f32 0.0, %v5358
      %v5360 = vpop.f32.mrb[0].mxu0
      %5361 = vmatprep.mubr.f32.mxu0 0.0
      %5362 = vmatmul.mubr.f32.gmra.mrb[0].mxu0 %v5137
      %v5363 = vpop.f32.mrb[0].mxu0
      %v5364 = vadd.f32 0.0, %v5363
      %v5365 = vpop.f32.mrb[0].mxu0
      %5366 = vdwg.mxu0
      %v5367 = vadd.f32 %v4978, %v5209
      %v5368 = vadd.f32 %v4979, %v5214
      %v5369 = vadd.f32 %v4980, %v5219
      %v5370 = vadd.f32 %v4981, %v5224
      %v5371 = vadd.f32 %v4982, %v5229
      %v5372 = vadd.f32 %v4983, %v5234
      %v5373 = vadd.f32 %v4984, %v5239
      %v5374 = vadd.f32 %v4985, %v5244
      %v5375 = vadd.f32 %v4986, %v5249
      %v5376 = vadd.f32 %v4987, %v5254
      %v5377 = vadd.f32 %v4988, %v5259
      %v5378 = vadd.f32 %v4989, %v5264
      %v5379 = vadd.f32 %v4990, %v5269
      %v5380 = vadd.f32 %v4991, %v5274
      %v5381 = vadd.f32 %v4992, %v5279
      %v5382 = vadd.f32 %v4993, %v5284
      %v5383 = vadd.f32 %v4994, %v5289
      %v5384 = vadd.f32 %v4995, %v5294
      %v5385 = vadd.f32 %v4996, %v5299
      %v5386 = vadd.f32 %v4997, %v5304
      %v5387 = vadd.f32 %v4998, %v5309
      %v5388 = vadd.f32 %v4999, %v5314
      %v5389 = vadd.f32 %v5000, %v5319
      %v5390 = vadd.f32 %v5001, %v5324
      %v5391 = vadd.f32 %v5002, %v5329
      %v5392 = vadd.f32 %v5003, %v5334
      %v5393 = vadd.f32 %v5004, %v5339
      %v5394 = vadd.f32 %v5005, %v5344
      %v5395 = vadd.f32 %v5006, %v5349
      %v5396 = vadd.f32 %v5007, %v5354
      %v5397 = vadd.f32 %v5008, %v5359
      %v5398 = vadd.f32 %v5009, %v5364
      %v5399 = vld [vmem:[%s268 + $0x8] sm:$0xff]
      %v5400 = vld [vmem:[%s268 + $0x10] sm:$0xff]
      %v5401 = vld [vmem:[%s268 + $0x28] sm:$0xff]
      %v5402 = vld [vmem:[%s268 + $0x30] sm:$0xff]
      %v5403 = vld [vmem:[%s268 + $0x48] sm:$0xff]
      %v5404 = vld [vmem:[%s268 + $0x50] sm:$0xff]
      %v5405 = vld [vmem:[%s268 + $0x68] sm:$0xff]
      %v5406 = vld [vmem:[%s268 + $0x70] sm:$0xff]
      %v5407 = vld [vmem:[%s268 + $0x88] sm:$0xff]
      %v5408 = vld [vmem:[%s268 + $0x90] sm:$0xff]
      %v5409 = vld [vmem:[%s268 + $0xa8] sm:$0xff]
      %v5410 = vld [vmem:[%s268 + $0xb0] sm:$0xff]
      %v5411 = vld [vmem:[%s268 + $0xc8] sm:$0xff]
      %v5412 = vld [vmem:[%s268 + $0xd0] sm:$0xff]
      %v5413 = vld [vmem:[%s268 + $0xe8] sm:$0xff]
      %v5414 = vld [vmem:[%s268 + $0xf0] sm:$0xff]
      %v5415 = vld [vmem:[%s268 + $0x108] sm:$0xff]
      %v5416 = vld [vmem:[%s268 + $0x110] sm:$0xff]
      %v5417 = vld [vmem:[%s268 + $0x128] sm:$0xff]
      %v5418 = vld [vmem:[%s268 + $0x130] sm:$0xff]
      %v5419 = vld [vmem:[%s268 + $0x148] sm:$0xff]
      %v5420 = vld [vmem:[%s268 + $0x150] sm:$0xff]
      %v5421 = vld [vmem:[%s268 + $0x168] sm:$0xff]
      %v5422 = vld [vmem:[%s268 + $0x170] sm:$0xff]
      %v5423 = vld [vmem:[%s268 + $0x188] sm:$0xff]
      %v5424 = vld [vmem:[%s268 + $0x190] sm:$0xff]
      %v5425 = vld [vmem:[%s268 + $0x1a8] sm:$0xff]
      %v5426 = vld [vmem:[%s268 + $0x1b0] sm:$0xff]
      %v5427 = vld [vmem:[%s268 + $0x1c8] sm:$0xff]
      %v5428 = vld [vmem:[%s268 + $0x1d0] sm:$0xff]
      %v5429 = vld [vmem:[%s268 + $0x1e8] sm:$0xff]
      %v5430 = vld [vmem:[%s268 + $0x1f0] sm:$0xff]
      %v5431 = vld [vmem:[%s3 + $0x10] sm:$0xf]
      %v5433 = vsel %vm257, %v5399, 0
      %v5436 = vsel %vm257, %v5400, 0
      %v5439 = vsel %vm257, %v5401, 0
      %v5442 = vsel %vm257, %v5402, 0
      %v5445 = vsel %vm257, %v5403, 0
      %v5448 = vsel %vm257, %v5404, 0
      %v5451 = vsel %vm257, %v5405, 0
      %v5454 = vsel %vm257, %v5406, 0
      %v5457 = vsel %vm257, %v5407, 0
      %v5460 = vsel %vm257, %v5408, 0
      %v5463 = vsel %vm257, %v5409, 0
      %v5466 = vsel %vm257, %v5410, 0
      %v5469 = vsel %vm257, %v5411, 0
      %v5472 = vsel %vm257, %v5412, 0
      %v5475 = vsel %vm257, %v5413, 0
      %v5478 = vsel %vm257, %v5414, 0
      %v5481 = vsel %vm257, %v5415, 0
      %v5484 = vsel %vm257, %v5416, 0
      %v5487 = vsel %vm257, %v5417, 0
      %v5490 = vsel %vm257, %v5418, 0
      %v5493 = vsel %vm257, %v5419, 0
      %v5496 = vsel %vm257, %v5420, 0
      %v5499 = vsel %vm257, %v5421, 0
      %v5502 = vsel %vm257, %v5422, 0
      %v5505 = vsel %vm257, %v5423, 0
      %v5508 = vsel %vm257, %v5424, 0
      %v5511 = vsel %vm257, %v5425, 0
      %v5514 = vsel %vm257, %v5426, 0
      %v5517 = vsel %vm257, %v5427, 0
      %v5520 = vsel %vm257, %v5428, 0
      %v5523 = vsel %vm257, %v5429, 0
      %v5526 = vsel %vm257, %v5430, 0
      %v5529 = vsel %vm527, %v5431, 0
      %5531 = vmatprep.subr.mxu0 0.0
      %5532 = vmatpush1.msra.mxu0 %v5529
      %5533 = vmatprep.subr.mxu0 0.0
      %5534 = vmatpush1.msra.mxu0 0.0
      %5535 = vmatprep.subr.mxu0 0.0
      %5536 = vmatpush1.msra.mxu0 0.0
      %5537 = vmatprep.subr.mxu0 0.0
      %5538 = vmatpush1.msra.mxu0 0.0
      %5539 = vmatprep.subr.mxu0 0.0
      %5540 = vmatpush1.msra.mxu0 0.0
      %5541 = vmatprep.subr.mxu0 0.0
      %5542 = vmatpush1.msra.mxu0 0.0
      %5543 = vmatprep.subr.mxu0 0.0
      %5544 = vmatpush1.msra.mxu0 0.0
      %5545 = vmatprep.subr.mxu0 0.0
      %5546 = vmatpush1.msra.mxu0 0.0
      %5547 = vmatprep.subr.mxu0 0.0
      %5548 = vmatpush1.msra.mxu0 0.0
      %5549 = vmatprep.subr.mxu0 0.0
      %5550 = vmatpush1.msra.mxu0 0.0
      %5551 = vmatprep.subr.mxu0 0.0
      %5552 = vmatpush1.msra.mxu0 0.0
      %5553 = vmatprep.subr.mxu0 0.0
      %5554 = vmatpush1.msra.mxu0 0.0
      %5555 = vmatprep.subr.mxu0 0.0
      %5556 = vmatpush1.msra.mxu0 0.0
      %5557 = vmatprep.subr.mxu0 0.0
      %5558 = vmatpush1.msra.mxu0 0.0
      %5559 = vmatprep.subr.mxu0 0.0
      %5560 = vmatpush1.msra.mxu0 0.0
      %5561 = vmatprep.subr.mxu0 0.0
      %5562 = vmatpush1.msra.mxu0 0.0
      %5563 = vmatprep.subr.mxu0 0.0
      %5564 = vmatpush1.msra.mxu0 0.0
      %5565 = vmatprep.subr.mxu0 0.0
      %5566 = vmatpush1.msra.mxu0 0.0
      %5567 = vmatprep.subr.mxu0 0.0
      %5568 = vmatpush1.msra.mxu0 0.0
      %5569 = vmatprep.subr.mxu0 0.0
      %5570 = vmatpush1.msra.mxu0 0.0
      %5571 = vmatprep.subr.mxu0 0.0
      %5572 = vmatpush1.msra.mxu0 0.0
      %5573 = vmatprep.subr.mxu0 0.0
      %5574 = vmatpush1.msra.mxu0 0.0
      %5575 = vmatprep.subr.mxu0 0.0
      %5576 = vmatpush1.msra.mxu0 0.0
      %5577 = vmatprep.subr.mxu0 0.0
      %5578 = vmatpush1.msra.mxu0 0.0
      %5579 = vmatprep.subr.mxu0 0.0
      %5580 = vmatpush1.msra.mxu0 0.0
      %5581 = vmatprep.subr.mxu0 0.0
      %5582 = vmatpush1.msra.mxu0 0.0
      %5583 = vmatprep.subr.mxu0 0.0
      %5584 = vmatpush1.msra.mxu0 0.0
      %5585 = vmatprep.subr.mxu0 0.0
      %5586 = vmatpush1.msra.mxu0 0.0
      %5587 = vmatprep.subr.mxu0 0.0
      %5588 = vmatpush1.msra.mxu0 0.0
      %5589 = vmatprep.subr.mxu0 0.0
      %5590 = vmatpush1.msra.mxu0 0.0
      %5591 = vmatprep.subr.mxu0 0.0
      %5592 = vmatpush1.msra.mxu0 0.0
      %5593 = vmatprep.subr.mxu0 0.0
      %5594 = vmatpush1.msra.mxu0 0.0
      %5595 = vmatprep.mubr.f32.mxu0 0.0
      %5596 = vmatmul.mubr.f32.gmra.mrb[0].mxu0 %v5433
      %v5597 = vpop.f32.mrb[0].mxu0
      %v5598 = vadd.f32 0.0, %v5597
      %v5599 = vpop.f32.mrb[0].mxu0
      %5600 = vmatprep.mubr.f32.mxu0 0.0
      %5601 = vmatmul.mubr.f32.gmra.mrb[0].mxu0 %v5436
      %v5602 = vpop.f32.mrb[0].mxu0
      %v5603 = vadd.f32 0.0, %v5602
      %v5604 = vpop.f32.mrb[0].mxu0
      %5605 = vmatprep.mubr.f32.mxu0 0.0
      %5606 = vmatmul.mubr.f32.gmra.mrb[0].mxu0 %v5439
      %v5607 = vpop.f32.mrb[0].mxu0
      %v5608 = vadd.f32 0.0, %v5607
      %v5609 = vpop.f32.mrb[0].mxu0
      %5610 = vmatprep.mubr.f32.mxu0 0.0
      %5611 = vmatmul.mubr.f32.gmra.mrb[0].mxu0 %v5442
      %v5612 = vpop.f32.mrb[0].mxu0
      %v5613 = vadd.f32 0.0, %v5612
      %v5614 = vpop.f32.mrb[0].mxu0
      %5615 = vmatprep.mubr.f32.mxu0 0.0
      %5616 = vmatmul.mubr.f32.gmra.mrb[0].mxu0 %v5445
      %v5617 = vpop.f32.mrb[0].mxu0
      %v5618 = vadd.f32 0.0, %v5617
      %v5619 = vpop.f32.mrb[0].mxu0
      %5620 = vmatprep.mubr.f32.mxu0 0.0
      %5621 = vmatmul.mubr.f32.gmra.mrb[0].mxu0 %v5448
      %v5622 = vpop.f32.mrb[0].mxu0
      %v5623 = vadd.f32 0.0, %v5622
      %v5624 = vpop.f32.mrb[0].mxu0
      %5625 = vmatprep.mubr.f32.mxu0 0.0
      %5626 = vmatmul.mubr.f32.gmra.mrb[0].mxu0 %v5451
      %v5627 = vpop.f32.mrb[0].mxu0
      %v5628 = vadd.f32 0.0, %v5627
      %v5629 = vpop.f32.mrb[0].mxu0
      %5630 = vmatprep.mubr.f32.mxu0 0.0
      %5631 = vmatmul.mubr.f32.gmra.mrb[0].mxu0 %v5454
      %v5632 = vpop.f32.mrb[0].mxu0
      %v5633 = vadd.f32 0.0, %v5632
      %v5634 = vpop.f32.mrb[0].mxu0
      %5635 = vmatprep.mubr.f32.mxu0 0.0
      %5636 = vmatmul.mubr.f32.gmra.mrb[0].mxu0 %v5457
      %v5637 = vpop.f32.mrb[0].mxu0
      %v5638 = vadd.f32 0.0, %v5637
      %v5639 = vpop.f32.mrb[0].mxu0
      %5640 = vmatprep.mubr.f32.mxu0 0.0
      %5641 = vmatmul.mubr.f32.gmra.mrb[0].mxu0 %v5460
      %v5642 = vpop.f32.mrb[0].mxu0
      %v5643 = vadd.f32 0.0, %v5642
      %v5644 = vpop.f32.mrb[0].mxu0
      %5645 = vmatprep.mubr.f32.mxu0 0.0
      %5646 = vmatmul.mubr.f32.gmra.mrb[0].mxu0 %v5463
      %v5647 = vpop.f32.mrb[0].mxu0
      %v5648 = vadd.f32 0.0, %v5647
      %v5649 = vpop.f32.mrb[0].mxu0
      %5650 = vmatprep.mubr.f32.mxu0 0.0
      %5651 = vmatmul.mubr.f32.gmra.mrb[0].mxu0 %v5466
      %v5652 = vpop.f32.mrb[0].mxu0
      %v5653 = vadd.f32 0.0, %v5652
      %v5654 = vpop.f32.mrb[0].mxu0
      %5655 = vmatprep.mubr.f32.mxu0 0.0
      %5656 = vmatmul.mubr.f32.gmra.mrb[0].mxu0 %v5469
      %v5657 = vpop.f32.mrb[0].mxu0
      %v5658 = vadd.f32 0.0, %v5657
      %v5659 = vpop.f32.mrb[0].mxu0
      %5660 = vmatprep.mubr.f32.mxu0 0.0
      %5661 = vmatmul.mubr.f32.gmra.mrb[0].mxu0 %v5472
      %v5662 = vpop.f32.mrb[0].mxu0
      %v5663 = vadd.f32 0.0, %v5662
      %v5664 = vpop.f32.mrb[0].mxu0
      %5665 = vmatprep.mubr.f32.mxu0 0.0
      %5666 = vmatmul.mubr.f32.gmra.mrb[0].mxu0 %v5475
      %v5667 = vpop.f32.mrb[0].mxu0
      %v5668 = vadd.f32 0.0, %v5667
      %v5669 = vpop.f32.mrb[0].mxu0
      %5670 = vmatprep.mubr.f32.mxu0 0.0
      %5671 = vmatmul.mubr.f32.gmra.mrb[0].mxu0 %v5478
      %v5672 = vpop.f32.mrb[0].mxu0
      %v5673 = vadd.f32 0.0, %v5672
      %v5674 = vpop.f32.mrb[0].mxu0
      %5675 = vmatprep.mubr.f32.mxu0 0.0
      %5676 = vmatmul.mubr.f32.gmra.mrb[0].mxu0 %v5481
      %v5677 = vpop.f32.mrb[0].mxu0
      %v5678 = vadd.f32 0.0, %v5677
      %v5679 = vpop.f32.mrb[0].mxu0
      %5680 = vmatprep.mubr.f32.mxu0 0.0
      %5681 = vmatmul.mubr.f32.gmra.mrb[0].mxu0 %v5484
      %v5682 = vpop.f32.mrb[0].mxu0
      %v5683 = vadd.f32 0.0, %v5682
      %v5684 = vpop.f32.mrb[0].mxu0
      %5685 = vmatprep.mubr.f32.mxu0 0.0
      %5686 = vmatmul.mubr.f32.gmra.mrb[0].mxu0 %v5487
      %v5687 = vpop.f32.mrb[0].mxu0
      %v5688 = vadd.f32 0.0, %v5687
      %v5689 = vpop.f32.mrb[0].mxu0
      %5690 = vmatprep.mubr.f32.mxu0 0.0
      %5691 = vmatmul.mubr.f32.gmra.mrb[0].mxu0 %v5490
      %v5692 = vpop.f32.mrb[0].mxu0
      %v5693 = vadd.f32 0.0, %v5692
      %v5694 = vpop.f32.mrb[0].mxu0
      %5695 = vmatprep.mubr.f32.mxu0 0.0
      %5696 = vmatmul.mubr.f32.gmra.mrb[0].mxu0 %v5493
      %v5697 = vpop.f32.mrb[0].mxu0
      %v5698 = vadd.f32 0.0, %v5697
      %v5699 = vpop.f32.mrb[0].mxu0
      %5700 = vmatprep.mubr.f32.mxu0 0.0
      %5701 = vmatmul.mubr.f32.gmra.mrb[0].mxu0 %v5496
      %v5702 = vpop.f32.mrb[0].mxu0
      %v5703 = vadd.f32 0.0, %v5702
      %v5704 = vpop.f32.mrb[0].mxu0
      %5705 = vmatprep.mubr.f32.mxu0 0.0
      %5706 = vmatmul.mubr.f32.gmra.mrb[0].mxu0 %v5499
      %v5707 = vpop.f32.mrb[0].mxu0
      %v5708 = vadd.f32 0.0, %v5707
      %v5709 = vpop.f32.mrb[0].mxu0
      %5710 = vmatprep.mubr.f32.mxu0 0.0
      %5711 = vmatmul.mubr.f32.gmra.mrb[0].mxu0 %v5502
      %v5712 = vpop.f32.mrb[0].mxu0
      %v5713 = vadd.f32 0.0, %v5712
      %v5714 = vpop.f32.mrb[0].mxu0
      %5715 = vmatprep.mubr.f32.mxu0 0.0
      %5716 = vmatmul.mubr.f32.gmra.mrb[0].mxu0 %v5505
      %v5717 = vpop.f32.mrb[0].mxu0
      %v5718 = vadd.f32 0.0, %v5717
      %v5719 = vpop.f32.mrb[0].mxu0
      %5720 = vmatprep.mubr.f32.mxu0 0.0
      %5721 = vmatmul.mubr.f32.gmra.mrb[0].mxu0 %v5508
      %v5722 = vpop.f32.mrb[0].mxu0
      %v5723 = vadd.f32 0.0, %v5722
      %v5724 = vpop.f32.mrb[0].mxu0
      %5725 = vmatprep.mubr.f32.mxu0 0.0
      %5726 = vmatmul.mubr.f32.gmra.mrb[0].mxu0 %v5511
      %v5727 = vpop.f32.mrb[0].mxu0
      %v5728 = vadd.f32 0.0, %v5727
      %v5729 = vpop.f32.mrb[0].mxu0
      %5730 = vmatprep.mubr.f32.mxu0 0.0
      %5731 = vmatmul.mubr.f32.gmra.mrb[0].mxu0 %v5514
      %v5732 = vpop.f32.mrb[0].mxu0
      %v5733 = vadd.f32 0.0, %v5732
      %v5734 = vpop.f32.mrb[0].mxu0
      %5735 = vmatprep.mubr.f32.mxu0 0.0
      %5736 = vmatmul.mubr.f32.gmra.mrb[0].mxu0 %v5517
      %v5737 = vpop.f32.mrb[0].mxu0
      %v5738 = vadd.f32 0.0, %v5737
      %v5739 = vpop.f32.mrb[0].mxu0
      %5740 = vmatprep.mubr.f32.mxu0 0.0
      %5741 = vmatmul.mubr.f32.gmra.mrb[0].mxu0 %v5520
      %v5742 = vpop.f32.mrb[0].mxu0
      %v5743 = vadd.f32 0.0, %v5742
      %v5744 = vpop.f32.mrb[0].mxu0
      %5745 = vmatprep.mubr.f32.mxu0 0.0
      %5746 = vmatmul.mubr.f32.gmra.mrb[0].mxu0 %v5523
      %v5747 = vpop.f32.mrb[0].mxu0
      %v5748 = vadd.f32 0.0, %v5747
      %v5749 = vpop.f32.mrb[0].mxu0
      %5750 = vmatprep.mubr.f32.mxu0 0.0
      %5751 = vmatmul.mubr.f32.gmra.mrb[0].mxu0 %v5526
      %v5752 = vpop.f32.mrb[0].mxu0
      %v5753 = vadd.f32 0.0, %v5752
      %v5754 = vpop.f32.mrb[0].mxu0
      %5755 = vdwg.mxu0
      %v5756 = vadd.f32 %v5367, %v5598
      %v5757 = vadd.f32 %v5368, %v5603
      %v5758 = vadd.f32 %v5369, %v5608
      %v5759 = vadd.f32 %v5370, %v5613
      %v5760 = vadd.f32 %v5371, %v5618
      %v5761 = vadd.f32 %v5372, %v5623
      %v5762 = vadd.f32 %v5373, %v5628
      %v5763 = vadd.f32 %v5374, %v5633
      %v5764 = vadd.f32 %v5375, %v5638
      %v5765 = vadd.f32 %v5376, %v5643
      %v5766 = vadd.f32 %v5377, %v5648
      %v5767 = vadd.f32 %v5378, %v5653
      %v5768 = vadd.f32 %v5379, %v5658
      %v5769 = vadd.f32 %v5380, %v5663
      %v5770 = vadd.f32 %v5381, %v5668
      %v5771 = vadd.f32 %v5382, %v5673
      %v5772 = vadd.f32 %v5383, %v5678
      %v5773 = vadd.f32 %v5384, %v5683
      %v5774 = vadd.f32 %v5385, %v5688
      %v5775 = vadd.f32 %v5386, %v5693
      %v5776 = vadd.f32 %v5387, %v5698
      %v5777 = vadd.f32 %v5388, %v5703
      %v5778 = vadd.f32 %v5389, %v5708
      %v5779 = vadd.f32 %v5390, %v5713
      %v5780 = vadd.f32 %v5391, %v5718
      %v5781 = vadd.f32 %v5392, %v5723
      %v5782 = vadd.f32 %v5393, %v5728
      %v5783 = vadd.f32 %v5394, %v5733
      %v5784 = vadd.f32 %v5395, %v5738
      %v5785 = vadd.f32 %v5396, %v5743
      %v5786 = vadd.f32 %v5397, %v5748
      %v5787 = vadd.f32 %v5398, %v5753
      %v5788 = vld [vmem:[%s268 + $0x9] sm:$0xff]
      %v5789 = vld [vmem:[%s268 + $0x11] sm:$0xff]
      %v5790 = vld [vmem:[%s268 + $0x29] sm:$0xff]
      %v5791 = vld [vmem:[%s268 + $0x31] sm:$0xff]
      %v5792 = vld [vmem:[%s268 + $0x49] sm:$0xff]
      %v5793 = vld [vmem:[%s268 + $0x51] sm:$0xff]
      %v5794 = vld [vmem:[%s268 + $0x69] sm:$0xff]
      %v5795 = vld [vmem:[%s268 + $0x71] sm:$0xff]
      %v5796 = vld [vmem:[%s268 + $0x89] sm:$0xff]
      %v5797 = vld [vmem:[%s268 + $0x91] sm:$0xff]
      %v5798 = vld [vmem:[%s268 + $0xa9] sm:$0xff]
      %v5799 = vld [vmem:[%s268 + $0xb1] sm:$0xff]
      %v5800 = vld [vmem:[%s268 + $0xc9] sm:$0xff]
      %v5801 = vld [vmem:[%s268 + $0xd1] sm:$0xff]
      %v5802 = vld [vmem:[%s268 + $0xe9] sm:$0xff]
      %v5803 = vld [vmem:[%s268 + $0xf1] sm:$0xff]
      %v5804 = vld [vmem:[%s268 + $0x109] sm:$0xff]
      %v5805 = vld [vmem:[%s268 + $0x111] sm:$0xff]
      %v5806 = vld [vmem:[%s268 + $0x129] sm:$0xff]
      %v5807 = vld [vmem:[%s268 + $0x131] sm:$0xff]
      %v5808 = vld [vmem:[%s268 + $0x149] sm:$0xff]
      %v5809 = vld [vmem:[%s268 + $0x151] sm:$0xff]
      %v5810 = vld [vmem:[%s268 + $0x169] sm:$0xff]
      %v5811 = vld [vmem:[%s268 + $0x171] sm:$0xff]
      %v5812 = vld [vmem:[%s268 + $0x189] sm:$0xff]
      %v5813 = vld [vmem:[%s268 + $0x191] sm:$0xff]
      %v5814 = vld [vmem:[%s268 + $0x1a9] sm:$0xff]
      %v5815 = vld [vmem:[%s268 + $0x1b1] sm:$0xff]
      %v5816 = vld [vmem:[%s268 + $0x1c9] sm:$0xff]
      %v5817 = vld [vmem:[%s268 + $0x1d1] sm:$0xff]
      %v5818 = vld [vmem:[%s268 + $0x1e9] sm:$0xff]
      %v5819 = vld [vmem:[%s268 + $0x1f1] sm:$0xff]
      %v5820 = vld [vmem:[%s3 + $0x14] sm:$0xf]
      %v5822 = vsel %vm257, %v5788, 0
      %v5825 = vsel %vm257, %v5789, 0
      %v5828 = vsel %vm257, %v5790, 0
      %v5831 = vsel %vm257, %v5791, 0
      %v5834 = vsel %vm257, %v5792, 0
      %v5837 = vsel %vm257, %v5793, 0
      %v5840 = vsel %vm257, %v5794, 0
      %v5843 = vsel %vm257, %v5795, 0
      %v5846 = vsel %vm257, %v5796, 0
      %v5849 = vsel %vm257, %v5797, 0
      %v5852 = vsel %vm257, %v5798, 0
      %v5855 = vsel %vm257, %v5799, 0
      %v5858 = vsel %vm257, %v5800, 0
      %v5861 = vsel %vm257, %v5801, 0
      %v5864 = vsel %vm257, %v5802, 0
      %v5867 = vsel %vm257, %v5803, 0
      %v5870 = vsel %vm257, %v5804, 0
      %v5873 = vsel %vm257, %v5805, 0
      %v5876 = vsel %vm257, %v5806, 0
      %v5879 = vsel %vm257, %v5807, 0
      %v5882 = vsel %vm257, %v5808, 0
      %v5885 = vsel %vm257, %v5809, 0
      %v5888 = vsel %vm257, %v5810, 0
      %v5891 = vsel %vm257, %v5811, 0
      %v5894 = vsel %vm257, %v5812, 0
      %v5897 = vsel %vm257, %v5813, 0
      %v5900 = vsel %vm257, %v5814, 0
      %v5903 = vsel %vm257, %v5815, 0
      %v5906 = vsel %vm257, %v5816, 0
      %v5909 = vsel %vm257, %v5817, 0
      %v5912 = vsel %vm257, %v5818, 0
      %v5915 = vsel %vm257, %v5819, 0
      %v5918 = vsel %vm527, %v5820, 0
      %5920 = vmatprep.subr.mxu0 0.0
      %5921 = vmatpush1.msra.mxu0 %v5918
      %5922 = vmatprep.subr.mxu0 0.0
      %5923 = vmatpush1.msra.mxu0 0.0
      %5924 = vmatprep.subr.mxu0 0.0
      %5925 = vmatpush1.msra.mxu0 0.0
      %5926 = vmatprep.subr.mxu0 0.0
      %5927 = vmatpush1.msra.mxu0 0.0
      %5928 = vmatprep.subr.mxu0 0.0
      %5929 = vmatpush1.msra.mxu0 0.0
      %5930 = vmatprep.subr.mxu0 0.0
      %5931 = vmatpush1.msra.mxu0 0.0
      %5932 = vmatprep.subr.mxu0 0.0
      %5933 = vmatpush1.msra.mxu0 0.0
      %5934 = vmatprep.subr.mxu0 0.0
      %5935 = vmatpush1.msra.mxu0 0.0
      %5936 = vmatprep.subr.mxu0 0.0
      %5937 = vmatpush1.msra.mxu0 0.0
      %5938 = vmatprep.subr.mxu0 0.0
      %5939 = vmatpush1.msra.mxu0 0.0
      %5940 = vmatprep.subr.mxu0 0.0
      %5941 = vmatpush1.msra.mxu0 0.0
      %5942 = vmatprep.subr.mxu0 0.0
      %5943 = vmatpush1.msra.mxu0 0.0
      %5944 = vmatprep.subr.mxu0 0.0
      %5945 = vmatpush1.msra.mxu0 0.0
      %5946 = vmatprep.subr.mxu0 0.0
      %5947 = vmatpush1.msra.mxu0 0.0
      %5948 = vmatprep.subr.mxu0 0.0
      %5949 = vmatpush1.msra.mxu0 0.0
      %5950 = vmatprep.subr.mxu0 0.0
      %5951 = vmatpush1.msra.mxu0 0.0
      %5952 = vmatprep.subr.mxu0 0.0
      %5953 = vmatpush1.msra.mxu0 0.0
      %5954 = vmatprep.subr.mxu0 0.0
      %5955 = vmatpush1.msra.mxu0 0.0
      %5956 = vmatprep.subr.mxu0 0.0
      %5957 = vmatpush1.msra.mxu0 0.0
      %5958 = vmatprep.subr.mxu0 0.0
      %5959 = vmatpush1.msra.mxu0 0.0
      %5960 = vmatprep.subr.mxu0 0.0
      %5961 = vmatpush1.msra.mxu0 0.0
      %5962 = vmatprep.subr.mxu0 0.0
      %5963 = vmatpush1.msra.mxu0 0.0
      %5964 = vmatprep.subr.mxu0 0.0
      %5965 = vmatpush1.msra.mxu0 0.0
      %5966 = vmatprep.subr.mxu0 0.0
      %5967 = vmatpush1.msra.mxu0 0.0
      %5968 = vmatprep.subr.mxu0 0.0
      %5969 = vmatpush1.msra.mxu0 0.0
      %5970 = vmatprep.subr.mxu0 0.0
      %5971 = vmatpush1.msra.mxu0 0.0
      %5972 = vmatprep.subr.mxu0 0.0
      %5973 = vmatpush1.msra.mxu0 0.0
      %5974 = vmatprep.subr.mxu0 0.0
      %5975 = vmatpush1.msra.mxu0 0.0
      %5976 = vmatprep.subr.mxu0 0.0
      %5977 = vmatpush1.msra.mxu0 0.0
      %5978 = vmatprep.subr.mxu0 0.0
      %5979 = vmatpush1.msra.mxu0 0.0
      %5980 = vmatprep.subr.mxu0 0.0
      %5981 = vmatpush1.msra.mxu0 0.0
      %5982 = vmatprep.subr.mxu0 0.0
      %5983 = vmatpush1.msra.mxu0 0.0
      %5984 = vmatprep.mubr.f32.mxu0 0.0
      %5985 = vmatmul.mubr.f32.gmra.mrb[0].mxu0 %v5822
      %v5986 = vpop.f32.mrb[0].mxu0
      %v5987 = vadd.f32 0.0, %v5986
      %v5988 = vpop.f32.mrb[0].mxu0
      %5989 = vmatprep.mubr.f32.mxu0 0.0
      %5990 = vmatmul.mubr.f32.gmra.mrb[0].mxu0 %v5825
      %v5991 = vpop.f32.mrb[0].mxu0
      %v5992 = vadd.f32 0.0, %v5991
      %v5993 = vpop.f32.mrb[0].mxu0
      %5994 = vmatprep.mubr.f32.mxu0 0.0
      %5995 = vmatmul.mubr.f32.gmra.mrb[0].mxu0 %v5828
      %v5996 = vpop.f32.mrb[0].mxu0
      %v5997 = vadd.f32 0.0, %v5996
      %v5998 = vpop.f32.mrb[0].mxu0
      %5999 = vmatprep.mubr.f32.mxu0 0.0
      %6000 = vmatmul.mubr.f32.gmra.mrb[0].mxu0 %v5831
      %v6001 = vpop.f32.mrb[0].mxu0
      %v6002 = vadd.f32 0.0, %v6001
      %v6003 = vpop.f32.mrb[0].mxu0
      %6004 = vmatprep.mubr.f32.mxu0 0.0
      %6005 = vmatmul.mubr.f32.gmra.mrb[0].mxu0 %v5834
      %v6006 = vpop.f32.mrb[0].mxu0
      %v6007 = vadd.f32 0.0, %v6006
      %v6008 = vpop.f32.mrb[0].mxu0
      %6009 = vmatprep.mubr.f32.mxu0 0.0
      %6010 = vmatmul.mubr.f32.gmra.mrb[0].mxu0 %v5837
      %v6011 = vpop.f32.mrb[0].mxu0
      %v6012 = vadd.f32 0.0, %v6011
      %v6013 = vpop.f32.mrb[0].mxu0
      %6014 = vmatprep.mubr.f32.mxu0 0.0
      %6015 = vmatmul.mubr.f32.gmra.mrb[0].mxu0 %v5840
      %v6016 = vpop.f32.mrb[0].mxu0
      %v6017 = vadd.f32 0.0, %v6016
      %v6018 = vpop.f32.mrb[0].mxu0
      %6019 = vmatprep.mubr.f32.mxu0 0.0
      %6020 = vmatmul.mubr.f32.gmra.mrb[0].mxu0 %v5843
      %v6021 = vpop.f32.mrb[0].mxu0
      %v6022 = vadd.f32 0.0, %v6021
      %v6023 = vpop.f32.mrb[0].mxu0
      %6024 = vmatprep.mubr.f32.mxu0 0.0
      %6025 = vmatmul.mubr.f32.gmra.mrb[0].mxu0 %v5846
      %v6026 = vpop.f32.mrb[0].mxu0
      %v6027 = vadd.f32 0.0, %v6026
      %v6028 = vpop.f32.mrb[0].mxu0
      %6029 = vmatprep.mubr.f32.mxu0 0.0
      %6030 = vmatmul.mubr.f32.gmra.mrb[0].mxu0 %v5849
      %v6031 = vpop.f32.mrb[0].mxu0
      %v6032 = vadd.f32 0.0, %v6031
      %v6033 = vpop.f32.mrb[0].mxu0
      %6034 = vmatprep.mubr.f32.mxu0 0.0
      %6035 = vmatmul.mubr.f32.gmra.mrb[0].mxu0 %v5852
      %v6036 = vpop.f32.mrb[0].mxu0
      %v6037 = vadd.f32 0.0, %v6036
      %v6038 = vpop.f32.mrb[0].mxu0
      %6039 = vmatprep.mubr.f32.mxu0 0.0
      %6040 = vmatmul.mubr.f32.gmra.mrb[0].mxu0 %v5855
      %v6041 = vpop.f32.mrb[0].mxu0
      %v6042 = vadd.f32 0.0, %v6041
      %v6043 = vpop.f32.mrb[0].mxu0
      %6044 = vmatprep.mubr.f32.mxu0 0.0
      %6045 = vmatmul.mubr.f32.gmra.mrb[0].mxu0 %v5858
      %v6046 = vpop.f32.mrb[0].mxu0
      %v6047 = vadd.f32 0.0, %v6046
      %v6048 = vpop.f32.mrb[0].mxu0
      %6049 = vmatprep.mubr.f32.mxu0 0.0
      %6050 = vmatmul.mubr.f32.gmra.mrb[0].mxu0 %v5861
      %v6051 = vpop.f32.mrb[0].mxu0
      %v6052 = vadd.f32 0.0, %v6051
      %v6053 = vpop.f32.mrb[0].mxu0
      %6054 = vmatprep.mubr.f32.mxu0 0.0
      %6055 = vmatmul.mubr.f32.gmra.mrb[0].mxu0 %v5864
      %v6056 = vpop.f32.mrb[0].mxu0
      %v6057 = vadd.f32 0.0, %v6056
      %v6058 = vpop.f32.mrb[0].mxu0
      %6059 = vmatprep.mubr.f32.mxu0 0.0
      %6060 = vmatmul.mubr.f32.gmra.mrb[0].mxu0 %v5867
      %v6061 = vpop.f32.mrb[0].mxu0
      %v6062 = vadd.f32 0.0, %v6061
      %v6063 = vpop.f32.mrb[0].mxu0
      %6064 = vmatprep.mubr.f32.mxu0 0.0
      %6065 = vmatmul.mubr.f32.gmra.mrb[0].mxu0 %v5870
      %v6066 = vpop.f32.mrb[0].mxu0
      %v6067 = vadd.f32 0.0, %v6066
      %v6068 = vpop.f32.mrb[0].mxu0
      %6069 = vmatprep.mubr.f32.mxu0 0.0
      %6070 = vmatmul.mubr.f32.gmra.mrb[0].mxu0 %v5873
      %v6071 = vpop.f32.mrb[0].mxu0
      %v6072 = vadd.f32 0.0, %v6071
      %v6073 = vpop.f32.mrb[0].mxu0
      %6074 = vmatprep.mubr.f32.mxu0 0.0
      %6075 = vmatmul.mubr.f32.gmra.mrb[0].mxu0 %v5876
      %v6076 = vpop.f32.mrb[0].mxu0
      %v6077 = vadd.f32 0.0, %v6076
      %v6078 = vpop.f32.mrb[0].mxu0
      %6079 = vmatprep.mubr.f32.mxu0 0.0
      %6080 = vmatmul.mubr.f32.gmra.mrb[0].mxu0 %v5879
      %v6081 = vpop.f32.mrb[0].mxu0
      %v6082 = vadd.f32 0.0, %v6081
      %v6083 = vpop.f32.mrb[0].mxu0
      %6084 = vmatprep.mubr.f32.mxu0 0.0
      %6085 = vmatmul.mubr.f32.gmra.mrb[0].mxu0 %v5882
      %v6086 = vpop.f32.mrb[0].mxu0
      %v6087 = vadd.f32 0.0, %v6086
      %v6088 = vpop.f32.mrb[0].mxu0
      %6089 = vmatprep.mubr.f32.mxu0 0.0
      %6090 = vmatmul.mubr.f32.gmra.mrb[0].mxu0 %v5885
      %v6091 = vpop.f32.mrb[0].mxu0
      %v6092 = vadd.f32 0.0, %v6091
      %v6093 = vpop.f32.mrb[0].mxu0
      %6094 = vmatprep.mubr.f32.mxu0 0.0
      %6095 = vmatmul.mubr.f32.gmra.mrb[0].mxu0 %v5888
      %v6096 = vpop.f32.mrb[0].mxu0
      %v6097 = vadd.f32 0.0, %v6096
      %v6098 = vpop.f32.mrb[0].mxu0
      %6099 = vmatprep.mubr.f32.mxu0 0.0
      %6100 = vmatmul.mubr.f32.gmra.mrb[0].mxu0 %v5891
      %v6101 = vpop.f32.mrb[0].mxu0
      %v6102 = vadd.f32 0.0, %v6101
      %v6103 = vpop.f32.mrb[0].mxu0
      %6104 = vmatprep.mubr.f32.mxu0 0.0
      %6105 = vmatmul.mubr.f32.gmra.mrb[0].mxu0 %v5894
      %v6106 = vpop.f32.mrb[0].mxu0
      %v6107 = vadd.f32 0.0, %v6106
      %v6108 = vpop.f32.mrb[0].mxu0
      %6109 = vmatprep.mubr.f32.mxu0 0.0
      %6110 = vmatmul.mubr.f32.gmra.mrb[0].mxu0 %v5897
      %v6111 = vpop.f32.mrb[0].mxu0
      %v6112 = vadd.f32 0.0, %v6111
      %v6113 = vpop.f32.mrb[0].mxu0
      %6114 = vmatprep.mubr.f32.mxu0 0.0
      %6115 = vmatmul.mubr.f32.gmra.mrb[0].mxu0 %v5900
      %v6116 = vpop.f32.mrb[0].mxu0
      %v6117 = vadd.f32 0.0, %v6116
      %v6118 = vpop.f32.mrb[0].mxu0
      %6119 = vmatprep.mubr.f32.mxu0 0.0
      %6120 = vmatmul.mubr.f32.gmra.mrb[0].mxu0 %v5903
      %v6121 = vpop.f32.mrb[0].mxu0
      %v6122 = vadd.f32 0.0, %v6121
      %v6123 = vpop.f32.mrb[0].mxu0
      %6124 = vmatprep.mubr.f32.mxu0 0.0
      %6125 = vmatmul.mubr.f32.gmra.mrb[0].mxu0 %v5906
      %v6126 = vpop.f32.mrb[0].mxu0
      %v6127 = vadd.f32 0.0, %v6126
      %v6128 = vpop.f32.mrb[0].mxu0
      %6129 = vmatprep.mubr.f32.mxu0 0.0
      %6130 = vmatmul.mubr.f32.gmra.mrb[0].mxu0 %v5909
      %v6131 = vpop.f32.mrb[0].mxu0
      %v6132 = vadd.f32 0.0, %v6131
      %v6133 = vpop.f32.mrb[0].mxu0
      %6134 = vmatprep.mubr.f32.mxu0 0.0
      %6135 = vmatmul.mubr.f32.gmra.mrb[0].mxu0 %v5912
      %v6136 = vpop.f32.mrb[0].mxu0
      %v6137 = vadd.f32 0.0, %v6136
      %v6138 = vpop.f32.mrb[0].mxu0
      %6139 = vmatprep.mubr.f32.mxu0 0.0
      %6140 = vmatmul.mubr.f32.gmra.mrb[0].mxu0 %v5915
      %v6141 = vpop.f32.mrb[0].mxu0
      %v6142 = vadd.f32 0.0, %v6141
      %v6143 = vpop.f32.mrb[0].mxu0
      %6144 = vdwg.mxu0
      %v6145 = vadd.f32 %v5756, %v5987
      %v6146 = vadd.f32 %v5757, %v5992
      %v6147 = vadd.f32 %v5758, %v5997
      %v6148 = vadd.f32 %v5759, %v6002
      %v6149 = vadd.f32 %v5760, %v6007
      %v6150 = vadd.f32 %v5761, %v6012
      %v6151 = vadd.f32 %v5762, %v6017
      %v6152 = vadd.f32 %v5763, %v6022
      %v6153 = vadd.f32 %v5764, %v6027
      %v6154 = vadd.f32 %v5765, %v6032
      %v6155 = vadd.f32 %v5766, %v6037
      %v6156 = vadd.f32 %v5767, %v6042
      %v6157 = vadd.f32 %v5768, %v6047
      %v6158 = vadd.f32 %v5769, %v6052
      %v6159 = vadd.f32 %v5770, %v6057
      %v6160 = vadd.f32 %v5771, %v6062
      %v6161 = vadd.f32 %v5772, %v6067
      %v6162 = vadd.f32 %v5773, %v6072
      %v6163 = vadd.f32 %v5774, %v6077
      %v6164 = vadd.f32 %v5775, %v6082
      %v6165 = vadd.f32 %v5776, %v6087
      %v6166 = vadd.f32 %v5777, %v6092
      %v6167 = vadd.f32 %v5778, %v6097
      %v6168 = vadd.f32 %v5779, %v6102
      %v6169 = vadd.f32 %v5780, %v6107
      %v6170 = vadd.f32 %v5781, %v6112
      %v6171 = vadd.f32 %v5782, %v6117
      %v6172 = vadd.f32 %v5783, %v6122
      %v6173 = vadd.f32 %v5784, %v6127
      %v6174 = vadd.f32 %v5785, %v6132
      %v6175 = vadd.f32 %v5786, %v6137
      %v6176 = vadd.f32 %v5787, %v6142
      %v6177 = vld [vmem:[%s2636 + $0x7] sm:$0xff]
      %v6178 = vld [vmem:[%s2636 + $0xf] sm:$0xff]
      %v6179 = vld [vmem:[%s2636 + $0x27] sm:$0xff]
      %v6180 = vld [vmem:[%s2636 + $0x2f] sm:$0xff]
      %v6181 = vld [vmem:[%s2636 + $0x47] sm:$0xff]
      %v6182 = vld [vmem:[%s2636 + $0x4f] sm:$0xff]
      %v6183 = vld [vmem:[%s2636 + $0x67] sm:$0xff]
      %v6184 = vld [vmem:[%s2636 + $0x6f] sm:$0xff]
      %v6185 = vld [vmem:[%s2636 + $0x87] sm:$0xff]
      %v6186 = vld [vmem:[%s2636 + $0x8f] sm:$0xff]
      %v6187 = vld [vmem:[%s2636 + $0xa7] sm:$0xff]
      %v6188 = vld [vmem:[%s2636 + $0xaf] sm:$0xff]
      %v6189 = vld [vmem:[%s2636 + $0xc7] sm:$0xff]
      %v6190 = vld [vmem:[%s2636 + $0xcf] sm:$0xff]
      %v6191 = vld [vmem:[%s2636 + $0xe7] sm:$0xff]
      %v6192 = vld [vmem:[%s2636 + $0xef] sm:$0xff]
      %v6193 = vld [vmem:[%s2636 + $0x107] sm:$0xff]
      %v6194 = vld [vmem:[%s2636 + $0x10f] sm:$0xff]
      %v6195 = vld [vmem:[%s2636 + $0x127] sm:$0xff]
      %v6196 = vld [vmem:[%s2636 + $0x12f] sm:$0xff]
      %v6197 = vld [vmem:[%s2636 + $0x147] sm:$0xff]
      %v6198 = vld [vmem:[%s2636 + $0x14f] sm:$0xff]
      %v6199 = vld [vmem:[%s2636 + $0x167] sm:$0xff]
      %v6200 = vld [vmem:[%s2636 + $0x16f] sm:$0xff]
      %v6201 = vld [vmem:[%s2636 + $0x187] sm:$0xff]
      %v6202 = vld [vmem:[%s2636 + $0x18f] sm:$0xff]
      %v6203 = vld [vmem:[%s2636 + $0x1a7] sm:$0xff]
      %v6204 = vld [vmem:[%s2636 + $0x1af] sm:$0xff]
      %v6205 = vld [vmem:[%s2636 + $0x1c7] sm:$0xff]
      %v6206 = vld [vmem:[%s2636 + $0x1cf] sm:$0xff]
      %v6207 = vld [vmem:[%s2636 + $0x1e7] sm:$0xff]
      %v6208 = vld [vmem:[%s2636 + $0x1ef] sm:$0xff]
      %v6209 = vld [vmem:[%s3 + $0x18] sm:$0xf]
      %v6211 = vsel %vm257, %v6177, 0
      %v6214 = vsel %vm257, %v6178, 0
      %v6217 = vsel %vm257, %v6179, 0
      %v6220 = vsel %vm257, %v6180, 0
      %v6223 = vsel %vm257, %v6181, 0
      %v6226 = vsel %vm257, %v6182, 0
      %v6229 = vsel %vm257, %v6183, 0
      %v6232 = vsel %vm257, %v6184, 0
      %v6235 = vsel %vm257, %v6185, 0
      %v6238 = vsel %vm257, %v6186, 0
      %v6241 = vsel %vm257, %v6187, 0
      %v6244 = vsel %vm257, %v6188, 0
      %v6247 = vsel %vm257, %v6189, 0
      %v6250 = vsel %vm257, %v6190, 0
      %v6253 = vsel %vm257, %v6191, 0
      %v6256 = vsel %vm257, %v6192, 0
      %v6259 = vsel %vm257, %v6193, 0
      %v6262 = vsel %vm257, %v6194, 0
      %v6265 = vsel %vm257, %v6195, 0
      %v6268 = vsel %vm257, %v6196, 0
      %v6271 = vsel %vm257, %v6197, 0
      %v6274 = vsel %vm257, %v6198, 0
      %v6277 = vsel %vm257, %v6199, 0
      %v6280 = vsel %vm257, %v6200, 0
      %v6283 = vsel %vm257, %v6201, 0
      %v6286 = vsel %vm257, %v6202, 0
      %v6289 = vsel %vm257, %v6203, 0
      %v6292 = vsel %vm257, %v6204, 0
      %v6295 = vsel %vm257, %v6205, 0
      %v6298 = vsel %vm257, %v6206, 0
      %v6301 = vsel %vm257, %v6207, 0
      %v6304 = vsel %vm257, %v6208, 0
      %v6307 = vsel %vm527, %v6209, 0
      %6309 = vmatprep.subr.mxu0 0.0
      %6310 = vmatpush1.msra.mxu0 %v6307
      %6311 = vmatprep.subr.mxu0 0.0
      %6312 = vmatpush1.msra.mxu0 0.0
      %6313 = vmatprep.subr.mxu0 0.0
      %6314 = vmatpush1.msra.mxu0 0.0
      %6315 = vmatprep.subr.mxu0 0.0
      %6316 = vmatpush1.msra.mxu0 0.0
      %6317 = vmatprep.subr.mxu0 0.0
      %6318 = vmatpush1.msra.mxu0 0.0
      %6319 = vmatprep.subr.mxu0 0.0
      %6320 = vmatpush1.msra.mxu0 0.0
      %6321 = vmatprep.subr.mxu0 0.0
      %6322 = vmatpush1.msra.mxu0 0.0
      %6323 = vmatprep.subr.mxu0 0.0
      %6324 = vmatpush1.msra.mxu0 0.0
      %6325 = vmatprep.subr.mxu0 0.0
      %6326 = vmatpush1.msra.mxu0 0.0
      %6327 = vmatprep.subr.mxu0 0.0
      %6328 = vmatpush1.msra.mxu0 0.0
      %6329 = vmatprep.subr.mxu0 0.0
      %6330 = vmatpush1.msra.mxu0 0.0
      %6331 = vmatprep.subr.mxu0 0.0
      %6332 = vmatpush1.msra.mxu0 0.0
      %6333 = vmatprep.subr.mxu0 0.0
      %6334 = vmatpush1.msra.mxu0 0.0
      %6335 = vmatprep.subr.mxu0 0.0
      %6336 = vmatpush1.msra.mxu0 0.0
      %6337 = vmatprep.subr.mxu0 0.0
      %6338 = vmatpush1.msra.mxu0 0.0
      %6339 = vmatprep.subr.mxu0 0.0
      %6340 = vmatpush1.msra.mxu0 0.0
      %6341 = vmatprep.subr.mxu0 0.0
      %6342 = vmatpush1.msra.mxu0 0.0
      %6343 = vmatprep.subr.mxu0 0.0
      %6344 = vmatpush1.msra.mxu0 0.0
      %6345 = vmatprep.subr.mxu0 0.0
      %6346 = vmatpush1.msra.mxu0 0.0
      %6347 = vmatprep.subr.mxu0 0.0
      %6348 = vmatpush1.msra.mxu0 0.0
      %6349 = vmatprep.subr.mxu0 0.0
      %6350 = vmatpush1.msra.mxu0 0.0
      %6351 = vmatprep.subr.mxu0 0.0
      %6352 = vmatpush1.msra.mxu0 0.0
      %6353 = vmatprep.subr.mxu0 0.0
      %6354 = vmatpush1.msra.mxu0 0.0
      %6355 = vmatprep.subr.mxu0 0.0
      %6356 = vmatpush1.msra.mxu0 0.0
      %6357 = vmatprep.subr.mxu0 0.0
      %6358 = vmatpush1.msra.mxu0 0.0
      %6359 = vmatprep.subr.mxu0 0.0
      %6360 = vmatpush1.msra.mxu0 0.0
      %6361 = vmatprep.subr.mxu0 0.0
      %6362 = vmatpush1.msra.mxu0 0.0
      %6363 = vmatprep.subr.mxu0 0.0
      %6364 = vmatpush1.msra.mxu0 0.0
      %6365 = vmatprep.subr.mxu0 0.0
      %6366 = vmatpush1.msra.mxu0 0.0
      %6367 = vmatprep.subr.mxu0 0.0
      %6368 = vmatpush1.msra.mxu0 0.0
      %6369 = vmatprep.subr.mxu0 0.0
      %6370 = vmatpush1.msra.mxu0 0.0
      %6371 = vmatprep.subr.mxu0 0.0
      %6372 = vmatpush1.msra.mxu0 0.0
      %6373 = vmatprep.mubr.f32.mxu0 0.0
      %6374 = vmatmul.mubr.f32.gmra.mrb[0].mxu0 %v6211
      %v6375 = vpop.f32.mrb[0].mxu0
      %v6376 = vadd.f32 0.0, %v6375
      %v6377 = vpop.f32.mrb[0].mxu0
      %6378 = vmatprep.mubr.f32.mxu0 0.0
      %6379 = vmatmul.mubr.f32.gmra.mrb[0].mxu0 %v6214
      %v6380 = vpop.f32.mrb[0].mxu0
      %v6381 = vadd.f32 0.0, %v6380
      %v6382 = vpop.f32.mrb[0].mxu0
      %6383 = vmatprep.mubr.f32.mxu0 0.0
      %6384 = vmatmul.mubr.f32.gmra.mrb[0].mxu0 %v6217
      %v6385 = vpop.f32.mrb[0].mxu0
      %v6386 = vadd.f32 0.0, %v6385
      %v6387 = vpop.f32.mrb[0].mxu0
      %6388 = vmatprep.mubr.f32.mxu0 0.0
      %6389 = vmatmul.mubr.f32.gmra.mrb[0].mxu0 %v6220
      %v6390 = vpop.f32.mrb[0].mxu0
      %v6391 = vadd.f32 0.0, %v6390
      %v6392 = vpop.f32.mrb[0].mxu0
      %6393 = vmatprep.mubr.f32.mxu0 0.0
      %6394 = vmatmul.mubr.f32.gmra.mrb[0].mxu0 %v6223
      %v6395 = vpop.f32.mrb[0].mxu0
      %v6396 = vadd.f32 0.0, %v6395
      %v6397 = vpop.f32.mrb[0].mxu0
      %6398 = vmatprep.mubr.f32.mxu0 0.0
      %6399 = vmatmul.mubr.f32.gmra.mrb[0].mxu0 %v6226
      %v6400 = vpop.f32.mrb[0].mxu0
      %v6401 = vadd.f32 0.0, %v6400
      %v6402 = vpop.f32.mrb[0].mxu0
      %6403 = vmatprep.mubr.f32.mxu0 0.0
      %6404 = vmatmul.mubr.f32.gmra.mrb[0].mxu0 %v6229
      %v6405 = vpop.f32.mrb[0].mxu0
      %v6406 = vadd.f32 0.0, %v6405
      %v6407 = vpop.f32.mrb[0].mxu0
      %6408 = vmatprep.mubr.f32.mxu0 0.0
      %6409 = vmatmul.mubr.f32.gmra.mrb[0].mxu0 %v6232
      %v6410 = vpop.f32.mrb[0].mxu0
      %v6411 = vadd.f32 0.0, %v6410
      %v6412 = vpop.f32.mrb[0].mxu0
      %6413 = vmatprep.mubr.f32.mxu0 0.0
      %6414 = vmatmul.mubr.f32.gmra.mrb[0].mxu0 %v6235
      %v6415 = vpop.f32.mrb[0].mxu0
      %v6416 = vadd.f32 0.0, %v6415
      %v6417 = vpop.f32.mrb[0].mxu0
      %6418 = vmatprep.mubr.f32.mxu0 0.0
      %6419 = vmatmul.mubr.f32.gmra.mrb[0].mxu0 %v6238
      %v6420 = vpop.f32.mrb[0].mxu0
      %v6421 = vadd.f32 0.0, %v6420
      %v6422 = vpop.f32.mrb[0].mxu0
      %6423 = vmatprep.mubr.f32.mxu0 0.0
      %6424 = vmatmul.mubr.f32.gmra.mrb[0].mxu0 %v6241
      %v6425 = vpop.f32.mrb[0].mxu0
      %v6426 = vadd.f32 0.0, %v6425
      %v6427 = vpop.f32.mrb[0].mxu0
      %6428 = vmatprep.mubr.f32.mxu0 0.0
      %6429 = vmatmul.mubr.f32.gmra.mrb[0].mxu0 %v6244
      %v6430 = vpop.f32.mrb[0].mxu0
      %v6431 = vadd.f32 0.0, %v6430
      %v6432 = vpop.f32.mrb[0].mxu0
      %6433 = vmatprep.mubr.f32.mxu0 0.0
      %6434 = vmatmul.mubr.f32.gmra.mrb[0].mxu0 %v6247
      %v6435 = vpop.f32.mrb[0].mxu0
      %v6436 = vadd.f32 0.0, %v6435
      %v6437 = vpop.f32.mrb[0].mxu0
      %6438 = vmatprep.mubr.f32.mxu0 0.0
      %6439 = vmatmul.mubr.f32.gmra.mrb[0].mxu0 %v6250
      %v6440 = vpop.f32.mrb[0].mxu0
      %v6441 = vadd.f32 0.0, %v6440
      %v6442 = vpop.f32.mrb[0].mxu0
      %6443 = vmatprep.mubr.f32.mxu0 0.0
      %6444 = vmatmul.mubr.f32.gmra.mrb[0].mxu0 %v6253
      %v6445 = vpop.f32.mrb[0].mxu0
      %v6446 = vadd.f32 0.0, %v6445
      %v6447 = vpop.f32.mrb[0].mxu0
      %6448 = vmatprep.mubr.f32.mxu0 0.0
      %6449 = vmatmul.mubr.f32.gmra.mrb[0].mxu0 %v6256
      %v6450 = vpop.f32.mrb[0].mxu0
      %v6451 = vadd.f32 0.0, %v6450
      %v6452 = vpop.f32.mrb[0].mxu0
      %6453 = vmatprep.mubr.f32.mxu0 0.0
      %6454 = vmatmul.mubr.f32.gmra.mrb[0].mxu0 %v6259
      %v6455 = vpop.f32.mrb[0].mxu0
      %v6456 = vadd.f32 0.0, %v6455
      %v6457 = vpop.f32.mrb[0].mxu0
      %6458 = vmatprep.mubr.f32.mxu0 0.0
      %6459 = vmatmul.mubr.f32.gmra.mrb[0].mxu0 %v6262
      %v6460 = vpop.f32.mrb[0].mxu0
      %v6461 = vadd.f32 0.0, %v6460
      %v6462 = vpop.f32.mrb[0].mxu0
      %6463 = vmatprep.mubr.f32.mxu0 0.0
      %6464 = vmatmul.mubr.f32.gmra.mrb[0].mxu0 %v6265
      %v6465 = vpop.f32.mrb[0].mxu0
      %v6466 = vadd.f32 0.0, %v6465
      %v6467 = vpop.f32.mrb[0].mxu0
      %6468 = vmatprep.mubr.f32.mxu0 0.0
      %6469 = vmatmul.mubr.f32.gmra.mrb[0].mxu0 %v6268
      %v6470 = vpop.f32.mrb[0].mxu0
      %v6471 = vadd.f32 0.0, %v6470
      %v6472 = vpop.f32.mrb[0].mxu0
      %6473 = vmatprep.mubr.f32.mxu0 0.0
      %6474 = vmatmul.mubr.f32.gmra.mrb[0].mxu0 %v6271
      %v6475 = vpop.f32.mrb[0].mxu0
      %v6476 = vadd.f32 0.0, %v6475
      %v6477 = vpop.f32.mrb[0].mxu0
      %6478 = vmatprep.mubr.f32.mxu0 0.0
      %6479 = vmatmul.mubr.f32.gmra.mrb[0].mxu0 %v6274
      %v6480 = vpop.f32.mrb[0].mxu0
      %v6481 = vadd.f32 0.0, %v6480
      %v6482 = vpop.f32.mrb[0].mxu0
      %6483 = vmatprep.mubr.f32.mxu0 0.0
      %6484 = vmatmul.mubr.f32.gmra.mrb[0].mxu0 %v6277
      %v6485 = vpop.f32.mrb[0].mxu0
      %v6486 = vadd.f32 0.0, %v6485
      %v6487 = vpop.f32.mrb[0].mxu0
      %6488 = vmatprep.mubr.f32.mxu0 0.0
      %6489 = vmatmul.mubr.f32.gmra.mrb[0].mxu0 %v6280
      %v6490 = vpop.f32.mrb[0].mxu0
      %v6491 = vadd.f32 0.0, %v6490
      %v6492 = vpop.f32.mrb[0].mxu0
      %6493 = vmatprep.mubr.f32.mxu0 0.0
      %6494 = vmatmul.mubr.f32.gmra.mrb[0].mxu0 %v6283
      %v6495 = vpop.f32.mrb[0].mxu0
      %v6496 = vadd.f32 0.0, %v6495
      %v6497 = vpop.f32.mrb[0].mxu0
      %6498 = vmatprep.mubr.f32.mxu0 0.0
      %6499 = vmatmul.mubr.f32.gmra.mrb[0].mxu0 %v6286
      %v6500 = vpop.f32.mrb[0].mxu0
      %v6501 = vadd.f32 0.0, %v6500
      %v6502 = vpop.f32.mrb[0].mxu0
      %6503 = vmatprep.mubr.f32.mxu0 0.0
      %6504 = vmatmul.mubr.f32.gmra.mrb[0].mxu0 %v6289
      %v6505 = vpop.f32.mrb[0].mxu0
      %v6506 = vadd.f32 0.0, %v6505
      %v6507 = vpop.f32.mrb[0].mxu0
      %6508 = vmatprep.mubr.f32.mxu0 0.0
      %6509 = vmatmul.mubr.f32.gmra.mrb[0].mxu0 %v6292
      %v6510 = vpop.f32.mrb[0].mxu0
      %v6511 = vadd.f32 0.0, %v6510
      %v6512 = vpop.f32.mrb[0].mxu0
      %6513 = vmatprep.mubr.f32.mxu0 0.0
      %6514 = vmatmul.mubr.f32.gmra.mrb[0].mxu0 %v6295
      %v6515 = vpop.f32.mrb[0].mxu0
      %v6516 = vadd.f32 0.0, %v6515
      %v6517 = vpop.f32.mrb[0].mxu0
      %6518 = vmatprep.mubr.f32.mxu0 0.0
      %6519 = vmatmul.mubr.f32.gmra.mrb[0].mxu0 %v6298
      %v6520 = vpop.f32.mrb[0].mxu0
      %v6521 = vadd.f32 0.0, %v6520
      %v6522 = vpop.f32.mrb[0].mxu0
      %6523 = vmatprep.mubr.f32.mxu0 0.0
      %6524 = vmatmul.mubr.f32.gmra.mrb[0].mxu0 %v6301
      %v6525 = vpop.f32.mrb[0].mxu0
      %v6526 = vadd.f32 0.0, %v6525
      %v6527 = vpop.f32.mrb[0].mxu0
      %6528 = vmatprep.mubr.f32.mxu0 0.0
      %6529 = vmatmul.mubr.f32.gmra.mrb[0].mxu0 %v6304
      %v6530 = vpop.f32.mrb[0].mxu0
      %v6531 = vadd.f32 0.0, %v6530
      %v6532 = vpop.f32.mrb[0].mxu0
      %6533 = vdwg.mxu0
      %v6534 = vadd.f32 %v6145, %v6376
      %v6535 = vadd.f32 %v6146, %v6381
      %v6536 = vadd.f32 %v6147, %v6386
      %v6537 = vadd.f32 %v6148, %v6391
      %v6538 = vadd.f32 %v6149, %v6396
      %v6539 = vadd.f32 %v6150, %v6401
      %v6540 = vadd.f32 %v6151, %v6406
      %v6541 = vadd.f32 %v6152, %v6411
      %v6542 = vadd.f32 %v6153, %v6416
      %v6543 = vadd.f32 %v6154, %v6421
      %v6544 = vadd.f32 %v6155, %v6426
      %v6545 = vadd.f32 %v6156, %v6431
      %v6546 = vadd.f32 %v6157, %v6436
      %v6547 = vadd.f32 %v6158, %v6441
      %v6548 = vadd.f32 %v6159, %v6446
      %v6549 = vadd.f32 %v6160, %v6451
      %v6550 = vadd.f32 %v6161, %v6456
      %v6551 = vadd.f32 %v6162, %v6461
      %v6552 = vadd.f32 %v6163, %v6466
      %v6553 = vadd.f32 %v6164, %v6471
      %v6554 = vadd.f32 %v6165, %v6476
      %v6555 = vadd.f32 %v6166, %v6481
      %v6556 = vadd.f32 %v6167, %v6486
      %v6557 = vadd.f32 %v6168, %v6491
      %v6558 = vadd.f32 %v6169, %v6496
      %v6559 = vadd.f32 %v6170, %v6501
      %v6560 = vadd.f32 %v6171, %v6506
      %v6561 = vadd.f32 %v6172, %v6511
      %v6562 = vadd.f32 %v6173, %v6516
      %v6563 = vadd.f32 %v6174, %v6521
      %v6564 = vadd.f32 %v6175, %v6526
      %v6565 = vadd.f32 %v6176, %v6531
      %v6566 = vld [vmem:[%s2636 + $0x8] sm:$0xff]
      %v6567 = vld [vmem:[%s2636 + $0x10] sm:$0xff]
      %v6568 = vld [vmem:[%s2636 + $0x28] sm:$0xff]
      %v6569 = vld [vmem:[%s2636 + $0x30] sm:$0xff]
      %v6570 = vld [vmem:[%s2636 + $0x48] sm:$0xff]
      %v6571 = vld [vmem:[%s2636 + $0x50] sm:$0xff]
      %v6572 = vld [vmem:[%s2636 + $0x68] sm:$0xff]
      %v6573 = vld [vmem:[%s2636 + $0x70] sm:$0xff]
      %v6574 = vld [vmem:[%s2636 + $0x88] sm:$0xff]
      %v6575 = vld [vmem:[%s2636 + $0x90] sm:$0xff]
      %v6576 = vld [vmem:[%s2636 + $0xa8] sm:$0xff]
      %v6577 = vld [vmem:[%s2636 + $0xb0] sm:$0xff]
      %v6578 = vld [vmem:[%s2636 + $0xc8] sm:$0xff]
      %v6579 = vld [vmem:[%s2636 + $0xd0] sm:$0xff]
      %v6580 = vld [vmem:[%s2636 + $0xe8] sm:$0xff]
      %v6581 = vld [vmem:[%s2636 + $0xf0] sm:$0xff]
      %v6582 = vld [vmem:[%s2636 + $0x108] sm:$0xff]
      %v6583 = vld [vmem:[%s2636 + $0x110] sm:$0xff]
      %v6584 = vld [vmem:[%s2636 + $0x128] sm:$0xff]
      %v6585 = vld [vmem:[%s2636 + $0x130] sm:$0xff]
      %v6586 = vld [vmem:[%s2636 + $0x148] sm:$0xff]
      %v6587 = vld [vmem:[%s2636 + $0x150] sm:$0xff]
      %v6588 = vld [vmem:[%s2636 + $0x168] sm:$0xff]
      %v6589 = vld [vmem:[%s2636 + $0x170] sm:$0xff]
      %v6590 = vld [vmem:[%s2636 + $0x188] sm:$0xff]
      %v6591 = vld [vmem:[%s2636 + $0x190] sm:$0xff]
      %v6592 = vld [vmem:[%s2636 + $0x1a8] sm:$0xff]
      %v6593 = vld [vmem:[%s2636 + $0x1b0] sm:$0xff]
      %v6594 = vld [vmem:[%s2636 + $0x1c8] sm:$0xff]
      %v6595 = vld [vmem:[%s2636 + $0x1d0] sm:$0xff]
      %v6596 = vld [vmem:[%s2636 + $0x1e8] sm:$0xff]
      %v6597 = vld [vmem:[%s2636 + $0x1f0] sm:$0xff]
      %v6598 = vld [vmem:[%s3 + $0x1c] sm:$0xf]
      %v6600 = vsel %vm257, %v6566, 0
      %v6603 = vsel %vm257, %v6567, 0
      %v6606 = vsel %vm257, %v6568, 0
      %v6609 = vsel %vm257, %v6569, 0
      %v6612 = vsel %vm257, %v6570, 0
      %v6615 = vsel %vm257, %v6571, 0
      %v6618 = vsel %vm257, %v6572, 0
      %v6621 = vsel %vm257, %v6573, 0
      %v6624 = vsel %vm257, %v6574, 0
      %v6627 = vsel %vm257, %v6575, 0
      %v6630 = vsel %vm257, %v6576, 0
      %v6633 = vsel %vm257, %v6577, 0
      %v6636 = vsel %vm257, %v6578, 0
      %v6639 = vsel %vm257, %v6579, 0
      %v6642 = vsel %vm257, %v6580, 0
      %v6645 = vsel %vm257, %v6581, 0
      %v6648 = vsel %vm257, %v6582, 0
      %v6651 = vsel %vm257, %v6583, 0
      %v6654 = vsel %vm257, %v6584, 0
      %v6657 = vsel %vm257, %v6585, 0
      %v6660 = vsel %vm257, %v6586, 0
      %v6663 = vsel %vm257, %v6587, 0
      %v6666 = vsel %vm257, %v6588, 0
      %v6669 = vsel %vm257, %v6589, 0
      %v6672 = vsel %vm257, %v6590, 0
      %v6675 = vsel %vm257, %v6591, 0
      %v6678 = vsel %vm257, %v6592, 0
      %v6681 = vsel %vm257, %v6593, 0
      %v6684 = vsel %vm257, %v6594, 0
      %v6687 = vsel %vm257, %v6595, 0
      %v6690 = vsel %vm257, %v6596, 0
      %v6693 = vsel %vm257, %v6597, 0
      %v6696 = vsel %vm527, %v6598, 0
      %6698 = vmatprep.subr.mxu0 0.0
      %6699 = vmatpush1.msra.mxu0 %v6696
      %6700 = vmatprep.subr.mxu0 0.0
      %6701 = vmatpush1.msra.mxu0 0.0
      %6702 = vmatprep.subr.mxu0 0.0
      %6703 = vmatpush1.msra.mxu0 0.0
      %6704 = vmatprep.subr.mxu0 0.0
      %6705 = vmatpush1.msra.mxu0 0.0
      %6706 = vmatprep.subr.mxu0 0.0
      %6707 = vmatpush1.msra.mxu0 0.0
      %6708 = vmatprep.subr.mxu0 0.0
      %6709 = vmatpush1.msra.mxu0 0.0
      %6710 = vmatprep.subr.mxu0 0.0
      %6711 = vmatpush1.msra.mxu0 0.0
      %6712 = vmatprep.subr.mxu0 0.0
      %6713 = vmatpush1.msra.mxu0 0.0
      %6714 = vmatprep.subr.mxu0 0.0
      %6715 = vmatpush1.msra.mxu0 0.0
      %6716 = vmatprep.subr.mxu0 0.0
      %6717 = vmatpush1.msra.mxu0 0.0
      %6718 = vmatprep.subr.mxu0 0.0
      %6719 = vmatpush1.msra.mxu0 0.0
      %6720 = vmatprep.subr.mxu0 0.0
      %6721 = vmatpush1.msra.mxu0 0.0
      %6722 = vmatprep.subr.mxu0 0.0
      %6723 = vmatpush1.msra.mxu0 0.0
      %6724 = vmatprep.subr.mxu0 0.0
      %6725 = vmatpush1.msra.mxu0 0.0
      %6726 = vmatprep.subr.mxu0 0.0
      %6727 = vmatpush1.msra.mxu0 0.0
      %6728 = vmatprep.subr.mxu0 0.0
      %6729 = vmatpush1.msra.mxu0 0.0
      %6730 = vmatprep.subr.mxu0 0.0
      %6731 = vmatpush1.msra.mxu0 0.0
      %6732 = vmatprep.subr.mxu0 0.0
      %6733 = vmatpush1.msra.mxu0 0.0
      %6734 = vmatprep.subr.mxu0 0.0
      %6735 = vmatpush1.msra.mxu0 0.0
      %6736 = vmatprep.subr.mxu0 0.0
      %6737 = vmatpush1.msra.mxu0 0.0
      %6738 = vmatprep.subr.mxu0 0.0
      %6739 = vmatpush1.msra.mxu0 0.0
      %6740 = vmatprep.subr.mxu0 0.0
      %6741 = vmatpush1.msra.mxu0 0.0
      %6742 = vmatprep.subr.mxu0 0.0
      %6743 = vmatpush1.msra.mxu0 0.0
      %6744 = vmatprep.subr.mxu0 0.0
      %6745 = vmatpush1.msra.mxu0 0.0
      %6746 = vmatprep.subr.mxu0 0.0
      %6747 = vmatpush1.msra.mxu0 0.0
      %6748 = vmatprep.subr.mxu0 0.0
      %6749 = vmatpush1.msra.mxu0 0.0
      %6750 = vmatprep.subr.mxu0 0.0
      %6751 = vmatpush1.msra.mxu0 0.0
      %6752 = vmatprep.subr.mxu0 0.0
      %6753 = vmatpush1.msra.mxu0 0.0
      %6754 = vmatprep.subr.mxu0 0.0
      %6755 = vmatpush1.msra.mxu0 0.0
      %6756 = vmatprep.subr.mxu0 0.0
      %6757 = vmatpush1.msra.mxu0 0.0
      %6758 = vmatprep.subr.mxu0 0.0
      %6759 = vmatpush1.msra.mxu0 0.0
      %6760 = vmatprep.subr.mxu0 0.0
      %6761 = vmatpush1.msra.mxu0 0.0
      %6762 = vmatprep.mubr.f32.mxu0 0.0
      %6763 = vmatmul.mubr.f32.gmra.mrb[0].mxu0 %v6600
      %v6764 = vpop.f32.mrb[0].mxu0
      %v6765 = vadd.f32 0.0, %v6764
      %v6766 = vpop.f32.mrb[0].mxu0
      %6767 = vmatprep.mubr.f32.mxu0 0.0
      %6768 = vmatmul.mubr.f32.gmra.mrb[0].mxu0 %v6603
      %v6769 = vpop.f32.mrb[0].mxu0
      %v6770 = vadd.f32 0.0, %v6769
      %v6771 = vpop.f32.mrb[0].mxu0
      %6772 = vmatprep.mubr.f32.mxu0 0.0
      %6773 = vmatmul.mubr.f32.gmra.mrb[0].mxu0 %v6606
      %v6774 = vpop.f32.mrb[0].mxu0
      %v6775 = vadd.f32 0.0, %v6774
      %v6776 = vpop.f32.mrb[0].mxu0
      %6777 = vmatprep.mubr.f32.mxu0 0.0
      %6778 = vmatmul.mubr.f32.gmra.mrb[0].mxu0 %v6609
      %v6779 = vpop.f32.mrb[0].mxu0
      %v6780 = vadd.f32 0.0, %v6779
      %v6781 = vpop.f32.mrb[0].mxu0
      %6782 = vmatprep.mubr.f32.mxu0 0.0
      %6783 = vmatmul.mubr.f32.gmra.mrb[0].mxu0 %v6612
      %v6784 = vpop.f32.mrb[0].mxu0
      %v6785 = vadd.f32 0.0, %v6784
      %v6786 = vpop.f32.mrb[0].mxu0
      %6787 = vmatprep.mubr.f32.mxu0 0.0
      %6788 = vmatmul.mubr.f32.gmra.mrb[0].mxu0 %v6615
      %v6789 = vpop.f32.mrb[0].mxu0
      %v6790 = vadd.f32 0.0, %v6789
      %v6791 = vpop.f32.mrb[0].mxu0
      %6792 = vmatprep.mubr.f32.mxu0 0.0
      %6793 = vmatmul.mubr.f32.gmra.mrb[0].mxu0 %v6618
      %v6794 = vpop.f32.mrb[0].mxu0
      %v6795 = vadd.f32 0.0, %v6794
      %v6796 = vpop.f32.mrb[0].mxu0
      %6797 = vmatprep.mubr.f32.mxu0 0.0
      %6798 = vmatmul.mubr.f32.gmra.mrb[0].mxu0 %v6621
      %v6799 = vpop.f32.mrb[0].mxu0
      %v6800 = vadd.f32 0.0, %v6799
      %v6801 = vpop.f32.mrb[0].mxu0
      %6802 = vmatprep.mubr.f32.mxu0 0.0
      %6803 = vmatmul.mubr.f32.gmra.mrb[0].mxu0 %v6624
      %v6804 = vpop.f32.mrb[0].mxu0
      %v6805 = vadd.f32 0.0, %v6804
      %v6806 = vpop.f32.mrb[0].mxu0
      %6807 = vmatprep.mubr.f32.mxu0 0.0
      %6808 = vmatmul.mubr.f32.gmra.mrb[0].mxu0 %v6627
      %v6809 = vpop.f32.mrb[0].mxu0
      %v6810 = vadd.f32 0.0, %v6809
      %v6811 = vpop.f32.mrb[0].mxu0
      %6812 = vmatprep.mubr.f32.mxu0 0.0
      %6813 = vmatmul.mubr.f32.gmra.mrb[0].mxu0 %v6630
      %v6814 = vpop.f32.mrb[0].mxu0
      %v6815 = vadd.f32 0.0, %v6814
      %v6816 = vpop.f32.mrb[0].mxu0
      %6817 = vmatprep.mubr.f32.mxu0 0.0
      %6818 = vmatmul.mubr.f32.gmra.mrb[0].mxu0 %v6633
      %v6819 = vpop.f32.mrb[0].mxu0
      %v6820 = vadd.f32 0.0, %v6819
      %v6821 = vpop.f32.mrb[0].mxu0
      %6822 = vmatprep.mubr.f32.mxu0 0.0
      %6823 = vmatmul.mubr.f32.gmra.mrb[0].mxu0 %v6636
      %v6824 = vpop.f32.mrb[0].mxu0
      %v6825 = vadd.f32 0.0, %v6824
      %v6826 = vpop.f32.mrb[0].mxu0
      %6827 = vmatprep.mubr.f32.mxu0 0.0
      %6828 = vmatmul.mubr.f32.gmra.mrb[0].mxu0 %v6639
      %v6829 = vpop.f32.mrb[0].mxu0
      %v6830 = vadd.f32 0.0, %v6829
      %v6831 = vpop.f32.mrb[0].mxu0
      %6832 = vmatprep.mubr.f32.mxu0 0.0
      %6833 = vmatmul.mubr.f32.gmra.mrb[0].mxu0 %v6642
      %v6834 = vpop.f32.mrb[0].mxu0
      %v6835 = vadd.f32 0.0, %v6834
      %v6836 = vpop.f32.mrb[0].mxu0
      %6837 = vmatprep.mubr.f32.mxu0 0.0
      %6838 = vmatmul.mubr.f32.gmra.mrb[0].mxu0 %v6645
      %v6839 = vpop.f32.mrb[0].mxu0
      %v6840 = vadd.f32 0.0, %v6839
      %v6841 = vpop.f32.mrb[0].mxu0
      %6842 = vmatprep.mubr.f32.mxu0 0.0
      %6843 = vmatmul.mubr.f32.gmra.mrb[0].mxu0 %v6648
      %v6844 = vpop.f32.mrb[0].mxu0
      %v6845 = vadd.f32 0.0, %v6844
      %v6846 = vpop.f32.mrb[0].mxu0
      %6847 = vmatprep.mubr.f32.mxu0 0.0
      %6848 = vmatmul.mubr.f32.gmra.mrb[0].mxu0 %v6651
      %v6849 = vpop.f32.mrb[0].mxu0
      %v6850 = vadd.f32 0.0, %v6849
      %v6851 = vpop.f32.mrb[0].mxu0
      %6852 = vmatprep.mubr.f32.mxu0 0.0
      %6853 = vmatmul.mubr.f32.gmra.mrb[0].mxu0 %v6654
      %v6854 = vpop.f32.mrb[0].mxu0
      %v6855 = vadd.f32 0.0, %v6854
      %v6856 = vpop.f32.mrb[0].mxu0
      %6857 = vmatprep.mubr.f32.mxu0 0.0
      %6858 = vmatmul.mubr.f32.gmra.mrb[0].mxu0 %v6657
      %v6859 = vpop.f32.mrb[0].mxu0
      %v6860 = vadd.f32 0.0, %v6859
      %v6861 = vpop.f32.mrb[0].mxu0
      %6862 = vmatprep.mubr.f32.mxu0 0.0
      %6863 = vmatmul.mubr.f32.gmra.mrb[0].mxu0 %v6660
      %v6864 = vpop.f32.mrb[0].mxu0
      %v6865 = vadd.f32 0.0, %v6864
      %v6866 = vpop.f32.mrb[0].mxu0
      %6867 = vmatprep.mubr.f32.mxu0 0.0
      %6868 = vmatmul.mubr.f32.gmra.mrb[0].mxu0 %v6663
      %v6869 = vpop.f32.mrb[0].mxu0
      %v6870 = vadd.f32 0.0, %v6869
      %v6871 = vpop.f32.mrb[0].mxu0
      %6872 = vmatprep.mubr.f32.mxu0 0.0
      %6873 = vmatmul.mubr.f32.gmra.mrb[0].mxu0 %v6666
      %v6874 = vpop.f32.mrb[0].mxu0
      %v6875 = vadd.f32 0.0, %v6874
      %v6876 = vpop.f32.mrb[0].mxu0
      %6877 = vmatprep.mubr.f32.mxu0 0.0
      %6878 = vmatmul.mubr.f32.gmra.mrb[0].mxu0 %v6669
      %v6879 = vpop.f32.mrb[0].mxu0
      %v6880 = vadd.f32 0.0, %v6879
      %v6881 = vpop.f32.mrb[0].mxu0
      %6882 = vmatprep.mubr.f32.mxu0 0.0
      %6883 = vmatmul.mubr.f32.gmra.mrb[0].mxu0 %v6672
      %v6884 = vpop.f32.mrb[0].mxu0
      %v6885 = vadd.f32 0.0, %v6884
      %v6886 = vpop.f32.mrb[0].mxu0
      %6887 = vmatprep.mubr.f32.mxu0 0.0
      %6888 = vmatmul.mubr.f32.gmra.mrb[0].mxu0 %v6675
      %v6889 = vpop.f32.mrb[0].mxu0
      %v6890 = vadd.f32 0.0, %v6889
      %v6891 = vpop.f32.mrb[0].mxu0
      %6892 = vmatprep.mubr.f32.mxu0 0.0
      %6893 = vmatmul.mubr.f32.gmra.mrb[0].mxu0 %v6678
      %v6894 = vpop.f32.mrb[0].mxu0
      %v6895 = vadd.f32 0.0, %v6894
      %v6896 = vpop.f32.mrb[0].mxu0
      %6897 = vmatprep.mubr.f32.mxu0 0.0
      %6898 = vmatmul.mubr.f32.gmra.mrb[0].mxu0 %v6681
      %v6899 = vpop.f32.mrb[0].mxu0
      %v6900 = vadd.f32 0.0, %v6899
      %v6901 = vpop.f32.mrb[0].mxu0
      %6902 = vmatprep.mubr.f32.mxu0 0.0
      %6903 = vmatmul.mubr.f32.gmra.mrb[0].mxu0 %v6684
      %v6904 = vpop.f32.mrb[0].mxu0
      %v6905 = vadd.f32 0.0, %v6904
      %v6906 = vpop.f32.mrb[0].mxu0
      %6907 = vmatprep.mubr.f32.mxu0 0.0
      %6908 = vmatmul.mubr.f32.gmra.mrb[0].mxu0 %v6687
      %v6909 = vpop.f32.mrb[0].mxu0
      %v6910 = vadd.f32 0.0, %v6909
      %v6911 = vpop.f32.mrb[0].mxu0
      %6912 = vmatprep.mubr.f32.mxu0 0.0
      %6913 = vmatmul.mubr.f32.gmra.mrb[0].mxu0 %v6690
      %v6914 = vpop.f32.mrb[0].mxu0
      %v6915 = vadd.f32 0.0, %v6914
      %v6916 = vpop.f32.mrb[0].mxu0
      %6917 = vmatprep.mubr.f32.mxu0 0.0
      %6918 = vmatmul.mubr.f32.gmra.mrb[0].mxu0 %v6693
      %v6919 = vpop.f32.mrb[0].mxu0
      %v6920 = vadd.f32 0.0, %v6919
      %v6921 = vpop.f32.mrb[0].mxu0
      %6922 = vdwg.mxu0
      %v6923 = vadd.f32 %v6534, %v6765
      %v6924 = vadd.f32 %v6535, %v6770
      %v6925 = vadd.f32 %v6536, %v6775
      %v6926 = vadd.f32 %v6537, %v6780
      %v6927 = vadd.f32 %v6538, %v6785
      %v6928 = vadd.f32 %v6539, %v6790
      %v6929 = vadd.f32 %v6540, %v6795
      %v6930 = vadd.f32 %v6541, %v6800
      %v6931 = vadd.f32 %v6542, %v6805
      %v6932 = vadd.f32 %v6543, %v6810
      %v6933 = vadd.f32 %v6544, %v6815
      %v6934 = vadd.f32 %v6545, %v6820
      %v6935 = vadd.f32 %v6546, %v6825
      %v6936 = vadd.f32 %v6547, %v6830
      %v6937 = vadd.f32 %v6548, %v6835
      %v6938 = vadd.f32 %v6549, %v6840
      %v6939 = vadd.f32 %v6550, %v6845
      %v6940 = vadd.f32 %v6551, %v6850
      %v6941 = vadd.f32 %v6552, %v6855
      %v6942 = vadd.f32 %v6553, %v6860
      %v6943 = vadd.f32 %v6554, %v6865
      %v6944 = vadd.f32 %v6555, %v6870
      %v6945 = vadd.f32 %v6556, %v6875
      %v6946 = vadd.f32 %v6557, %v6880
      %v6947 = vadd.f32 %v6558, %v6885
      %v6948 = vadd.f32 %v6559, %v6890
      %v6949 = vadd.f32 %v6560, %v6895
      %v6950 = vadd.f32 %v6561, %v6900
      %v6951 = vadd.f32 %v6562, %v6905
      %v6952 = vadd.f32 %v6563, %v6910
      %v6953 = vadd.f32 %v6564, %v6915
      %v6954 = vadd.f32 %v6565, %v6920
      %v6955 = vld [vmem:[%s2636 + $0x9] sm:$0xff]
      %v6956 = vld [vmem:[%s2636 + $0x11] sm:$0xff]
      %v6957 = vld [vmem:[%s2636 + $0x29] sm:$0xff]
      %v6958 = vld [vmem:[%s2636 + $0x31] sm:$0xff]
      %v6959 = vld [vmem:[%s2636 + $0x49] sm:$0xff]
      %v6960 = vld [vmem:[%s2636 + $0x51] sm:$0xff]
      %v6961 = vld [vmem:[%s2636 + $0x69] sm:$0xff]
      %v6962 = vld [vmem:[%s2636 + $0x71] sm:$0xff]
      %v6963 = vld [vmem:[%s2636 + $0x89] sm:$0xff]
      %v6964 = vld [vmem:[%s2636 + $0x91] sm:$0xff]
      %v6965 = vld [vmem:[%s2636 + $0xa9] sm:$0xff]
      %v6966 = vld [vmem:[%s2636 + $0xb1] sm:$0xff]
      %v6967 = vld [vmem:[%s2636 + $0xc9] sm:$0xff]
      %v6968 = vld [vmem:[%s2636 + $0xd1] sm:$0xff]
      %v6969 = vld [vmem:[%s2636 + $0xe9] sm:$0xff]
      %v6970 = vld [vmem:[%s2636 + $0xf1] sm:$0xff]
      %v6971 = vld [vmem:[%s2636 + $0x109] sm:$0xff]
      %v6972 = vld [vmem:[%s2636 + $0x111] sm:$0xff]
      %v6973 = vld [vmem:[%s2636 + $0x129] sm:$0xff]
      %v6974 = vld [vmem:[%s2636 + $0x131] sm:$0xff]
      %v6975 = vld [vmem:[%s2636 + $0x149] sm:$0xff]
      %v6976 = vld [vmem:[%s2636 + $0x151] sm:$0xff]
      %v6977 = vld [vmem:[%s2636 + $0x169] sm:$0xff]
      %v6978 = vld [vmem:[%s2636 + $0x171] sm:$0xff]
      %v6979 = vld [vmem:[%s2636 + $0x189] sm:$0xff]
      %v6980 = vld [vmem:[%s2636 + $0x191] sm:$0xff]
      %v6981 = vld [vmem:[%s2636 + $0x1a9] sm:$0xff]
      %v6982 = vld [vmem:[%s2636 + $0x1b1] sm:$0xff]
      %v6983 = vld [vmem:[%s2636 + $0x1c9] sm:$0xff]
      %v6984 = vld [vmem:[%s2636 + $0x1d1] sm:$0xff]
      %v6985 = vld [vmem:[%s2636 + $0x1e9] sm:$0xff]
      %v6986 = vld [vmem:[%s2636 + $0x1f1] sm:$0xff]
      %v6987 = vld [vmem:[%s3 + $0x20] sm:$0xf]
      %v6989 = vsel %vm257, %v6955, 0
      %v6992 = vsel %vm257, %v6956, 0
      %v6995 = vsel %vm257, %v6957, 0
      %v6998 = vsel %vm257, %v6958, 0
      %v7001 = vsel %vm257, %v6959, 0
      %v7004 = vsel %vm257, %v6960, 0
      %v7007 = vsel %vm257, %v6961, 0
      %v7010 = vsel %vm257, %v6962, 0
      %v7013 = vsel %vm257, %v6963, 0
      %v7016 = vsel %vm257, %v6964, 0
      %v7019 = vsel %vm257, %v6965, 0
      %v7022 = vsel %vm257, %v6966, 0
      %v7025 = vsel %vm257, %v6967, 0
      %v7028 = vsel %vm257, %v6968, 0
      %v7031 = vsel %vm257, %v6969, 0
      %v7034 = vsel %vm257, %v6970, 0
      %v7037 = vsel %vm257, %v6971, 0
      %v7040 = vsel %vm257, %v6972, 0
      %v7043 = vsel %vm257, %v6973, 0
      %v7046 = vsel %vm257, %v6974, 0
      %v7049 = vsel %vm257, %v6975, 0
      %v7052 = vsel %vm257, %v6976, 0
      %v7055 = vsel %vm257, %v6977, 0
      %v7058 = vsel %vm257, %v6978, 0
      %v7061 = vsel %vm257, %v6979, 0
      %v7064 = vsel %vm257, %v6980, 0
      %v7067 = vsel %vm257, %v6981, 0
      %v7070 = vsel %vm257, %v6982, 0
      %v7073 = vsel %vm257, %v6983, 0
      %v7076 = vsel %vm257, %v6984, 0
      %v7079 = vsel %vm257, %v6985, 0
      %v7082 = vsel %vm257, %v6986, 0
      %v7085 = vsel %vm527, %v6987, 0
      %7087 = vmatprep.subr.mxu0 0.0
      %7088 = vmatpush1.msra.mxu0 %v7085
      %7089 = vmatprep.subr.mxu0 0.0
      %7090 = vmatpush1.msra.mxu0 0.0
      %7091 = vmatprep.subr.mxu0 0.0
      %7092 = vmatpush1.msra.mxu0 0.0
      %7093 = vmatprep.subr.mxu0 0.0
      %7094 = vmatpush1.msra.mxu0 0.0
      %7095 = vmatprep.subr.mxu0 0.0
      %7096 = vmatpush1.msra.mxu0 0.0
      %7097 = vmatprep.subr.mxu0 0.0
      %7098 = vmatpush1.msra.mxu0 0.0
      %7099 = vmatprep.subr.mxu0 0.0
      %7100 = vmatpush1.msra.mxu0 0.0
      %7101 = vmatprep.subr.mxu0 0.0
      %7102 = vmatpush1.msra.mxu0 0.0
      %7103 = vmatprep.subr.mxu0 0.0
      %7104 = vmatpush1.msra.mxu0 0.0
      %7105 = vmatprep.subr.mxu0 0.0
      %7106 = vmatpush1.msra.mxu0 0.0
      %7107 = vmatprep.subr.mxu0 0.0
      %7108 = vmatpush1.msra.mxu0 0.0
      %7109 = vmatprep.subr.mxu0 0.0
      %7110 = vmatpush1.msra.mxu0 0.0
      %7111 = vmatprep.subr.mxu0 0.0
      %7112 = vmatpush1.msra.mxu0 0.0
      %7113 = vmatprep.subr.mxu0 0.0
      %7114 = vmatpush1.msra.mxu0 0.0
      %7115 = vmatprep.subr.mxu0 0.0
      %7116 = vmatpush1.msra.mxu0 0.0
      %7117 = vmatprep.subr.mxu0 0.0
      %7118 = vmatpush1.msra.mxu0 0.0
      %7119 = vmatprep.subr.mxu0 0.0
      %7120 = vmatpush1.msra.mxu0 0.0
      %7121 = vmatprep.subr.mxu0 0.0
      %7122 = vmatpush1.msra.mxu0 0.0
      %7123 = vmatprep.subr.mxu0 0.0
      %7124 = vmatpush1.msra.mxu0 0.0
      %7125 = vmatprep.subr.mxu0 0.0
      %7126 = vmatpush1.msra.mxu0 0.0
      %7127 = vmatprep.subr.mxu0 0.0
      %7128 = vmatpush1.msra.mxu0 0.0
      %7129 = vmatprep.subr.mxu0 0.0
      %7130 = vmatpush1.msra.mxu0 0.0
      %7131 = vmatprep.subr.mxu0 0.0
      %7132 = vmatpush1.msra.mxu0 0.0
      %7133 = vmatprep.subr.mxu0 0.0
      %7134 = vmatpush1.msra.mxu0 0.0
      %7135 = vmatprep.subr.mxu0 0.0
      %7136 = vmatpush1.msra.mxu0 0.0
      %7137 = vmatprep.subr.mxu0 0.0
      %7138 = vmatpush1.msra.mxu0 0.0
      %7139 = vmatprep.subr.mxu0 0.0
      %7140 = vmatpush1.msra.mxu0 0.0
      %7141 = vmatprep.subr.mxu0 0.0
      %7142 = vmatpush1.msra.mxu0 0.0
      %7143 = vmatprep.subr.mxu0 0.0
      %7144 = vmatpush1.msra.mxu0 0.0
      %7145 = vmatprep.subr.mxu0 0.0
      %7146 = vmatpush1.msra.mxu0 0.0
      %7147 = vmatprep.subr.mxu0 0.0
      %7148 = vmatpush1.msra.mxu0 0.0
      %7149 = vmatprep.subr.mxu0 0.0
      %7150 = vmatpush1.msra.mxu0 0.0
      %7151 = vmatprep.mubr.f32.mxu0 0.0
      %7152 = vmatmul.mubr.f32.gmra.mrb[0].mxu0 %v6989
      %v7153 = vpop.f32.mrb[0].mxu0
      %v7154 = vadd.f32 0.0, %v7153
      %v7155 = vpop.f32.mrb[0].mxu0
      %7156 = vmatprep.mubr.f32.mxu0 0.0
      %7157 = vmatmul.mubr.f32.gmra.mrb[0].mxu0 %v6992
      %v7158 = vpop.f32.mrb[0].mxu0
      %v7159 = vadd.f32 0.0, %v7158
      %v7160 = vpop.f32.mrb[0].mxu0
      %7161 = vmatprep.mubr.f32.mxu0 0.0
      %7162 = vmatmul.mubr.f32.gmra.mrb[0].mxu0 %v6995
      %v7163 = vpop.f32.mrb[0].mxu0
      %v7164 = vadd.f32 0.0, %v7163
      %v7165 = vpop.f32.mrb[0].mxu0
      %7166 = vmatprep.mubr.f32.mxu0 0.0
      %7167 = vmatmul.mubr.f32.gmra.mrb[0].mxu0 %v6998
      %v7168 = vpop.f32.mrb[0].mxu0
      %v7169 = vadd.f32 0.0, %v7168
      %v7170 = vpop.f32.mrb[0].mxu0
      %7171 = vmatprep.mubr.f32.mxu0 0.0
      %7172 = vmatmul.mubr.f32.gmra.mrb[0].mxu0 %v7001
      %v7173 = vpop.f32.mrb[0].mxu0
      %v7174 = vadd.f32 0.0, %v7173
      %v7175 = vpop.f32.mrb[0].mxu0
      %7176 = vmatprep.mubr.f32.mxu0 0.0
      %7177 = vmatmul.mubr.f32.gmra.mrb[0].mxu0 %v7004
      %v7178 = vpop.f32.mrb[0].mxu0
      %v7179 = vadd.f32 0.0, %v7178
      %v7180 = vpop.f32.mrb[0].mxu0
      %7181 = vmatprep.mubr.f32.mxu0 0.0
      %7182 = vmatmul.mubr.f32.gmra.mrb[0].mxu0 %v7007
      %v7183 = vpop.f32.mrb[0].mxu0
      %v7184 = vadd.f32 0.0, %v7183
      %v7185 = vpop.f32.mrb[0].mxu0
      %7186 = vmatprep.mubr.f32.mxu0 0.0
      %7187 = vmatmul.mubr.f32.gmra.mrb[0].mxu0 %v7010
      %v7188 = vpop.f32.mrb[0].mxu0
      %v7189 = vadd.f32 0.0, %v7188
      %v7190 = vpop.f32.mrb[0].mxu0
      %7191 = vmatprep.mubr.f32.mxu0 0.0
      %7192 = vmatmul.mubr.f32.gmra.mrb[0].mxu0 %v7013
      %v7193 = vpop.f32.mrb[0].mxu0
      %v7194 = vadd.f32 0.0, %v7193
      %v7195 = vpop.f32.mrb[0].mxu0
      %7196 = vmatprep.mubr.f32.mxu0 0.0
      %7197 = vmatmul.mubr.f32.gmra.mrb[0].mxu0 %v7016
      %v7198 = vpop.f32.mrb[0].mxu0
      %v7199 = vadd.f32 0.0, %v7198
      %v7200 = vpop.f32.mrb[0].mxu0
      %7201 = vmatprep.mubr.f32.mxu0 0.0
      %7202 = vmatmul.mubr.f32.gmra.mrb[0].mxu0 %v7019
      %v7203 = vpop.f32.mrb[0].mxu0
      %v7204 = vadd.f32 0.0, %v7203
      %v7205 = vpop.f32.mrb[0].mxu0
      %7206 = vmatprep.mubr.f32.mxu0 0.0
      %7207 = vmatmul.mubr.f32.gmra.mrb[0].mxu0 %v7022
      %v7208 = vpop.f32.mrb[0].mxu0
      %v7209 = vadd.f32 0.0, %v7208
      %v7210 = vpop.f32.mrb[0].mxu0
      %7211 = vmatprep.mubr.f32.mxu0 0.0
      %7212 = vmatmul.mubr.f32.gmra.mrb[0].mxu0 %v7025
      %v7213 = vpop.f32.mrb[0].mxu0
      %v7214 = vadd.f32 0.0, %v7213
      %v7215 = vpop.f32.mrb[0].mxu0
      %7216 = vmatprep.mubr.f32.mxu0 0.0
      %7217 = vmatmul.mubr.f32.gmra.mrb[0].mxu0 %v7028
      %v7218 = vpop.f32.mrb[0].mxu0
      %v7219 = vadd.f32 0.0, %v7218
      %v7220 = vpop.f32.mrb[0].mxu0
      %7221 = vmatprep.mubr.f32.mxu0 0.0
      %7222 = vmatmul.mubr.f32.gmra.mrb[0].mxu0 %v7031
      %v7223 = vpop.f32.mrb[0].mxu0
      %v7224 = vadd.f32 0.0, %v7223
      %v7225 = vpop.f32.mrb[0].mxu0
      %7226 = vmatprep.mubr.f32.mxu0 0.0
      %7227 = vmatmul.mubr.f32.gmra.mrb[0].mxu0 %v7034
      %v7228 = vpop.f32.mrb[0].mxu0
      %v7229 = vadd.f32 0.0, %v7228
      %v7230 = vpop.f32.mrb[0].mxu0
      %7231 = vmatprep.mubr.f32.mxu0 0.0
      %7232 = vmatmul.mubr.f32.gmra.mrb[0].mxu0 %v7037
      %v7233 = vpop.f32.mrb[0].mxu0
      %v7234 = vadd.f32 0.0, %v7233
      %v7235 = vpop.f32.mrb[0].mxu0
      %7236 = vmatprep.mubr.f32.mxu0 0.0
      %7237 = vmatmul.mubr.f32.gmra.mrb[0].mxu0 %v7040
      %v7238 = vpop.f32.mrb[0].mxu0
      %v7239 = vadd.f32 0.0, %v7238
      %v7240 = vpop.f32.mrb[0].mxu0
      %7241 = vmatprep.mubr.f32.mxu0 0.0
      %7242 = vmatmul.mubr.f32.gmra.mrb[0].mxu0 %v7043
      %v7243 = vpop.f32.mrb[0].mxu0
      %v7244 = vadd.f32 0.0, %v7243
      %v7245 = vpop.f32.mrb[0].mxu0
      %7246 = vmatprep.mubr.f32.mxu0 0.0
      %7247 = vmatmul.mubr.f32.gmra.mrb[0].mxu0 %v7046
      %v7248 = vpop.f32.mrb[0].mxu0
      %v7249 = vadd.f32 0.0, %v7248
      %v7250 = vpop.f32.mrb[0].mxu0
      %7251 = vmatprep.mubr.f32.mxu0 0.0
      %7252 = vmatmul.mubr.f32.gmra.mrb[0].mxu0 %v7049
      %v7253 = vpop.f32.mrb[0].mxu0
      %v7254 = vadd.f32 0.0, %v7253
      %v7255 = vpop.f32.mrb[0].mxu0
      %7256 = vmatprep.mubr.f32.mxu0 0.0
      %7257 = vmatmul.mubr.f32.gmra.mrb[0].mxu0 %v7052
      %v7258 = vpop.f32.mrb[0].mxu0
      %v7259 = vadd.f32 0.0, %v7258
      %v7260 = vpop.f32.mrb[0].mxu0
      %7261 = vmatprep.mubr.f32.mxu0 0.0
      %7262 = vmatmul.mubr.f32.gmra.mrb[0].mxu0 %v7055
      %v7263 = vpop.f32.mrb[0].mxu0
      %v7264 = vadd.f32 0.0, %v7263
      %v7265 = vpop.f32.mrb[0].mxu0
      %7266 = vmatprep.mubr.f32.mxu0 0.0
      %7267 = vmatmul.mubr.f32.gmra.mrb[0].mxu0 %v7058
      %v7268 = vpop.f32.mrb[0].mxu0
      %v7269 = vadd.f32 0.0, %v7268
      %v7270 = vpop.f32.mrb[0].mxu0
      %7271 = vmatprep.mubr.f32.mxu0 0.0
      %7272 = vmatmul.mubr.f32.gmra.mrb[0].mxu0 %v7061
      %v7273 = vpop.f32.mrb[0].mxu0
      %v7274 = vadd.f32 0.0, %v7273
      %v7275 = vpop.f32.mrb[0].mxu0
      %7276 = vmatprep.mubr.f32.mxu0 0.0
      %7277 = vmatmul.mubr.f32.gmra.mrb[0].mxu0 %v7064
      %v7278 = vpop.f32.mrb[0].mxu0
      %v7279 = vadd.f32 0.0, %v7278
      %v7280 = vpop.f32.mrb[0].mxu0
      %7281 = vmatprep.mubr.f32.mxu0 0.0
      %7282 = vmatmul.mubr.f32.gmra.mrb[0].mxu0 %v7067
      %v7283 = vpop.f32.mrb[0].mxu0
      %v7284 = vadd.f32 0.0, %v7283
      %v7285 = vpop.f32.mrb[0].mxu0
      %7286 = vmatprep.mubr.f32.mxu0 0.0
      %7287 = vmatmul.mubr.f32.gmra.mrb[0].mxu0 %v7070
      %v7288 = vpop.f32.mrb[0].mxu0
      %v7289 = vadd.f32 0.0, %v7288
      %v7290 = vpop.f32.mrb[0].mxu0
      %7291 = vmatprep.mubr.f32.mxu0 0.0
      %7292 = vmatmul.mubr.f32.gmra.mrb[0].mxu0 %v7073
      %v7293 = vpop.f32.mrb[0].mxu0
      %v7294 = vadd.f32 0.0, %v7293
      %v7295 = vpop.f32.mrb[0].mxu0
      %7296 = vmatprep.mubr.f32.mxu0 0.0
      %7297 = vmatmul.mubr.f32.gmra.mrb[0].mxu0 %v7076
      %v7298 = vpop.f32.mrb[0].mxu0
      %v7299 = vadd.f32 0.0, %v7298
      %v7300 = vpop.f32.mrb[0].mxu0
      %7301 = vmatprep.mubr.f32.mxu0 0.0
      %7302 = vmatmul.mubr.f32.gmra.mrb[0].mxu0 %v7079
      %v7303 = vpop.f32.mrb[0].mxu0
      %v7304 = vadd.f32 0.0, %v7303
      %v7305 = vpop.f32.mrb[0].mxu0
      %7306 = vmatprep.mubr.f32.mxu0 0.0
      %7307 = vmatmul.mubr.f32.gmra.mrb[0].mxu0 %v7082
      %v7308 = vpop.f32.mrb[0].mxu0
      %v7309 = vadd.f32 0.0, %v7308
      %v7310 = vpop.f32.mrb[0].mxu0
      %7311 = vdwg.mxu0
      %v7312 = vadd.f32 %v6923, %v7154
      %v7313 = vadd.f32 %v6924, %v7159
      %v7314 = vadd.f32 %v6925, %v7164
      %v7315 = vadd.f32 %v6926, %v7169
      %v7316 = vadd.f32 %v6927, %v7174
      %v7317 = vadd.f32 %v6928, %v7179
      %v7318 = vadd.f32 %v6929, %v7184
      %v7319 = vadd.f32 %v6930, %v7189
      %v7320 = vadd.f32 %v6931, %v7194
      %v7321 = vadd.f32 %v6932, %v7199
      %v7322 = vadd.f32 %v6933, %v7204
      %v7323 = vadd.f32 %v6934, %v7209
      %v7324 = vadd.f32 %v6935, %v7214
      %v7325 = vadd.f32 %v6936, %v7219
      %v7326 = vadd.f32 %v6937, %v7224
      %v7327 = vadd.f32 %v6938, %v7229
      %v7328 = vadd.f32 %v6939, %v7234
      %v7329 = vadd.f32 %v6940, %v7239
      %v7330 = vadd.f32 %v6941, %v7244
      %v7331 = vadd.f32 %v6942, %v7249
      %v7332 = vadd.f32 %v6943, %v7254
      %v7333 = vadd.f32 %v6944, %v7259
      %v7334 = vadd.f32 %v6945, %v7264
      %v7335 = vadd.f32 %v6946, %v7269
      %v7336 = vadd.f32 %v6947, %v7274
      %v7337 = vadd.f32 %v6948, %v7279
      %v7338 = vadd.f32 %v6949, %v7284
      %v7339 = vadd.f32 %v6950, %v7289
      %v7340 = vadd.f32 %v6951, %v7294
      %v7341 = vadd.f32 %v6952, %v7299
      %v7342 = vadd.f32 %v6953, %v7304
      %v7343 = vadd.f32 %v6954, %v7309
      %v7344 = vld [vmem:[%s4] sm:$0x1]
      %v7346 = vlaneseq
      %v7347 = vshrl.u32 %v7346, 7
      %v7348 = vsub.s32 0, %v7347
      %v7349 = vrot.slane %v7344, %v7348
      %v7351 = vadd.f32 %v7312, %v7349
      %v7352 = vadd.f32 %v7313, %v7349
      %v7353 = vadd.f32 %v7314, %v7349
      %v7354 = vadd.f32 %v7315, %v7349
      %v7355 = vadd.f32 %v7316, %v7349
      %v7356 = vadd.f32 %v7317, %v7349
      %v7357 = vadd.f32 %v7318, %v7349
      %v7358 = vadd.f32 %v7319, %v7349
      %v7359 = vadd.f32 %v7320, %v7349
      %v7360 = vadd.f32 %v7321, %v7349
      %v7361 = vadd.f32 %v7322, %v7349
      %v7362 = vadd.f32 %v7323, %v7349
      %v7363 = vadd.f32 %v7324, %v7349
      %v7364 = vadd.f32 %v7325, %v7349
      %v7365 = vadd.f32 %v7326, %v7349
      %v7366 = vadd.f32 %v7327, %v7349
      %v7367 = vadd.f32 %v7328, %v7349
      %v7368 = vadd.f32 %v7329, %v7349
      %v7369 = vadd.f32 %v7330, %v7349
      %v7370 = vadd.f32 %v7331, %v7349
      %v7371 = vadd.f32 %v7332, %v7349
      %v7372 = vadd.f32 %v7333, %v7349
      %v7373 = vadd.f32 %v7334, %v7349
      %v7374 = vadd.f32 %v7335, %v7349
      %v7375 = vadd.f32 %v7336, %v7349
      %v7376 = vadd.f32 %v7337, %v7349
      %v7377 = vadd.f32 %v7338, %v7349
      %v7378 = vadd.f32 %v7339, %v7349
      %v7379 = vadd.f32 %v7340, %v7349
      %v7380 = vadd.f32 %v7341, %v7349
      %v7381 = vadd.f32 %v7342, %v7349
      %v7382 = vadd.f32 %v7343, %v7349
      %v7383 = vadd.f32 %v225, %v7351
      %v7384 = vadd.f32 %v226, %v7352
      %v7385 = vadd.f32 %v227, %v7353
      %v7386 = vadd.f32 %v228, %v7354
      %v7387 = vadd.f32 %v229, %v7355
      %v7388 = vadd.f32 %v230, %v7356
      %v7389 = vadd.f32 %v231, %v7357
      %v7390 = vadd.f32 %v232, %v7358
      %v7391 = vadd.f32 %v233, %v7359
      %v7392 = vadd.f32 %v234, %v7360
      %v7393 = vadd.f32 %v235, %v7361
      %v7394 = vadd.f32 %v236, %v7362
      %v7395 = vadd.f32 %v237, %v7363
      %v7396 = vadd.f32 %v238, %v7364
      %v7397 = vadd.f32 %v239, %v7365
      %v7398 = vadd.f32 %v240, %v7366
      %v7399 = vadd.f32 %v241, %v7367
      %v7400 = vadd.f32 %v242, %v7368
      %v7401 = vadd.f32 %v243, %v7369
      %v7402 = vadd.f32 %v244, %v7370
      %v7403 = vadd.f32 %v245, %v7371
      %v7404 = vadd.f32 %v246, %v7372
      %v7405 = vadd.f32 %v247, %v7373
      %v7406 = vadd.f32 %v248, %v7374
      %v7407 = vadd.f32 %v249, %v7375
      %v7408 = vadd.f32 %v250, %v7376
      %v7409 = vadd.f32 %v251, %v7377
      %v7410 = vadd.f32 %v252, %v7378
      %v7411 = vadd.f32 %v253, %v7379
      %v7412 = vadd.f32 %v254, %v7380
      %v7413 = vadd.f32 %v255, %v7381
      %v7414 = vadd.f32 %v256, %v7382
      %7415 = vst.msk [vmem:[%s224] sm:$0xff] %vm257, %v7383
      %7416 = vst.msk [vmem:[%s224 + $0x8] sm:$0xff] %vm257, %v7384
      %7417 = vst.msk [vmem:[%s224 + $0x10] sm:$0xff] %vm257, %v7385
      %7418 = vst.msk [vmem:[%s224 + $0x18] sm:$0xff] %vm257, %v7386
      %7419 = vst.msk [vmem:[%s224 + $0x20] sm:$0xff] %vm257, %v7387
      %7420 = vst.msk [vmem:[%s224 + $0x28] sm:$0xff] %vm257, %v7388
      %7421 = vst.msk [vmem:[%s224 + $0x30] sm:$0xff] %vm257, %v7389
      %7422 = vst.msk [vmem:[%s224 + $0x38] sm:$0xff] %vm257, %v7390
      %7423 = vst.msk [vmem:[%s224 + $0x40] sm:$0xff] %vm257, %v7391
      %7424 = vst.msk [vmem:[%s224 + $0x48] sm:$0xff] %vm257, %v7392
      %7425 = vst.msk [vmem:[%s224 + $0x50] sm:$0xff] %vm257, %v7393
      %7426 = vst.msk [vmem:[%s224 + $0x58] sm:$0xff] %vm257, %v7394
      %7427 = vst.msk [vmem:[%s224 + $0x60] sm:$0xff] %vm257, %v7395
      %7428 = vst.msk [vmem:[%s224 + $0x68] sm:$0xff] %vm257, %v7396
      %7429 = vst.msk [vmem:[%s224 + $0x70] sm:$0xff] %vm257, %v7397
      %7430 = vst.msk [vmem:[%s224 + $0x78] sm:$0xff] %vm257, %v7398
      %7431 = vst.msk [vmem:[%s224 + $0x80] sm:$0xff] %vm257, %v7399
      %7432 = vst.msk [vmem:[%s224 + $0x88] sm:$0xff] %vm257, %v7400
      %7433 = vst.msk [vmem:[%s224 + $0x90] sm:$0xff] %vm257, %v7401
      %7434 = vst.msk [vmem:[%s224 + $0x98] sm:$0xff] %vm257, %v7402
      %7435 = vst.msk [vmem:[%s224 + $0xa0] sm:$0xff] %vm257, %v7403
      %7436 = vst.msk [vmem:[%s224 + $0xa8] sm:$0xff] %vm257, %v7404
      %7437 = vst.msk [vmem:[%s224 + $0xb0] sm:$0xff] %vm257, %v7405
      %7438 = vst.msk [vmem:[%s224 + $0xb8] sm:$0xff] %vm257, %v7406
      %7439 = vst.msk [vmem:[%s224 + $0xc0] sm:$0xff] %vm257, %v7407
      %7440 = vst.msk [vmem:[%s224 + $0xc8] sm:$0xff] %vm257, %v7408
      %7441 = vst.msk [vmem:[%s224 + $0xd0] sm:$0xff] %vm257, %v7409
      %7442 = vst.msk [vmem:[%s224 + $0xd8] sm:$0xff] %vm257, %v7410
      %7443 = vst.msk [vmem:[%s224 + $0xe0] sm:$0xff] %vm257, %v7411
      %7444 = vst.msk [vmem:[%s224 + $0xe8] sm:$0xff] %vm257, %v7412
      %7445 = vst.msk [vmem:[%s224 + $0xf0] sm:$0xff] %vm257, %v7413
      %7446 = vst.msk [vmem:[%s224 + $0xf8] sm:$0xff] %vm257, %v7414
      %p7447 = scmp.lt.s32.totalorder %s16, 1
      %s7448 = scalar_select %p7447, %s16, 1
      %s7449 = smul.addr %s7448, 32
      %s7450 = smul.addr %s7449, 8
      %s7451 = scalar_lea.vmem %s5, %s7450
      // Predicated region
      $region41: #{tpu_custom_call.1} parent=39 // pred_check
        %p7452 = pneg %p144
      $region42: #{tpu_custom_call.1} parent=39 // pred_check_branch
        %7454 = sbr.rel (%p7452) target = $region44
      $region43: #{tpu_custom_call.1} parent=39 // pred_region
        _
      $region44: #{tpu_custom_call.1} parent=39 // pred_fallthru
        _
    $region40: #{tpu_custom_call.1} parent=5 // pred_fallthru
      _
    %p7455 = scmp.le.s32.totalorder 2, %s11
    // Predicated region
    $region45: #{tpu_custom_call.1} parent=5 // pred_check
      %p7456 = pneg %p7455
    $region46: #{tpu_custom_call.1} parent=5 // pred_check_branch
      %7458 = sbr.rel (%p7456) target = $region48
    $region47: #{tpu_custom_call.1} parent=5 // pred_region
      %s7459 = ssub.s32 %s11, 2
      // Predicated region
      $region49: #{tpu_custom_call.1} parent=47 // pred_check
        %p7460 = pneg %p150
      $region50: #{tpu_custom_call.1} parent=47 // pred_check_branch
        %7462 = sbr.rel (%p7460) target = $region52
      $region51: #{tpu_custom_call.1} parent=47 // pred_region
        %p7463 = scmp.lt.s32.totalorder %s17, 1
        %s7464 = scalar_select %p7463, %s17, 1
        %s7465 = smul.addr %s7464, 32
        %s7466 = smul.addr %s7465, 8
        %s7467 = scalar_lea.vmem %s5, %s7466
      $region52: #{tpu_custom_call.1} parent=47 // pred_fallthru
        _
    $region48: #{tpu_custom_call.1} parent=5 // pred_fallthru
      _
  $region6: #{tpu_custom_call.1} parent=0 // loop_footer
    %s15 = sadd.s32 1, %s11
  $region7: #{tpu_custom_call.1} parent=0 // loop_footer_branch
    %10 = sbr.rel target = $region3
  $region8: #{tpu_custom_call.1} parent=0 // loop_exit
    _

</llo_original>
